<compile_context>
chip_gen: v6e
topology: v6e:2x2x1
jax: 0.10.0
libtpu: 0.0.40
codegen_flags: <defaults>
</compile_context>

<pallas_src>
import jax
import jax.numpy as jnp
from jax import lax
from jax.experimental import pallas as pl
from jax.experimental.pallas import tpu as pltpu


# ------------------------------ fused forward kernel --------------------------------
def _fused_forward_kernel(x_ref, w1_ref, b1_ref, w2_ref, b2_ref, w3_ref, b3_ref,
                          fw1_ref, fb1_ref, fw2_ref, fb2_ref, o_ref,
                          pad1_ref, pad2_ref, pad3_ref):

    def zero_halo(pad_ref):
        # Zero only the 1-element border; the interior is overwritten next.
        hp, wp, c = pad_ref.shape
        zrow = jnp.zeros((1, wp, c), pad_ref.dtype)
        pad_ref[0:1, :, :] = zrow
        pad_ref[hp - 1:hp, :, :] = zrow
        zcol = jnp.zeros((hp, 1, c), pad_ref.dtype)
        pad_ref[:, 0:1, :] = zcol
        pad_ref[:, wp - 1:wp, :] = zcol

    def conv3x3_relu(pad_ref, wt_ref, b_ref):
        # 9 tap matmuls accumulated in a single f32 value (no patch matrix):
        # bf16 operands straight out of the bf16 pad buffer, f32 accumulation.
        hp, wp, cin = pad_ref.shape
        h, w = hp - 2, wp - 2
        m = h * w
        acc = None
        for kh in range(3):
            for kw in range(3):
                tap = pad_ref[kh:kh + h, kw:kw + w, :].reshape(m, cin)
                part = jnp.dot(tap, wt_ref[kh * 3 + kw],
                               preferred_element_type=jnp.float32)
                acc = part if acc is None else acc + part
        return jnp.maximum(acc + b_ref[...], 0.0)          # (m, cout) f32

    def maxpool2x2(y, h, w):
        # 2x2 / stride-2 max pool on the flat (h*w, c) activation, in VMEM.
        c = y.shape[-1]
        ho, wo = h // 2, w // 2
        y = y.reshape(h * wo, 2, c)
        y = jnp.maximum(y[:, 0, :], y[:, 1, :])            # pool along W
        y = y.reshape(ho, 2, wo, c)
        y = jnp.maximum(y[:, 0, :, :], y[:, 1, :, :])      # pool along H
        return y.reshape(ho * wo, c)

    h1, w1, _ = x_ref.shape                                # (16, 16, 8) bf16

    # ---- stage 1: conv1 (3(padded to 8) -> 64) + ReLU + pool -------------
    zero_halo(pad1_ref)
    pad1_ref[1:h1 + 1, 1:w1 + 1, :] = x_ref[...]
    y = conv3x3_relu(pad1_ref, w1_ref, b1_ref)             # (256, 64) f32
    y = maxpool2x2(y, h1, w1)                              # (64, 64)
    h2, w2 = h1 // 2, w1 // 2

    # ---- stage 2: conv2 (64 -> 128) + ReLU + pool ------------------------
    zero_halo(pad2_ref)
    pad2_ref[1:h2 + 1, 1:w2 + 1, :] = (
        y.reshape(h2, w2, y.shape[-1]).astype(pad2_ref.dtype))
    y = conv3x3_relu(pad2_ref, w2_ref, b2_ref)             # (64, 128)
    y = maxpool2x2(y, h2, w2)                              # (16, 128)
    h3, w3 = h2 // 2, w2 // 2

    # ---- stage 3: conv3 (128 -> 128) + ReLU + pool -----------------------
    zero_halo(pad3_ref)
    pad3_ref[1:h3 + 1, 1:w3 + 1, :] = (
        y.reshape(h3, w3, y.shape[-1]).astype(pad3_ref.dtype))
    y = conv3x3_relu(pad3_ref, w3_ref, b3_ref)             # (16, 128)
    y = maxpool2x2(y, h3, w3)                              # (4, 128) f32

    # ---- EmoxelLayer surrogate -------------------------------------------
    # F.normalize(x, p=2, dim=(2,3)) == per-channel spatial L2 normalization;
    # emoxelify consumes batch 0, channels 0:3.
    # TODO(synk): percentile thresholding, EmoxelConvert.toUnicode, the
    # emojiSenseMap.json lookup and the HuggingFace sentiment pipeline have no
    # Pallas equivalent; a deterministic surrogate scalar (mean of the
    # normalized first-3-channel map) stands in for the emoji-sentiment score.
    x03 = y[:, 0:3]                                        # (4, 3) spatial x chan
    ss = jnp.sum(x03 * x03, axis=0, keepdims=True)         # (1, 3)
    xn = x03 * lax.rsqrt(jnp.maximum(ss, 1e-24))           # rsqrt -> EUP slot
    s = jnp.mean(xn)

    # ---- head: scalar_fc (1->256) + ReLU ; dropout == identity ; fc2 -----
    hvec = jnp.maximum(s * fw1_ref[...] + fb1_ref[...], 0.0)        # (1, 256)
    o_ref[...] = (jnp.dot(hvec, fw2_ref[...],
                          preferred_element_type=jnp.float32) + fb2_ref[...])


# --------------------------------- wrappers ------------------------------------------
def prepare_params(params):
    """One-time (hoisted) weight prep: HWIO -> per-tap (9, cin, cout) bf16."""
    def conv_taps(w_hwio, pad_cin_to=None):
        kh, kw, cin, cout = w_hwio.shape
        if pad_cin_to is not None and pad_cin_to > cin:
            w_hwio = jnp.pad(w_hwio,
                             ((0, 0), (0, 0), (0, pad_cin_to - cin), (0, 0)))
            cin = pad_cin_to
        return w_hwio.reshape(kh * kw, cin, cout).astype(jnp.bfloat16)

    return dict(
        w1t=conv_taps(params["w1"], pad_cin_to=8),
        b1=params["b1"].reshape(1, -1).astype(jnp.float32),
        w2t=conv_taps(params["w2"]),
        b2=params["b2"].reshape(1, -1).astype(jnp.float32),
        w3t=conv_taps(params["w3"]),
        b3=params["b3"].reshape(1, -1).astype(jnp.float32),
        fw1=params["fcw1"].astype(jnp.float32),
        fb1=params["fcb1"].astype(jnp.float32),
        fw2=params["fcw2"].astype(jnp.float32),
        fb2=params["fcb2"].astype(jnp.float32),
    )


def custom_model_forward(x_nchw, prep):
    # The reference model's (1, num_classes) output depends only on batch
    # element 0 (emoxelify indexes [0]), so drop the dead batch elements.
    x0 = jnp.transpose(x_nchw[0], (1, 2, 0))               # CHW -> HWC (16,16,3)
    h, w, cin = x0.shape
    cin_pad = prep["w1t"].shape[1]
    if cin_pad > cin:
        x0 = jnp.pad(x0, ((0, 0), (0, 0), (0, cin_pad - cin)))
    x0 = x0.astype(jnp.bfloat16)

    c1 = prep["w1t"].shape[-1]      # 64
    c2 = prep["w2t"].shape[-1]      # 128
    nc = prep["fw2"].shape[-1]      # num_classes
    h2, w2 = h // 2, w // 2
    h3, w3 = h2 // 2, w2 // 2

    vmem = [pl.BlockSpec(memory_space=pltpu.MemorySpace.VMEM) for _ in range(11)]
    return pl.pallas_call(
        _fused_forward_kernel,
        out_shape=jax.ShapeDtypeStruct((1, nc), jnp.float32),
        in_specs=vmem,
        out_specs=pl.BlockSpec(memory_space=pltpu.MemorySpace.VMEM),
        scratch_shapes=[
            pltpu.VMEM((h + 2, w + 2, cin_pad), jnp.bfloat16),    # pad1 (18,18,8)
            pltpu.VMEM((h2 + 2, w2 + 2, c1), jnp.bfloat16),       # pad2 (10,10,64)
            pltpu.VMEM((h3 + 2, w3 + 2, c2), jnp.bfloat16),       # pad3 (6,6,128)
        ],
    )(x0, prep["w1t"], prep["b1"], prep["w2t"], prep["b2"],
      prep["w3t"], prep["b3"], prep["fw1"], prep["fb1"],
      prep["fw2"], prep["fb2"])


def init_params(key, num_classes=4):
    ks = jax.random.split(key, 8)

    def nrm(k, shape, scale=0.05):
        return (scale * jax.random.normal(k, shape)).astype(jnp.float32)

    return dict(
        w1=nrm(ks[0], (3, 3, 3, 64)),        b1=nrm(ks[1], (64,)),
        w2=nrm(ks[2], (3, 3, 64, 128)),      b2=nrm(ks[3], (128,)),
        w3=nrm(ks[4], (3, 3, 128, 128)),     b3=nrm(ks[5], (128,)),
        fcw1=nrm(ks[6], (1, 256)),           fcb1=jnp.zeros((1, 256), jnp.float32),
        fcw2=nrm(ks[7], (256, num_classes)),
        fcb2=jnp.zeros((1, num_classes), jnp.float32),
    )


if __name__ == "__main__":
    key = jax.random.PRNGKey(0)
    kx, kp = jax.random.split(key)
    x = jax.random.normal(kx, (2, 3, 16, 16), jnp.float32)   # NCHW, like the PyTorch module
    params = init_params(kp, num_classes=4)
    prep = prepare_params(params)          # one-time weight prep, outside the jitted forward

    fwd = jax.jit(custom_model_forward)
    out = jax.block_until_ready(fwd(x, prep))
    assert out.shape == (1, 4) and out.dtype == jnp.float32
    assert bool(jnp.all(jnp.isfinite(out)))
    print("KERNEL_OK")
</pallas_src>

<mosaic_0001>
module attributes {stable_mosaic.version = 11 : i64} {
  func.func @_fused_forward_kernel(%arg0: memref<16x16x8xbf16, #tpu.memory_space<vmem>>, %arg1: memref<9x8x64xbf16, #tpu.memory_space<vmem>>, %arg2: memref<1x64xf32, #tpu.memory_space<vmem>>, %arg3: memref<9x64x128xbf16, #tpu.memory_space<vmem>>, %arg4: memref<1x128xf32, #tpu.memory_space<vmem>>, %arg5: memref<9x128x128xbf16, #tpu.memory_space<vmem>>, %arg6: memref<1x128xf32, #tpu.memory_space<vmem>>, %arg7: memref<1x256xf32, #tpu.memory_space<vmem>>, %arg8: memref<1x256xf32, #tpu.memory_space<vmem>>, %arg9: memref<256x4xf32, #tpu.memory_space<vmem>>, %arg10: memref<1x4xf32, #tpu.memory_space<vmem>>, %arg11: memref<1x4xf32, #tpu.memory_space<vmem>>, %arg12: memref<18x18x8xbf16, #tpu.memory_space<vmem>>, %arg13: memref<10x10x64xbf16, #tpu.memory_space<vmem>>, %arg14: memref<6x6x128xbf16, #tpu.memory_space<vmem>>) attributes {dimension_semantics = [], scalar_prefetch = 0 : i64, scratch_operands = 3 : i64, tpu.core_type = #tpu.core_type<tc>} {
    %cst = arith.constant 0.000000e+00 : bf16
    %0 = vector.broadcast %cst : bf16 to vector<1x18x8xbf16>
    %c0 = arith.constant 0 : index
    %c0_0 = arith.constant 0 : index
    %c0_1 = arith.constant 0 : index
    %1 = vector.load %arg12[%c0, %c0_0, %c0_1] : memref<18x18x8xbf16, #tpu.memory_space<vmem>>, vector<1x18x8xbf16>
    tpu.vector_store %arg12[%c0, %c0_0, %c0_1], %0 {strides = array<i32>} : memref<18x18x8xbf16, #tpu.memory_space<vmem>>, vector<1x18x8xbf16>,
    %c17 = arith.constant 17 : index
    %c0_2 = arith.constant 0 : index
    %c0_3 = arith.constant 0 : index
    %2 = vector.load %arg12[%c17, %c0_2, %c0_3] : memref<18x18x8xbf16, #tpu.memory_space<vmem>>, vector<1x18x8xbf16>
    tpu.vector_store %arg12[%c17, %c0_2, %c0_3], %0 {strides = array<i32>} : memref<18x18x8xbf16, #tpu.memory_space<vmem>>, vector<1x18x8xbf16>,
    %cst_4 = arith.constant 0.000000e+00 : bf16
    %3 = vector.broadcast %cst_4 : bf16 to vector<18x1x8xbf16>
    %c0_5 = arith.constant 0 : index
    %c0_6 = arith.constant 0 : index
    %c0_7 = arith.constant 0 : index
    %4 = vector.load %arg12[%c0_5, %c0_6, %c0_7] : memref<18x18x8xbf16, #tpu.memory_space<vmem>>, vector<18x1x8xbf16>
    tpu.vector_store %arg12[%c0_5, %c0_6, %c0_7], %3 {strides = array<i32>} : memref<18x18x8xbf16, #tpu.memory_space<vmem>>, vector<18x1x8xbf16>,
    %c0_8 = arith.constant 0 : index
    %c17_9 = arith.constant 17 : index
    %c0_10 = arith.constant 0 : index
    %5 = vector.load %arg12[%c0_8, %c17_9, %c0_10] : memref<18x18x8xbf16, #tpu.memory_space<vmem>>, vector<18x1x8xbf16>
    tpu.vector_store %arg12[%c0_8, %c17_9, %c0_10], %3 {strides = array<i32>} : memref<18x18x8xbf16, #tpu.memory_space<vmem>>, vector<18x1x8xbf16>,
    %c0_11 = arith.constant 0 : index
    %c0_12 = arith.constant 0 : index
    %c0_13 = arith.constant 0 : index
    %6 = vector.load %arg0[%c0_11, %c0_12, %c0_13] : memref<16x16x8xbf16, #tpu.memory_space<vmem>>, vector<16x16x8xbf16>
    %c1 = arith.constant 1 : index
    %c1_14 = arith.constant 1 : index
    %c0_15 = arith.constant 0 : index
    %7 = vector.load %arg12[%c1, %c1_14, %c0_15] : memref<18x18x8xbf16, #tpu.memory_space<vmem>>, vector<16x16x8xbf16>
    tpu.vector_store %arg12[%c1, %c1_14, %c0_15], %6 {strides = array<i32>} : memref<18x18x8xbf16, #tpu.memory_space<vmem>>, vector<16x16x8xbf16>,
    %c0_16 = arith.constant 0 : index
    %c0_17 = arith.constant 0 : index
    %c0_18 = arith.constant 0 : index
    %8 = vector.load %arg12[%c0_16, %c0_17, %c0_18] : memref<18x18x8xbf16, #tpu.memory_space<vmem>>, vector<16x16x8xbf16>
    %9 = vector.shape_cast %8 : vector<16x16x8xbf16> to vector<256x8xbf16>
    %c0_19 = arith.constant 0 : index
    %c0_20 = arith.constant 0 : index
    %c0_21 = arith.constant 0 : index
    %10 = vector.load %arg1[%c0_19, %c0_20, %c0_21] : memref<9x8x64xbf16, #tpu.memory_space<vmem>>, vector<1x8x64xbf16>
    %11 = vector.shape_cast %10 : vector<1x8x64xbf16> to vector<8x64xbf16>
    %cst_22 = arith.constant dense<0.000000e+00> : vector<256x64xf32>
    %12 = tpu.matmul %9, %11, %cst_22 {dimension_numbers = #tpu.dot_dimension_numbers<[1], [0], [0], [1], [0, 0, 1, 1], [], []>} : vector<256x8xbf16>, vector<8x64xbf16>, vector<256x64xf32> -> vector<256x64xf32>
    %c0_23 = arith.constant 0 : index
    %c1_24 = arith.constant 1 : index
    %c0_25 = arith.constant 0 : index
    %13 = vector.load %arg12[%c0_23, %c1_24, %c0_25] : memref<18x18x8xbf16, #tpu.memory_space<vmem>>, vector<16x16x8xbf16>
    %14 = vector.shape_cast %13 : vector<16x16x8xbf16> to vector<256x8xbf16>
    %c1_26 = arith.constant 1 : index
    %c0_27 = arith.constant 0 : index
    %c0_28 = arith.constant 0 : index
    %15 = vector.load %arg1[%c1_26, %c0_27, %c0_28] : memref<9x8x64xbf16, #tpu.memory_space<vmem>>, vector<1x8x64xbf16>
    %16 = vector.shape_cast %15 : vector<1x8x64xbf16> to vector<8x64xbf16>
    %cst_29 = arith.constant dense<0.000000e+00> : vector<256x64xf32>
    %17 = tpu.matmul %14, %16, %cst_29 {dimension_numbers = #tpu.dot_dimension_numbers<[1], [0], [0], [1], [0, 0, 1, 1], [], []>} : vector<256x8xbf16>, vector<8x64xbf16>, vector<256x64xf32> -> vector<256x64xf32>
    %18 = arith.addf %12, %17 : vector<256x64xf32>
    %c0_30 = arith.constant 0 : index
    %c2 = arith.constant 2 : index
    %c0_31 = arith.constant 0 : index
    %19 = vector.load %arg12[%c0_30, %c2, %c0_31] : memref<18x18x8xbf16, #tpu.memory_space<vmem>>, vector<16x16x8xbf16>
    %20 = vector.shape_cast %19 : vector<16x16x8xbf16> to vector<256x8xbf16>
    %c2_32 = arith.constant 2 : index
    %c0_33 = arith.constant 0 : index
    %c0_34 = arith.constant 0 : index
    %21 = vector.load %arg1[%c2_32, %c0_33, %c0_34] : memref<9x8x64xbf16, #tpu.memory_space<vmem>>, vector<1x8x64xbf16>
    %22 = vector.shape_cast %21 : vector<1x8x64xbf16> to vector<8x64xbf16>
    %cst_35 = arith.constant dense<0.000000e+00> : vector<256x64xf32>
    %23 = tpu.matmul %20, %22, %cst_35 {dimension_numbers = #tpu.dot_dimension_numbers<[1], [0], [0], [1], [0, 0, 1, 1], [], []>} : vector<256x8xbf16>, vector<8x64xbf16>, vector<256x64xf32> -> vector<256x64xf32>
    %24 = arith.addf %18, %23 : vector<256x64xf32>
    %c1_36 = arith.constant 1 : index
    %c0_37 = arith.constant 0 : index
    %c0_38 = arith.constant 0 : index
    %25 = vector.load %arg12[%c1_36, %c0_37, %c0_38] : memref<18x18x8xbf16, #tpu.memory_space<vmem>>, vector<16x16x8xbf16>
    %26 = vector.shape_cast %25 : vector<16x16x8xbf16> to vector<256x8xbf16>
    %c3 = arith.constant 3 : index
    %c0_39 = arith.constant 0 : index
    %c0_40 = arith.constant 0 : index
    %27 = vector.load %arg1[%c3, %c0_39, %c0_40] : memref<9x8x64xbf16, #tpu.memory_space<vmem>>, vector<1x8x64xbf16>
    %28 = vector.shape_cast %27 : vector<1x8x64xbf16> to vector<8x64xbf16>
    %cst_41 = arith.constant dense<0.000000e+00> : vector<256x64xf32>
    %29 = tpu.matmul %26, %28, %cst_41 {dimension_numbers = #tpu.dot_dimension_numbers<[1], [0], [0], [1], [0, 0, 1, 1], [], []>} : vector<256x8xbf16>, vector<8x64xbf16>, vector<256x64xf32> -> vector<256x64xf32>
    %30 = arith.addf %24, %29 : vector<256x64xf32>
    %c1_42 = arith.constant 1 : index
    %c1_43 = arith.constant 1 : index
    %c0_44 = arith.constant 0 : index
    %31 = vector.load %arg12[%c1_42, %c1_43, %c0_44] : memref<18x18x8xbf16, #tpu.memory_space<vmem>>, vector<16x16x8xbf16>
    %32 = vector.shape_cast %31 : vector<16x16x8xbf16> to vector<256x8xbf16>
    %c4 = arith.constant 4 : index
    %c0_45 = arith.constant 0 : index
    %c0_46 = arith.constant 0 : index
    %33 = vector.load %arg1[%c4, %c0_45, %c0_46] : memref<9x8x64xbf16, #tpu.memory_space<vmem>>, vector<1x8x64xbf16>
    %34 = vector.shape_cast %33 : vector<1x8x64xbf16> to vector<8x64xbf16>
    %cst_47 = arith.constant dense<0.000000e+00> : vector<256x64xf32>
    %35 = tpu.matmul %32, %34, %cst_47 {dimension_numbers = #tpu.dot_dimension_numbers<[1], [0], [0], [1], [0, 0, 1, 1], [], []>} : vector<256x8xbf16>, vector<8x64xbf16>, vector<256x64xf32> -> vector<256x64xf32>
    %36 = arith.addf %30, %35 : vector<256x64xf32>
    %c1_48 = arith.constant 1 : index
    %c2_49 = arith.constant 2 : index
    %c0_50 = arith.constant 0 : index
    %37 = vector.load %arg12[%c1_48, %c2_49, %c0_50] : memref<18x18x8xbf16, #tpu.memory_space<vmem>>, vector<16x16x8xbf16>
    %38 = vector.shape_cast %37 : vector<16x16x8xbf16> to vector<256x8xbf16>
    %c5 = arith.constant 5 : index
    %c0_51 = arith.constant 0 : index
    %c0_52 = arith.constant 0 : index
    %39 = vector.load %arg1[%c5, %c0_51, %c0_52] : memref<9x8x64xbf16, #tpu.memory_space<vmem>>, vector<1x8x64xbf16>
    %40 = vector.shape_cast %39 : vector<1x8x64xbf16> to vector<8x64xbf16>
    %cst_53 = arith.constant dense<0.000000e+00> : vector<256x64xf32>
    %41 = tpu.matmul %38, %40, %cst_53 {dimension_numbers = #tpu.dot_dimension_numbers<[1], [0], [0], [1], [0, 0, 1, 1], [], []>} : vector<256x8xbf16>, vector<8x64xbf16>, vector<256x64xf32> -> vector<256x64xf32>
    %42 = arith.addf %36, %41 : vector<256x64xf32>
    %c2_54 = arith.constant 2 : index
    %c0_55 = arith.constant 0 : index
    %c0_56 = arith.constant 0 : index
    %43 = vector.load %arg12[%c2_54, %c0_55, %c0_56] : memref<18x18x8xbf16, #tpu.memory_space<vmem>>, vector<16x16x8xbf16>
    %44 = vector.shape_cast %43 : vector<16x16x8xbf16> to vector<256x8xbf16>
    %c6 = arith.constant 6 : index
    %c0_57 = arith.constant 0 : index
    %c0_58 = arith.constant 0 : index
    %45 = vector.load %arg1[%c6, %c0_57, %c0_58] : memref<9x8x64xbf16, #tpu.memory_space<vmem>>, vector<1x8x64xbf16>
    %46 = vector.shape_cast %45 : vector<1x8x64xbf16> to vector<8x64xbf16>
    %cst_59 = arith.constant dense<0.000000e+00> : vector<256x64xf32>
    %47 = tpu.matmul %44, %46, %cst_59 {dimension_numbers = #tpu.dot_dimension_numbers<[1], [0], [0], [1], [0, 0, 1, 1], [], []>} : vector<256x8xbf16>, vector<8x64xbf16>, vector<256x64xf32> -> vector<256x64xf32>
    %48 = arith.addf %42, %47 : vector<256x64xf32>
    %c2_60 = arith.constant 2 : index
    %c1_61 = arith.constant 1 : index
    %c0_62 = arith.constant 0 : index
    %49 = vector.load %arg12[%c2_60, %c1_61, %c0_62] : memref<18x18x8xbf16, #tpu.memory_space<vmem>>, vector<16x16x8xbf16>
    %50 = vector.shape_cast %49 : vector<16x16x8xbf16> to vector<256x8xbf16>
    %c7 = arith.constant 7 : index
    %c0_63 = arith.constant 0 : index
    %c0_64 = arith.constant 0 : index
    %51 = vector.load %arg1[%c7, %c0_63, %c0_64] : memref<9x8x64xbf16, #tpu.memory_space<vmem>>, vector<1x8x64xbf16>
    %52 = vector.shape_cast %51 : vector<1x8x64xbf16> to vector<8x64xbf16>
    %cst_65 = arith.constant dense<0.000000e+00> : vector<256x64xf32>
    %53 = tpu.matmul %50, %52, %cst_65 {dimension_numbers = #tpu.dot_dimension_numbers<[1], [0], [0], [1], [0, 0, 1, 1], [], []>} : vector<256x8xbf16>, vector<8x64xbf16>, vector<256x64xf32> -> vector<256x64xf32>
    %54 = arith.addf %48, %53 : vector<256x64xf32>
    %c2_66 = arith.constant 2 : index
    %c2_67 = arith.constant 2 : index
    %c0_68 = arith.constant 0 : index
    %55 = vector.load %arg12[%c2_66, %c2_67, %c0_68] : memref<18x18x8xbf16, #tpu.memory_space<vmem>>, vector<16x16x8xbf16>
    %56 = vector.shape_cast %55 : vector<16x16x8xbf16> to vector<256x8xbf16>
    %c8 = arith.constant 8 : index
    %c0_69 = arith.constant 0 : index
    %c0_70 = arith.constant 0 : index
    %57 = vector.load %arg1[%c8, %c0_69, %c0_70] : memref<9x8x64xbf16, #tpu.memory_space<vmem>>, vector<1x8x64xbf16>
    %58 = vector.shape_cast %57 : vector<1x8x64xbf16> to vector<8x64xbf16>
    %cst_71 = arith.constant dense<0.000000e+00> : vector<256x64xf32>
    %59 = tpu.matmul %56, %58, %cst_71 {dimension_numbers = #tpu.dot_dimension_numbers<[1], [0], [0], [1], [0, 0, 1, 1], [], []>} : vector<256x8xbf16>, vector<8x64xbf16>, vector<256x64xf32> -> vector<256x64xf32>
    %60 = arith.addf %54, %59 : vector<256x64xf32>
    %c0_72 = arith.constant 0 : index
    %c0_73 = arith.constant 0 : index
    %61 = vector.load %arg2[%c0_72, %c0_73] : memref<1x64xf32, #tpu.memory_space<vmem>>, vector<1x64xf32>
    %62 = vector.broadcast %61 : vector<1x64xf32> to vector<256x64xf32>
    %63 = arith.addf %60, %62 : vector<256x64xf32>
    %cst_74 = arith.constant 0.000000e+00 : f32
    %64 = vector.broadcast %cst_74 : f32 to vector<256x64xf32>
    %65 = arith.maximumf %63, %64 : vector<256x64xf32>
    %66 = vector.shape_cast %65 : vector<256x64xf32> to vector<128x2x64xf32>
    %67 = vector.extract_strided_slice %66 {offsets = [0, 0, 0], sizes = [128, 1, 64], strides = [1, 1, 1]} : vector<128x2x64xf32> to vector<128x1x64xf32>
    %68 = vector.shape_cast %67 : vector<128x1x64xf32> to vector<128x64xf32>
    %69 = vector.extract_strided_slice %66 {offsets = [0, 1, 0], sizes = [128, 1, 64], strides = [1, 1, 1]} : vector<128x2x64xf32> to vector<128x1x64xf32>
    %70 = vector.shape_cast %69 : vector<128x1x64xf32> to vector<128x64xf32>
    %71 = arith.maximumf %68, %70 : vector<128x64xf32>
    %72 = vector.shape_cast %71 : vector<128x64xf32> to vector<8x2x8x64xf32>
    %73 = vector.extract_strided_slice %72 {offsets = [0, 0, 0, 0], sizes = [8, 1, 8, 64], strides = [1, 1, 1, 1]} : vector<8x2x8x64xf32> to vector<8x1x8x64xf32>
    %74 = vector.shape_cast %73 : vector<8x1x8x64xf32> to vector<8x8x64xf32>
    %75 = vector.extract_strided_slice %72 {offsets = [0, 1, 0, 0], sizes = [8, 1, 8, 64], strides = [1, 1, 1, 1]} : vector<8x2x8x64xf32> to vector<8x1x8x64xf32>
    %76 = vector.shape_cast %75 : vector<8x1x8x64xf32> to vector<8x8x64xf32>
    %77 = arith.maximumf %74, %76 : vector<8x8x64xf32>
    %78 = vector.shape_cast %77 : vector<8x8x64xf32> to vector<64x64xf32>
    %cst_75 = arith.constant 0.000000e+00 : bf16
    %79 = vector.broadcast %cst_75 : bf16 to vector<1x10x64xbf16>
    %c0_76 = arith.constant 0 : index
    %c0_77 = arith.constant 0 : index
    %c0_78 = arith.constant 0 : index
    %80 = vector.load %arg13[%c0_76, %c0_77, %c0_78] : memref<10x10x64xbf16, #tpu.memory_space<vmem>>, vector<1x10x64xbf16>
    tpu.vector_store %arg13[%c0_76, %c0_77, %c0_78], %79 {strides = array<i32>} : memref<10x10x64xbf16, #tpu.memory_space<vmem>>, vector<1x10x64xbf16>,
    %c9 = arith.constant 9 : index
    %c0_79 = arith.constant 0 : index
    %c0_80 = arith.constant 0 : index
    %81 = vector.load %arg13[%c9, %c0_79, %c0_80] : memref<10x10x64xbf16, #tpu.memory_space<vmem>>, vector<1x10x64xbf16>
    tpu.vector_store %arg13[%c9, %c0_79, %c0_80], %79 {strides = array<i32>} : memref<10x10x64xbf16, #tpu.memory_space<vmem>>, vector<1x10x64xbf16>,
    %cst_81 = arith.constant 0.000000e+00 : bf16
    %82 = vector.broadcast %cst_81 : bf16 to vector<10x1x64xbf16>
    %c0_82 = arith.constant 0 : index
    %c0_83 = arith.constant 0 : index
    %c0_84 = arith.constant 0 : index
    %83 = vector.load %arg13[%c0_82, %c0_83, %c0_84] : memref<10x10x64xbf16, #tpu.memory_space<vmem>>, vector<10x1x64xbf16>
    tpu.vector_store %arg13[%c0_82, %c0_83, %c0_84], %82 {strides = array<i32>} : memref<10x10x64xbf16, #tpu.memory_space<vmem>>, vector<10x1x64xbf16>,
    %c0_85 = arith.constant 0 : index
    %c9_86 = arith.constant 9 : index
    %c0_87 = arith.constant 0 : index
    %84 = vector.load %arg13[%c0_85, %c9_86, %c0_87] : memref<10x10x64xbf16, #tpu.memory_space<vmem>>, vector<10x1x64xbf16>
    tpu.vector_store %arg13[%c0_85, %c9_86, %c0_87], %82 {strides = array<i32>} : memref<10x10x64xbf16, #tpu.memory_space<vmem>>, vector<10x1x64xbf16>,
    %85 = vector.shape_cast %78 : vector<64x64xf32> to vector<8x8x64xf32>
    %86 = arith.truncf %85 : vector<8x8x64xf32> to vector<8x8x64xbf16>
    %c1_88 = arith.constant 1 : index
    %c1_89 = arith.constant 1 : index
    %c0_90 = arith.constant 0 : index
    %87 = vector.load %arg13[%c1_88, %c1_89, %c0_90] : memref<10x10x64xbf16, #tpu.memory_space<vmem>>, vector<8x8x64xbf16>
    tpu.vector_store %arg13[%c1_88, %c1_89, %c0_90], %86 {strides = array<i32>} : memref<10x10x64xbf16, #tpu.memory_space<vmem>>, vector<8x8x64xbf16>,
    %c0_91 = arith.constant 0 : index
    %c0_92 = arith.constant 0 : index
    %c0_93 = arith.constant 0 : index
    %88 = vector.load %arg13[%c0_91, %c0_92, %c0_93] : memref<10x10x64xbf16, #tpu.memory_space<vmem>>, vector<8x8x64xbf16>
    %89 = vector.shape_cast %88 : vector<8x8x64xbf16> to vector<64x64xbf16>
    %c0_94 = arith.constant 0 : index
    %c0_95 = arith.constant 0 : index
    %c0_96 = arith.constant 0 : index
    %90 = vector.load %arg3[%c0_94, %c0_95, %c0_96] : memref<9x64x128xbf16, #tpu.memory_space<vmem>>, vector<1x64x128xbf16>
    %91 = vector.shape_cast %90 : vector<1x64x128xbf16> to vector<64x128xbf16>
    %cst_97 = arith.constant dense<0.000000e+00> : vector<64x128xf32>
    %92 = tpu.matmul %89, %91, %cst_97 {dimension_numbers = #tpu.dot_dimension_numbers<[1], [0], [0], [1], [0, 0, 1, 1], [], []>} : vector<64x64xbf16>, vector<64x128xbf16>, vector<64x128xf32> -> vector<64x128xf32>
    %c0_98 = arith.constant 0 : index
    %c1_99 = arith.constant 1 : index
    %c0_100 = arith.constant 0 : index
    %93 = vector.load %arg13[%c0_98, %c1_99, %c0_100] : memref<10x10x64xbf16, #tpu.memory_space<vmem>>, vector<8x8x64xbf16>
    %94 = vector.shape_cast %93 : vector<8x8x64xbf16> to vector<64x64xbf16>
    %c1_101 = arith.constant 1 : index
    %c0_102 = arith.constant 0 : index
    %c0_103 = arith.constant 0 : index
    %95 = vector.load %arg3[%c1_101, %c0_102, %c0_103] : memref<9x64x128xbf16, #tpu.memory_space<vmem>>, vector<1x64x128xbf16>
    %96 = vector.shape_cast %95 : vector<1x64x128xbf16> to vector<64x128xbf16>
    %cst_104 = arith.constant dense<0.000000e+00> : vector<64x128xf32>
    %97 = tpu.matmul %94, %96, %cst_104 {dimension_numbers = #tpu.dot_dimension_numbers<[1], [0], [0], [1], [0, 0, 1, 1], [], []>} : vector<64x64xbf16>, vector<64x128xbf16>, vector<64x128xf32> -> vector<64x128xf32>
    %98 = arith.addf %92, %97 : vector<64x128xf32>
    %c0_105 = arith.constant 0 : index
    %c2_106 = arith.constant 2 : index
    %c0_107 = arith.constant 0 : index
    %99 = vector.load %arg13[%c0_105, %c2_106, %c0_107] : memref<10x10x64xbf16, #tpu.memory_space<vmem>>, vector<8x8x64xbf16>
    %100 = vector.shape_cast %99 : vector<8x8x64xbf16> to vector<64x64xbf16>
    %c2_108 = arith.constant 2 : index
    %c0_109 = arith.constant 0 : index
    %c0_110 = arith.constant 0 : index
    %101 = vector.load %arg3[%c2_108, %c0_109, %c0_110] : memref<9x64x128xbf16, #tpu.memory_space<vmem>>, vector<1x64x128xbf16>
    %102 = vector.shape_cast %101 : vector<1x64x128xbf16> to vector<64x128xbf16>
    %cst_111 = arith.constant dense<0.000000e+00> : vector<64x128xf32>
    %103 = tpu.matmul %100, %102, %cst_111 {dimension_numbers = #tpu.dot_dimension_numbers<[1], [0], [0], [1], [0, 0, 1, 1], [], []>} : vector<64x64xbf16>, vector<64x128xbf16>, vector<64x128xf32> -> vector<64x128xf32>
    %104 = arith.addf %98, %103 : vector<64x128xf32>
    %c1_112 = arith.constant 1 : index
    %c0_113 = arith.constant 0 : index
    %c0_114 = arith.constant 0 : index
    %105 = vector.load %arg13[%c1_112, %c0_113, %c0_114] : memref<10x10x64xbf16, #tpu.memory_space<vmem>>, vector<8x8x64xbf16>
    %106 = vector.shape_cast %105 : vector<8x8x64xbf16> to vector<64x64xbf16>
    %c3_115 = arith.constant 3 : index
    %c0_116 = arith.constant 0 : index
    %c0_117 = arith.constant 0 : index
    %107 = vector.load %arg3[%c3_115, %c0_116, %c0_117] : memref<9x64x128xbf16, #tpu.memory_space<vmem>>, vector<1x64x128xbf16>
    %108 = vector.shape_cast %107 : vector<1x64x128xbf16> to vector<64x128xbf16>
    %cst_118 = arith.constant dense<0.000000e+00> : vector<64x128xf32>
    %109 = tpu.matmul %106, %108, %cst_118 {dimension_numbers = #tpu.dot_dimension_numbers<[1], [0], [0], [1], [0, 0, 1, 1], [], []>} : vector<64x64xbf16>, vector<64x128xbf16>, vector<64x128xf32> -> vector<64x128xf32>
    %110 = arith.addf %104, %109 : vector<64x128xf32>
    %c1_119 = arith.constant 1 : index
    %c1_120 = arith.constant 1 : index
    %c0_121 = arith.constant 0 : index
    %111 = vector.load %arg13[%c1_119, %c1_120, %c0_121] : memref<10x10x64xbf16, #tpu.memory_space<vmem>>, vector<8x8x64xbf16>
    %112 = vector.shape_cast %111 : vector<8x8x64xbf16> to vector<64x64xbf16>
    %c4_122 = arith.constant 4 : index
    %c0_123 = arith.constant 0 : index
    %c0_124 = arith.constant 0 : index
    %113 = vector.load %arg3[%c4_122, %c0_123, %c0_124] : memref<9x64x128xbf16, #tpu.memory_space<vmem>>, vector<1x64x128xbf16>
    %114 = vector.shape_cast %113 : vector<1x64x128xbf16> to vector<64x128xbf16>
    %cst_125 = arith.constant dense<0.000000e+00> : vector<64x128xf32>
    %115 = tpu.matmul %112, %114, %cst_125 {dimension_numbers = #tpu.dot_dimension_numbers<[1], [0], [0], [1], [0, 0, 1, 1], [], []>} : vector<64x64xbf16>, vector<64x128xbf16>, vector<64x128xf32> -> vector<64x128xf32>
    %116 = arith.addf %110, %115 : vector<64x128xf32>
    %c1_126 = arith.constant 1 : index
    %c2_127 = arith.constant 2 : index
    %c0_128 = arith.constant 0 : index
    %117 = vector.load %arg13[%c1_126, %c2_127, %c0_128] : memref<10x10x64xbf16, #tpu.memory_space<vmem>>, vector<8x8x64xbf16>
    %118 = vector.shape_cast %117 : vector<8x8x64xbf16> to vector<64x64xbf16>
    %c5_129 = arith.constant 5 : index
    %c0_130 = arith.constant 0 : index
    %c0_131 = arith.constant 0 : index
    %119 = vector.load %arg3[%c5_129, %c0_130, %c0_131] : memref<9x64x128xbf16, #tpu.memory_space<vmem>>, vector<1x64x128xbf16>
    %120 = vector.shape_cast %119 : vector<1x64x128xbf16> to vector<64x128xbf16>
    %cst_132 = arith.constant dense<0.000000e+00> : vector<64x128xf32>
    %121 = tpu.matmul %118, %120, %cst_132 {dimension_numbers = #tpu.dot_dimension_numbers<[1], [0], [0], [1], [0, 0, 1, 1], [], []>} : vector<64x64xbf16>, vector<64x128xbf16>, vector<64x128xf32> -> vector<64x128xf32>
    %122 = arith.addf %116, %121 : vector<64x128xf32>
    %c2_133 = arith.constant 2 : index
    %c0_134 = arith.constant 0 : index
    %c0_135 = arith.constant 0 : index
    %123 = vector.load %arg13[%c2_133, %c0_134, %c0_135] : memref<10x10x64xbf16, #tpu.memory_space<vmem>>, vector<8x8x64xbf16>
    %124 = vector.shape_cast %123 : vector<8x8x64xbf16> to vector<64x64xbf16>
    %c6_136 = arith.constant 6 : index
    %c0_137 = arith.constant 0 : index
    %c0_138 = arith.constant 0 : index
    %125 = vector.load %arg3[%c6_136, %c0_137, %c0_138] : memref<9x64x128xbf16, #tpu.memory_space<vmem>>, vector<1x64x128xbf16>
    %126 = vector.shape_cast %125 : vector<1x64x128xbf16> to vector<64x128xbf16>
    %cst_139 = arith.constant dense<0.000000e+00> : vector<64x128xf32>
    %127 = tpu.matmul %124, %126, %cst_139 {dimension_numbers = #tpu.dot_dimension_numbers<[1], [0], [0], [1], [0, 0, 1, 1], [], []>} : vector<64x64xbf16>, vector<64x128xbf16>, vector<64x128xf32> -> vector<64x128xf32>
    %128 = arith.addf %122, %127 : vector<64x128xf32>
    %c2_140 = arith.constant 2 : index
    %c1_141 = arith.constant 1 : index
    %c0_142 = arith.constant 0 : index
    %129 = vector.load %arg13[%c2_140, %c1_141, %c0_142] : memref<10x10x64xbf16, #tpu.memory_space<vmem>>, vector<8x8x64xbf16>
    %130 = vector.shape_cast %129 : vector<8x8x64xbf16> to vector<64x64xbf16>
    %c7_143 = arith.constant 7 : index
    %c0_144 = arith.constant 0 : index
    %c0_145 = arith.constant 0 : index
    %131 = vector.load %arg3[%c7_143, %c0_144, %c0_145] : memref<9x64x128xbf16, #tpu.memory_space<vmem>>, vector<1x64x128xbf16>
    %132 = vector.shape_cast %131 : vector<1x64x128xbf16> to vector<64x128xbf16>
    %cst_146 = arith.constant dense<0.000000e+00> : vector<64x128xf32>
    %133 = tpu.matmul %130, %132, %cst_146 {dimension_numbers = #tpu.dot_dimension_numbers<[1], [0], [0], [1], [0, 0, 1, 1], [], []>} : vector<64x64xbf16>, vector<64x128xbf16>, vector<64x128xf32> -> vector<64x128xf32>
    %134 = arith.addf %128, %133 : vector<64x128xf32>
    %c2_147 = arith.constant 2 : index
    %c2_148 = arith.constant 2 : index
    %c0_149 = arith.constant 0 : index
    %135 = vector.load %arg13[%c2_147, %c2_148, %c0_149] : memref<10x10x64xbf16, #tpu.memory_space<vmem>>, vector<8x8x64xbf16>
    %136 = vector.shape_cast %135 : vector<8x8x64xbf16> to vector<64x64xbf16>
    %c8_150 = arith.constant 8 : index
    %c0_151 = arith.constant 0 : index
    %c0_152 = arith.constant 0 : index
    %137 = vector.load %arg3[%c8_150, %c0_151, %c0_152] : memref<9x64x128xbf16, #tpu.memory_space<vmem>>, vector<1x64x128xbf16>
    %138 = vector.shape_cast %137 : vector<1x64x128xbf16> to vector<64x128xbf16>
    %cst_153 = arith.constant dense<0.000000e+00> : vector<64x128xf32>
    %139 = tpu.matmul %136, %138, %cst_153 {dimension_numbers = #tpu.dot_dimension_numbers<[1], [0], [0], [1], [0, 0, 1, 1], [], []>} : vector<64x64xbf16>, vector<64x128xbf16>, vector<64x128xf32> -> vector<64x128xf32>
    %140 = arith.addf %134, %139 : vector<64x128xf32>
    %c0_154 = arith.constant 0 : index
    %c0_155 = arith.constant 0 : index
    %141 = vector.load %arg4[%c0_154, %c0_155] : memref<1x128xf32, #tpu.memory_space<vmem>>, vector<1x128xf32>
    %142 = vector.broadcast %141 : vector<1x128xf32> to vector<64x128xf32>
    %143 = arith.addf %140, %142 : vector<64x128xf32>
    %cst_156 = arith.constant 0.000000e+00 : f32
    %144 = vector.broadcast %cst_156 : f32 to vector<64x128xf32>
    %145 = arith.maximumf %143, %144 : vector<64x128xf32>
    %146 = vector.shape_cast %145 : vector<64x128xf32> to vector<32x2x128xf32>
    %147 = vector.extract_strided_slice %146 {offsets = [0, 0, 0], sizes = [32, 1, 128], strides = [1, 1, 1]} : vector<32x2x128xf32> to vector<32x1x128xf32>
    %148 = vector.shape_cast %147 : vector<32x1x128xf32> to vector<32x128xf32>
    %149 = vector.extract_strided_slice %146 {offsets = [0, 1, 0], sizes = [32, 1, 128], strides = [1, 1, 1]} : vector<32x2x128xf32> to vector<32x1x128xf32>
    %150 = vector.shape_cast %149 : vector<32x1x128xf32> to vector<32x128xf32>
    %151 = arith.maximumf %148, %150 : vector<32x128xf32>
    %152 = vector.shape_cast %151 : vector<32x128xf32> to vector<4x2x4x128xf32>
    %153 = vector.extract_strided_slice %152 {offsets = [0, 0, 0, 0], sizes = [4, 1, 4, 128], strides = [1, 1, 1, 1]} : vector<4x2x4x128xf32> to vector<4x1x4x128xf32>
    %154 = vector.shape_cast %153 : vector<4x1x4x128xf32> to vector<4x4x128xf32>
    %155 = vector.extract_strided_slice %152 {offsets = [0, 1, 0, 0], sizes = [4, 1, 4, 128], strides = [1, 1, 1, 1]} : vector<4x2x4x128xf32> to vector<4x1x4x128xf32>
    %156 = vector.shape_cast %155 : vector<4x1x4x128xf32> to vector<4x4x128xf32>
    %157 = arith.maximumf %154, %156 : vector<4x4x128xf32>
    %158 = vector.shape_cast %157 : vector<4x4x128xf32> to vector<16x128xf32>
    %cst_157 = arith.constant 0.000000e+00 : bf16
    %159 = vector.broadcast %cst_157 : bf16 to vector<1x6x128xbf16>
    %c0_158 = arith.constant 0 : index
    %c0_159 = arith.constant 0 : index
    %c0_160 = arith.constant 0 : index
    %160 = vector.load %arg14[%c0_158, %c0_159, %c0_160] : memref<6x6x128xbf16, #tpu.memory_space<vmem>>, vector<1x6x128xbf16>
    tpu.vector_store %arg14[%c0_158, %c0_159, %c0_160], %159 {strides = array<i32>} : memref<6x6x128xbf16, #tpu.memory_space<vmem>>, vector<1x6x128xbf16>,
    %c5_161 = arith.constant 5 : index
    %c0_162 = arith.constant 0 : index
    %c0_163 = arith.constant 0 : index
    %161 = vector.load %arg14[%c5_161, %c0_162, %c0_163] : memref<6x6x128xbf16, #tpu.memory_space<vmem>>, vector<1x6x128xbf16>
    tpu.vector_store %arg14[%c5_161, %c0_162, %c0_163], %159 {strides = array<i32>} : memref<6x6x128xbf16, #tpu.memory_space<vmem>>, vector<1x6x128xbf16>,
    %cst_164 = arith.constant 0.000000e+00 : bf16
    %162 = vector.broadcast %cst_164 : bf16 to vector<6x1x128xbf16>
    %c0_165 = arith.constant 0 : index
    %c0_166 = arith.constant 0 : index
    %c0_167 = arith.constant 0 : index
    %163 = vector.load %arg14[%c0_165, %c0_166, %c0_167] : memref<6x6x128xbf16, #tpu.memory_space<vmem>>, vector<6x1x128xbf16>
    tpu.vector_store %arg14[%c0_165, %c0_166, %c0_167], %162 {strides = array<i32>} : memref<6x6x128xbf16, #tpu.memory_space<vmem>>, vector<6x1x128xbf16>,
    %c0_168 = arith.constant 0 : index
    %c5_169 = arith.constant 5 : index
    %c0_170 = arith.constant 0 : index
    %164 = vector.load %arg14[%c0_168, %c5_169, %c0_170] : memref<6x6x128xbf16, #tpu.memory_space<vmem>>, vector<6x1x128xbf16>
    tpu.vector_store %arg14[%c0_168, %c5_169, %c0_170], %162 {strides = array<i32>} : memref<6x6x128xbf16, #tpu.memory_space<vmem>>, vector<6x1x128xbf16>,
    %165 = vector.shape_cast %158 : vector<16x128xf32> to vector<4x4x128xf32>
    %166 = arith.truncf %165 : vector<4x4x128xf32> to vector<4x4x128xbf16>
    %c1_171 = arith.constant 1 : index
    %c1_172 = arith.constant 1 : index
    %c0_173 = arith.constant 0 : index
    %167 = vector.load %arg14[%c1_171, %c1_172, %c0_173] : memref<6x6x128xbf16, #tpu.memory_space<vmem>>, vector<4x4x128xbf16>
    tpu.vector_store %arg14[%c1_171, %c1_172, %c0_173], %166 {strides = array<i32>} : memref<6x6x128xbf16, #tpu.memory_space<vmem>>, vector<4x4x128xbf16>,
    %c0_174 = arith.constant 0 : index
    %c0_175 = arith.constant 0 : index
    %c0_176 = arith.constant 0 : index
    %168 = vector.load %arg14[%c0_174, %c0_175, %c0_176] : memref<6x6x128xbf16, #tpu.memory_space<vmem>>, vector<4x4x128xbf16>
    %169 = vector.shape_cast %168 : vector<4x4x128xbf16> to vector<16x128xbf16>
    %c0_177 = arith.constant 0 : index
    %c0_178 = arith.constant 0 : index
    %c0_179 = arith.constant 0 : index
    %170 = vector.load %arg5[%c0_177, %c0_178, %c0_179] : memref<9x128x128xbf16, #tpu.memory_space<vmem>>, vector<1x128x128xbf16>
    %171 = vector.shape_cast %170 : vector<1x128x128xbf16> to vector<128x128xbf16>
    %cst_180 = arith.constant dense<0.000000e+00> : vector<16x128xf32>
    %172 = tpu.matmul %169, %171, %cst_180 {dimension_numbers = #tpu.dot_dimension_numbers<[1], [0], [0], [1], [0, 0, 1, 1], [], []>} : vector<16x128xbf16>, vector<128x128xbf16>, vector<16x128xf32> -> vector<16x128xf32>
    %c0_181 = arith.constant 0 : index
    %c1_182 = arith.constant 1 : index
    %c0_183 = arith.constant 0 : index
    %173 = vector.load %arg14[%c0_181, %c1_182, %c0_183] : memref<6x6x128xbf16, #tpu.memory_space<vmem>>, vector<4x4x128xbf16>
    %174 = vector.shape_cast %173 : vector<4x4x128xbf16> to vector<16x128xbf16>
    %c1_184 = arith.constant 1 : index
    %c0_185 = arith.constant 0 : index
    %c0_186 = arith.constant 0 : index
    %175 = vector.load %arg5[%c1_184, %c0_185, %c0_186] : memref<9x128x128xbf16, #tpu.memory_space<vmem>>, vector<1x128x128xbf16>
    %176 = vector.shape_cast %175 : vector<1x128x128xbf16> to vector<128x128xbf16>
    %cst_187 = arith.constant dense<0.000000e+00> : vector<16x128xf32>
    %177 = tpu.matmul %174, %176, %cst_187 {dimension_numbers = #tpu.dot_dimension_numbers<[1], [0], [0], [1], [0, 0, 1, 1], [], []>} : vector<16x128xbf16>, vector<128x128xbf16>, vector<16x128xf32> -> vector<16x128xf32>
    %178 = arith.addf %172, %177 : vector<16x128xf32>
    %c0_188 = arith.constant 0 : index
    %c2_189 = arith.constant 2 : index
    %c0_190 = arith.constant 0 : index
    %179 = vector.load %arg14[%c0_188, %c2_189, %c0_190] : memref<6x6x128xbf16, #tpu.memory_space<vmem>>, vector<4x4x128xbf16>
    %180 = vector.shape_cast %179 : vector<4x4x128xbf16> to vector<16x128xbf16>
    %c2_191 = arith.constant 2 : index
    %c0_192 = arith.constant 0 : index
    %c0_193 = arith.constant 0 : index
    %181 = vector.load %arg5[%c2_191, %c0_192, %c0_193] : memref<9x128x128xbf16, #tpu.memory_space<vmem>>, vector<1x128x128xbf16>
    %182 = vector.shape_cast %181 : vector<1x128x128xbf16> to vector<128x128xbf16>
    %cst_194 = arith.constant dense<0.000000e+00> : vector<16x128xf32>
    %183 = tpu.matmul %180, %182, %cst_194 {dimension_numbers = #tpu.dot_dimension_numbers<[1], [0], [0], [1], [0, 0, 1, 1], [], []>} : vector<16x128xbf16>, vector<128x128xbf16>, vector<16x128xf32> -> vector<16x128xf32>
    %184 = arith.addf %178, %183 : vector<16x128xf32>
    %c1_195 = arith.constant 1 : index
    %c0_196 = arith.constant 0 : index
    %c0_197 = arith.constant 0 : index
    %185 = vector.load %arg14[%c1_195, %c0_196, %c0_197] : memref<6x6x128xbf16, #tpu.memory_space<vmem>>, vector<4x4x128xbf16>
    %186 = vector.shape_cast %185 : vector<4x4x128xbf16> to vector<16x128xbf16>
    %c3_198 = arith.constant 3 : index
    %c0_199 = arith.constant 0 : index
    %c0_200 = arith.constant 0 : index
    %187 = vector.load %arg5[%c3_198, %c0_199, %c0_200] : memref<9x128x128xbf16, #tpu.memory_space<vmem>>, vector<1x128x128xbf16>
    %188 = vector.shape_cast %187 : vector<1x128x128xbf16> to vector<128x128xbf16>
    %cst_201 = arith.constant dense<0.000000e+00> : vector<16x128xf32>
    %189 = tpu.matmul %186, %188, %cst_201 {dimension_numbers = #tpu.dot_dimension_numbers<[1], [0], [0], [1], [0, 0, 1, 1], [], []>} : vector<16x128xbf16>, vector<128x128xbf16>, vector<16x128xf32> -> vector<16x128xf32>
    %190 = arith.addf %184, %189 : vector<16x128xf32>
    %c1_202 = arith.constant 1 : index
    %c1_203 = arith.constant 1 : index
    %c0_204 = arith.constant 0 : index
    %191 = vector.load %arg14[%c1_202, %c1_203, %c0_204] : memref<6x6x128xbf16, #tpu.memory_space<vmem>>, vector<4x4x128xbf16>
    %192 = vector.shape_cast %191 : vector<4x4x128xbf16> to vector<16x128xbf16>
    %c4_205 = arith.constant 4 : index
    %c0_206 = arith.constant 0 : index
    %c0_207 = arith.constant 0 : index
    %193 = vector.load %arg5[%c4_205, %c0_206, %c0_207] : memref<9x128x128xbf16, #tpu.memory_space<vmem>>, vector<1x128x128xbf16>
    %194 = vector.shape_cast %193 : vector<1x128x128xbf16> to vector<128x128xbf16>
    %cst_208 = arith.constant dense<0.000000e+00> : vector<16x128xf32>
    %195 = tpu.matmul %192, %194, %cst_208 {dimension_numbers = #tpu.dot_dimension_numbers<[1], [0], [0], [1], [0, 0, 1, 1], [], []>} : vector<16x128xbf16>, vector<128x128xbf16>, vector<16x128xf32> -> vector<16x128xf32>
    %196 = arith.addf %190, %195 : vector<16x128xf32>
    %c1_209 = arith.constant 1 : index
    %c2_210 = arith.constant 2 : index
    %c0_211 = arith.constant 0 : index
    %197 = vector.load %arg14[%c1_209, %c2_210, %c0_211] : memref<6x6x128xbf16, #tpu.memory_space<vmem>>, vector<4x4x128xbf16>
    %198 = vector.shape_cast %197 : vector<4x4x128xbf16> to vector<16x128xbf16>
    %c5_212 = arith.constant 5 : index
    %c0_213 = arith.constant 0 : index
    %c0_214 = arith.constant 0 : index
    %199 = vector.load %arg5[%c5_212, %c0_213, %c0_214] : memref<9x128x128xbf16, #tpu.memory_space<vmem>>, vector<1x128x128xbf16>
    %200 = vector.shape_cast %199 : vector<1x128x128xbf16> to vector<128x128xbf16>
    %cst_215 = arith.constant dense<0.000000e+00> : vector<16x128xf32>
    %201 = tpu.matmul %198, %200, %cst_215 {dimension_numbers = #tpu.dot_dimension_numbers<[1], [0], [0], [1], [0, 0, 1, 1], [], []>} : vector<16x128xbf16>, vector<128x128xbf16>, vector<16x128xf32> -> vector<16x128xf32>
    %202 = arith.addf %196, %201 : vector<16x128xf32>
    %c2_216 = arith.constant 2 : index
    %c0_217 = arith.constant 0 : index
    %c0_218 = arith.constant 0 : index
    %203 = vector.load %arg14[%c2_216, %c0_217, %c0_218] : memref<6x6x128xbf16, #tpu.memory_space<vmem>>, vector<4x4x128xbf16>
    %204 = vector.shape_cast %203 : vector<4x4x128xbf16> to vector<16x128xbf16>
    %c6_219 = arith.constant 6 : index
    %c0_220 = arith.constant 0 : index
    %c0_221 = arith.constant 0 : index
    %205 = vector.load %arg5[%c6_219, %c0_220, %c0_221] : memref<9x128x128xbf16, #tpu.memory_space<vmem>>, vector<1x128x128xbf16>
    %206 = vector.shape_cast %205 : vector<1x128x128xbf16> to vector<128x128xbf16>
    %cst_222 = arith.constant dense<0.000000e+00> : vector<16x128xf32>
    %207 = tpu.matmul %204, %206, %cst_222 {dimension_numbers = #tpu.dot_dimension_numbers<[1], [0], [0], [1], [0, 0, 1, 1], [], []>} : vector<16x128xbf16>, vector<128x128xbf16>, vector<16x128xf32> -> vector<16x128xf32>
    %208 = arith.addf %202, %207 : vector<16x128xf32>
    %c2_223 = arith.constant 2 : index
    %c1_224 = arith.constant 1 : index
    %c0_225 = arith.constant 0 : index
    %209 = vector.load %arg14[%c2_223, %c1_224, %c0_225] : memref<6x6x128xbf16, #tpu.memory_space<vmem>>, vector<4x4x128xbf16>
    %210 = vector.shape_cast %209 : vector<4x4x128xbf16> to vector<16x128xbf16>
    %c7_226 = arith.constant 7 : index
    %c0_227 = arith.constant 0 : index
    %c0_228 = arith.constant 0 : index
    %211 = vector.load %arg5[%c7_226, %c0_227, %c0_228] : memref<9x128x128xbf16, #tpu.memory_space<vmem>>, vector<1x128x128xbf16>
    %212 = vector.shape_cast %211 : vector<1x128x128xbf16> to vector<128x128xbf16>
    %cst_229 = arith.constant dense<0.000000e+00> : vector<16x128xf32>
    %213 = tpu.matmul %210, %212, %cst_229 {dimension_numbers = #tpu.dot_dimension_numbers<[1], [0], [0], [1], [0, 0, 1, 1], [], []>} : vector<16x128xbf16>, vector<128x128xbf16>, vector<16x128xf32> -> vector<16x128xf32>
    %214 = arith.addf %208, %213 : vector<16x128xf32>
    %c2_230 = arith.constant 2 : index
    %c2_231 = arith.constant 2 : index
    %c0_232 = arith.constant 0 : index
    %215 = vector.load %arg14[%c2_230, %c2_231, %c0_232] : memref<6x6x128xbf16, #tpu.memory_space<vmem>>, vector<4x4x128xbf16>
    %216 = vector.shape_cast %215 : vector<4x4x128xbf16> to vector<16x128xbf16>
    %c8_233 = arith.constant 8 : index
    %c0_234 = arith.constant 0 : index
    %c0_235 = arith.constant 0 : index
    %217 = vector.load %arg5[%c8_233, %c0_234, %c0_235] : memref<9x128x128xbf16, #tpu.memory_space<vmem>>, vector<1x128x128xbf16>
    %218 = vector.shape_cast %217 : vector<1x128x128xbf16> to vector<128x128xbf16>
    %cst_236 = arith.constant dense<0.000000e+00> : vector<16x128xf32>
    %219 = tpu.matmul %216, %218, %cst_236 {dimension_numbers = #tpu.dot_dimension_numbers<[1], [0], [0], [1], [0, 0, 1, 1], [], []>} : vector<16x128xbf16>, vector<128x128xbf16>, vector<16x128xf32> -> vector<16x128xf32>
    %220 = arith.addf %214, %219 : vector<16x128xf32>
    %c0_237 = arith.constant 0 : index
    %c0_238 = arith.constant 0 : index
    %221 = vector.load %arg6[%c0_237, %c0_238] : memref<1x128xf32, #tpu.memory_space<vmem>>, vector<1x128xf32>
    %222 = vector.broadcast %221 : vector<1x128xf32> to vector<16x128xf32>
    %223 = arith.addf %220, %222 : vector<16x128xf32>
    %cst_239 = arith.constant 0.000000e+00 : f32
    %224 = vector.broadcast %cst_239 : f32 to vector<16x128xf32>
    %225 = arith.maximumf %223, %224 : vector<16x128xf32>
    %226 = vector.shape_cast %225 : vector<16x128xf32> to vector<8x2x128xf32>
    %227 = vector.extract_strided_slice %226 {offsets = [0, 0, 0], sizes = [8, 1, 128], strides = [1, 1, 1]} : vector<8x2x128xf32> to vector<8x1x128xf32>
    %228 = vector.shape_cast %227 : vector<8x1x128xf32> to vector<8x128xf32>
    %229 = vector.extract_strided_slice %226 {offsets = [0, 1, 0], sizes = [8, 1, 128], strides = [1, 1, 1]} : vector<8x2x128xf32> to vector<8x1x128xf32>
    %230 = vector.shape_cast %229 : vector<8x1x128xf32> to vector<8x128xf32>
    %231 = arith.maximumf %228, %230 : vector<8x128xf32>
    %232 = vector.shape_cast %231 : vector<8x128xf32> to vector<2x2x2x128xf32>
    %233 = vector.extract_strided_slice %232 {offsets = [0, 0, 0, 0], sizes = [2, 1, 2, 128], strides = [1, 1, 1, 1]} : vector<2x2x2x128xf32> to vector<2x1x2x128xf32>
    %234 = vector.shape_cast %233 : vector<2x1x2x128xf32> to vector<2x2x128xf32>
    %235 = vector.extract_strided_slice %232 {offsets = [0, 1, 0, 0], sizes = [2, 1, 2, 128], strides = [1, 1, 1, 1]} : vector<2x2x2x128xf32> to vector<2x1x2x128xf32>
    %236 = vector.shape_cast %235 : vector<2x1x2x128xf32> to vector<2x2x128xf32>
    %237 = arith.maximumf %234, %236 : vector<2x2x128xf32>
    %238 = vector.shape_cast %237 : vector<2x2x128xf32> to vector<4x128xf32>
    %239 = vector.extract_strided_slice %238 {offsets = [0, 0], sizes = [4, 3], strides = [1, 1]} : vector<4x128xf32> to vector<4x3xf32>
    %240 = arith.mulf %239, %239 : vector<4x3xf32>
    %cst_240 = arith.constant dense<0.000000e+00> : vector<3xf32>
    %241 = vector.multi_reduction <add>, %240, %cst_240 [0] : vector<4x3xf32> to vector<3xf32>
    %242 = vector.shape_cast %241 : vector<3xf32> to vector<1x3xf32>
    %cst_241 = arith.constant 1.000000e-24 : f32
    %243 = vector.broadcast %cst_241 : f32 to vector<1x3xf32>
    %244 = arith.maximumf %242, %243 : vector<1x3xf32>
    %245 = math.rsqrt %244 : vector<1x3xf32>
    %246 = vector.broadcast %245 : vector<1x3xf32> to vector<4x3xf32>
    %247 = arith.mulf %239, %246 : vector<4x3xf32>
    %248 = vector.shape_cast %247 : vector<4x3xf32> to vector<1x4x3xf32>
    %cst_242 = arith.constant dense<0.000000e+00> : vector<1xf32>
    %249 = vector.multi_reduction <add>, %248, %cst_242 [1, 2] : vector<1x4x3xf32> to vector<1xf32>
    %250 = vector.shape_cast %249 : vector<1xf32> to vector<1x1x1xf32>
    %251 = vector.extract %250[0, 0, 0] : f32 from vector<1x1x1xf32>
    %cst_243 = arith.constant 1.200000e+01 : f32
    %252 = arith.divf %251, %cst_243 : f32
    %c0_244 = arith.constant 0 : index
    %c0_245 = arith.constant 0 : index
    %253 = vector.load %arg7[%c0_244, %c0_245] : memref<1x256xf32, #tpu.memory_space<vmem>>, vector<1x256xf32>
    %254 = vector.broadcast %252 : f32 to vector<1x256xf32>
    %255 = arith.mulf %254, %253 : vector<1x256xf32>
    %c0_246 = arith.constant 0 : index
    %c0_247 = arith.constant 0 : index
    %256 = vector.load %arg8[%c0_246, %c0_247] : memref<1x256xf32, #tpu.memory_space<vmem>>, vector<1x256xf32>
    %257 = arith.addf %255, %256 : vector<1x256xf32>
    %cst_248 = arith.constant 0.000000e+00 : f32
    %258 = vector.broadcast %cst_248 : f32 to vector<1x256xf32>
    %259 = arith.maximumf %257, %258 : vector<1x256xf32>
    %c0_249 = arith.constant 0 : index
    %c0_250 = arith.constant 0 : index
    %260 = vector.load %arg9[%c0_249, %c0_250] : memref<256x4xf32, #tpu.memory_space<vmem>>, vector<256x4xf32>
    %cst_251 = arith.constant dense<0.000000e+00> : vector<1x4xf32>
    %261 = tpu.matmul %259, %260, %cst_251 {dimension_numbers = #tpu.dot_dimension_numbers<[1], [0], [0], [1], [0, 0, 1, 1], [], []>} : vector<1x256xf32>, vector<256x4xf32>, vector<1x4xf32> -> vector<1x4xf32>
    %c0_252 = arith.constant 0 : index
    %c0_253 = arith.constant 0 : index
    %262 = vector.load %arg10[%c0_252, %c0_253] : memref<1x4xf32, #tpu.memory_space<vmem>>, vector<1x4xf32>
    %263 = arith.addf %261, %262 : vector<1x4xf32>
    %c0_254 = arith.constant 0 : index
    %c0_255 = arith.constant 0 : index
    %264 = vector.load %arg11[%c0_254, %c0_255] : memref<1x4xf32, #tpu.memory_space<vmem>>, vector<1x4xf32>
    tpu.vector_store %arg11[%c0_254, %c0_255], %263 {strides = array<i32>} : memref<1x4xf32, #tpu.memory_space<vmem>>, vector<1x4xf32>,
    return
  }
}

</mosaic_0001>

<llo_original>
// kernel: custom_model_forward.1
$region0: #{custom_model_forward.1}
  #allocation0 [shape = 'u32[]', space=smem, size = 0x4, offset = 0x4, fixed_abs, tag = 'smem constant byte address 0x4 - core index']
  #allocation1 [shape = 'u32[144,128]{1,0:T(1,128)}', space=vmem, size = 0x12000, scoped, tag = 'internal scratch']
  #allocation2 [shape = 'bf16[18,18,8]{2,1,0:T(8,128)(2,1)}', space=vmem, size = 0x1b000, scoped, tag = 'scratch operand']
  #allocation3 [shape = 'bf16[10,10,64]{2,1,0:T(8,128)(2,1)}', space=vmem, size = 0xa000, scoped, tag = 'scratch operand']
  #allocation4 [shape = 'bf16[6,6,128]{2,1,0:T(8,128)(2,1)}', space=vmem, size = 0x3000, scoped, tag = 'scratch operand']
  %s0 = inlined_call_operand.vmem [shape: bf16[16,16,8], index: 0, kind: input, shape index: {}]
  %s1 = inlined_call_operand.vmem [shape: bf16[9,8,64], index: 1, kind: input, shape index: {}]
  %s2 = inlined_call_operand.vmem [shape: f32[1,64], index: 2, kind: input, shape index: {}]
  %s3 = inlined_call_operand.hbm [shape: bf16[9,64,128], index: 3, kind: input, shape index: {}]
  %s4 = inlined_call_operand.vmem [shape: f32[1,128], index: 4, kind: input, shape index: {}]
  %s5 = inlined_call_operand.vmem [shape: bf16[9,128,128], index: 5, kind: input, shape index: {}]
  %s6 = inlined_call_operand.vmem [shape: f32[1,128], index: 6, kind: input, shape index: {}]
  %s7 = inlined_call_operand.vmem [shape: f32[1,256], index: 7, kind: input, shape index: {}]
  %s8 = inlined_call_operand.vmem [shape: f32[1,256], index: 8, kind: input, shape index: {}]
  %s9 = inlined_call_operand.vmem [shape: f32[256,4], index: 9, kind: input, shape index: {}]
  %s10 = inlined_call_operand.vmem [shape: f32[1,4], index: 10, kind: input, shape index: {}]
  %s11 = inlined_call_operand.hbm [shape: f32[1,4], index: 11, kind: output, shape index: {}]
  %s12 = sld [smem:[#allocation0]]
  $region58: #{custom_model_forward.1} parent=0
    _
  %s14 = ssub.s32 1, %s12
  %s15 = scalar_select 0, %s14, %s12
  $region1: #{custom_model_forward.1} parent=0
    #allocation5 [shape = 'u8[147456]{0}', space=vmem, size = 0x24000, scoped, tag = 'input window, operand 3, single buffered']
    #allocation6 [shape = 's32[1]{0}', space=sflag, size = 0x4, scoped, tag = 'scoped memory for custom_model_forward.1']
    #allocation7 [shape = 's32[1]{0}', space=sflag, size = 0x4, scoped, tag = 'scoped memory for custom_model_forward.1']
    #allocation8 [shape = 'u8[512]{0}', space=vmem, size = 0x400, scoped, tag = 'output window, operand 0, single buffered']
    %16 = vsyncpa [#allocation6], 0
    %17 = vsyncpa [#allocation7], 0
    // Predicated region
    $region2: #{custom_model_forward.1} parent=1 // pred_check
      _
    $region3: #{custom_model_forward.1} parent=1 // pred_check_branch
      %19 = sbr.rel (0) target = $region5
    $region4: #{custom_model_forward.1} parent=1 // pred_region
      _
    $region5: #{custom_model_forward.1} parent=1 // pred_fallthru
      _
    // Predicated region
    $region6: #{custom_model_forward.1} parent=1 // pred_check
      _
    $region7: #{custom_model_forward.1} parent=1 // pred_check_branch
      %21 = sbr.rel (0) target = $region9
    $region8: #{custom_model_forward.1} parent=1 // pred_region
      _
    $region9: #{custom_model_forward.1} parent=1 // pred_fallthru
      _
    // Predicated region
    $region10: #{custom_model_forward.1} parent=1 // pred_check
      _
    $region11: #{custom_model_forward.1} parent=1 // pred_check_branch
      %23 = sbr.rel (0) target = $region13
    $region12: #{custom_model_forward.1} parent=1 // pred_region
      _
    $region13: #{custom_model_forward.1} parent=1 // pred_fallthru
      _
    // Predicated region
    $region14: #{custom_model_forward.1} parent=1 // pred_check
      _
    $region15: #{custom_model_forward.1} parent=1 // pred_check_branch
      %25 = sbr.rel (0) target = $region17
    $region16: #{custom_model_forward.1} parent=1 // pred_region
      %s27 = ssub.s32 4608, 4608
      %28 = vsyncadd [#allocation6], %s27
      %s29 = sshll.u32 [#allocation5], 4
      %s30 = int_to_ptr.vmem [resolvable:$true] %s29
      %35 = dma.hbm_to_vmem [thread:$0]  %s3, 4608, %s30, [#allocation6], 64, 64, 4
    $region17: #{custom_model_forward.1} parent=1 // pred_fallthru
      _
    // Predicated region
    $region18: #{custom_model_forward.1} parent=1 // pred_check
      _
    $region19: #{custom_model_forward.1} parent=1 // pred_check_branch
      %37 = sbr.rel (0) target = $region21
    $region20: #{custom_model_forward.1} parent=1 // pred_region
      _
    $region21: #{custom_model_forward.1} parent=1 // pred_fallthru
      _
    // Predicated region
    $region22: #{custom_model_forward.1} parent=1 // pred_check
      _
    $region23: #{custom_model_forward.1} parent=1 // pred_check_branch
      %39 = sbr.rel (0) target = $region25
    $region24: #{custom_model_forward.1} parent=1 // pred_region
      _
    $region25: #{custom_model_forward.1} parent=1 // pred_fallthru
      _
    // Predicated region
    $region26: #{custom_model_forward.1} parent=1 // pred_check
      _
    $region27: #{custom_model_forward.1} parent=1 // pred_check_branch
      %41 = sbr.rel (0) target = $region29
    $region28: #{custom_model_forward.1} parent=1 // pred_region
      _
    $region29: #{custom_model_forward.1} parent=1 // pred_fallthru
      _
    // Predicated region
    $region30: #{custom_model_forward.1} parent=1 // pred_check
      _
    $region31: #{custom_model_forward.1} parent=1 // pred_check_branch
      %43 = sbr.rel (0) target = $region33
    $region32: #{custom_model_forward.1} parent=1 // pred_region
      _
    $region33: #{custom_model_forward.1} parent=1 // pred_fallthru
      _
    // Predicated region
    $region34: #{custom_model_forward.1} parent=1 // pred_check
      _
    $region35: #{custom_model_forward.1} parent=1 // pred_check_branch
      %45 = sbr.rel (0) target = $region37
    $region36: #{custom_model_forward.1} parent=1 // pred_region
      _
    $region37: #{custom_model_forward.1} parent=1 // pred_fallthru
      _
    // Predicated region
    $region38: #{custom_model_forward.1} parent=1 // pred_check
      _
    $region39: #{custom_model_forward.1} parent=1 // pred_check_branch
      %47 = sbr.rel (0) target = $region41
    $region40: #{custom_model_forward.1} parent=1 // pred_region
      _
    $region41: #{custom_model_forward.1} parent=1 // pred_fallthru
      _
    // Predicated region
    $region42: #{custom_model_forward.1} parent=1 // pred_check
      _
    $region43: #{custom_model_forward.1} parent=1 // pred_check_branch
      %49 = sbr.rel (0) target = $region45
    $region44: #{custom_model_forward.1} parent=1 // pred_region
      _
    $region45: #{custom_model_forward.1} parent=1 // pred_fallthru
      _
    // Predicated region
    $region46: #{custom_model_forward.1} parent=1 // pred_check
      _
    $region47: #{custom_model_forward.1} parent=1 // pred_check_branch
      %51 = sbr.rel (0) target = $region49
    $region48: #{custom_model_forward.1} parent=1 // pred_region
      %52 = dma.done [#allocation6], 4608
    $region49: #{custom_model_forward.1} parent=1 // pred_fallthru
      _
    %vm54 = vcmask 60416
    %55 = vst.msk [vmem:[#allocation2] sm:$0xf] %vm54, 0
    %56 = vst.msk [vmem:[#allocation2 + $0x4] sm:$0xf] %vm54, 0
    %vm57 = vcmask 57344
    %58 = vst.msk [vmem:[#allocation2 + $0x8] sm:$0x1] %vm57, 0
    %s59 = scalar_lea.vmem [#allocation2], 204
    %60 = vst.msk [vmem:[%s59] sm:$0xf] %vm54, 0
    %61 = vst.msk [vmem:[%s59 + $0x4] sm:$0xf] %vm54, 0
    %62 = vst.msk [vmem:[%s59 + $0x8] sm:$0x1] %vm57, 0
    %vm63 = vcmask 57344
    %vm64 = vsmask.f32 256
    %vm65 = vmand %vm63, %vm64
    %v66 = vld [vmem:[#allocation2] sm:$0x1]
    %v67 = vsel %vm65, 0, %v66
    %68 = vst [vmem:[#allocation2] sm:$0x1] %v67
    %v69 = vld [vmem:[#allocation2 + $0xc] sm:$0x1]
    %v70 = vsel %vm65, 0, %v69
    %71 = vst [vmem:[#allocation2 + $0xc] sm:$0x1] %v70
    %v72 = vld [vmem:[#allocation2 + $0x18] sm:$0x1]
    %v73 = vsel %vm65, 0, %v72
    %74 = vst [vmem:[#allocation2 + $0x18] sm:$0x1] %v73
    %v75 = vld [vmem:[#allocation2 + $0x24] sm:$0x1]
    %v76 = vsel %vm65, 0, %v75
    %77 = vst [vmem:[#allocation2 + $0x24] sm:$0x1] %v76
    %v78 = vld [vmem:[#allocation2 + $0x30] sm:$0x1]
    %v79 = vsel %vm65, 0, %v78
    %80 = vst [vmem:[#allocation2 + $0x30] sm:$0x1] %v79
    %v81 = vld [vmem:[#allocation2 + $0x3c] sm:$0x1]
    %v82 = vsel %vm65, 0, %v81
    %83 = vst [vmem:[#allocation2 + $0x3c] sm:$0x1] %v82
    %v84 = vld [vmem:[#allocation2 + $0x48] sm:$0x1]
    %v85 = vsel %vm65, 0, %v84
    %86 = vst [vmem:[#allocation2 + $0x48] sm:$0x1] %v85
    %v87 = vld [vmem:[#allocation2 + $0x54] sm:$0x1]
    %v88 = vsel %vm65, 0, %v87
    %89 = vst [vmem:[#allocation2 + $0x54] sm:$0x1] %v88
    %v90 = vld [vmem:[#allocation2 + $0x60] sm:$0x1]
    %v91 = vsel %vm65, 0, %v90
    %92 = vst [vmem:[#allocation2 + $0x60] sm:$0x1] %v91
    %v93 = vld [vmem:[#allocation2 + $0x6c] sm:$0x1]
    %v94 = vsel %vm65, 0, %v93
    %95 = vst [vmem:[#allocation2 + $0x6c] sm:$0x1] %v94
    %v96 = vld [vmem:[#allocation2 + $0x78] sm:$0x1]
    %v97 = vsel %vm65, 0, %v96
    %98 = vst [vmem:[#allocation2 + $0x78] sm:$0x1] %v97
    %v99 = vld [vmem:[#allocation2 + $0x84] sm:$0x1]
    %v100 = vsel %vm65, 0, %v99
    %101 = vst [vmem:[#allocation2 + $0x84] sm:$0x1] %v100
    %v102 = vld [vmem:[#allocation2 + $0x90] sm:$0x1]
    %v103 = vsel %vm65, 0, %v102
    %104 = vst [vmem:[#allocation2 + $0x90] sm:$0x1] %v103
    %v105 = vld [vmem:[#allocation2 + $0x9c] sm:$0x1]
    %v106 = vsel %vm65, 0, %v105
    %107 = vst [vmem:[#allocation2 + $0x9c] sm:$0x1] %v106
    %v108 = vld [vmem:[#allocation2 + $0xa8] sm:$0x1]
    %v109 = vsel %vm65, 0, %v108
    %110 = vst [vmem:[#allocation2 + $0xa8] sm:$0x1] %v109
    %v111 = vld [vmem:[#allocation2 + $0xb4] sm:$0x1]
    %v112 = vsel %vm65, 0, %v111
    %113 = vst [vmem:[#allocation2 + $0xb4] sm:$0x1] %v112
    %v114 = vld [vmem:[#allocation2 + $0xc0] sm:$0x1]
    %v115 = vsel %vm65, 0, %v114
    %116 = vst [vmem:[#allocation2 + $0xc0] sm:$0x1] %v115
    %v117 = vld [vmem:[#allocation2 + $0xcc] sm:$0x1]
    %v118 = vsel %vm65, 0, %v117
    %119 = vst [vmem:[#allocation2 + $0xcc] sm:$0x1] %v118
    %vm120 = vsmask.f32 7938
    %vm121 = vmand %vm63, %vm120
    %v122 = vld [vmem:[#allocation2 + $0x8] sm:$0x1]
    %v123 = vsel %vm121, 0, %v122
    %124 = vst [vmem:[#allocation2 + $0x8] sm:$0x1] %v123
    %v125 = vld [vmem:[#allocation2 + $0x14] sm:$0x1]
    %v126 = vsel %vm121, 0, %v125
    %127 = vst [vmem:[#allocation2 + $0x14] sm:$0x1] %v126
    %v128 = vld [vmem:[#allocation2 + $0x20] sm:$0x1]
    %v129 = vsel %vm121, 0, %v128
    %130 = vst [vmem:[#allocation2 + $0x20] sm:$0x1] %v129
    %v131 = vld [vmem:[#allocation2 + $0x2c] sm:$0x1]
    %v132 = vsel %vm121, 0, %v131
    %133 = vst [vmem:[#allocation2 + $0x2c] sm:$0x1] %v132
    %v134 = vld [vmem:[#allocation2 + $0x38] sm:$0x1]
    %v135 = vsel %vm121, 0, %v134
    %136 = vst [vmem:[#allocation2 + $0x38] sm:$0x1] %v135
    %v137 = vld [vmem:[#allocation2 + $0x44] sm:$0x1]
    %v138 = vsel %vm121, 0, %v137
    %139 = vst [vmem:[#allocation2 + $0x44] sm:$0x1] %v138
    %v140 = vld [vmem:[#allocation2 + $0x50] sm:$0x1]
    %v141 = vsel %vm121, 0, %v140
    %142 = vst [vmem:[#allocation2 + $0x50] sm:$0x1] %v141
    %v143 = vld [vmem:[#allocation2 + $0x5c] sm:$0x1]
    %v144 = vsel %vm121, 0, %v143
    %145 = vst [vmem:[#allocation2 + $0x5c] sm:$0x1] %v144
    %v146 = vld [vmem:[#allocation2 + $0x68] sm:$0x1]
    %v147 = vsel %vm121, 0, %v146
    %148 = vst [vmem:[#allocation2 + $0x68] sm:$0x1] %v147
    %v149 = vld [vmem:[#allocation2 + $0x74] sm:$0x1]
    %v150 = vsel %vm121, 0, %v149
    %151 = vst [vmem:[#allocation2 + $0x74] sm:$0x1] %v150
    %v152 = vld [vmem:[#allocation2 + $0x80] sm:$0x1]
    %v153 = vsel %vm121, 0, %v152
    %154 = vst [vmem:[#allocation2 + $0x80] sm:$0x1] %v153
    %v155 = vld [vmem:[#allocation2 + $0x8c] sm:$0x1]
    %v156 = vsel %vm121, 0, %v155
    %157 = vst [vmem:[#allocation2 + $0x8c] sm:$0x1] %v156
    %v158 = vld [vmem:[#allocation2 + $0x98] sm:$0x1]
    %v159 = vsel %vm121, 0, %v158
    %160 = vst [vmem:[#allocation2 + $0x98] sm:$0x1] %v159
    %v161 = vld [vmem:[#allocation2 + $0xa4] sm:$0x1]
    %v162 = vsel %vm121, 0, %v161
    %163 = vst [vmem:[#allocation2 + $0xa4] sm:$0x1] %v162
    %v164 = vld [vmem:[#allocation2 + $0xb0] sm:$0x1]
    %v165 = vsel %vm121, 0, %v164
    %166 = vst [vmem:[#allocation2 + $0xb0] sm:$0x1] %v165
    %v167 = vld [vmem:[#allocation2 + $0xbc] sm:$0x1]
    %v168 = vsel %vm121, 0, %v167
    %169 = vst [vmem:[#allocation2 + $0xbc] sm:$0x1] %v168
    %v170 = vld [vmem:[#allocation2 + $0xc8] sm:$0x1]
    %v171 = vsel %vm121, 0, %v170
    %172 = vst [vmem:[#allocation2 + $0xc8] sm:$0x1] %v171
    %v173 = vld [vmem:[#allocation2 + $0xd4] sm:$0x1]
    %v174 = vsel %vm121, 0, %v173
    %175 = vst [vmem:[#allocation2 + $0xd4] sm:$0x1] %v174
    %v176 = vld [vmem:[%s0] sm:$0xf]
    %v177 = vld [vmem:[%s0 + $0x4] sm:$0xf]
    %v178 = vld [vmem:[%s0 + $0x8] sm:$0xf]
    %v179 = vld [vmem:[%s0 + $0xc] sm:$0xf]
    %v180 = vld [vmem:[%s0 + $0x10] sm:$0xf]
    %v181 = vld [vmem:[%s0 + $0x14] sm:$0xf]
    %v182 = vld [vmem:[%s0 + $0x18] sm:$0xf]
    %v183 = vld [vmem:[%s0 + $0x1c] sm:$0xf]
    %v184 = vld [vmem:[%s0 + $0x20] sm:$0xf]
    %v185 = vld [vmem:[%s0 + $0x24] sm:$0xf]
    %v186 = vld [vmem:[%s0 + $0x28] sm:$0xf]
    %v187 = vld [vmem:[%s0 + $0x2c] sm:$0xf]
    %v188 = vld [vmem:[%s0 + $0x30] sm:$0xf]
    %v189 = vld [vmem:[%s0 + $0x34] sm:$0xf]
    %v190 = vld [vmem:[%s0 + $0x38] sm:$0xf]
    %v191 = vld [vmem:[%s0 + $0x3c] sm:$0xf]
    %v192 = vld [vmem:[%s0 + $0x40] sm:$0xf]
    %v193 = vld [vmem:[%s0 + $0x44] sm:$0xf]
    %v194 = vld [vmem:[%s0 + $0x48] sm:$0xf]
    %v195 = vld [vmem:[%s0 + $0x4c] sm:$0xf]
    %v196 = vld [vmem:[%s0 + $0x50] sm:$0xf]
    %v197 = vld [vmem:[%s0 + $0x54] sm:$0xf]
    %v198 = vld [vmem:[%s0 + $0x58] sm:$0xf]
    %v199 = vld [vmem:[%s0 + $0x5c] sm:$0xf]
    %v200 = vld [vmem:[%s0 + $0x60] sm:$0xf]
    %v201 = vld [vmem:[%s0 + $0x64] sm:$0xf]
    %v202 = vld [vmem:[%s0 + $0x68] sm:$0xf]
    %v203 = vld [vmem:[%s0 + $0x6c] sm:$0xf]
    %v204 = vld [vmem:[%s0 + $0x70] sm:$0xf]
    %v205 = vld [vmem:[%s0 + $0x74] sm:$0xf]
    %v206 = vld [vmem:[%s0 + $0x78] sm:$0xf]
    %v207 = vld [vmem:[%s0 + $0x7c] sm:$0xf]
    %vm208 = vsmask.f32 4368
    %vm209 = vmor %vm64, %vm208
    %v211 = vshrl.u32 %v176, 16
    %v213 = vrot.slane %v211, 7
    %v214 = vshll.u32 %v176, 16
    %v216 = vor.u32 %v213, %v214
    %v217 = vrot.slane %v213, 4
    %v219 = vshrl.u32 %v177, 16
    %v221 = vrot.slane %v219, 7
    %v222 = vshll.u32 %v177, 16
    %v224 = vor.u32 %v221, %v222
    %v225 = vsel %vm209, %v217, %v224
    %v226 = vrot.slane %v221, 4
    %v228 = vshrl.u32 %v178, 16
    %v230 = vrot.slane %v228, 7
    %v231 = vshll.u32 %v178, 16
    %v233 = vor.u32 %v230, %v231
    %v234 = vrot.slane %v230, 4
    %v236 = vshrl.u32 %v179, 16
    %v238 = vrot.slane %v236, 7
    %v239 = vshll.u32 %v179, 16
    %v241 = vor.u32 %v238, %v239
    %v242 = vsel %vm209, %v234, %v241
    %v243 = vrot.slane %v238, 4
    %v245 = vshrl.u32 %v180, 16
    %v247 = vrot.slane %v245, 7
    %v248 = vshll.u32 %v180, 16
    %v250 = vor.u32 %v247, %v248
    %v251 = vrot.slane %v247, 4
    %v253 = vshrl.u32 %v181, 16
    %v255 = vrot.slane %v253, 7
    %v256 = vshll.u32 %v181, 16
    %v258 = vor.u32 %v255, %v256
    %v259 = vsel %vm209, %v251, %v258
    %v260 = vrot.slane %v255, 4
    %v262 = vshrl.u32 %v182, 16
    %v264 = vrot.slane %v262, 7
    %v265 = vshll.u32 %v182, 16
    %v267 = vor.u32 %v264, %v265
    %v268 = vrot.slane %v264, 4
    %v270 = vshrl.u32 %v183, 16
    %v272 = vrot.slane %v270, 7
    %v273 = vshll.u32 %v183, 16
    %v275 = vor.u32 %v272, %v273
    %v276 = vsel %vm209, %v268, %v275
    %v277 = vrot.slane %v272, 4
    %v279 = vshrl.u32 %v184, 16
    %v281 = vrot.slane %v279, 7
    %v282 = vshll.u32 %v184, 16
    %v284 = vor.u32 %v281, %v282
    %v285 = vrot.slane %v281, 4
    %v287 = vshrl.u32 %v185, 16
    %v289 = vrot.slane %v287, 7
    %v290 = vshll.u32 %v185, 16
    %v292 = vor.u32 %v289, %v290
    %v293 = vsel %vm209, %v285, %v292
    %v294 = vrot.slane %v289, 4
    %v296 = vshrl.u32 %v186, 16
    %v298 = vrot.slane %v296, 7
    %v299 = vshll.u32 %v186, 16
    %v301 = vor.u32 %v298, %v299
    %v302 = vrot.slane %v298, 4
    %v304 = vshrl.u32 %v187, 16
    %v306 = vrot.slane %v304, 7
    %v307 = vshll.u32 %v187, 16
    %v309 = vor.u32 %v306, %v307
    %v310 = vsel %vm209, %v302, %v309
    %v311 = vrot.slane %v306, 4
    %v313 = vshrl.u32 %v188, 16
    %v315 = vrot.slane %v313, 7
    %v316 = vshll.u32 %v188, 16
    %v318 = vor.u32 %v315, %v316
    %v319 = vrot.slane %v315, 4
    %v321 = vshrl.u32 %v189, 16
    %v323 = vrot.slane %v321, 7
    %v324 = vshll.u32 %v189, 16
    %v326 = vor.u32 %v323, %v324
    %v327 = vsel %vm209, %v319, %v326
    %v328 = vrot.slane %v323, 4
    %v330 = vshrl.u32 %v190, 16
    %v332 = vrot.slane %v330, 7
    %v333 = vshll.u32 %v190, 16
    %v335 = vor.u32 %v332, %v333
    %v336 = vrot.slane %v332, 4
    %v338 = vshrl.u32 %v191, 16
    %v340 = vrot.slane %v338, 7
    %v341 = vshll.u32 %v191, 16
    %v343 = vor.u32 %v340, %v341
    %v344 = vsel %vm209, %v336, %v343
    %v345 = vrot.slane %v340, 4
    %v347 = vshrl.u32 %v192, 16
    %v349 = vrot.slane %v347, 7
    %v350 = vshll.u32 %v192, 16
    %v352 = vor.u32 %v349, %v350
    %v353 = vrot.slane %v349, 4
    %v355 = vshrl.u32 %v193, 16
    %v357 = vrot.slane %v355, 7
    %v358 = vshll.u32 %v193, 16
    %v360 = vor.u32 %v357, %v358
    %v361 = vsel %vm209, %v353, %v360
    %v362 = vrot.slane %v357, 4
    %v364 = vshrl.u32 %v194, 16
    %v366 = vrot.slane %v364, 7
    %v367 = vshll.u32 %v194, 16
    %v369 = vor.u32 %v366, %v367
    %v370 = vrot.slane %v366, 4
    %v372 = vshrl.u32 %v195, 16
    %v374 = vrot.slane %v372, 7
    %v375 = vshll.u32 %v195, 16
    %v377 = vor.u32 %v374, %v375
    %v378 = vsel %vm209, %v370, %v377
    %v379 = vrot.slane %v374, 4
    %v381 = vshrl.u32 %v196, 16
    %v383 = vrot.slane %v381, 7
    %v384 = vshll.u32 %v196, 16
    %v386 = vor.u32 %v383, %v384
    %v387 = vrot.slane %v383, 4
    %v389 = vshrl.u32 %v197, 16
    %v391 = vrot.slane %v389, 7
    %v392 = vshll.u32 %v197, 16
    %v394 = vor.u32 %v391, %v392
    %v395 = vsel %vm209, %v387, %v394
    %v396 = vrot.slane %v391, 4
    %v398 = vshrl.u32 %v198, 16
    %v400 = vrot.slane %v398, 7
    %v401 = vshll.u32 %v198, 16
    %v403 = vor.u32 %v400, %v401
    %v404 = vrot.slane %v400, 4
    %v406 = vshrl.u32 %v199, 16
    %v408 = vrot.slane %v406, 7
    %v409 = vshll.u32 %v199, 16
    %v411 = vor.u32 %v408, %v409
    %v412 = vsel %vm209, %v404, %v411
    %v413 = vrot.slane %v408, 4
    %v415 = vshrl.u32 %v200, 16
    %v417 = vrot.slane %v415, 7
    %v418 = vshll.u32 %v200, 16
    %v420 = vor.u32 %v417, %v418
    %v421 = vrot.slane %v417, 4
    %v423 = vshrl.u32 %v201, 16
    %v425 = vrot.slane %v423, 7
    %v426 = vshll.u32 %v201, 16
    %v428 = vor.u32 %v425, %v426
    %v429 = vsel %vm209, %v421, %v428
    %v430 = vrot.slane %v425, 4
    %v432 = vshrl.u32 %v202, 16
    %v434 = vrot.slane %v432, 7
    %v435 = vshll.u32 %v202, 16
    %v437 = vor.u32 %v434, %v435
    %v438 = vrot.slane %v434, 4
    %v440 = vshrl.u32 %v203, 16
    %v442 = vrot.slane %v440, 7
    %v443 = vshll.u32 %v203, 16
    %v445 = vor.u32 %v442, %v443
    %v446 = vsel %vm209, %v438, %v445
    %v447 = vrot.slane %v442, 4
    %v449 = vshrl.u32 %v204, 16
    %v451 = vrot.slane %v449, 7
    %v452 = vshll.u32 %v204, 16
    %v454 = vor.u32 %v451, %v452
    %v455 = vrot.slane %v451, 4
    %v457 = vshrl.u32 %v205, 16
    %v459 = vrot.slane %v457, 7
    %v460 = vshll.u32 %v205, 16
    %v462 = vor.u32 %v459, %v460
    %v463 = vsel %vm209, %v455, %v462
    %v464 = vrot.slane %v459, 4
    %v466 = vshrl.u32 %v206, 16
    %v468 = vrot.slane %v466, 7
    %v469 = vshll.u32 %v206, 16
    %v471 = vor.u32 %v468, %v469
    %v472 = vrot.slane %v468, 4
    %v474 = vshrl.u32 %v207, 16
    %v476 = vrot.slane %v474, 7
    %v477 = vshll.u32 %v207, 16
    %v479 = vor.u32 %v476, %v477
    %v480 = vsel %vm209, %v472, %v479
    %v481 = vrot.slane %v476, 4
    %s530 = scalar_lea.vmem [#allocation2], 12
    %vm531 = vcmask 60416
    %vm532 = vmand %vm531, %vm120
    %v533 = vld [vmem:[%s530] sm:$0xf]
    %v534 = vsel %vm532, %v216, %v533
    %535 = vst [vmem:[%s530] sm:$0xf] %v534
    %536 = vst.msk [vmem:[%s530 + $0x4] sm:$0xf] %vm54, %v225
    %v537 = vld [vmem:[%s530 + $0x8] sm:$0x1]
    %v538 = vsel %vm65, %v226, %v537
    %539 = vst [vmem:[%s530 + $0x8] sm:$0x1] %v538
    %v540 = vld [vmem:[%s530 + $0xc] sm:$0xf]
    %v541 = vsel %vm532, %v233, %v540
    %542 = vst [vmem:[%s530 + $0xc] sm:$0xf] %v541
    %543 = vst.msk [vmem:[%s530 + $0x10] sm:$0xf] %vm54, %v242
    %v544 = vld [vmem:[%s530 + $0x14] sm:$0x1]
    %v545 = vsel %vm65, %v243, %v544
    %546 = vst [vmem:[%s530 + $0x14] sm:$0x1] %v545
    %v547 = vld [vmem:[%s530 + $0x18] sm:$0xf]
    %v548 = vsel %vm532, %v250, %v547
    %549 = vst [vmem:[%s530 + $0x18] sm:$0xf] %v548
    %550 = vst.msk [vmem:[%s530 + $0x1c] sm:$0xf] %vm54, %v259
    %v551 = vld [vmem:[%s530 + $0x20] sm:$0x1]
    %v552 = vsel %vm65, %v260, %v551
    %553 = vst [vmem:[%s530 + $0x20] sm:$0x1] %v552
    %v554 = vld [vmem:[%s530 + $0x24] sm:$0xf]
    %v555 = vsel %vm532, %v267, %v554
    %556 = vst [vmem:[%s530 + $0x24] sm:$0xf] %v555
    %557 = vst.msk [vmem:[%s530 + $0x28] sm:$0xf] %vm54, %v276
    %v558 = vld [vmem:[%s530 + $0x2c] sm:$0x1]
    %v559 = vsel %vm65, %v277, %v558
    %560 = vst [vmem:[%s530 + $0x2c] sm:$0x1] %v559
    %v561 = vld [vmem:[%s530 + $0x30] sm:$0xf]
    %v562 = vsel %vm532, %v284, %v561
    %563 = vst [vmem:[%s530 + $0x30] sm:$0xf] %v562
    %564 = vst.msk [vmem:[%s530 + $0x34] sm:$0xf] %vm54, %v293
    %v565 = vld [vmem:[%s530 + $0x38] sm:$0x1]
    %v566 = vsel %vm65, %v294, %v565
    %567 = vst [vmem:[%s530 + $0x38] sm:$0x1] %v566
    %v568 = vld [vmem:[%s530 + $0x3c] sm:$0xf]
    %v569 = vsel %vm532, %v301, %v568
    %570 = vst [vmem:[%s530 + $0x3c] sm:$0xf] %v569
    %571 = vst.msk [vmem:[%s530 + $0x40] sm:$0xf] %vm54, %v310
    %v572 = vld [vmem:[%s530 + $0x44] sm:$0x1]
    %v573 = vsel %vm65, %v311, %v572
    %574 = vst [vmem:[%s530 + $0x44] sm:$0x1] %v573
    %v575 = vld [vmem:[%s530 + $0x48] sm:$0xf]
    %v576 = vsel %vm532, %v318, %v575
    %577 = vst [vmem:[%s530 + $0x48] sm:$0xf] %v576
    %578 = vst.msk [vmem:[%s530 + $0x4c] sm:$0xf] %vm54, %v327
    %v579 = vld [vmem:[%s530 + $0x50] sm:$0x1]
    %v580 = vsel %vm65, %v328, %v579
    %581 = vst [vmem:[%s530 + $0x50] sm:$0x1] %v580
    %v582 = vld [vmem:[%s530 + $0x54] sm:$0xf]
    %v583 = vsel %vm532, %v335, %v582
    %584 = vst [vmem:[%s530 + $0x54] sm:$0xf] %v583
    %585 = vst.msk [vmem:[%s530 + $0x58] sm:$0xf] %vm54, %v344
    %v586 = vld [vmem:[%s530 + $0x5c] sm:$0x1]
    %v587 = vsel %vm65, %v345, %v586
    %588 = vst [vmem:[%s530 + $0x5c] sm:$0x1] %v587
    %v589 = vld [vmem:[%s530 + $0x60] sm:$0xf]
    %v590 = vsel %vm532, %v352, %v589
    %591 = vst [vmem:[%s530 + $0x60] sm:$0xf] %v590
    %592 = vst.msk [vmem:[%s530 + $0x64] sm:$0xf] %vm54, %v361
    %v593 = vld [vmem:[%s530 + $0x68] sm:$0x1]
    %v594 = vsel %vm65, %v362, %v593
    %595 = vst [vmem:[%s530 + $0x68] sm:$0x1] %v594
    %v596 = vld [vmem:[%s530 + $0x6c] sm:$0xf]
    %v597 = vsel %vm532, %v369, %v596
    %598 = vst [vmem:[%s530 + $0x6c] sm:$0xf] %v597
    %599 = vst.msk [vmem:[%s530 + $0x70] sm:$0xf] %vm54, %v378
    %v600 = vld [vmem:[%s530 + $0x74] sm:$0x1]
    %v601 = vsel %vm65, %v379, %v600
    %602 = vst [vmem:[%s530 + $0x74] sm:$0x1] %v601
    %v603 = vld [vmem:[%s530 + $0x78] sm:$0xf]
    %v604 = vsel %vm532, %v386, %v603
    %605 = vst [vmem:[%s530 + $0x78] sm:$0xf] %v604
    %606 = vst.msk [vmem:[%s530 + $0x7c] sm:$0xf] %vm54, %v395
    %v607 = vld [vmem:[%s530 + $0x80] sm:$0x1]
    %v608 = vsel %vm65, %v396, %v607
    %609 = vst [vmem:[%s530 + $0x80] sm:$0x1] %v608
    %v610 = vld [vmem:[%s530 + $0x84] sm:$0xf]
    %v611 = vsel %vm532, %v403, %v610
    %612 = vst [vmem:[%s530 + $0x84] sm:$0xf] %v611
    %613 = vst.msk [vmem:[%s530 + $0x88] sm:$0xf] %vm54, %v412
    %v614 = vld [vmem:[%s530 + $0x8c] sm:$0x1]
    %v615 = vsel %vm65, %v413, %v614
    %616 = vst [vmem:[%s530 + $0x8c] sm:$0x1] %v615
    %v617 = vld [vmem:[%s530 + $0x90] sm:$0xf]
    %v618 = vsel %vm532, %v420, %v617
    %619 = vst [vmem:[%s530 + $0x90] sm:$0xf] %v618
    %620 = vst.msk [vmem:[%s530 + $0x94] sm:$0xf] %vm54, %v429
    %v621 = vld [vmem:[%s530 + $0x98] sm:$0x1]
    %v622 = vsel %vm65, %v430, %v621
    %623 = vst [vmem:[%s530 + $0x98] sm:$0x1] %v622
    %v624 = vld [vmem:[%s530 + $0x9c] sm:$0xf]
    %v625 = vsel %vm532, %v437, %v624
    %626 = vst [vmem:[%s530 + $0x9c] sm:$0xf] %v625
    %627 = vst.msk [vmem:[%s530 + $0xa0] sm:$0xf] %vm54, %v446
    %v628 = vld [vmem:[%s530 + $0xa4] sm:$0x1]
    %v629 = vsel %vm65, %v447, %v628
    %630 = vst [vmem:[%s530 + $0xa4] sm:$0x1] %v629
    %v631 = vld [vmem:[%s530 + $0xa8] sm:$0xf]
    %v632 = vsel %vm532, %v454, %v631
    %633 = vst [vmem:[%s530 + $0xa8] sm:$0xf] %v632
    %634 = vst.msk [vmem:[%s530 + $0xac] sm:$0xf] %vm54, %v463
    %v635 = vld [vmem:[%s530 + $0xb0] sm:$0x1]
    %v636 = vsel %vm65, %v464, %v635
    %637 = vst [vmem:[%s530 + $0xb0] sm:$0x1] %v636
    %v638 = vld [vmem:[%s530 + $0xb4] sm:$0xf]
    %v639 = vsel %vm532, %v471, %v638
    %640 = vst [vmem:[%s530 + $0xb4] sm:$0xf] %v639
    %641 = vst.msk [vmem:[%s530 + $0xb8] sm:$0xf] %vm54, %v480
    %v642 = vld [vmem:[%s530 + $0xbc] sm:$0x1]
    %v643 = vsel %vm65, %v481, %v642
    %644 = vst [vmem:[%s530 + $0xbc] sm:$0x1] %v643
    %v645 = vld [vmem:[#allocation2] sm:$0xf]
    %v646 = vld [vmem:[#allocation2 + $0x4] sm:$0xf]
    %v647 = vld [vmem:[#allocation2 + $0xc] sm:$0xf]
    %v648 = vld [vmem:[#allocation2 + $0x10] sm:$0xf]
    %v649 = vld [vmem:[#allocation2 + $0x18] sm:$0xf]
    %v650 = vld [vmem:[#allocation2 + $0x1c] sm:$0xf]
    %v651 = vld [vmem:[#allocation2 + $0x24] sm:$0xf]
    %v652 = vld [vmem:[#allocation2 + $0x28] sm:$0xf]
    %v653 = vld [vmem:[#allocation2 + $0x30] sm:$0xf]
    %v654 = vld [vmem:[#allocation2 + $0x34] sm:$0xf]
    %v655 = vld [vmem:[#allocation2 + $0x3c] sm:$0xf]
    %v656 = vld [vmem:[#allocation2 + $0x40] sm:$0xf]
    %v657 = vld [vmem:[#allocation2 + $0x48] sm:$0xf]
    %v658 = vld [vmem:[#allocation2 + $0x4c] sm:$0xf]
    %v659 = vld [vmem:[#allocation2 + $0x54] sm:$0xf]
    %v660 = vld [vmem:[#allocation2 + $0x58] sm:$0xf]
    %v661 = vld [vmem:[#allocation2 + $0x60] sm:$0xf]
    %v662 = vld [vmem:[#allocation2 + $0x64] sm:$0xf]
    %v663 = vld [vmem:[#allocation2 + $0x6c] sm:$0xf]
    %v664 = vld [vmem:[#allocation2 + $0x70] sm:$0xf]
    %v665 = vld [vmem:[#allocation2 + $0x78] sm:$0xf]
    %v666 = vld [vmem:[#allocation2 + $0x7c] sm:$0xf]
    %v667 = vld [vmem:[#allocation2 + $0x84] sm:$0xf]
    %v668 = vld [vmem:[#allocation2 + $0x88] sm:$0xf]
    %v669 = vld [vmem:[#allocation2 + $0x90] sm:$0xf]
    %v670 = vld [vmem:[#allocation2 + $0x94] sm:$0xf]
    %v671 = vld [vmem:[#allocation2 + $0x9c] sm:$0xf]
    %v672 = vld [vmem:[#allocation2 + $0xa0] sm:$0xf]
    %v673 = vld [vmem:[#allocation2 + $0xa8] sm:$0xf]
    %v674 = vld [vmem:[#allocation2 + $0xac] sm:$0xf]
    %v675 = vld [vmem:[#allocation2 + $0xb4] sm:$0xf]
    %v676 = vld [vmem:[#allocation2 + $0xb8] sm:$0xf]
    %v677 = vld [vmem:[%s1] sm:$0xf]
    %v678 = vld [vmem:[#allocation2 + $0x8] sm:$0x1]
    %v679 = vld [vmem:[#allocation2 + $0x14] sm:$0x1]
    %v680 = vld [vmem:[#allocation2 + $0x20] sm:$0x1]
    %v681 = vld [vmem:[#allocation2 + $0x2c] sm:$0x1]
    %v682 = vld [vmem:[#allocation2 + $0x38] sm:$0x1]
    %v683 = vld [vmem:[#allocation2 + $0x44] sm:$0x1]
    %v684 = vld [vmem:[#allocation2 + $0x50] sm:$0x1]
    %v685 = vld [vmem:[#allocation2 + $0x5c] sm:$0x1]
    %v686 = vld [vmem:[#allocation2 + $0x68] sm:$0x1]
    %v687 = vld [vmem:[#allocation2 + $0x74] sm:$0x1]
    %v688 = vld [vmem:[#allocation2 + $0x80] sm:$0x1]
    %v689 = vld [vmem:[#allocation2 + $0x8c] sm:$0x1]
    %v690 = vld [vmem:[#allocation2 + $0x98] sm:$0x1]
    %v691 = vld [vmem:[#allocation2 + $0xa4] sm:$0x1]
    %v692 = vld [vmem:[#allocation2 + $0xb0] sm:$0x1]
    %v693 = vld [vmem:[#allocation2 + $0xbc] sm:$0x1]
    %vm694 = vsmask.f32 3328
    %vm695 = vsmask.f32 7440
    %vm696 = vmor %vm694, %vm695
    %v698 = vshrl.u32 %v645, 16
    %v700 = vrot.slane %v698, 4
    %v701 = vshll.u32 %v645, 16
    %v703 = vrot.slane %v701, 5
    %v704 = vor.u32 %v700, %v703
    %v705 = vrot.slane %v704, 4
    %v707 = vshll.u32 %v646, 16
    %v709 = vrot.slane %v707, 5
    %v710 = vsel %vm696, %v705, %v709
    %v711 = vshrl.u32 %v646, 16
    %v713 = vrot.slane %v711, 4
    %v714 = vor.u32 %v713, %v709
    %v715 = vrot.slane %v714, 4
    %v717 = vshll.u32 %v678, 16
    %v719 = vrot.slane %v717, 5
    %v720 = vsel %vm696, %v715, %v719
    %v722 = vshrl.u32 %v647, 16
    %v724 = vrot.slane %v722, 4
    %v725 = vshll.u32 %v647, 16
    %v727 = vrot.slane %v725, 5
    %v728 = vor.u32 %v724, %v727
    %v729 = vrot.slane %v728, 4
    %v731 = vshll.u32 %v648, 16
    %v733 = vrot.slane %v731, 5
    %v734 = vsel %vm696, %v729, %v733
    %v735 = vshrl.u32 %v648, 16
    %v737 = vrot.slane %v735, 4
    %v738 = vor.u32 %v737, %v733
    %v739 = vrot.slane %v738, 4
    %v741 = vshll.u32 %v679, 16
    %v743 = vrot.slane %v741, 5
    %v744 = vsel %vm696, %v739, %v743
    %v746 = vshrl.u32 %v649, 16
    %v748 = vrot.slane %v746, 4
    %v749 = vshll.u32 %v649, 16
    %v751 = vrot.slane %v749, 5
    %v752 = vor.u32 %v748, %v751
    %v753 = vrot.slane %v752, 4
    %v755 = vshll.u32 %v650, 16
    %v757 = vrot.slane %v755, 5
    %v758 = vsel %vm696, %v753, %v757
    %v759 = vshrl.u32 %v650, 16
    %v761 = vrot.slane %v759, 4
    %v762 = vor.u32 %v761, %v757
    %v763 = vrot.slane %v762, 4
    %v765 = vshll.u32 %v680, 16
    %v767 = vrot.slane %v765, 5
    %v768 = vsel %vm696, %v763, %v767
    %v770 = vshrl.u32 %v651, 16
    %v772 = vrot.slane %v770, 4
    %v773 = vshll.u32 %v651, 16
    %v775 = vrot.slane %v773, 5
    %v776 = vor.u32 %v772, %v775
    %v777 = vrot.slane %v776, 4
    %v779 = vshll.u32 %v652, 16
    %v781 = vrot.slane %v779, 5
    %v782 = vsel %vm696, %v777, %v781
    %v783 = vshrl.u32 %v652, 16
    %v785 = vrot.slane %v783, 4
    %v786 = vor.u32 %v785, %v781
    %v787 = vrot.slane %v786, 4
    %v789 = vshll.u32 %v681, 16
    %v791 = vrot.slane %v789, 5
    %v792 = vsel %vm696, %v787, %v791
    %v794 = vshrl.u32 %v653, 16
    %v796 = vrot.slane %v794, 4
    %v797 = vshll.u32 %v653, 16
    %v799 = vrot.slane %v797, 5
    %v800 = vor.u32 %v796, %v799
    %v801 = vrot.slane %v800, 4
    %v803 = vshll.u32 %v654, 16
    %v805 = vrot.slane %v803, 5
    %v806 = vsel %vm696, %v801, %v805
    %v807 = vshrl.u32 %v654, 16
    %v809 = vrot.slane %v807, 4
    %v810 = vor.u32 %v809, %v805
    %v811 = vrot.slane %v810, 4
    %v813 = vshll.u32 %v682, 16
    %v815 = vrot.slane %v813, 5
    %v816 = vsel %vm696, %v811, %v815
    %v818 = vshrl.u32 %v655, 16
    %v820 = vrot.slane %v818, 4
    %v821 = vshll.u32 %v655, 16
    %v823 = vrot.slane %v821, 5
    %v824 = vor.u32 %v820, %v823
    %v825 = vrot.slane %v824, 4
    %v827 = vshll.u32 %v656, 16
    %v829 = vrot.slane %v827, 5
    %v830 = vsel %vm696, %v825, %v829
    %v831 = vshrl.u32 %v656, 16
    %v833 = vrot.slane %v831, 4
    %v834 = vor.u32 %v833, %v829
    %v835 = vrot.slane %v834, 4
    %v837 = vshll.u32 %v683, 16
    %v839 = vrot.slane %v837, 5
    %v840 = vsel %vm696, %v835, %v839
    %v842 = vshrl.u32 %v657, 16
    %v844 = vrot.slane %v842, 4
    %v845 = vshll.u32 %v657, 16
    %v847 = vrot.slane %v845, 5
    %v848 = vor.u32 %v844, %v847
    %v849 = vrot.slane %v848, 4
    %v851 = vshll.u32 %v658, 16
    %v853 = vrot.slane %v851, 5
    %v854 = vsel %vm696, %v849, %v853
    %v855 = vshrl.u32 %v658, 16
    %v857 = vrot.slane %v855, 4
    %v858 = vor.u32 %v857, %v853
    %v859 = vrot.slane %v858, 4
    %v861 = vshll.u32 %v684, 16
    %v863 = vrot.slane %v861, 5
    %v864 = vsel %vm696, %v859, %v863
    %v866 = vshrl.u32 %v659, 16
    %v868 = vrot.slane %v866, 4
    %v869 = vshll.u32 %v659, 16
    %v871 = vrot.slane %v869, 5
    %v872 = vor.u32 %v868, %v871
    %v873 = vrot.slane %v872, 4
    %v875 = vshll.u32 %v660, 16
    %v877 = vrot.slane %v875, 5
    %v878 = vsel %vm696, %v873, %v877
    %v879 = vshrl.u32 %v660, 16
    %v881 = vrot.slane %v879, 4
    %v882 = vor.u32 %v881, %v877
    %v883 = vrot.slane %v882, 4
    %v885 = vshll.u32 %v685, 16
    %v887 = vrot.slane %v885, 5
    %v888 = vsel %vm696, %v883, %v887
    %v890 = vshrl.u32 %v661, 16
    %v892 = vrot.slane %v890, 4
    %v893 = vshll.u32 %v661, 16
    %v895 = vrot.slane %v893, 5
    %v896 = vor.u32 %v892, %v895
    %v897 = vrot.slane %v896, 4
    %v899 = vshll.u32 %v662, 16
    %v901 = vrot.slane %v899, 5
    %v902 = vsel %vm696, %v897, %v901
    %v903 = vshrl.u32 %v662, 16
    %v905 = vrot.slane %v903, 4
    %v906 = vor.u32 %v905, %v901
    %v907 = vrot.slane %v906, 4
    %v909 = vshll.u32 %v686, 16
    %v911 = vrot.slane %v909, 5
    %v912 = vsel %vm696, %v907, %v911
    %v914 = vshrl.u32 %v663, 16
    %v916 = vrot.slane %v914, 4
    %v917 = vshll.u32 %v663, 16
    %v919 = vrot.slane %v917, 5
    %v920 = vor.u32 %v916, %v919
    %v921 = vrot.slane %v920, 4
    %v923 = vshll.u32 %v664, 16
    %v925 = vrot.slane %v923, 5
    %v926 = vsel %vm696, %v921, %v925
    %v927 = vshrl.u32 %v664, 16
    %v929 = vrot.slane %v927, 4
    %v930 = vor.u32 %v929, %v925
    %v931 = vrot.slane %v930, 4
    %v933 = vshll.u32 %v687, 16
    %v935 = vrot.slane %v933, 5
    %v936 = vsel %vm696, %v931, %v935
    %v938 = vshrl.u32 %v665, 16
    %v940 = vrot.slane %v938, 4
    %v941 = vshll.u32 %v665, 16
    %v943 = vrot.slane %v941, 5
    %v944 = vor.u32 %v940, %v943
    %v945 = vrot.slane %v944, 4
    %v947 = vshll.u32 %v666, 16
    %v949 = vrot.slane %v947, 5
    %v950 = vsel %vm696, %v945, %v949
    %v951 = vshrl.u32 %v666, 16
    %v953 = vrot.slane %v951, 4
    %v954 = vor.u32 %v953, %v949
    %v955 = vrot.slane %v954, 4
    %v957 = vshll.u32 %v688, 16
    %v959 = vrot.slane %v957, 5
    %v960 = vsel %vm696, %v955, %v959
    %v962 = vshrl.u32 %v667, 16
    %v964 = vrot.slane %v962, 4
    %v965 = vshll.u32 %v667, 16
    %v967 = vrot.slane %v965, 5
    %v968 = vor.u32 %v964, %v967
    %v969 = vrot.slane %v968, 4
    %v971 = vshll.u32 %v668, 16
    %v973 = vrot.slane %v971, 5
    %v974 = vsel %vm696, %v969, %v973
    %v975 = vshrl.u32 %v668, 16
    %v977 = vrot.slane %v975, 4
    %v978 = vor.u32 %v977, %v973
    %v979 = vrot.slane %v978, 4
    %v981 = vshll.u32 %v689, 16
    %v983 = vrot.slane %v981, 5
    %v984 = vsel %vm696, %v979, %v983
    %v986 = vshrl.u32 %v669, 16
    %v988 = vrot.slane %v986, 4
    %v989 = vshll.u32 %v669, 16
    %v991 = vrot.slane %v989, 5
    %v992 = vor.u32 %v988, %v991
    %v993 = vrot.slane %v992, 4
    %v995 = vshll.u32 %v670, 16
    %v997 = vrot.slane %v995, 5
    %v998 = vsel %vm696, %v993, %v997
    %v999 = vshrl.u32 %v670, 16
    %v1001 = vrot.slane %v999, 4
    %v1002 = vor.u32 %v1001, %v997
    %v1003 = vrot.slane %v1002, 4
    %v1005 = vshll.u32 %v690, 16
    %v1007 = vrot.slane %v1005, 5
    %v1008 = vsel %vm696, %v1003, %v1007
    %v1010 = vshrl.u32 %v671, 16
    %v1012 = vrot.slane %v1010, 4
    %v1013 = vshll.u32 %v671, 16
    %v1015 = vrot.slane %v1013, 5
    %v1016 = vor.u32 %v1012, %v1015
    %v1017 = vrot.slane %v1016, 4
    %v1019 = vshll.u32 %v672, 16
    %v1021 = vrot.slane %v1019, 5
    %v1022 = vsel %vm696, %v1017, %v1021
    %v1023 = vshrl.u32 %v672, 16
    %v1025 = vrot.slane %v1023, 4
    %v1026 = vor.u32 %v1025, %v1021
    %v1027 = vrot.slane %v1026, 4
    %v1029 = vshll.u32 %v691, 16
    %v1031 = vrot.slane %v1029, 5
    %v1032 = vsel %vm696, %v1027, %v1031
    %v1034 = vshrl.u32 %v673, 16
    %v1036 = vrot.slane %v1034, 4
    %v1037 = vshll.u32 %v673, 16
    %v1039 = vrot.slane %v1037, 5
    %v1040 = vor.u32 %v1036, %v1039
    %v1041 = vrot.slane %v1040, 4
    %v1043 = vshll.u32 %v674, 16
    %v1045 = vrot.slane %v1043, 5
    %v1046 = vsel %vm696, %v1041, %v1045
    %v1047 = vshrl.u32 %v674, 16
    %v1049 = vrot.slane %v1047, 4
    %v1050 = vor.u32 %v1049, %v1045
    %v1051 = vrot.slane %v1050, 4
    %v1053 = vshll.u32 %v692, 16
    %v1055 = vrot.slane %v1053, 5
    %v1056 = vsel %vm696, %v1051, %v1055
    %v1058 = vshrl.u32 %v675, 16
    %v1060 = vrot.slane %v1058, 4
    %v1061 = vshll.u32 %v675, 16
    %v1063 = vrot.slane %v1061, 5
    %v1064 = vor.u32 %v1060, %v1063
    %v1065 = vrot.slane %v1064, 4
    %v1067 = vshll.u32 %v676, 16
    %v1069 = vrot.slane %v1067, 5
    %v1070 = vsel %vm696, %v1065, %v1069
    %v1071 = vshrl.u32 %v676, 16
    %v1073 = vrot.slane %v1071, 4
    %v1074 = vor.u32 %v1073, %v1069
    %v1075 = vrot.slane %v1074, 4
    %v1077 = vshll.u32 %v693, 16
    %v1079 = vrot.slane %v1077, 5
    %v1080 = vsel %vm696, %v1075, %v1079
    %s1081 = scalar_lea.vmem %s1, 4
    %v1082 = vld [vmem:[%s1081] sm:$0xf]
    %v1083 = vunpack.c.l.b16 %v710
    %v1084 = vunpack.c.l.b16 %v720
    %v1085 = vunpack.c.l.b16 %v734
    %v1086 = vunpack.c.l.b16 %v744
    %v1087 = vunpack.c.l.b16 %v758
    %v1088 = vunpack.c.l.b16 %v768
    %v1089 = vunpack.c.l.b16 %v782
    %v1090 = vunpack.c.l.b16 %v792
    %v1091 = vunpack.c.l.b16 %v806
    %v1092 = vunpack.c.l.b16 %v816
    %v1093 = vunpack.c.l.b16 %v830
    %v1094 = vunpack.c.l.b16 %v840
    %v1095 = vunpack.c.l.b16 %v854
    %v1096 = vunpack.c.l.b16 %v864
    %v1097 = vunpack.c.l.b16 %v878
    %v1098 = vunpack.c.l.b16 %v888
    %v1099 = vunpack.c.l.b16 %v902
    %v1100 = vunpack.c.l.b16 %v912
    %v1101 = vunpack.c.l.b16 %v926
    %v1102 = vunpack.c.l.b16 %v936
    %v1103 = vunpack.c.l.b16 %v950
    %v1104 = vunpack.c.l.b16 %v960
    %v1105 = vunpack.c.l.b16 %v974
    %v1106 = vunpack.c.l.b16 %v984
    %v1107 = vunpack.c.l.b16 %v998
    %v1108 = vunpack.c.l.b16 %v1008
    %v1109 = vunpack.c.l.b16 %v1022
    %v1110 = vunpack.c.l.b16 %v1032
    %v1111 = vunpack.c.l.b16 %v1046
    %v1112 = vunpack.c.l.b16 %v1056
    %v1113 = vunpack.c.l.b16 %v1070
    %v1114 = vunpack.c.l.b16 %v1080
    %v1115 = vpack.c.b16 %v1084, %v1083
    %v1116 = vpack.c.b16 %v1086, %v1085
    %v1117 = vpack.c.b16 %v1088, %v1087
    %v1118 = vpack.c.b16 %v1090, %v1089
    %v1119 = vpack.c.b16 %v1092, %v1091
    %v1120 = vpack.c.b16 %v1094, %v1093
    %v1121 = vpack.c.b16 %v1096, %v1095
    %v1122 = vpack.c.b16 %v1098, %v1097
    %v1123 = vpack.c.b16 %v1100, %v1099
    %v1124 = vpack.c.b16 %v1102, %v1101
    %v1125 = vpack.c.b16 %v1104, %v1103
    %v1126 = vpack.c.b16 %v1106, %v1105
    %v1127 = vpack.c.b16 %v1108, %v1107
    %v1128 = vpack.c.b16 %v1110, %v1109
    %v1129 = vpack.c.b16 %v1112, %v1111
    %v1130 = vpack.c.b16 %v1114, %v1113
    %vm1131 = vcmask 64512
    %v1133 = vsel %vm1131, %v1115, 0
    %v1136 = vsel %vm1131, %v1116, 0
    %v1139 = vsel %vm1131, %v1117, 0
    %v1142 = vsel %vm1131, %v1118, 0
    %v1145 = vsel %vm1131, %v1119, 0
    %v1148 = vsel %vm1131, %v1120, 0
    %v1151 = vsel %vm1131, %v1121, 0
    %v1154 = vsel %vm1131, %v1122, 0
    %v1157 = vsel %vm1131, %v1123, 0
    %v1160 = vsel %vm1131, %v1124, 0
    %v1163 = vsel %vm1131, %v1125, 0
    %v1166 = vsel %vm1131, %v1126, 0
    %v1169 = vsel %vm1131, %v1127, 0
    %v1172 = vsel %vm1131, %v1128, 0
    %v1175 = vsel %vm1131, %v1129, 0
    %v1178 = vsel %vm1131, %v1130, 0
    %vm1180 = vcmask 1043456
    %v1182 = vsel %vm1180, %v1082, 0
    %1184 = vmatprep.subr.bf16.mxu0 0
    %1185 = vmatpush1.bf16.msra.mxu0 0
    %1186 = vmatprep.subr.bf16.mxu0 0
    %1187 = vmatpush1.bf16.msra.mxu0 0
    %1188 = vmatprep.subr.bf16.mxu0 0
    %1189 = vmatpush1.bf16.msra.mxu0 0
    %1190 = vmatprep.subr.bf16.mxu0 0
    %1191 = vmatpush1.bf16.msra.mxu0 0
    %1192 = vmatprep.subr.bf16.mxu0 0
    %1193 = vmatpush1.bf16.msra.mxu0 0
    %1194 = vmatprep.subr.bf16.mxu0 0
    %1195 = vmatpush1.bf16.msra.mxu0 0
    %1196 = vmatprep.subr.bf16.mxu0 0
    %1197 = vmatpush1.bf16.msra.mxu0 0
    %1198 = vmatprep.subr.bf16.mxu0 0
    %1199 = vmatpush1.bf16.msra.mxu0 %v1182
    %1200 = vmatprep.subr.bf16.mxu0 0
    %1201 = vmatpush2.bf16.msra.mxu0 0
    %1202 = vmatprep.subr.bf16.mxu0 0
    %1203 = vmatpush2.bf16.msra.mxu0 0
    %1204 = vmatprep.subr.bf16.mxu0 0
    %1205 = vmatpush2.bf16.msra.mxu0 0
    %1206 = vmatprep.subr.bf16.mxu0 0
    %1207 = vmatpush2.bf16.msra.mxu0 0
    %1208 = vmatprep.subr.bf16.mxu0 0
    %1209 = vmatpush2.bf16.msra.mxu0 0
    %1210 = vmatprep.subr.bf16.mxu0 0
    %1211 = vmatpush2.bf16.msra.mxu0 0
    %1212 = vmatprep.subr.bf16.mxu0 0
    %1213 = vmatpush2.bf16.msra.mxu0 0
    %1214 = vmatprep.subr.bf16.mxu0 0
    %1215 = vmatpush2.bf16.msra.mxu0 0
    %1216 = vmatprep.mubr.bf16.mxu0 0
    %1217 = vmatmul.mubr.bf16.gmra.mxu0 %v1133
    %v1218 = vpop.f32.mrf.mxu0
    %v1219 = vadd.f32 0.0, %v1218
    %v1220 = vpop.f32.mrf.mxu0
    %v1221 = vpop.f32.mrf.mxu0
    %v1222 = vadd.f32 0.0, %v1221
    %v1223 = vpop.f32.mrf.mxu0
    %1224 = vmatprep.mubr.bf16.mxu0 0
    %1225 = vmatmul.mubr.bf16.gmra.mxu0 %v1136
    %v1226 = vpop.f32.mrf.mxu0
    %v1227 = vadd.f32 0.0, %v1226
    %v1228 = vpop.f32.mrf.mxu0
    %v1229 = vpop.f32.mrf.mxu0
    %v1230 = vadd.f32 0.0, %v1229
    %v1231 = vpop.f32.mrf.mxu0
    %1232 = vmatprep.mubr.bf16.mxu0 0
    %1233 = vmatmul.mubr.bf16.gmra.mxu0 %v1139
    %v1234 = vpop.f32.mrf.mxu0
    %v1235 = vadd.f32 0.0, %v1234
    %v1236 = vpop.f32.mrf.mxu0
    %v1237 = vpop.f32.mrf.mxu0
    %v1238 = vadd.f32 0.0, %v1237
    %v1239 = vpop.f32.mrf.mxu0
    %1240 = vmatprep.mubr.bf16.mxu0 0
    %1241 = vmatmul.mubr.bf16.gmra.mxu0 %v1142
    %v1242 = vpop.f32.mrf.mxu0
    %v1243 = vadd.f32 0.0, %v1242
    %v1244 = vpop.f32.mrf.mxu0
    %v1245 = vpop.f32.mrf.mxu0
    %v1246 = vadd.f32 0.0, %v1245
    %v1247 = vpop.f32.mrf.mxu0
    %1248 = vmatprep.mubr.bf16.mxu0 0
    %1249 = vmatmul.mubr.bf16.gmra.mxu0 %v1145
    %v1250 = vpop.f32.mrf.mxu0
    %v1251 = vadd.f32 0.0, %v1250
    %v1252 = vpop.f32.mrf.mxu0
    %v1253 = vpop.f32.mrf.mxu0
    %v1254 = vadd.f32 0.0, %v1253
    %v1255 = vpop.f32.mrf.mxu0
    %1256 = vmatprep.mubr.bf16.mxu0 0
    %1257 = vmatmul.mubr.bf16.gmra.mxu0 %v1148
    %v1258 = vpop.f32.mrf.mxu0
    %v1259 = vadd.f32 0.0, %v1258
    %v1260 = vpop.f32.mrf.mxu0
    %v1261 = vpop.f32.mrf.mxu0
    %v1262 = vadd.f32 0.0, %v1261
    %v1263 = vpop.f32.mrf.mxu0
    %1264 = vmatprep.mubr.bf16.mxu0 0
    %1265 = vmatmul.mubr.bf16.gmra.mxu0 %v1151
    %v1266 = vpop.f32.mrf.mxu0
    %v1267 = vadd.f32 0.0, %v1266
    %v1268 = vpop.f32.mrf.mxu0
    %v1269 = vpop.f32.mrf.mxu0
    %v1270 = vadd.f32 0.0, %v1269
    %v1271 = vpop.f32.mrf.mxu0
    %1272 = vmatprep.mubr.bf16.mxu0 0
    %1273 = vmatmul.mubr.bf16.gmra.mxu0 %v1154
    %v1274 = vpop.f32.mrf.mxu0
    %v1275 = vadd.f32 0.0, %v1274
    %v1276 = vpop.f32.mrf.mxu0
    %v1277 = vpop.f32.mrf.mxu0
    %v1278 = vadd.f32 0.0, %v1277
    %v1279 = vpop.f32.mrf.mxu0
    %1280 = vmatprep.mubr.bf16.mxu0 0
    %1281 = vmatmul.mubr.bf16.gmra.mxu0 %v1157
    %v1282 = vpop.f32.mrf.mxu0
    %v1283 = vadd.f32 0.0, %v1282
    %v1284 = vpop.f32.mrf.mxu0
    %v1285 = vpop.f32.mrf.mxu0
    %v1286 = vadd.f32 0.0, %v1285
    %v1287 = vpop.f32.mrf.mxu0
    %1288 = vmatprep.mubr.bf16.mxu0 0
    %1289 = vmatmul.mubr.bf16.gmra.mxu0 %v1160
    %v1290 = vpop.f32.mrf.mxu0
    %v1291 = vadd.f32 0.0, %v1290
    %v1292 = vpop.f32.mrf.mxu0
    %v1293 = vpop.f32.mrf.mxu0
    %v1294 = vadd.f32 0.0, %v1293
    %v1295 = vpop.f32.mrf.mxu0
    %1296 = vmatprep.mubr.bf16.mxu0 0
    %1297 = vmatmul.mubr.bf16.gmra.mxu0 %v1163
    %v1298 = vpop.f32.mrf.mxu0
    %v1299 = vadd.f32 0.0, %v1298
    %v1300 = vpop.f32.mrf.mxu0
    %v1301 = vpop.f32.mrf.mxu0
    %v1302 = vadd.f32 0.0, %v1301
    %v1303 = vpop.f32.mrf.mxu0
    %1304 = vmatprep.mubr.bf16.mxu0 0
    %1305 = vmatmul.mubr.bf16.gmra.mxu0 %v1166
    %v1306 = vpop.f32.mrf.mxu0
    %v1307 = vadd.f32 0.0, %v1306
    %v1308 = vpop.f32.mrf.mxu0
    %v1309 = vpop.f32.mrf.mxu0
    %v1310 = vadd.f32 0.0, %v1309
    %v1311 = vpop.f32.mrf.mxu0
    %1312 = vmatprep.mubr.bf16.mxu0 0
    %1313 = vmatmul.mubr.bf16.gmra.mxu0 %v1169
    %v1314 = vpop.f32.mrf.mxu0
    %v1315 = vadd.f32 0.0, %v1314
    %v1316 = vpop.f32.mrf.mxu0
    %v1317 = vpop.f32.mrf.mxu0
    %v1318 = vadd.f32 0.0, %v1317
    %v1319 = vpop.f32.mrf.mxu0
    %1320 = vmatprep.mubr.bf16.mxu0 0
    %1321 = vmatmul.mubr.bf16.gmra.mxu0 %v1172
    %v1322 = vpop.f32.mrf.mxu0
    %v1323 = vadd.f32 0.0, %v1322
    %v1324 = vpop.f32.mrf.mxu0
    %v1325 = vpop.f32.mrf.mxu0
    %v1326 = vadd.f32 0.0, %v1325
    %v1327 = vpop.f32.mrf.mxu0
    %1328 = vmatprep.mubr.bf16.mxu0 0
    %1329 = vmatmul.mubr.bf16.gmra.mxu0 %v1175
    %v1330 = vpop.f32.mrf.mxu0
    %v1331 = vadd.f32 0.0, %v1330
    %v1332 = vpop.f32.mrf.mxu0
    %v1333 = vpop.f32.mrf.mxu0
    %v1334 = vadd.f32 0.0, %v1333
    %v1335 = vpop.f32.mrf.mxu0
    %1336 = vmatprep.mubr.bf16.mxu0 0
    %1337 = vmatmul.mubr.bf16.gmra.mxu0 %v1178
    %v1338 = vpop.f32.mrf.mxu0
    %v1339 = vadd.f32 0.0, %v1338
    %v1340 = vpop.f32.mrf.mxu0
    %v1341 = vpop.f32.mrf.mxu0
    %v1342 = vadd.f32 0.0, %v1341
    %v1343 = vpop.f32.mrf.mxu0
    %1344 = vdwg.mxu0
    %v1377 = vunpack.c.l.b16 %v645
    %v1378 = vunpack.c.l.b16 %v646
    %v1379 = vunpack.c.l.b16 %v647
    %v1380 = vunpack.c.l.b16 %v648
    %v1381 = vunpack.c.l.b16 %v649
    %v1382 = vunpack.c.l.b16 %v650
    %v1383 = vunpack.c.l.b16 %v651
    %v1384 = vunpack.c.l.b16 %v652
    %v1385 = vunpack.c.l.b16 %v653
    %v1386 = vunpack.c.l.b16 %v654
    %v1387 = vunpack.c.l.b16 %v655
    %v1388 = vunpack.c.l.b16 %v656
    %v1389 = vunpack.c.l.b16 %v657
    %v1390 = vunpack.c.l.b16 %v658
    %v1391 = vunpack.c.l.b16 %v659
    %v1392 = vunpack.c.l.b16 %v660
    %v1393 = vunpack.c.l.b16 %v661
    %v1394 = vunpack.c.l.b16 %v662
    %v1395 = vunpack.c.l.b16 %v663
    %v1396 = vunpack.c.l.b16 %v664
    %v1397 = vunpack.c.l.b16 %v665
    %v1398 = vunpack.c.l.b16 %v666
    %v1399 = vunpack.c.l.b16 %v667
    %v1400 = vunpack.c.l.b16 %v668
    %v1401 = vunpack.c.l.b16 %v669
    %v1402 = vunpack.c.l.b16 %v670
    %v1403 = vunpack.c.l.b16 %v671
    %v1404 = vunpack.c.l.b16 %v672
    %v1405 = vunpack.c.l.b16 %v673
    %v1406 = vunpack.c.l.b16 %v674
    %v1407 = vunpack.c.l.b16 %v675
    %v1408 = vunpack.c.l.b16 %v676
    %v1409 = vpack.c.b16 %v1378, %v1377
    %v1410 = vpack.c.b16 %v1380, %v1379
    %v1411 = vpack.c.b16 %v1382, %v1381
    %v1412 = vpack.c.b16 %v1384, %v1383
    %v1413 = vpack.c.b16 %v1386, %v1385
    %v1414 = vpack.c.b16 %v1388, %v1387
    %v1415 = vpack.c.b16 %v1390, %v1389
    %v1416 = vpack.c.b16 %v1392, %v1391
    %v1417 = vpack.c.b16 %v1394, %v1393
    %v1418 = vpack.c.b16 %v1396, %v1395
    %v1419 = vpack.c.b16 %v1398, %v1397
    %v1420 = vpack.c.b16 %v1400, %v1399
    %v1421 = vpack.c.b16 %v1402, %v1401
    %v1422 = vpack.c.b16 %v1404, %v1403
    %v1423 = vpack.c.b16 %v1406, %v1405
    %v1424 = vpack.c.b16 %v1408, %v1407
    %v1426 = vsel %vm1131, %v1409, 0
    %v1429 = vsel %vm1131, %v1410, 0
    %v1432 = vsel %vm1131, %v1411, 0
    %v1435 = vsel %vm1131, %v1412, 0
    %v1438 = vsel %vm1131, %v1413, 0
    %v1441 = vsel %vm1131, %v1414, 0
    %v1444 = vsel %vm1131, %v1415, 0
    %v1447 = vsel %vm1131, %v1416, 0
    %v1450 = vsel %vm1131, %v1417, 0
    %v1453 = vsel %vm1131, %v1418, 0
    %v1456 = vsel %vm1131, %v1419, 0
    %v1459 = vsel %vm1131, %v1420, 0
    %v1462 = vsel %vm1131, %v1421, 0
    %v1465 = vsel %vm1131, %v1422, 0
    %v1468 = vsel %vm1131, %v1423, 0
    %v1471 = vsel %vm1131, %v1424, 0
    %v1474 = vsel %vm1180, %v677, 0
    %1476 = vmatprep.subr.bf16.mxu0 0
    %1477 = vmatpush1.bf16.msra.mxu0 0
    %1478 = vmatprep.subr.bf16.mxu0 0
    %1479 = vmatpush1.bf16.msra.mxu0 0
    %1480 = vmatprep.subr.bf16.mxu0 0
    %1481 = vmatpush1.bf16.msra.mxu0 0
    %1482 = vmatprep.subr.bf16.mxu0 0
    %1483 = vmatpush1.bf16.msra.mxu0 0
    %1484 = vmatprep.subr.bf16.mxu0 0
    %1485 = vmatpush1.bf16.msra.mxu0 0
    %1486 = vmatprep.subr.bf16.mxu0 0
    %1487 = vmatpush1.bf16.msra.mxu0 0
    %1488 = vmatprep.subr.bf16.mxu0 0
    %1489 = vmatpush1.bf16.msra.mxu0 0
    %1490 = vmatprep.subr.bf16.mxu0 0
    %1491 = vmatpush1.bf16.msra.mxu0 %v1474
    %1492 = vmatprep.subr.bf16.mxu0 0
    %1493 = vmatpush2.bf16.msra.mxu0 0
    %1494 = vmatprep.subr.bf16.mxu0 0
    %1495 = vmatpush2.bf16.msra.mxu0 0
    %1496 = vmatprep.subr.bf16.mxu0 0
    %1497 = vmatpush2.bf16.msra.mxu0 0
    %1498 = vmatprep.subr.bf16.mxu0 0
    %1499 = vmatpush2.bf16.msra.mxu0 0
    %1500 = vmatprep.subr.bf16.mxu0 0
    %1501 = vmatpush2.bf16.msra.mxu0 0
    %1502 = vmatprep.subr.bf16.mxu0 0
    %1503 = vmatpush2.bf16.msra.mxu0 0
    %1504 = vmatprep.subr.bf16.mxu0 0
    %1505 = vmatpush2.bf16.msra.mxu0 0
    %1506 = vmatprep.subr.bf16.mxu0 0
    %1507 = vmatpush2.bf16.msra.mxu0 0
    %1508 = vmatprep.mubr.bf16.mxu0 0
    %1509 = vmatmul.mubr.bf16.gmra.mxu0 %v1426
    %v1510 = vpop.f32.mrf.mxu0
    %v1511 = vadd.f32 %v1219, %v1510
    %v1512 = vpop.f32.mrf.mxu0
    %v1513 = vpop.f32.mrf.mxu0
    %v1514 = vadd.f32 %v1222, %v1513
    %v1515 = vpop.f32.mrf.mxu0
    %1516 = vmatprep.mubr.bf16.mxu0 0
    %1517 = vmatmul.mubr.bf16.gmra.mxu0 %v1429
    %v1518 = vpop.f32.mrf.mxu0
    %v1519 = vadd.f32 %v1227, %v1518
    %v1520 = vpop.f32.mrf.mxu0
    %v1521 = vpop.f32.mrf.mxu0
    %v1522 = vadd.f32 %v1230, %v1521
    %v1523 = vpop.f32.mrf.mxu0
    %1524 = vmatprep.mubr.bf16.mxu0 0
    %1525 = vmatmul.mubr.bf16.gmra.mxu0 %v1432
    %v1526 = vpop.f32.mrf.mxu0
    %v1527 = vadd.f32 %v1235, %v1526
    %v1528 = vpop.f32.mrf.mxu0
    %v1529 = vpop.f32.mrf.mxu0
    %v1530 = vadd.f32 %v1238, %v1529
    %v1531 = vpop.f32.mrf.mxu0
    %1532 = vmatprep.mubr.bf16.mxu0 0
    %1533 = vmatmul.mubr.bf16.gmra.mxu0 %v1435
    %v1534 = vpop.f32.mrf.mxu0
    %v1535 = vadd.f32 %v1243, %v1534
    %v1536 = vpop.f32.mrf.mxu0
    %v1537 = vpop.f32.mrf.mxu0
    %v1538 = vadd.f32 %v1246, %v1537
    %v1539 = vpop.f32.mrf.mxu0
    %1540 = vmatprep.mubr.bf16.mxu0 0
    %1541 = vmatmul.mubr.bf16.gmra.mxu0 %v1438
    %v1542 = vpop.f32.mrf.mxu0
    %v1543 = vadd.f32 %v1251, %v1542
    %v1544 = vpop.f32.mrf.mxu0
    %v1545 = vpop.f32.mrf.mxu0
    %v1546 = vadd.f32 %v1254, %v1545
    %v1547 = vpop.f32.mrf.mxu0
    %1548 = vmatprep.mubr.bf16.mxu0 0
    %1549 = vmatmul.mubr.bf16.gmra.mxu0 %v1441
    %v1550 = vpop.f32.mrf.mxu0
    %v1551 = vadd.f32 %v1259, %v1550
    %v1552 = vpop.f32.mrf.mxu0
    %v1553 = vpop.f32.mrf.mxu0
    %v1554 = vadd.f32 %v1262, %v1553
    %v1555 = vpop.f32.mrf.mxu0
    %1556 = vmatprep.mubr.bf16.mxu0 0
    %1557 = vmatmul.mubr.bf16.gmra.mxu0 %v1444
    %v1558 = vpop.f32.mrf.mxu0
    %v1559 = vadd.f32 %v1267, %v1558
    %v1560 = vpop.f32.mrf.mxu0
    %v1561 = vpop.f32.mrf.mxu0
    %v1562 = vadd.f32 %v1270, %v1561
    %v1563 = vpop.f32.mrf.mxu0
    %1564 = vmatprep.mubr.bf16.mxu0 0
    %1565 = vmatmul.mubr.bf16.gmra.mxu0 %v1447
    %v1566 = vpop.f32.mrf.mxu0
    %v1567 = vadd.f32 %v1275, %v1566
    %v1568 = vpop.f32.mrf.mxu0
    %v1569 = vpop.f32.mrf.mxu0
    %v1570 = vadd.f32 %v1278, %v1569
    %v1571 = vpop.f32.mrf.mxu0
    %1572 = vmatprep.mubr.bf16.mxu0 0
    %1573 = vmatmul.mubr.bf16.gmra.mxu0 %v1450
    %v1574 = vpop.f32.mrf.mxu0
    %v1575 = vadd.f32 %v1283, %v1574
    %v1576 = vpop.f32.mrf.mxu0
    %v1577 = vpop.f32.mrf.mxu0
    %v1578 = vadd.f32 %v1286, %v1577
    %v1579 = vpop.f32.mrf.mxu0
    %1580 = vmatprep.mubr.bf16.mxu0 0
    %1581 = vmatmul.mubr.bf16.gmra.mxu0 %v1453
    %v1582 = vpop.f32.mrf.mxu0
    %v1583 = vadd.f32 %v1291, %v1582
    %v1584 = vpop.f32.mrf.mxu0
    %v1585 = vpop.f32.mrf.mxu0
    %v1586 = vadd.f32 %v1294, %v1585
    %v1587 = vpop.f32.mrf.mxu0
    %1588 = vmatprep.mubr.bf16.mxu0 0
    %1589 = vmatmul.mubr.bf16.gmra.mxu0 %v1456
    %v1590 = vpop.f32.mrf.mxu0
    %v1591 = vadd.f32 %v1299, %v1590
    %v1592 = vpop.f32.mrf.mxu0
    %v1593 = vpop.f32.mrf.mxu0
    %v1594 = vadd.f32 %v1302, %v1593
    %v1595 = vpop.f32.mrf.mxu0
    %1596 = vmatprep.mubr.bf16.mxu0 0
    %1597 = vmatmul.mubr.bf16.gmra.mxu0 %v1459
    %v1598 = vpop.f32.mrf.mxu0
    %v1599 = vadd.f32 %v1307, %v1598
    %v1600 = vpop.f32.mrf.mxu0
    %v1601 = vpop.f32.mrf.mxu0
    %v1602 = vadd.f32 %v1310, %v1601
    %v1603 = vpop.f32.mrf.mxu0
    %1604 = vmatprep.mubr.bf16.mxu0 0
    %1605 = vmatmul.mubr.bf16.gmra.mxu0 %v1462
    %v1606 = vpop.f32.mrf.mxu0
    %v1607 = vadd.f32 %v1315, %v1606
    %v1608 = vpop.f32.mrf.mxu0
    %v1609 = vpop.f32.mrf.mxu0
    %v1610 = vadd.f32 %v1318, %v1609
    %v1611 = vpop.f32.mrf.mxu0
    %1612 = vmatprep.mubr.bf16.mxu0 0
    %1613 = vmatmul.mubr.bf16.gmra.mxu0 %v1465
    %v1614 = vpop.f32.mrf.mxu0
    %v1615 = vadd.f32 %v1323, %v1614
    %v1616 = vpop.f32.mrf.mxu0
    %v1617 = vpop.f32.mrf.mxu0
    %v1618 = vadd.f32 %v1326, %v1617
    %v1619 = vpop.f32.mrf.mxu0
    %1620 = vmatprep.mubr.bf16.mxu0 0
    %1621 = vmatmul.mubr.bf16.gmra.mxu0 %v1468
    %v1622 = vpop.f32.mrf.mxu0
    %v1623 = vadd.f32 %v1331, %v1622
    %v1624 = vpop.f32.mrf.mxu0
    %v1625 = vpop.f32.mrf.mxu0
    %v1626 = vadd.f32 %v1334, %v1625
    %v1627 = vpop.f32.mrf.mxu0
    %1628 = vmatprep.mubr.bf16.mxu0 0
    %1629 = vmatmul.mubr.bf16.gmra.mxu0 %v1471
    %v1630 = vpop.f32.mrf.mxu0
    %v1631 = vadd.f32 %v1339, %v1630
    %v1632 = vpop.f32.mrf.mxu0
    %v1633 = vpop.f32.mrf.mxu0
    %v1634 = vadd.f32 %v1342, %v1633
    %v1635 = vpop.f32.mrf.mxu0
    %1636 = vdwg.mxu0
    %v1637 = vld [vmem:[#allocation2] sm:$0xe]
    %v1638 = vld [vmem:[#allocation2 + $0xc] sm:$0xe]
    %v1639 = vld [vmem:[#allocation2 + $0x18] sm:$0xe]
    %v1640 = vld [vmem:[#allocation2 + $0x24] sm:$0xe]
    %v1641 = vld [vmem:[#allocation2 + $0x30] sm:$0xe]
    %v1642 = vld [vmem:[#allocation2 + $0x3c] sm:$0xe]
    %v1643 = vld [vmem:[#allocation2 + $0x48] sm:$0xe]
    %v1644 = vld [vmem:[#allocation2 + $0x54] sm:$0xe]
    %v1645 = vld [vmem:[#allocation2 + $0x60] sm:$0xe]
    %v1646 = vld [vmem:[#allocation2 + $0x6c] sm:$0xe]
    %v1647 = vld [vmem:[#allocation2 + $0x78] sm:$0xe]
    %v1648 = vld [vmem:[#allocation2 + $0x84] sm:$0xe]
    %v1649 = vld [vmem:[#allocation2 + $0x90] sm:$0xe]
    %v1650 = vld [vmem:[#allocation2 + $0x9c] sm:$0xe]
    %v1651 = vld [vmem:[#allocation2 + $0xa8] sm:$0xe]
    %v1652 = vld [vmem:[#allocation2 + $0xb4] sm:$0xe]
    %vm1685 = vcmask 1042432
    %vm1686 = vcmask 1046532
    %vm1687 = vmor %vm1685, %vm1686
    %v1688 = vrot.slane %v1637, 5
    %v1689 = vrot.slane %v1688, 4
    %v1690 = vrot.slane %v646, 5
    %v1691 = vsel %vm1687, %v1689, %v1690
    %v1692 = vrot.slane %v1690, 4
    %v1693 = vrot.slane %v678, 5
    %v1694 = vsel %vm1687, %v1692, %v1693
    %v1695 = vrot.slane %v1638, 5
    %v1696 = vrot.slane %v1695, 4
    %v1697 = vrot.slane %v648, 5
    %v1698 = vsel %vm1687, %v1696, %v1697
    %v1699 = vrot.slane %v1697, 4
    %v1700 = vrot.slane %v679, 5
    %v1701 = vsel %vm1687, %v1699, %v1700
    %v1702 = vrot.slane %v1639, 5
    %v1703 = vrot.slane %v1702, 4
    %v1704 = vrot.slane %v650, 5
    %v1705 = vsel %vm1687, %v1703, %v1704
    %v1706 = vrot.slane %v1704, 4
    %v1707 = vrot.slane %v680, 5
    %v1708 = vsel %vm1687, %v1706, %v1707
    %v1709 = vrot.slane %v1640, 5
    %v1710 = vrot.slane %v1709, 4
    %v1711 = vrot.slane %v652, 5
    %v1712 = vsel %vm1687, %v1710, %v1711
    %v1713 = vrot.slane %v1711, 4
    %v1714 = vrot.slane %v681, 5
    %v1715 = vsel %vm1687, %v1713, %v1714
    %v1716 = vrot.slane %v1641, 5
    %v1717 = vrot.slane %v1716, 4
    %v1718 = vrot.slane %v654, 5
    %v1719 = vsel %vm1687, %v1717, %v1718
    %v1720 = vrot.slane %v1718, 4
    %v1721 = vrot.slane %v682, 5
    %v1722 = vsel %vm1687, %v1720, %v1721
    %v1723 = vrot.slane %v1642, 5
    %v1724 = vrot.slane %v1723, 4
    %v1725 = vrot.slane %v656, 5
    %v1726 = vsel %vm1687, %v1724, %v1725
    %v1727 = vrot.slane %v1725, 4
    %v1728 = vrot.slane %v683, 5
    %v1729 = vsel %vm1687, %v1727, %v1728
    %v1730 = vrot.slane %v1643, 5
    %v1731 = vrot.slane %v1730, 4
    %v1732 = vrot.slane %v658, 5
    %v1733 = vsel %vm1687, %v1731, %v1732
    %v1734 = vrot.slane %v1732, 4
    %v1735 = vrot.slane %v684, 5
    %v1736 = vsel %vm1687, %v1734, %v1735
    %v1737 = vrot.slane %v1644, 5
    %v1738 = vrot.slane %v1737, 4
    %v1739 = vrot.slane %v660, 5
    %v1740 = vsel %vm1687, %v1738, %v1739
    %v1741 = vrot.slane %v1739, 4
    %v1742 = vrot.slane %v685, 5
    %v1743 = vsel %vm1687, %v1741, %v1742
    %v1744 = vrot.slane %v1645, 5
    %v1745 = vrot.slane %v1744, 4
    %v1746 = vrot.slane %v662, 5
    %v1747 = vsel %vm1687, %v1745, %v1746
    %v1748 = vrot.slane %v1746, 4
    %v1749 = vrot.slane %v686, 5
    %v1750 = vsel %vm1687, %v1748, %v1749
    %v1751 = vrot.slane %v1646, 5
    %v1752 = vrot.slane %v1751, 4
    %v1753 = vrot.slane %v664, 5
    %v1754 = vsel %vm1687, %v1752, %v1753
    %v1755 = vrot.slane %v1753, 4
    %v1756 = vrot.slane %v687, 5
    %v1757 = vsel %vm1687, %v1755, %v1756
    %v1758 = vrot.slane %v1647, 5
    %v1759 = vrot.slane %v1758, 4
    %v1760 = vrot.slane %v666, 5
    %v1761 = vsel %vm1687, %v1759, %v1760
    %v1762 = vrot.slane %v1760, 4
    %v1763 = vrot.slane %v688, 5
    %v1764 = vsel %vm1687, %v1762, %v1763
    %v1765 = vrot.slane %v1648, 5
    %v1766 = vrot.slane %v1765, 4
    %v1767 = vrot.slane %v668, 5
    %v1768 = vsel %vm1687, %v1766, %v1767
    %v1769 = vrot.slane %v1767, 4
    %v1770 = vrot.slane %v689, 5
    %v1771 = vsel %vm1687, %v1769, %v1770
    %v1772 = vrot.slane %v1649, 5
    %v1773 = vrot.slane %v1772, 4
    %v1774 = vrot.slane %v670, 5
    %v1775 = vsel %vm1687, %v1773, %v1774
    %v1776 = vrot.slane %v1774, 4
    %v1777 = vrot.slane %v690, 5
    %v1778 = vsel %vm1687, %v1776, %v1777
    %v1779 = vrot.slane %v1650, 5
    %v1780 = vrot.slane %v1779, 4
    %v1781 = vrot.slane %v672, 5
    %v1782 = vsel %vm1687, %v1780, %v1781
    %v1783 = vrot.slane %v1781, 4
    %v1784 = vrot.slane %v691, 5
    %v1785 = vsel %vm1687, %v1783, %v1784
    %v1786 = vrot.slane %v1651, 5
    %v1787 = vrot.slane %v1786, 4
    %v1788 = vrot.slane %v674, 5
    %v1789 = vsel %vm1687, %v1787, %v1788
    %v1790 = vrot.slane %v1788, 4
    %v1791 = vrot.slane %v692, 5
    %v1792 = vsel %vm1687, %v1790, %v1791
    %v1793 = vrot.slane %v1652, 5
    %v1794 = vrot.slane %v1793, 4
    %v1795 = vrot.slane %v676, 5
    %v1796 = vsel %vm1687, %v1794, %v1795
    %v1797 = vrot.slane %v1795, 4
    %v1798 = vrot.slane %v693, 5
    %v1799 = vsel %vm1687, %v1797, %v1798
    %s1800 = scalar_lea.vmem %s1, 8
    %v1801 = vld [vmem:[%s1800] sm:$0xf]
    %v1802 = vunpack.c.l.b16 %v1691
    %v1803 = vunpack.c.l.b16 %v1694
    %v1804 = vunpack.c.l.b16 %v1698
    %v1805 = vunpack.c.l.b16 %v1701
    %v1806 = vunpack.c.l.b16 %v1705
    %v1807 = vunpack.c.l.b16 %v1708
    %v1808 = vunpack.c.l.b16 %v1712
    %v1809 = vunpack.c.l.b16 %v1715
    %v1810 = vunpack.c.l.b16 %v1719
    %v1811 = vunpack.c.l.b16 %v1722
    %v1812 = vunpack.c.l.b16 %v1726
    %v1813 = vunpack.c.l.b16 %v1729
    %v1814 = vunpack.c.l.b16 %v1733
    %v1815 = vunpack.c.l.b16 %v1736
    %v1816 = vunpack.c.l.b16 %v1740
    %v1817 = vunpack.c.l.b16 %v1743
    %v1818 = vunpack.c.l.b16 %v1747
    %v1819 = vunpack.c.l.b16 %v1750
    %v1820 = vunpack.c.l.b16 %v1754
    %v1821 = vunpack.c.l.b16 %v1757
    %v1822 = vunpack.c.l.b16 %v1761
    %v1823 = vunpack.c.l.b16 %v1764
    %v1824 = vunpack.c.l.b16 %v1768
    %v1825 = vunpack.c.l.b16 %v1771
    %v1826 = vunpack.c.l.b16 %v1775
    %v1827 = vunpack.c.l.b16 %v1778
    %v1828 = vunpack.c.l.b16 %v1782
    %v1829 = vunpack.c.l.b16 %v1785
    %v1830 = vunpack.c.l.b16 %v1789
    %v1831 = vunpack.c.l.b16 %v1792
    %v1832 = vunpack.c.l.b16 %v1796
    %v1833 = vunpack.c.l.b16 %v1799
    %v1834 = vpack.c.b16 %v1803, %v1802
    %v1835 = vpack.c.b16 %v1805, %v1804
    %v1836 = vpack.c.b16 %v1807, %v1806
    %v1837 = vpack.c.b16 %v1809, %v1808
    %v1838 = vpack.c.b16 %v1811, %v1810
    %v1839 = vpack.c.b16 %v1813, %v1812
    %v1840 = vpack.c.b16 %v1815, %v1814
    %v1841 = vpack.c.b16 %v1817, %v1816
    %v1842 = vpack.c.b16 %v1819, %v1818
    %v1843 = vpack.c.b16 %v1821, %v1820
    %v1844 = vpack.c.b16 %v1823, %v1822
    %v1845 = vpack.c.b16 %v1825, %v1824
    %v1846 = vpack.c.b16 %v1827, %v1826
    %v1847 = vpack.c.b16 %v1829, %v1828
    %v1848 = vpack.c.b16 %v1831, %v1830
    %v1849 = vpack.c.b16 %v1833, %v1832
    %v1851 = vsel %vm1131, %v1834, 0
    %v1854 = vsel %vm1131, %v1835, 0
    %v1857 = vsel %vm1131, %v1836, 0
    %v1860 = vsel %vm1131, %v1837, 0
    %v1863 = vsel %vm1131, %v1838, 0
    %v1866 = vsel %vm1131, %v1839, 0
    %v1869 = vsel %vm1131, %v1840, 0
    %v1872 = vsel %vm1131, %v1841, 0
    %v1875 = vsel %vm1131, %v1842, 0
    %v1878 = vsel %vm1131, %v1843, 0
    %v1881 = vsel %vm1131, %v1844, 0
    %v1884 = vsel %vm1131, %v1845, 0
    %v1887 = vsel %vm1131, %v1846, 0
    %v1890 = vsel %vm1131, %v1847, 0
    %v1893 = vsel %vm1131, %v1848, 0
    %v1896 = vsel %vm1131, %v1849, 0
    %v1899 = vsel %vm1180, %v1801, 0
    %1901 = vmatprep.subr.bf16.mxu0 0
    %1902 = vmatpush1.bf16.msra.mxu0 0
    %1903 = vmatprep.subr.bf16.mxu0 0
    %1904 = vmatpush1.bf16.msra.mxu0 0
    %1905 = vmatprep.subr.bf16.mxu0 0
    %1906 = vmatpush1.bf16.msra.mxu0 0
    %1907 = vmatprep.subr.bf16.mxu0 0
    %1908 = vmatpush1.bf16.msra.mxu0 0
    %1909 = vmatprep.subr.bf16.mxu0 0
    %1910 = vmatpush1.bf16.msra.mxu0 0
    %1911 = vmatprep.subr.bf16.mxu0 0
    %1912 = vmatpush1.bf16.msra.mxu0 0
    %1913 = vmatprep.subr.bf16.mxu0 0
    %1914 = vmatpush1.bf16.msra.mxu0 0
    %1915 = vmatprep.subr.bf16.mxu0 0
    %1916 = vmatpush1.bf16.msra.mxu0 %v1899
    %1917 = vmatprep.subr.bf16.mxu0 0
    %1918 = vmatpush2.bf16.msra.mxu0 0
    %1919 = vmatprep.subr.bf16.mxu0 0
    %1920 = vmatpush2.bf16.msra.mxu0 0
    %1921 = vmatprep.subr.bf16.mxu0 0
    %1922 = vmatpush2.bf16.msra.mxu0 0
    %1923 = vmatprep.subr.bf16.mxu0 0
    %1924 = vmatpush2.bf16.msra.mxu0 0
    %1925 = vmatprep.subr.bf16.mxu0 0
    %1926 = vmatpush2.bf16.msra.mxu0 0
    %1927 = vmatprep.subr.bf16.mxu0 0
    %1928 = vmatpush2.bf16.msra.mxu0 0
    %1929 = vmatprep.subr.bf16.mxu0 0
    %1930 = vmatpush2.bf16.msra.mxu0 0
    %1931 = vmatprep.subr.bf16.mxu0 0
    %1932 = vmatpush2.bf16.msra.mxu0 0
    %1933 = vmatprep.mubr.bf16.mxu0 0
    %1934 = vmatmul.mubr.bf16.gmra.mxu0 %v1851
    %v1935 = vpop.f32.mrf.mxu0
    %v1936 = vadd.f32 0.0, %v1935
    %v1937 = vpop.f32.mrf.mxu0
    %v1938 = vpop.f32.mrf.mxu0
    %v1939 = vadd.f32 0.0, %v1938
    %v1940 = vpop.f32.mrf.mxu0
    %1941 = vmatprep.mubr.bf16.mxu0 0
    %1942 = vmatmul.mubr.bf16.gmra.mxu0 %v1854
    %v1943 = vpop.f32.mrf.mxu0
    %v1944 = vadd.f32 0.0, %v1943
    %v1945 = vpop.f32.mrf.mxu0
    %v1946 = vpop.f32.mrf.mxu0
    %v1947 = vadd.f32 0.0, %v1946
    %v1948 = vpop.f32.mrf.mxu0
    %1949 = vmatprep.mubr.bf16.mxu0 0
    %1950 = vmatmul.mubr.bf16.gmra.mxu0 %v1857
    %v1951 = vpop.f32.mrf.mxu0
    %v1952 = vadd.f32 0.0, %v1951
    %v1953 = vpop.f32.mrf.mxu0
    %v1954 = vpop.f32.mrf.mxu0
    %v1955 = vadd.f32 0.0, %v1954
    %v1956 = vpop.f32.mrf.mxu0
    %1957 = vmatprep.mubr.bf16.mxu0 0
    %1958 = vmatmul.mubr.bf16.gmra.mxu0 %v1860
    %v1959 = vpop.f32.mrf.mxu0
    %v1960 = vadd.f32 0.0, %v1959
    %v1961 = vpop.f32.mrf.mxu0
    %v1962 = vpop.f32.mrf.mxu0
    %v1963 = vadd.f32 0.0, %v1962
    %v1964 = vpop.f32.mrf.mxu0
    %1965 = vmatprep.mubr.bf16.mxu0 0
    %1966 = vmatmul.mubr.bf16.gmra.mxu0 %v1863
    %v1967 = vpop.f32.mrf.mxu0
    %v1968 = vadd.f32 0.0, %v1967
    %v1969 = vpop.f32.mrf.mxu0
    %v1970 = vpop.f32.mrf.mxu0
    %v1971 = vadd.f32 0.0, %v1970
    %v1972 = vpop.f32.mrf.mxu0
    %1973 = vmatprep.mubr.bf16.mxu0 0
    %1974 = vmatmul.mubr.bf16.gmra.mxu0 %v1866
    %v1975 = vpop.f32.mrf.mxu0
    %v1976 = vadd.f32 0.0, %v1975
    %v1977 = vpop.f32.mrf.mxu0
    %v1978 = vpop.f32.mrf.mxu0
    %v1979 = vadd.f32 0.0, %v1978
    %v1980 = vpop.f32.mrf.mxu0
    %1981 = vmatprep.mubr.bf16.mxu0 0
    %1982 = vmatmul.mubr.bf16.gmra.mxu0 %v1869
    %v1983 = vpop.f32.mrf.mxu0
    %v1984 = vadd.f32 0.0, %v1983
    %v1985 = vpop.f32.mrf.mxu0
    %v1986 = vpop.f32.mrf.mxu0
    %v1987 = vadd.f32 0.0, %v1986
    %v1988 = vpop.f32.mrf.mxu0
    %1989 = vmatprep.mubr.bf16.mxu0 0
    %1990 = vmatmul.mubr.bf16.gmra.mxu0 %v1872
    %v1991 = vpop.f32.mrf.mxu0
    %v1992 = vadd.f32 0.0, %v1991
    %v1993 = vpop.f32.mrf.mxu0
    %v1994 = vpop.f32.mrf.mxu0
    %v1995 = vadd.f32 0.0, %v1994
    %v1996 = vpop.f32.mrf.mxu0
    %1997 = vmatprep.mubr.bf16.mxu0 0
    %1998 = vmatmul.mubr.bf16.gmra.mxu0 %v1875
    %v1999 = vpop.f32.mrf.mxu0
    %v2000 = vadd.f32 0.0, %v1999
    %v2001 = vpop.f32.mrf.mxu0
    %v2002 = vpop.f32.mrf.mxu0
    %v2003 = vadd.f32 0.0, %v2002
    %v2004 = vpop.f32.mrf.mxu0
    %2005 = vmatprep.mubr.bf16.mxu0 0
    %2006 = vmatmul.mubr.bf16.gmra.mxu0 %v1878
    %v2007 = vpop.f32.mrf.mxu0
    %v2008 = vadd.f32 0.0, %v2007
    %v2009 = vpop.f32.mrf.mxu0
    %v2010 = vpop.f32.mrf.mxu0
    %v2011 = vadd.f32 0.0, %v2010
    %v2012 = vpop.f32.mrf.mxu0
    %2013 = vmatprep.mubr.bf16.mxu0 0
    %2014 = vmatmul.mubr.bf16.gmra.mxu0 %v1881
    %v2015 = vpop.f32.mrf.mxu0
    %v2016 = vadd.f32 0.0, %v2015
    %v2017 = vpop.f32.mrf.mxu0
    %v2018 = vpop.f32.mrf.mxu0
    %v2019 = vadd.f32 0.0, %v2018
    %v2020 = vpop.f32.mrf.mxu0
    %2021 = vmatprep.mubr.bf16.mxu0 0
    %2022 = vmatmul.mubr.bf16.gmra.mxu0 %v1884
    %v2023 = vpop.f32.mrf.mxu0
    %v2024 = vadd.f32 0.0, %v2023
    %v2025 = vpop.f32.mrf.mxu0
    %v2026 = vpop.f32.mrf.mxu0
    %v2027 = vadd.f32 0.0, %v2026
    %v2028 = vpop.f32.mrf.mxu0
    %2029 = vmatprep.mubr.bf16.mxu0 0
    %2030 = vmatmul.mubr.bf16.gmra.mxu0 %v1887
    %v2031 = vpop.f32.mrf.mxu0
    %v2032 = vadd.f32 0.0, %v2031
    %v2033 = vpop.f32.mrf.mxu0
    %v2034 = vpop.f32.mrf.mxu0
    %v2035 = vadd.f32 0.0, %v2034
    %v2036 = vpop.f32.mrf.mxu0
    %2037 = vmatprep.mubr.bf16.mxu0 0
    %2038 = vmatmul.mubr.bf16.gmra.mxu0 %v1890
    %v2039 = vpop.f32.mrf.mxu0
    %v2040 = vadd.f32 0.0, %v2039
    %v2041 = vpop.f32.mrf.mxu0
    %v2042 = vpop.f32.mrf.mxu0
    %v2043 = vadd.f32 0.0, %v2042
    %v2044 = vpop.f32.mrf.mxu0
    %2045 = vmatprep.mubr.bf16.mxu0 0
    %2046 = vmatmul.mubr.bf16.gmra.mxu0 %v1893
    %v2047 = vpop.f32.mrf.mxu0
    %v2048 = vadd.f32 0.0, %v2047
    %v2049 = vpop.f32.mrf.mxu0
    %v2050 = vpop.f32.mrf.mxu0
    %v2051 = vadd.f32 0.0, %v2050
    %v2052 = vpop.f32.mrf.mxu0
    %2053 = vmatprep.mubr.bf16.mxu0 0
    %2054 = vmatmul.mubr.bf16.gmra.mxu0 %v1896
    %v2055 = vpop.f32.mrf.mxu0
    %v2056 = vadd.f32 0.0, %v2055
    %v2057 = vpop.f32.mrf.mxu0
    %v2058 = vpop.f32.mrf.mxu0
    %v2059 = vadd.f32 0.0, %v2058
    %v2060 = vpop.f32.mrf.mxu0
    %2061 = vdwg.mxu0
    %v2062 = vadd.f32 %v1511, %v1936
    %v2063 = vadd.f32 %v1514, %v1939
    %v2064 = vadd.f32 %v1519, %v1944
    %v2065 = vadd.f32 %v1522, %v1947
    %v2066 = vadd.f32 %v1527, %v1952
    %v2067 = vadd.f32 %v1530, %v1955
    %v2068 = vadd.f32 %v1535, %v1960
    %v2069 = vadd.f32 %v1538, %v1963
    %v2070 = vadd.f32 %v1543, %v1968
    %v2071 = vadd.f32 %v1546, %v1971
    %v2072 = vadd.f32 %v1551, %v1976
    %v2073 = vadd.f32 %v1554, %v1979
    %v2074 = vadd.f32 %v1559, %v1984
    %v2075 = vadd.f32 %v1562, %v1987
    %v2076 = vadd.f32 %v1567, %v1992
    %v2077 = vadd.f32 %v1570, %v1995
    %v2078 = vadd.f32 %v1575, %v2000
    %v2079 = vadd.f32 %v1578, %v2003
    %v2080 = vadd.f32 %v1583, %v2008
    %v2081 = vadd.f32 %v1586, %v2011
    %v2082 = vadd.f32 %v1591, %v2016
    %v2083 = vadd.f32 %v1594, %v2019
    %v2084 = vadd.f32 %v1599, %v2024
    %v2085 = vadd.f32 %v1602, %v2027
    %v2086 = vadd.f32 %v1607, %v2032
    %v2087 = vadd.f32 %v1610, %v2035
    %v2088 = vadd.f32 %v1615, %v2040
    %v2089 = vadd.f32 %v1618, %v2043
    %v2090 = vadd.f32 %v1623, %v2048
    %v2091 = vadd.f32 %v1626, %v2051
    %v2092 = vadd.f32 %v1631, %v2056
    %v2093 = vadd.f32 %v1634, %v2059
    %v2094 = vld [vmem:[%s530] sm:$0xf]
    %v2095 = vld [vmem:[%s530 + $0x4] sm:$0xf]
    %v2096 = vld [vmem:[%s530 + $0xc] sm:$0xf]
    %v2097 = vld [vmem:[%s530 + $0x10] sm:$0xf]
    %v2098 = vld [vmem:[%s530 + $0x18] sm:$0xf]
    %v2099 = vld [vmem:[%s530 + $0x1c] sm:$0xf]
    %v2100 = vld [vmem:[%s530 + $0x24] sm:$0xf]
    %v2101 = vld [vmem:[%s530 + $0x28] sm:$0xf]
    %v2102 = vld [vmem:[%s530 + $0x30] sm:$0xf]
    %v2103 = vld [vmem:[%s530 + $0x34] sm:$0xf]
    %v2104 = vld [vmem:[%s530 + $0x3c] sm:$0xf]
    %v2105 = vld [vmem:[%s530 + $0x40] sm:$0xf]
    %v2106 = vld [vmem:[%s530 + $0x48] sm:$0xf]
    %v2107 = vld [vmem:[%s530 + $0x4c] sm:$0xf]
    %v2108 = vld [vmem:[%s530 + $0x54] sm:$0xf]
    %v2109 = vld [vmem:[%s530 + $0x58] sm:$0xf]
    %v2110 = vld [vmem:[%s530 + $0x60] sm:$0xf]
    %v2111 = vld [vmem:[%s530 + $0x64] sm:$0xf]
    %v2112 = vld [vmem:[%s530 + $0x6c] sm:$0xf]
    %v2113 = vld [vmem:[%s530 + $0x70] sm:$0xf]
    %v2114 = vld [vmem:[%s530 + $0x78] sm:$0xf]
    %v2115 = vld [vmem:[%s530 + $0x7c] sm:$0xf]
    %v2116 = vld [vmem:[%s530 + $0x84] sm:$0xf]
    %v2117 = vld [vmem:[%s530 + $0x88] sm:$0xf]
    %v2118 = vld [vmem:[%s530 + $0x90] sm:$0xf]
    %v2119 = vld [vmem:[%s530 + $0x94] sm:$0xf]
    %v2120 = vld [vmem:[%s530 + $0x9c] sm:$0xf]
    %v2121 = vld [vmem:[%s530 + $0xa0] sm:$0xf]
    %v2122 = vld [vmem:[%s530 + $0xa8] sm:$0xf]
    %v2123 = vld [vmem:[%s530 + $0xac] sm:$0xf]
    %v2124 = vld [vmem:[%s530 + $0xb4] sm:$0xf]
    %v2125 = vld [vmem:[%s530 + $0xb8] sm:$0xf]
    %s2126 = scalar_lea.vmem %s1, 12
    %v2127 = vld [vmem:[%s2126] sm:$0xf]
    %v2160 = vunpack.c.l.b16 %v2094
    %v2161 = vunpack.c.l.b16 %v2095
    %v2162 = vunpack.c.l.b16 %v2096
    %v2163 = vunpack.c.l.b16 %v2097
    %v2164 = vunpack.c.l.b16 %v2098
    %v2165 = vunpack.c.l.b16 %v2099
    %v2166 = vunpack.c.l.b16 %v2100
    %v2167 = vunpack.c.l.b16 %v2101
    %v2168 = vunpack.c.l.b16 %v2102
    %v2169 = vunpack.c.l.b16 %v2103
    %v2170 = vunpack.c.l.b16 %v2104
    %v2171 = vunpack.c.l.b16 %v2105
    %v2172 = vunpack.c.l.b16 %v2106
    %v2173 = vunpack.c.l.b16 %v2107
    %v2174 = vunpack.c.l.b16 %v2108
    %v2175 = vunpack.c.l.b16 %v2109
    %v2176 = vunpack.c.l.b16 %v2110
    %v2177 = vunpack.c.l.b16 %v2111
    %v2178 = vunpack.c.l.b16 %v2112
    %v2179 = vunpack.c.l.b16 %v2113
    %v2180 = vunpack.c.l.b16 %v2114
    %v2181 = vunpack.c.l.b16 %v2115
    %v2182 = vunpack.c.l.b16 %v2116
    %v2183 = vunpack.c.l.b16 %v2117
    %v2184 = vunpack.c.l.b16 %v2118
    %v2185 = vunpack.c.l.b16 %v2119
    %v2186 = vunpack.c.l.b16 %v2120
    %v2187 = vunpack.c.l.b16 %v2121
    %v2188 = vunpack.c.l.b16 %v2122
    %v2189 = vunpack.c.l.b16 %v2123
    %v2190 = vunpack.c.l.b16 %v2124
    %v2191 = vunpack.c.l.b16 %v2125
    %v2192 = vpack.c.b16 %v2161, %v2160
    %v2193 = vpack.c.b16 %v2163, %v2162
    %v2194 = vpack.c.b16 %v2165, %v2164
    %v2195 = vpack.c.b16 %v2167, %v2166
    %v2196 = vpack.c.b16 %v2169, %v2168
    %v2197 = vpack.c.b16 %v2171, %v2170
    %v2198 = vpack.c.b16 %v2173, %v2172
    %v2199 = vpack.c.b16 %v2175, %v2174
    %v2200 = vpack.c.b16 %v2177, %v2176
    %v2201 = vpack.c.b16 %v2179, %v2178
    %v2202 = vpack.c.b16 %v2181, %v2180
    %v2203 = vpack.c.b16 %v2183, %v2182
    %v2204 = vpack.c.b16 %v2185, %v2184
    %v2205 = vpack.c.b16 %v2187, %v2186
    %v2206 = vpack.c.b16 %v2189, %v2188
    %v2207 = vpack.c.b16 %v2191, %v2190
    %v2209 = vsel %vm1131, %v2192, 0
    %v2212 = vsel %vm1131, %v2193, 0
    %v2215 = vsel %vm1131, %v2194, 0
    %v2218 = vsel %vm1131, %v2195, 0
    %v2221 = vsel %vm1131, %v2196, 0
    %v2224 = vsel %vm1131, %v2197, 0
    %v2227 = vsel %vm1131, %v2198, 0
    %v2230 = vsel %vm1131, %v2199, 0
    %v2233 = vsel %vm1131, %v2200, 0
    %v2236 = vsel %vm1131, %v2201, 0
    %v2239 = vsel %vm1131, %v2202, 0
    %v2242 = vsel %vm1131, %v2203, 0
    %v2245 = vsel %vm1131, %v2204, 0
    %v2248 = vsel %vm1131, %v2205, 0
    %v2251 = vsel %vm1131, %v2206, 0
    %v2254 = vsel %vm1131, %v2207, 0
    %v2257 = vsel %vm1180, %v2127, 0
    %2259 = vmatprep.subr.bf16.mxu0 0
    %2260 = vmatpush1.bf16.msra.mxu0 0
    %2261 = vmatprep.subr.bf16.mxu0 0
    %2262 = vmatpush1.bf16.msra.mxu0 0
    %2263 = vmatprep.subr.bf16.mxu0 0
    %2264 = vmatpush1.bf16.msra.mxu0 0
    %2265 = vmatprep.subr.bf16.mxu0 0
    %2266 = vmatpush1.bf16.msra.mxu0 0
    %2267 = vmatprep.subr.bf16.mxu0 0
    %2268 = vmatpush1.bf16.msra.mxu0 0
    %2269 = vmatprep.subr.bf16.mxu0 0
    %2270 = vmatpush1.bf16.msra.mxu0 0
    %2271 = vmatprep.subr.bf16.mxu0 0
    %2272 = vmatpush1.bf16.msra.mxu0 0
    %2273 = vmatprep.subr.bf16.mxu0 0
    %2274 = vmatpush1.bf16.msra.mxu0 %v2257
    %2275 = vmatprep.subr.bf16.mxu0 0
    %2276 = vmatpush2.bf16.msra.mxu0 0
    %2277 = vmatprep.subr.bf16.mxu0 0
    %2278 = vmatpush2.bf16.msra.mxu0 0
    %2279 = vmatprep.subr.bf16.mxu0 0
    %2280 = vmatpush2.bf16.msra.mxu0 0
    %2281 = vmatprep.subr.bf16.mxu0 0
    %2282 = vmatpush2.bf16.msra.mxu0 0
    %2283 = vmatprep.subr.bf16.mxu0 0
    %2284 = vmatpush2.bf16.msra.mxu0 0
    %2285 = vmatprep.subr.bf16.mxu0 0
    %2286 = vmatpush2.bf16.msra.mxu0 0
    %2287 = vmatprep.subr.bf16.mxu0 0
    %2288 = vmatpush2.bf16.msra.mxu0 0
    %2289 = vmatprep.subr.bf16.mxu0 0
    %2290 = vmatpush2.bf16.msra.mxu0 0
    %2291 = vmatprep.mubr.bf16.mxu0 0
    %2292 = vmatmul.mubr.bf16.gmra.mxu0 %v2209
    %v2293 = vpop.f32.mrf.mxu0
    %v2294 = vadd.f32 0.0, %v2293
    %v2295 = vpop.f32.mrf.mxu0
    %v2296 = vpop.f32.mrf.mxu0
    %v2297 = vadd.f32 0.0, %v2296
    %v2298 = vpop.f32.mrf.mxu0
    %2299 = vmatprep.mubr.bf16.mxu0 0
    %2300 = vmatmul.mubr.bf16.gmra.mxu0 %v2212
    %v2301 = vpop.f32.mrf.mxu0
    %v2302 = vadd.f32 0.0, %v2301
    %v2303 = vpop.f32.mrf.mxu0
    %v2304 = vpop.f32.mrf.mxu0
    %v2305 = vadd.f32 0.0, %v2304
    %v2306 = vpop.f32.mrf.mxu0
    %2307 = vmatprep.mubr.bf16.mxu0 0
    %2308 = vmatmul.mubr.bf16.gmra.mxu0 %v2215
    %v2309 = vpop.f32.mrf.mxu0
    %v2310 = vadd.f32 0.0, %v2309
    %v2311 = vpop.f32.mrf.mxu0
    %v2312 = vpop.f32.mrf.mxu0
    %v2313 = vadd.f32 0.0, %v2312
    %v2314 = vpop.f32.mrf.mxu0
    %2315 = vmatprep.mubr.bf16.mxu0 0
    %2316 = vmatmul.mubr.bf16.gmra.mxu0 %v2218
    %v2317 = vpop.f32.mrf.mxu0
    %v2318 = vadd.f32 0.0, %v2317
    %v2319 = vpop.f32.mrf.mxu0
    %v2320 = vpop.f32.mrf.mxu0
    %v2321 = vadd.f32 0.0, %v2320
    %v2322 = vpop.f32.mrf.mxu0
    %2323 = vmatprep.mubr.bf16.mxu0 0
    %2324 = vmatmul.mubr.bf16.gmra.mxu0 %v2221
    %v2325 = vpop.f32.mrf.mxu0
    %v2326 = vadd.f32 0.0, %v2325
    %v2327 = vpop.f32.mrf.mxu0
    %v2328 = vpop.f32.mrf.mxu0
    %v2329 = vadd.f32 0.0, %v2328
    %v2330 = vpop.f32.mrf.mxu0
    %2331 = vmatprep.mubr.bf16.mxu0 0
    %2332 = vmatmul.mubr.bf16.gmra.mxu0 %v2224
    %v2333 = vpop.f32.mrf.mxu0
    %v2334 = vadd.f32 0.0, %v2333
    %v2335 = vpop.f32.mrf.mxu0
    %v2336 = vpop.f32.mrf.mxu0
    %v2337 = vadd.f32 0.0, %v2336
    %v2338 = vpop.f32.mrf.mxu0
    %2339 = vmatprep.mubr.bf16.mxu0 0
    %2340 = vmatmul.mubr.bf16.gmra.mxu0 %v2227
    %v2341 = vpop.f32.mrf.mxu0
    %v2342 = vadd.f32 0.0, %v2341
    %v2343 = vpop.f32.mrf.mxu0
    %v2344 = vpop.f32.mrf.mxu0
    %v2345 = vadd.f32 0.0, %v2344
    %v2346 = vpop.f32.mrf.mxu0
    %2347 = vmatprep.mubr.bf16.mxu0 0
    %2348 = vmatmul.mubr.bf16.gmra.mxu0 %v2230
    %v2349 = vpop.f32.mrf.mxu0
    %v2350 = vadd.f32 0.0, %v2349
    %v2351 = vpop.f32.mrf.mxu0
    %v2352 = vpop.f32.mrf.mxu0
    %v2353 = vadd.f32 0.0, %v2352
    %v2354 = vpop.f32.mrf.mxu0
    %2355 = vmatprep.mubr.bf16.mxu0 0
    %2356 = vmatmul.mubr.bf16.gmra.mxu0 %v2233
    %v2357 = vpop.f32.mrf.mxu0
    %v2358 = vadd.f32 0.0, %v2357
    %v2359 = vpop.f32.mrf.mxu0
    %v2360 = vpop.f32.mrf.mxu0
    %v2361 = vadd.f32 0.0, %v2360
    %v2362 = vpop.f32.mrf.mxu0
    %2363 = vmatprep.mubr.bf16.mxu0 0
    %2364 = vmatmul.mubr.bf16.gmra.mxu0 %v2236
    %v2365 = vpop.f32.mrf.mxu0
    %v2366 = vadd.f32 0.0, %v2365
    %v2367 = vpop.f32.mrf.mxu0
    %v2368 = vpop.f32.mrf.mxu0
    %v2369 = vadd.f32 0.0, %v2368
    %v2370 = vpop.f32.mrf.mxu0
    %2371 = vmatprep.mubr.bf16.mxu0 0
    %2372 = vmatmul.mubr.bf16.gmra.mxu0 %v2239
    %v2373 = vpop.f32.mrf.mxu0
    %v2374 = vadd.f32 0.0, %v2373
    %v2375 = vpop.f32.mrf.mxu0
    %v2376 = vpop.f32.mrf.mxu0
    %v2377 = vadd.f32 0.0, %v2376
    %v2378 = vpop.f32.mrf.mxu0
    %2379 = vmatprep.mubr.bf16.mxu0 0
    %2380 = vmatmul.mubr.bf16.gmra.mxu0 %v2242
    %v2381 = vpop.f32.mrf.mxu0
    %v2382 = vadd.f32 0.0, %v2381
    %v2383 = vpop.f32.mrf.mxu0
    %v2384 = vpop.f32.mrf.mxu0
    %v2385 = vadd.f32 0.0, %v2384
    %v2386 = vpop.f32.mrf.mxu0
    %2387 = vmatprep.mubr.bf16.mxu0 0
    %2388 = vmatmul.mubr.bf16.gmra.mxu0 %v2245
    %v2389 = vpop.f32.mrf.mxu0
    %v2390 = vadd.f32 0.0, %v2389
    %v2391 = vpop.f32.mrf.mxu0
    %v2392 = vpop.f32.mrf.mxu0
    %v2393 = vadd.f32 0.0, %v2392
    %v2394 = vpop.f32.mrf.mxu0
    %2395 = vmatprep.mubr.bf16.mxu0 0
    %2396 = vmatmul.mubr.bf16.gmra.mxu0 %v2248
    %v2397 = vpop.f32.mrf.mxu0
    %v2398 = vadd.f32 0.0, %v2397
    %v2399 = vpop.f32.mrf.mxu0
    %v2400 = vpop.f32.mrf.mxu0
    %v2401 = vadd.f32 0.0, %v2400
    %v2402 = vpop.f32.mrf.mxu0
    %2403 = vmatprep.mubr.bf16.mxu0 0
    %2404 = vmatmul.mubr.bf16.gmra.mxu0 %v2251
    %v2405 = vpop.f32.mrf.mxu0
    %v2406 = vadd.f32 0.0, %v2405
    %v2407 = vpop.f32.mrf.mxu0
    %v2408 = vpop.f32.mrf.mxu0
    %v2409 = vadd.f32 0.0, %v2408
    %v2410 = vpop.f32.mrf.mxu0
    %2411 = vmatprep.mubr.bf16.mxu0 0
    %2412 = vmatmul.mubr.bf16.gmra.mxu0 %v2254
    %v2413 = vpop.f32.mrf.mxu0
    %v2414 = vadd.f32 0.0, %v2413
    %v2415 = vpop.f32.mrf.mxu0
    %v2416 = vpop.f32.mrf.mxu0
    %v2417 = vadd.f32 0.0, %v2416
    %v2418 = vpop.f32.mrf.mxu0
    %2419 = vdwg.mxu0
    %v2420 = vadd.f32 %v2062, %v2294
    %v2421 = vadd.f32 %v2063, %v2297
    %v2422 = vadd.f32 %v2064, %v2302
    %v2423 = vadd.f32 %v2065, %v2305
    %v2424 = vadd.f32 %v2066, %v2310
    %v2425 = vadd.f32 %v2067, %v2313
    %v2426 = vadd.f32 %v2068, %v2318
    %v2427 = vadd.f32 %v2069, %v2321
    %v2428 = vadd.f32 %v2070, %v2326
    %v2429 = vadd.f32 %v2071, %v2329
    %v2430 = vadd.f32 %v2072, %v2334
    %v2431 = vadd.f32 %v2073, %v2337
    %v2432 = vadd.f32 %v2074, %v2342
    %v2433 = vadd.f32 %v2075, %v2345
    %v2434 = vadd.f32 %v2076, %v2350
    %v2435 = vadd.f32 %v2077, %v2353
    %v2436 = vadd.f32 %v2078, %v2358
    %v2437 = vadd.f32 %v2079, %v2361
    %v2438 = vadd.f32 %v2080, %v2366
    %v2439 = vadd.f32 %v2081, %v2369
    %v2440 = vadd.f32 %v2082, %v2374
    %v2441 = vadd.f32 %v2083, %v2377
    %v2442 = vadd.f32 %v2084, %v2382
    %v2443 = vadd.f32 %v2085, %v2385
    %v2444 = vadd.f32 %v2086, %v2390
    %v2445 = vadd.f32 %v2087, %v2393
    %v2446 = vadd.f32 %v2088, %v2398
    %v2447 = vadd.f32 %v2089, %v2401
    %v2448 = vadd.f32 %v2090, %v2406
    %v2449 = vadd.f32 %v2091, %v2409
    %v2450 = vadd.f32 %v2092, %v2414
    %v2451 = vadd.f32 %v2093, %v2417
    %v2452 = vld [vmem:[%s530] sm:$0xf]
    %v2453 = vld [vmem:[%s530 + $0x4] sm:$0xf]
    %v2454 = vld [vmem:[%s530 + $0x8] sm:$0x1]
    %v2455 = vld [vmem:[%s530 + $0xc] sm:$0xf]
    %v2456 = vld [vmem:[%s530 + $0x10] sm:$0xf]
    %v2457 = vld [vmem:[%s530 + $0x14] sm:$0x1]
    %v2458 = vld [vmem:[%s530 + $0x18] sm:$0xf]
    %v2459 = vld [vmem:[%s530 + $0x1c] sm:$0xf]
    %v2460 = vld [vmem:[%s530 + $0x20] sm:$0x1]
    %v2461 = vld [vmem:[%s530 + $0x24] sm:$0xf]
    %v2462 = vld [vmem:[%s530 + $0x28] sm:$0xf]
    %v2463 = vld [vmem:[%s530 + $0x2c] sm:$0x1]
    %v2464 = vld [vmem:[%s530 + $0x30] sm:$0xf]
    %v2465 = vld [vmem:[%s530 + $0x34] sm:$0xf]
    %v2466 = vld [vmem:[%s530 + $0x38] sm:$0x1]
    %v2467 = vld [vmem:[%s530 + $0x3c] sm:$0xf]
    %v2468 = vld [vmem:[%s530 + $0x40] sm:$0xf]
    %v2469 = vld [vmem:[%s530 + $0x44] sm:$0x1]
    %v2470 = vld [vmem:[%s530 + $0x48] sm:$0xf]
    %v2471 = vld [vmem:[%s530 + $0x4c] sm:$0xf]
    %v2472 = vld [vmem:[%s530 + $0x50] sm:$0x1]
    %v2473 = vld [vmem:[%s530 + $0x54] sm:$0xf]
    %v2474 = vld [vmem:[%s530 + $0x58] sm:$0xf]
    %v2475 = vld [vmem:[%s530 + $0x5c] sm:$0x1]
    %v2476 = vld [vmem:[%s530 + $0x60] sm:$0xf]
    %v2477 = vld [vmem:[%s530 + $0x64] sm:$0xf]
    %v2478 = vld [vmem:[%s530 + $0x68] sm:$0x1]
    %v2479 = vld [vmem:[%s530 + $0x6c] sm:$0xf]
    %v2480 = vld [vmem:[%s530 + $0x70] sm:$0xf]
    %v2481 = vld [vmem:[%s530 + $0x74] sm:$0x1]
    %v2482 = vld [vmem:[%s530 + $0x78] sm:$0xf]
    %v2483 = vld [vmem:[%s530 + $0x7c] sm:$0xf]
    %v2484 = vld [vmem:[%s530 + $0x80] sm:$0x1]
    %v2485 = vld [vmem:[%s530 + $0x84] sm:$0xf]
    %v2486 = vld [vmem:[%s530 + $0x88] sm:$0xf]
    %v2487 = vld [vmem:[%s530 + $0x8c] sm:$0x1]
    %v2488 = vld [vmem:[%s530 + $0x90] sm:$0xf]
    %v2489 = vld [vmem:[%s530 + $0x94] sm:$0xf]
    %v2490 = vld [vmem:[%s530 + $0x98] sm:$0x1]
    %v2491 = vld [vmem:[%s530 + $0x9c] sm:$0xf]
    %v2492 = vld [vmem:[%s530 + $0xa0] sm:$0xf]
    %v2493 = vld [vmem:[%s530 + $0xa4] sm:$0x1]
    %v2494 = vld [vmem:[%s530 + $0xa8] sm:$0xf]
    %v2495 = vld [vmem:[%s530 + $0xac] sm:$0xf]
    %v2496 = vld [vmem:[%s530 + $0xb0] sm:$0x1]
    %v2497 = vld [vmem:[%s530 + $0xb4] sm:$0xf]
    %v2498 = vld [vmem:[%s530 + $0xb8] sm:$0xf]
    %v2499 = vld [vmem:[%s530 + $0xbc] sm:$0x1]
    %v2501 = vshrl.u32 %v2452, 16
    %v2503 = vrot.slane %v2501, 4
    %v2504 = vshll.u32 %v2452, 16
    %v2506 = vrot.slane %v2504, 5
    %v2507 = vor.u32 %v2503, %v2506
    %v2508 = vrot.slane %v2507, 4
    %v2510 = vshll.u32 %v2453, 16
    %v2512 = vrot.slane %v2510, 5
    %v2513 = vsel %vm696, %v2508, %v2512
    %v2514 = vshrl.u32 %v2453, 16
    %v2516 = vrot.slane %v2514, 4
    %v2517 = vor.u32 %v2516, %v2512
    %v2518 = vrot.slane %v2517, 4
    %v2520 = vshll.u32 %v2454, 16
    %v2522 = vrot.slane %v2520, 5
    %v2523 = vsel %vm696, %v2518, %v2522
    %v2525 = vshrl.u32 %v2455, 16
    %v2527 = vrot.slane %v2525, 4
    %v2528 = vshll.u32 %v2455, 16
    %v2530 = vrot.slane %v2528, 5
    %v2531 = vor.u32 %v2527, %v2530
    %v2532 = vrot.slane %v2531, 4
    %v2534 = vshll.u32 %v2456, 16
    %v2536 = vrot.slane %v2534, 5
    %v2537 = vsel %vm696, %v2532, %v2536
    %v2538 = vshrl.u32 %v2456, 16
    %v2540 = vrot.slane %v2538, 4
    %v2541 = vor.u32 %v2540, %v2536
    %v2542 = vrot.slane %v2541, 4
    %v2544 = vshll.u32 %v2457, 16
    %v2546 = vrot.slane %v2544, 5
    %v2547 = vsel %vm696, %v2542, %v2546
    %v2549 = vshrl.u32 %v2458, 16
    %v2551 = vrot.slane %v2549, 4
    %v2552 = vshll.u32 %v2458, 16
    %v2554 = vrot.slane %v2552, 5
    %v2555 = vor.u32 %v2551, %v2554
    %v2556 = vrot.slane %v2555, 4
    %v2558 = vshll.u32 %v2459, 16
    %v2560 = vrot.slane %v2558, 5
    %v2561 = vsel %vm696, %v2556, %v2560
    %v2562 = vshrl.u32 %v2459, 16
    %v2564 = vrot.slane %v2562, 4
    %v2565 = vor.u32 %v2564, %v2560
    %v2566 = vrot.slane %v2565, 4
    %v2568 = vshll.u32 %v2460, 16
    %v2570 = vrot.slane %v2568, 5
    %v2571 = vsel %vm696, %v2566, %v2570
    %v2573 = vshrl.u32 %v2461, 16
    %v2575 = vrot.slane %v2573, 4
    %v2576 = vshll.u32 %v2461, 16
    %v2578 = vrot.slane %v2576, 5
    %v2579 = vor.u32 %v2575, %v2578
    %v2580 = vrot.slane %v2579, 4
    %v2582 = vshll.u32 %v2462, 16
    %v2584 = vrot.slane %v2582, 5
    %v2585 = vsel %vm696, %v2580, %v2584
    %v2586 = vshrl.u32 %v2462, 16
    %v2588 = vrot.slane %v2586, 4
    %v2589 = vor.u32 %v2588, %v2584
    %v2590 = vrot.slane %v2589, 4
    %v2592 = vshll.u32 %v2463, 16
    %v2594 = vrot.slane %v2592, 5
    %v2595 = vsel %vm696, %v2590, %v2594
    %v2597 = vshrl.u32 %v2464, 16
    %v2599 = vrot.slane %v2597, 4
    %v2600 = vshll.u32 %v2464, 16
    %v2602 = vrot.slane %v2600, 5
    %v2603 = vor.u32 %v2599, %v2602
    %v2604 = vrot.slane %v2603, 4
    %v2606 = vshll.u32 %v2465, 16
    %v2608 = vrot.slane %v2606, 5
    %v2609 = vsel %vm696, %v2604, %v2608
    %v2610 = vshrl.u32 %v2465, 16
    %v2612 = vrot.slane %v2610, 4
    %v2613 = vor.u32 %v2612, %v2608
    %v2614 = vrot.slane %v2613, 4
    %v2616 = vshll.u32 %v2466, 16
    %v2618 = vrot.slane %v2616, 5
    %v2619 = vsel %vm696, %v2614, %v2618
    %v2621 = vshrl.u32 %v2467, 16
    %v2623 = vrot.slane %v2621, 4
    %v2624 = vshll.u32 %v2467, 16
    %v2626 = vrot.slane %v2624, 5
    %v2627 = vor.u32 %v2623, %v2626
    %v2628 = vrot.slane %v2627, 4
    %v2630 = vshll.u32 %v2468, 16
    %v2632 = vrot.slane %v2630, 5
    %v2633 = vsel %vm696, %v2628, %v2632
    %v2634 = vshrl.u32 %v2468, 16
    %v2636 = vrot.slane %v2634, 4
    %v2637 = vor.u32 %v2636, %v2632
    %v2638 = vrot.slane %v2637, 4
    %v2640 = vshll.u32 %v2469, 16
    %v2642 = vrot.slane %v2640, 5
    %v2643 = vsel %vm696, %v2638, %v2642
    %v2645 = vshrl.u32 %v2470, 16
    %v2647 = vrot.slane %v2645, 4
    %v2648 = vshll.u32 %v2470, 16
    %v2650 = vrot.slane %v2648, 5
    %v2651 = vor.u32 %v2647, %v2650
    %v2652 = vrot.slane %v2651, 4
    %v2654 = vshll.u32 %v2471, 16
    %v2656 = vrot.slane %v2654, 5
    %v2657 = vsel %vm696, %v2652, %v2656
    %v2658 = vshrl.u32 %v2471, 16
    %v2660 = vrot.slane %v2658, 4
    %v2661 = vor.u32 %v2660, %v2656
    %v2662 = vrot.slane %v2661, 4
    %v2664 = vshll.u32 %v2472, 16
    %v2666 = vrot.slane %v2664, 5
    %v2667 = vsel %vm696, %v2662, %v2666
    %v2669 = vshrl.u32 %v2473, 16
    %v2671 = vrot.slane %v2669, 4
    %v2672 = vshll.u32 %v2473, 16
    %v2674 = vrot.slane %v2672, 5
    %v2675 = vor.u32 %v2671, %v2674
    %v2676 = vrot.slane %v2675, 4
    %v2678 = vshll.u32 %v2474, 16
    %v2680 = vrot.slane %v2678, 5
    %v2681 = vsel %vm696, %v2676, %v2680
    %v2682 = vshrl.u32 %v2474, 16
    %v2684 = vrot.slane %v2682, 4
    %v2685 = vor.u32 %v2684, %v2680
    %v2686 = vrot.slane %v2685, 4
    %v2688 = vshll.u32 %v2475, 16
    %v2690 = vrot.slane %v2688, 5
    %v2691 = vsel %vm696, %v2686, %v2690
    %v2693 = vshrl.u32 %v2476, 16
    %v2695 = vrot.slane %v2693, 4
    %v2696 = vshll.u32 %v2476, 16
    %v2698 = vrot.slane %v2696, 5
    %v2699 = vor.u32 %v2695, %v2698
    %v2700 = vrot.slane %v2699, 4
    %v2702 = vshll.u32 %v2477, 16
    %v2704 = vrot.slane %v2702, 5
    %v2705 = vsel %vm696, %v2700, %v2704
    %v2706 = vshrl.u32 %v2477, 16
    %v2708 = vrot.slane %v2706, 4
    %v2709 = vor.u32 %v2708, %v2704
    %v2710 = vrot.slane %v2709, 4
    %v2712 = vshll.u32 %v2478, 16
    %v2714 = vrot.slane %v2712, 5
    %v2715 = vsel %vm696, %v2710, %v2714
    %v2717 = vshrl.u32 %v2479, 16
    %v2719 = vrot.slane %v2717, 4
    %v2720 = vshll.u32 %v2479, 16
    %v2722 = vrot.slane %v2720, 5
    %v2723 = vor.u32 %v2719, %v2722
    %v2724 = vrot.slane %v2723, 4
    %v2726 = vshll.u32 %v2480, 16
    %v2728 = vrot.slane %v2726, 5
    %v2729 = vsel %vm696, %v2724, %v2728
    %v2730 = vshrl.u32 %v2480, 16
    %v2732 = vrot.slane %v2730, 4
    %v2733 = vor.u32 %v2732, %v2728
    %v2734 = vrot.slane %v2733, 4
    %v2736 = vshll.u32 %v2481, 16
    %v2738 = vrot.slane %v2736, 5
    %v2739 = vsel %vm696, %v2734, %v2738
    %v2741 = vshrl.u32 %v2482, 16
    %v2743 = vrot.slane %v2741, 4
    %v2744 = vshll.u32 %v2482, 16
    %v2746 = vrot.slane %v2744, 5
    %v2747 = vor.u32 %v2743, %v2746
    %v2748 = vrot.slane %v2747, 4
    %v2750 = vshll.u32 %v2483, 16
    %v2752 = vrot.slane %v2750, 5
    %v2753 = vsel %vm696, %v2748, %v2752
    %v2754 = vshrl.u32 %v2483, 16
    %v2756 = vrot.slane %v2754, 4
    %v2757 = vor.u32 %v2756, %v2752
    %v2758 = vrot.slane %v2757, 4
    %v2760 = vshll.u32 %v2484, 16
    %v2762 = vrot.slane %v2760, 5
    %v2763 = vsel %vm696, %v2758, %v2762
    %v2765 = vshrl.u32 %v2485, 16
    %v2767 = vrot.slane %v2765, 4
    %v2768 = vshll.u32 %v2485, 16
    %v2770 = vrot.slane %v2768, 5
    %v2771 = vor.u32 %v2767, %v2770
    %v2772 = vrot.slane %v2771, 4
    %v2774 = vshll.u32 %v2486, 16
    %v2776 = vrot.slane %v2774, 5
    %v2777 = vsel %vm696, %v2772, %v2776
    %v2778 = vshrl.u32 %v2486, 16
    %v2780 = vrot.slane %v2778, 4
    %v2781 = vor.u32 %v2780, %v2776
    %v2782 = vrot.slane %v2781, 4
    %v2784 = vshll.u32 %v2487, 16
    %v2786 = vrot.slane %v2784, 5
    %v2787 = vsel %vm696, %v2782, %v2786
    %v2789 = vshrl.u32 %v2488, 16
    %v2791 = vrot.slane %v2789, 4
    %v2792 = vshll.u32 %v2488, 16
    %v2794 = vrot.slane %v2792, 5
    %v2795 = vor.u32 %v2791, %v2794
    %v2796 = vrot.slane %v2795, 4
    %v2798 = vshll.u32 %v2489, 16
    %v2800 = vrot.slane %v2798, 5
    %v2801 = vsel %vm696, %v2796, %v2800
    %v2802 = vshrl.u32 %v2489, 16
    %v2804 = vrot.slane %v2802, 4
    %v2805 = vor.u32 %v2804, %v2800
    %v2806 = vrot.slane %v2805, 4
    %v2808 = vshll.u32 %v2490, 16
    %v2810 = vrot.slane %v2808, 5
    %v2811 = vsel %vm696, %v2806, %v2810
    %v2813 = vshrl.u32 %v2491, 16
    %v2815 = vrot.slane %v2813, 4
    %v2816 = vshll.u32 %v2491, 16
    %v2818 = vrot.slane %v2816, 5
    %v2819 = vor.u32 %v2815, %v2818
    %v2820 = vrot.slane %v2819, 4
    %v2822 = vshll.u32 %v2492, 16
    %v2824 = vrot.slane %v2822, 5
    %v2825 = vsel %vm696, %v2820, %v2824
    %v2826 = vshrl.u32 %v2492, 16
    %v2828 = vrot.slane %v2826, 4
    %v2829 = vor.u32 %v2828, %v2824
    %v2830 = vrot.slane %v2829, 4
    %v2832 = vshll.u32 %v2493, 16
    %v2834 = vrot.slane %v2832, 5
    %v2835 = vsel %vm696, %v2830, %v2834
    %v2837 = vshrl.u32 %v2494, 16
    %v2839 = vrot.slane %v2837, 4
    %v2840 = vshll.u32 %v2494, 16
    %v2842 = vrot.slane %v2840, 5
    %v2843 = vor.u32 %v2839, %v2842
    %v2844 = vrot.slane %v2843, 4
    %v2846 = vshll.u32 %v2495, 16
    %v2848 = vrot.slane %v2846, 5
    %v2849 = vsel %vm696, %v2844, %v2848
    %v2850 = vshrl.u32 %v2495, 16
    %v2852 = vrot.slane %v2850, 4
    %v2853 = vor.u32 %v2852, %v2848
    %v2854 = vrot.slane %v2853, 4
    %v2856 = vshll.u32 %v2496, 16
    %v2858 = vrot.slane %v2856, 5
    %v2859 = vsel %vm696, %v2854, %v2858
    %v2861 = vshrl.u32 %v2497, 16
    %v2863 = vrot.slane %v2861, 4
    %v2864 = vshll.u32 %v2497, 16
    %v2866 = vrot.slane %v2864, 5
    %v2867 = vor.u32 %v2863, %v2866
    %v2868 = vrot.slane %v2867, 4
    %v2870 = vshll.u32 %v2498, 16
    %v2872 = vrot.slane %v2870, 5
    %v2873 = vsel %vm696, %v2868, %v2872
    %v2874 = vshrl.u32 %v2498, 16
    %v2876 = vrot.slane %v2874, 4
    %v2877 = vor.u32 %v2876, %v2872
    %v2878 = vrot.slane %v2877, 4
    %v2880 = vshll.u32 %v2499, 16
    %v2882 = vrot.slane %v2880, 5
    %v2883 = vsel %vm696, %v2878, %v2882
    %s2884 = scalar_lea.vmem %s1, 16
    %v2885 = vld [vmem:[%s2884] sm:$0xf]
    %v2886 = vunpack.c.l.b16 %v2513
    %v2887 = vunpack.c.l.b16 %v2523
    %v2888 = vunpack.c.l.b16 %v2537
    %v2889 = vunpack.c.l.b16 %v2547
    %v2890 = vunpack.c.l.b16 %v2561
    %v2891 = vunpack.c.l.b16 %v2571
    %v2892 = vunpack.c.l.b16 %v2585
    %v2893 = vunpack.c.l.b16 %v2595
    %v2894 = vunpack.c.l.b16 %v2609
    %v2895 = vunpack.c.l.b16 %v2619
    %v2896 = vunpack.c.l.b16 %v2633
    %v2897 = vunpack.c.l.b16 %v2643
    %v2898 = vunpack.c.l.b16 %v2657
    %v2899 = vunpack.c.l.b16 %v2667
    %v2900 = vunpack.c.l.b16 %v2681
    %v2901 = vunpack.c.l.b16 %v2691
    %v2902 = vunpack.c.l.b16 %v2705
    %v2903 = vunpack.c.l.b16 %v2715
    %v2904 = vunpack.c.l.b16 %v2729
    %v2905 = vunpack.c.l.b16 %v2739
    %v2906 = vunpack.c.l.b16 %v2753
    %v2907 = vunpack.c.l.b16 %v2763
    %v2908 = vunpack.c.l.b16 %v2777
    %v2909 = vunpack.c.l.b16 %v2787
    %v2910 = vunpack.c.l.b16 %v2801
    %v2911 = vunpack.c.l.b16 %v2811
    %v2912 = vunpack.c.l.b16 %v2825
    %v2913 = vunpack.c.l.b16 %v2835
    %v2914 = vunpack.c.l.b16 %v2849
    %v2915 = vunpack.c.l.b16 %v2859
    %v2916 = vunpack.c.l.b16 %v2873
    %v2917 = vunpack.c.l.b16 %v2883
    %v2918 = vpack.c.b16 %v2887, %v2886
    %v2919 = vpack.c.b16 %v2889, %v2888
    %v2920 = vpack.c.b16 %v2891, %v2890
    %v2921 = vpack.c.b16 %v2893, %v2892
    %v2922 = vpack.c.b16 %v2895, %v2894
    %v2923 = vpack.c.b16 %v2897, %v2896
    %v2924 = vpack.c.b16 %v2899, %v2898
    %v2925 = vpack.c.b16 %v2901, %v2900
    %v2926 = vpack.c.b16 %v2903, %v2902
    %v2927 = vpack.c.b16 %v2905, %v2904
    %v2928 = vpack.c.b16 %v2907, %v2906
    %v2929 = vpack.c.b16 %v2909, %v2908
    %v2930 = vpack.c.b16 %v2911, %v2910
    %v2931 = vpack.c.b16 %v2913, %v2912
    %v2932 = vpack.c.b16 %v2915, %v2914
    %v2933 = vpack.c.b16 %v2917, %v2916
    %v2935 = vsel %vm1131, %v2918, 0
    %v2938 = vsel %vm1131, %v2919, 0
    %v2941 = vsel %vm1131, %v2920, 0
    %v2944 = vsel %vm1131, %v2921, 0
    %v2947 = vsel %vm1131, %v2922, 0
    %v2950 = vsel %vm1131, %v2923, 0
    %v2953 = vsel %vm1131, %v2924, 0
    %v2956 = vsel %vm1131, %v2925, 0
    %v2959 = vsel %vm1131, %v2926, 0
    %v2962 = vsel %vm1131, %v2927, 0
    %v2965 = vsel %vm1131, %v2928, 0
    %v2968 = vsel %vm1131, %v2929, 0
    %v2971 = vsel %vm1131, %v2930, 0
    %v2974 = vsel %vm1131, %v2931, 0
    %v2977 = vsel %vm1131, %v2932, 0
    %v2980 = vsel %vm1131, %v2933, 0
    %v2983 = vsel %vm1180, %v2885, 0
    %2985 = vmatprep.subr.bf16.mxu0 0
    %2986 = vmatpush1.bf16.msra.mxu0 0
    %2987 = vmatprep.subr.bf16.mxu0 0
    %2988 = vmatpush1.bf16.msra.mxu0 0
    %2989 = vmatprep.subr.bf16.mxu0 0
    %2990 = vmatpush1.bf16.msra.mxu0 0
    %2991 = vmatprep.subr.bf16.mxu0 0
    %2992 = vmatpush1.bf16.msra.mxu0 0
    %2993 = vmatprep.subr.bf16.mxu0 0
    %2994 = vmatpush1.bf16.msra.mxu0 0
    %2995 = vmatprep.subr.bf16.mxu0 0
    %2996 = vmatpush1.bf16.msra.mxu0 0
    %2997 = vmatprep.subr.bf16.mxu0 0
    %2998 = vmatpush1.bf16.msra.mxu0 0
    %2999 = vmatprep.subr.bf16.mxu0 0
    %3000 = vmatpush1.bf16.msra.mxu0 %v2983
    %3001 = vmatprep.subr.bf16.mxu0 0
    %3002 = vmatpush2.bf16.msra.mxu0 0
    %3003 = vmatprep.subr.bf16.mxu0 0
    %3004 = vmatpush2.bf16.msra.mxu0 0
    %3005 = vmatprep.subr.bf16.mxu0 0
    %3006 = vmatpush2.bf16.msra.mxu0 0
    %3007 = vmatprep.subr.bf16.mxu0 0
    %3008 = vmatpush2.bf16.msra.mxu0 0
    %3009 = vmatprep.subr.bf16.mxu0 0
    %3010 = vmatpush2.bf16.msra.mxu0 0
    %3011 = vmatprep.subr.bf16.mxu0 0
    %3012 = vmatpush2.bf16.msra.mxu0 0
    %3013 = vmatprep.subr.bf16.mxu0 0
    %3014 = vmatpush2.bf16.msra.mxu0 0
    %3015 = vmatprep.subr.bf16.mxu0 0
    %3016 = vmatpush2.bf16.msra.mxu0 0
    %3017 = vmatprep.mubr.bf16.mxu0 0
    %3018 = vmatmul.mubr.bf16.gmra.mxu0 %v2935
    %v3019 = vpop.f32.mrf.mxu0
    %v3020 = vadd.f32 0.0, %v3019
    %v3021 = vpop.f32.mrf.mxu0
    %v3022 = vpop.f32.mrf.mxu0
    %v3023 = vadd.f32 0.0, %v3022
    %v3024 = vpop.f32.mrf.mxu0
    %3025 = vmatprep.mubr.bf16.mxu0 0
    %3026 = vmatmul.mubr.bf16.gmra.mxu0 %v2938
    %v3027 = vpop.f32.mrf.mxu0
    %v3028 = vadd.f32 0.0, %v3027
    %v3029 = vpop.f32.mrf.mxu0
    %v3030 = vpop.f32.mrf.mxu0
    %v3031 = vadd.f32 0.0, %v3030
    %v3032 = vpop.f32.mrf.mxu0
    %3033 = vmatprep.mubr.bf16.mxu0 0
    %3034 = vmatmul.mubr.bf16.gmra.mxu0 %v2941
    %v3035 = vpop.f32.mrf.mxu0
    %v3036 = vadd.f32 0.0, %v3035
    %v3037 = vpop.f32.mrf.mxu0
    %v3038 = vpop.f32.mrf.mxu0
    %v3039 = vadd.f32 0.0, %v3038
    %v3040 = vpop.f32.mrf.mxu0
    %3041 = vmatprep.mubr.bf16.mxu0 0
    %3042 = vmatmul.mubr.bf16.gmra.mxu0 %v2944
    %v3043 = vpop.f32.mrf.mxu0
    %v3044 = vadd.f32 0.0, %v3043
    %v3045 = vpop.f32.mrf.mxu0
    %v3046 = vpop.f32.mrf.mxu0
    %v3047 = vadd.f32 0.0, %v3046
    %v3048 = vpop.f32.mrf.mxu0
    %3049 = vmatprep.mubr.bf16.mxu0 0
    %3050 = vmatmul.mubr.bf16.gmra.mxu0 %v2947
    %v3051 = vpop.f32.mrf.mxu0
    %v3052 = vadd.f32 0.0, %v3051
    %v3053 = vpop.f32.mrf.mxu0
    %v3054 = vpop.f32.mrf.mxu0
    %v3055 = vadd.f32 0.0, %v3054
    %v3056 = vpop.f32.mrf.mxu0
    %3057 = vmatprep.mubr.bf16.mxu0 0
    %3058 = vmatmul.mubr.bf16.gmra.mxu0 %v2950
    %v3059 = vpop.f32.mrf.mxu0
    %v3060 = vadd.f32 0.0, %v3059
    %v3061 = vpop.f32.mrf.mxu0
    %v3062 = vpop.f32.mrf.mxu0
    %v3063 = vadd.f32 0.0, %v3062
    %v3064 = vpop.f32.mrf.mxu0
    %3065 = vmatprep.mubr.bf16.mxu0 0
    %3066 = vmatmul.mubr.bf16.gmra.mxu0 %v2953
    %v3067 = vpop.f32.mrf.mxu0
    %v3068 = vadd.f32 0.0, %v3067
    %v3069 = vpop.f32.mrf.mxu0
    %v3070 = vpop.f32.mrf.mxu0
    %v3071 = vadd.f32 0.0, %v3070
    %v3072 = vpop.f32.mrf.mxu0
    %3073 = vmatprep.mubr.bf16.mxu0 0
    %3074 = vmatmul.mubr.bf16.gmra.mxu0 %v2956
    %v3075 = vpop.f32.mrf.mxu0
    %v3076 = vadd.f32 0.0, %v3075
    %v3077 = vpop.f32.mrf.mxu0
    %v3078 = vpop.f32.mrf.mxu0
    %v3079 = vadd.f32 0.0, %v3078
    %v3080 = vpop.f32.mrf.mxu0
    %3081 = vmatprep.mubr.bf16.mxu0 0
    %3082 = vmatmul.mubr.bf16.gmra.mxu0 %v2959
    %v3083 = vpop.f32.mrf.mxu0
    %v3084 = vadd.f32 0.0, %v3083
    %v3085 = vpop.f32.mrf.mxu0
    %v3086 = vpop.f32.mrf.mxu0
    %v3087 = vadd.f32 0.0, %v3086
    %v3088 = vpop.f32.mrf.mxu0
    %3089 = vmatprep.mubr.bf16.mxu0 0
    %3090 = vmatmul.mubr.bf16.gmra.mxu0 %v2962
    %v3091 = vpop.f32.mrf.mxu0
    %v3092 = vadd.f32 0.0, %v3091
    %v3093 = vpop.f32.mrf.mxu0
    %v3094 = vpop.f32.mrf.mxu0
    %v3095 = vadd.f32 0.0, %v3094
    %v3096 = vpop.f32.mrf.mxu0
    %3097 = vmatprep.mubr.bf16.mxu0 0
    %3098 = vmatmul.mubr.bf16.gmra.mxu0 %v2965
    %v3099 = vpop.f32.mrf.mxu0
    %v3100 = vadd.f32 0.0, %v3099
    %v3101 = vpop.f32.mrf.mxu0
    %v3102 = vpop.f32.mrf.mxu0
    %v3103 = vadd.f32 0.0, %v3102
    %v3104 = vpop.f32.mrf.mxu0
    %3105 = vmatprep.mubr.bf16.mxu0 0
    %3106 = vmatmul.mubr.bf16.gmra.mxu0 %v2968
    %v3107 = vpop.f32.mrf.mxu0
    %v3108 = vadd.f32 0.0, %v3107
    %v3109 = vpop.f32.mrf.mxu0
    %v3110 = vpop.f32.mrf.mxu0
    %v3111 = vadd.f32 0.0, %v3110
    %v3112 = vpop.f32.mrf.mxu0
    %3113 = vmatprep.mubr.bf16.mxu0 0
    %3114 = vmatmul.mubr.bf16.gmra.mxu0 %v2971
    %v3115 = vpop.f32.mrf.mxu0
    %v3116 = vadd.f32 0.0, %v3115
    %v3117 = vpop.f32.mrf.mxu0
    %v3118 = vpop.f32.mrf.mxu0
    %v3119 = vadd.f32 0.0, %v3118
    %v3120 = vpop.f32.mrf.mxu0
    %3121 = vmatprep.mubr.bf16.mxu0 0
    %3122 = vmatmul.mubr.bf16.gmra.mxu0 %v2974
    %v3123 = vpop.f32.mrf.mxu0
    %v3124 = vadd.f32 0.0, %v3123
    %v3125 = vpop.f32.mrf.mxu0
    %v3126 = vpop.f32.mrf.mxu0
    %v3127 = vadd.f32 0.0, %v3126
    %v3128 = vpop.f32.mrf.mxu0
    %3129 = vmatprep.mubr.bf16.mxu0 0
    %3130 = vmatmul.mubr.bf16.gmra.mxu0 %v2977
    %v3131 = vpop.f32.mrf.mxu0
    %v3132 = vadd.f32 0.0, %v3131
    %v3133 = vpop.f32.mrf.mxu0
    %v3134 = vpop.f32.mrf.mxu0
    %v3135 = vadd.f32 0.0, %v3134
    %v3136 = vpop.f32.mrf.mxu0
    %3137 = vmatprep.mubr.bf16.mxu0 0
    %3138 = vmatmul.mubr.bf16.gmra.mxu0 %v2980
    %v3139 = vpop.f32.mrf.mxu0
    %v3140 = vadd.f32 0.0, %v3139
    %v3141 = vpop.f32.mrf.mxu0
    %v3142 = vpop.f32.mrf.mxu0
    %v3143 = vadd.f32 0.0, %v3142
    %v3144 = vpop.f32.mrf.mxu0
    %3145 = vdwg.mxu0
    %v3146 = vadd.f32 %v2420, %v3020
    %v3147 = vadd.f32 %v2421, %v3023
    %v3148 = vadd.f32 %v2422, %v3028
    %v3149 = vadd.f32 %v2423, %v3031
    %v3150 = vadd.f32 %v2424, %v3036
    %v3151 = vadd.f32 %v2425, %v3039
    %v3152 = vadd.f32 %v2426, %v3044
    %v3153 = vadd.f32 %v2427, %v3047
    %v3154 = vadd.f32 %v2428, %v3052
    %v3155 = vadd.f32 %v2429, %v3055
    %v3156 = vadd.f32 %v2430, %v3060
    %v3157 = vadd.f32 %v2431, %v3063
    %v3158 = vadd.f32 %v2432, %v3068
    %v3159 = vadd.f32 %v2433, %v3071
    %v3160 = vadd.f32 %v2434, %v3076
    %v3161 = vadd.f32 %v2435, %v3079
    %v3162 = vadd.f32 %v2436, %v3084
    %v3163 = vadd.f32 %v2437, %v3087
    %v3164 = vadd.f32 %v2438, %v3092
    %v3165 = vadd.f32 %v2439, %v3095
    %v3166 = vadd.f32 %v2440, %v3100
    %v3167 = vadd.f32 %v2441, %v3103
    %v3168 = vadd.f32 %v2442, %v3108
    %v3169 = vadd.f32 %v2443, %v3111
    %v3170 = vadd.f32 %v2444, %v3116
    %v3171 = vadd.f32 %v2445, %v3119
    %v3172 = vadd.f32 %v2446, %v3124
    %v3173 = vadd.f32 %v2447, %v3127
    %v3174 = vadd.f32 %v2448, %v3132
    %v3175 = vadd.f32 %v2449, %v3135
    %v3176 = vadd.f32 %v2450, %v3140
    %v3177 = vadd.f32 %v2451, %v3143
    %v3178 = vld [vmem:[%s530] sm:$0xe]
    %v3179 = vld [vmem:[%s530 + $0xc] sm:$0xe]
    %v3180 = vld [vmem:[%s530 + $0x18] sm:$0xe]
    %v3181 = vld [vmem:[%s530 + $0x24] sm:$0xe]
    %v3182 = vld [vmem:[%s530 + $0x30] sm:$0xe]
    %v3183 = vld [vmem:[%s530 + $0x3c] sm:$0xe]
    %v3184 = vld [vmem:[%s530 + $0x48] sm:$0xe]
    %v3185 = vld [vmem:[%s530 + $0x54] sm:$0xe]
    %v3186 = vld [vmem:[%s530 + $0x60] sm:$0xe]
    %v3187 = vld [vmem:[%s530 + $0x6c] sm:$0xe]
    %v3188 = vld [vmem:[%s530 + $0x78] sm:$0xe]
    %v3189 = vld [vmem:[%s530 + $0x84] sm:$0xe]
    %v3190 = vld [vmem:[%s530 + $0x90] sm:$0xe]
    %v3191 = vld [vmem:[%s530 + $0x9c] sm:$0xe]
    %v3192 = vld [vmem:[%s530 + $0xa8] sm:$0xe]
    %v3193 = vld [vmem:[%s530 + $0xb4] sm:$0xe]
    %v3242 = vrot.slane %v3178, 5
    %v3243 = vrot.slane %v3242, 4
    %v3244 = vrot.slane %v2453, 5
    %v3245 = vsel %vm1687, %v3243, %v3244
    %v3246 = vrot.slane %v3244, 4
    %v3247 = vrot.slane %v2454, 5
    %v3248 = vsel %vm1687, %v3246, %v3247
    %v3249 = vrot.slane %v3179, 5
    %v3250 = vrot.slane %v3249, 4
    %v3251 = vrot.slane %v2456, 5
    %v3252 = vsel %vm1687, %v3250, %v3251
    %v3253 = vrot.slane %v3251, 4
    %v3254 = vrot.slane %v2457, 5
    %v3255 = vsel %vm1687, %v3253, %v3254
    %v3256 = vrot.slane %v3180, 5
    %v3257 = vrot.slane %v3256, 4
    %v3258 = vrot.slane %v2459, 5
    %v3259 = vsel %vm1687, %v3257, %v3258
    %v3260 = vrot.slane %v3258, 4
    %v3261 = vrot.slane %v2460, 5
    %v3262 = vsel %vm1687, %v3260, %v3261
    %v3263 = vrot.slane %v3181, 5
    %v3264 = vrot.slane %v3263, 4
    %v3265 = vrot.slane %v2462, 5
    %v3266 = vsel %vm1687, %v3264, %v3265
    %v3267 = vrot.slane %v3265, 4
    %v3268 = vrot.slane %v2463, 5
    %v3269 = vsel %vm1687, %v3267, %v3268
    %v3270 = vrot.slane %v3182, 5
    %v3271 = vrot.slane %v3270, 4
    %v3272 = vrot.slane %v2465, 5
    %v3273 = vsel %vm1687, %v3271, %v3272
    %v3274 = vrot.slane %v3272, 4
    %v3275 = vrot.slane %v2466, 5
    %v3276 = vsel %vm1687, %v3274, %v3275
    %v3277 = vrot.slane %v3183, 5
    %v3278 = vrot.slane %v3277, 4
    %v3279 = vrot.slane %v2468, 5
    %v3280 = vsel %vm1687, %v3278, %v3279
    %v3281 = vrot.slane %v3279, 4
    %v3282 = vrot.slane %v2469, 5
    %v3283 = vsel %vm1687, %v3281, %v3282
    %v3284 = vrot.slane %v3184, 5
    %v3285 = vrot.slane %v3284, 4
    %v3286 = vrot.slane %v2471, 5
    %v3287 = vsel %vm1687, %v3285, %v3286
    %v3288 = vrot.slane %v3286, 4
    %v3289 = vrot.slane %v2472, 5
    %v3290 = vsel %vm1687, %v3288, %v3289
    %v3291 = vrot.slane %v3185, 5
    %v3292 = vrot.slane %v3291, 4
    %v3293 = vrot.slane %v2474, 5
    %v3294 = vsel %vm1687, %v3292, %v3293
    %v3295 = vrot.slane %v3293, 4
    %v3296 = vrot.slane %v2475, 5
    %v3297 = vsel %vm1687, %v3295, %v3296
    %v3298 = vrot.slane %v3186, 5
    %v3299 = vrot.slane %v3298, 4
    %v3300 = vrot.slane %v2477, 5
    %v3301 = vsel %vm1687, %v3299, %v3300
    %v3302 = vrot.slane %v3300, 4
    %v3303 = vrot.slane %v2478, 5
    %v3304 = vsel %vm1687, %v3302, %v3303
    %v3305 = vrot.slane %v3187, 5
    %v3306 = vrot.slane %v3305, 4
    %v3307 = vrot.slane %v2480, 5
    %v3308 = vsel %vm1687, %v3306, %v3307
    %v3309 = vrot.slane %v3307, 4
    %v3310 = vrot.slane %v2481, 5
    %v3311 = vsel %vm1687, %v3309, %v3310
    %v3312 = vrot.slane %v3188, 5
    %v3313 = vrot.slane %v3312, 4
    %v3314 = vrot.slane %v2483, 5
    %v3315 = vsel %vm1687, %v3313, %v3314
    %v3316 = vrot.slane %v3314, 4
    %v3317 = vrot.slane %v2484, 5
    %v3318 = vsel %vm1687, %v3316, %v3317
    %v3319 = vrot.slane %v3189, 5
    %v3320 = vrot.slane %v3319, 4
    %v3321 = vrot.slane %v2486, 5
    %v3322 = vsel %vm1687, %v3320, %v3321
    %v3323 = vrot.slane %v3321, 4
    %v3324 = vrot.slane %v2487, 5
    %v3325 = vsel %vm1687, %v3323, %v3324
    %v3326 = vrot.slane %v3190, 5
    %v3327 = vrot.slane %v3326, 4
    %v3328 = vrot.slane %v2489, 5
    %v3329 = vsel %vm1687, %v3327, %v3328
    %v3330 = vrot.slane %v3328, 4
    %v3331 = vrot.slane %v2490, 5
    %v3332 = vsel %vm1687, %v3330, %v3331
    %v3333 = vrot.slane %v3191, 5
    %v3334 = vrot.slane %v3333, 4
    %v3335 = vrot.slane %v2492, 5
    %v3336 = vsel %vm1687, %v3334, %v3335
    %v3337 = vrot.slane %v3335, 4
    %v3338 = vrot.slane %v2493, 5
    %v3339 = vsel %vm1687, %v3337, %v3338
    %v3340 = vrot.slane %v3192, 5
    %v3341 = vrot.slane %v3340, 4
    %v3342 = vrot.slane %v2495, 5
    %v3343 = vsel %vm1687, %v3341, %v3342
    %v3344 = vrot.slane %v3342, 4
    %v3345 = vrot.slane %v2496, 5
    %v3346 = vsel %vm1687, %v3344, %v3345
    %v3347 = vrot.slane %v3193, 5
    %v3348 = vrot.slane %v3347, 4
    %v3349 = vrot.slane %v2498, 5
    %v3350 = vsel %vm1687, %v3348, %v3349
    %v3351 = vrot.slane %v3349, 4
    %v3352 = vrot.slane %v2499, 5
    %v3353 = vsel %vm1687, %v3351, %v3352
    %s3354 = scalar_lea.vmem %s1, 20
    %v3355 = vld [vmem:[%s3354] sm:$0xf]
    %v3356 = vunpack.c.l.b16 %v3245
    %v3357 = vunpack.c.l.b16 %v3248
    %v3358 = vunpack.c.l.b16 %v3252
    %v3359 = vunpack.c.l.b16 %v3255
    %v3360 = vunpack.c.l.b16 %v3259
    %v3361 = vunpack.c.l.b16 %v3262
    %v3362 = vunpack.c.l.b16 %v3266
    %v3363 = vunpack.c.l.b16 %v3269
    %v3364 = vunpack.c.l.b16 %v3273
    %v3365 = vunpack.c.l.b16 %v3276
    %v3366 = vunpack.c.l.b16 %v3280
    %v3367 = vunpack.c.l.b16 %v3283
    %v3368 = vunpack.c.l.b16 %v3287
    %v3369 = vunpack.c.l.b16 %v3290
    %v3370 = vunpack.c.l.b16 %v3294
    %v3371 = vunpack.c.l.b16 %v3297
    %v3372 = vunpack.c.l.b16 %v3301
    %v3373 = vunpack.c.l.b16 %v3304
    %v3374 = vunpack.c.l.b16 %v3308
    %v3375 = vunpack.c.l.b16 %v3311
    %v3376 = vunpack.c.l.b16 %v3315
    %v3377 = vunpack.c.l.b16 %v3318
    %v3378 = vunpack.c.l.b16 %v3322
    %v3379 = vunpack.c.l.b16 %v3325
    %v3380 = vunpack.c.l.b16 %v3329
    %v3381 = vunpack.c.l.b16 %v3332
    %v3382 = vunpack.c.l.b16 %v3336
    %v3383 = vunpack.c.l.b16 %v3339
    %v3384 = vunpack.c.l.b16 %v3343
    %v3385 = vunpack.c.l.b16 %v3346
    %v3386 = vunpack.c.l.b16 %v3350
    %v3387 = vunpack.c.l.b16 %v3353
    %v3388 = vpack.c.b16 %v3357, %v3356
    %v3389 = vpack.c.b16 %v3359, %v3358
    %v3390 = vpack.c.b16 %v3361, %v3360
    %v3391 = vpack.c.b16 %v3363, %v3362
    %v3392 = vpack.c.b16 %v3365, %v3364
    %v3393 = vpack.c.b16 %v3367, %v3366
    %v3394 = vpack.c.b16 %v3369, %v3368
    %v3395 = vpack.c.b16 %v3371, %v3370
    %v3396 = vpack.c.b16 %v3373, %v3372
    %v3397 = vpack.c.b16 %v3375, %v3374
    %v3398 = vpack.c.b16 %v3377, %v3376
    %v3399 = vpack.c.b16 %v3379, %v3378
    %v3400 = vpack.c.b16 %v3381, %v3380
    %v3401 = vpack.c.b16 %v3383, %v3382
    %v3402 = vpack.c.b16 %v3385, %v3384
    %v3403 = vpack.c.b16 %v3387, %v3386
    %v3405 = vsel %vm1131, %v3388, 0
    %v3408 = vsel %vm1131, %v3389, 0
    %v3411 = vsel %vm1131, %v3390, 0
    %v3414 = vsel %vm1131, %v3391, 0
    %v3417 = vsel %vm1131, %v3392, 0
    %v3420 = vsel %vm1131, %v3393, 0
    %v3423 = vsel %vm1131, %v3394, 0
    %v3426 = vsel %vm1131, %v3395, 0
    %v3429 = vsel %vm1131, %v3396, 0
    %v3432 = vsel %vm1131, %v3397, 0
    %v3435 = vsel %vm1131, %v3398, 0
    %v3438 = vsel %vm1131, %v3399, 0
    %v3441 = vsel %vm1131, %v3400, 0
    %v3444 = vsel %vm1131, %v3401, 0
    %v3447 = vsel %vm1131, %v3402, 0
    %v3450 = vsel %vm1131, %v3403, 0
    %v3453 = vsel %vm1180, %v3355, 0
    %3455 = vmatprep.subr.bf16.mxu0 0
    %3456 = vmatpush1.bf16.msra.mxu0 0
    %3457 = vmatprep.subr.bf16.mxu0 0
    %3458 = vmatpush1.bf16.msra.mxu0 0
    %3459 = vmatprep.subr.bf16.mxu0 0
    %3460 = vmatpush1.bf16.msra.mxu0 0
    %3461 = vmatprep.subr.bf16.mxu0 0
    %3462 = vmatpush1.bf16.msra.mxu0 0
    %3463 = vmatprep.subr.bf16.mxu0 0
    %3464 = vmatpush1.bf16.msra.mxu0 0
    %3465 = vmatprep.subr.bf16.mxu0 0
    %3466 = vmatpush1.bf16.msra.mxu0 0
    %3467 = vmatprep.subr.bf16.mxu0 0
    %3468 = vmatpush1.bf16.msra.mxu0 0
    %3469 = vmatprep.subr.bf16.mxu0 0
    %3470 = vmatpush1.bf16.msra.mxu0 %v3453
    %3471 = vmatprep.subr.bf16.mxu0 0
    %3472 = vmatpush2.bf16.msra.mxu0 0
    %3473 = vmatprep.subr.bf16.mxu0 0
    %3474 = vmatpush2.bf16.msra.mxu0 0
    %3475 = vmatprep.subr.bf16.mxu0 0
    %3476 = vmatpush2.bf16.msra.mxu0 0
    %3477 = vmatprep.subr.bf16.mxu0 0
    %3478 = vmatpush2.bf16.msra.mxu0 0
    %3479 = vmatprep.subr.bf16.mxu0 0
    %3480 = vmatpush2.bf16.msra.mxu0 0
    %3481 = vmatprep.subr.bf16.mxu0 0
    %3482 = vmatpush2.bf16.msra.mxu0 0
    %3483 = vmatprep.subr.bf16.mxu0 0
    %3484 = vmatpush2.bf16.msra.mxu0 0
    %3485 = vmatprep.subr.bf16.mxu0 0
    %3486 = vmatpush2.bf16.msra.mxu0 0
    %3487 = vmatprep.mubr.bf16.mxu0 0
    %3488 = vmatmul.mubr.bf16.gmra.mxu0 %v3405
    %v3489 = vpop.f32.mrf.mxu0
    %v3490 = vadd.f32 0.0, %v3489
    %v3491 = vpop.f32.mrf.mxu0
    %v3492 = vpop.f32.mrf.mxu0
    %v3493 = vadd.f32 0.0, %v3492
    %v3494 = vpop.f32.mrf.mxu0
    %3495 = vmatprep.mubr.bf16.mxu0 0
    %3496 = vmatmul.mubr.bf16.gmra.mxu0 %v3408
    %v3497 = vpop.f32.mrf.mxu0
    %v3498 = vadd.f32 0.0, %v3497
    %v3499 = vpop.f32.mrf.mxu0
    %v3500 = vpop.f32.mrf.mxu0
    %v3501 = vadd.f32 0.0, %v3500
    %v3502 = vpop.f32.mrf.mxu0
    %3503 = vmatprep.mubr.bf16.mxu0 0
    %3504 = vmatmul.mubr.bf16.gmra.mxu0 %v3411
    %v3505 = vpop.f32.mrf.mxu0
    %v3506 = vadd.f32 0.0, %v3505
    %v3507 = vpop.f32.mrf.mxu0
    %v3508 = vpop.f32.mrf.mxu0
    %v3509 = vadd.f32 0.0, %v3508
    %v3510 = vpop.f32.mrf.mxu0
    %3511 = vmatprep.mubr.bf16.mxu0 0
    %3512 = vmatmul.mubr.bf16.gmra.mxu0 %v3414
    %v3513 = vpop.f32.mrf.mxu0
    %v3514 = vadd.f32 0.0, %v3513
    %v3515 = vpop.f32.mrf.mxu0
    %v3516 = vpop.f32.mrf.mxu0
    %v3517 = vadd.f32 0.0, %v3516
    %v3518 = vpop.f32.mrf.mxu0
    %3519 = vmatprep.mubr.bf16.mxu0 0
    %3520 = vmatmul.mubr.bf16.gmra.mxu0 %v3417
    %v3521 = vpop.f32.mrf.mxu0
    %v3522 = vadd.f32 0.0, %v3521
    %v3523 = vpop.f32.mrf.mxu0
    %v3524 = vpop.f32.mrf.mxu0
    %v3525 = vadd.f32 0.0, %v3524
    %v3526 = vpop.f32.mrf.mxu0
    %3527 = vmatprep.mubr.bf16.mxu0 0
    %3528 = vmatmul.mubr.bf16.gmra.mxu0 %v3420
    %v3529 = vpop.f32.mrf.mxu0
    %v3530 = vadd.f32 0.0, %v3529
    %v3531 = vpop.f32.mrf.mxu0
    %v3532 = vpop.f32.mrf.mxu0
    %v3533 = vadd.f32 0.0, %v3532
    %v3534 = vpop.f32.mrf.mxu0
    %3535 = vmatprep.mubr.bf16.mxu0 0
    %3536 = vmatmul.mubr.bf16.gmra.mxu0 %v3423
    %v3537 = vpop.f32.mrf.mxu0
    %v3538 = vadd.f32 0.0, %v3537
    %v3539 = vpop.f32.mrf.mxu0
    %v3540 = vpop.f32.mrf.mxu0
    %v3541 = vadd.f32 0.0, %v3540
    %v3542 = vpop.f32.mrf.mxu0
    %3543 = vmatprep.mubr.bf16.mxu0 0
    %3544 = vmatmul.mubr.bf16.gmra.mxu0 %v3426
    %v3545 = vpop.f32.mrf.mxu0
    %v3546 = vadd.f32 0.0, %v3545
    %v3547 = vpop.f32.mrf.mxu0
    %v3548 = vpop.f32.mrf.mxu0
    %v3549 = vadd.f32 0.0, %v3548
    %v3550 = vpop.f32.mrf.mxu0
    %3551 = vmatprep.mubr.bf16.mxu0 0
    %3552 = vmatmul.mubr.bf16.gmra.mxu0 %v3429
    %v3553 = vpop.f32.mrf.mxu0
    %v3554 = vadd.f32 0.0, %v3553
    %v3555 = vpop.f32.mrf.mxu0
    %v3556 = vpop.f32.mrf.mxu0
    %v3557 = vadd.f32 0.0, %v3556
    %v3558 = vpop.f32.mrf.mxu0
    %3559 = vmatprep.mubr.bf16.mxu0 0
    %3560 = vmatmul.mubr.bf16.gmra.mxu0 %v3432
    %v3561 = vpop.f32.mrf.mxu0
    %v3562 = vadd.f32 0.0, %v3561
    %v3563 = vpop.f32.mrf.mxu0
    %v3564 = vpop.f32.mrf.mxu0
    %v3565 = vadd.f32 0.0, %v3564
    %v3566 = vpop.f32.mrf.mxu0
    %3567 = vmatprep.mubr.bf16.mxu0 0
    %3568 = vmatmul.mubr.bf16.gmra.mxu0 %v3435
    %v3569 = vpop.f32.mrf.mxu0
    %v3570 = vadd.f32 0.0, %v3569
    %v3571 = vpop.f32.mrf.mxu0
    %v3572 = vpop.f32.mrf.mxu0
    %v3573 = vadd.f32 0.0, %v3572
    %v3574 = vpop.f32.mrf.mxu0
    %3575 = vmatprep.mubr.bf16.mxu0 0
    %3576 = vmatmul.mubr.bf16.gmra.mxu0 %v3438
    %v3577 = vpop.f32.mrf.mxu0
    %v3578 = vadd.f32 0.0, %v3577
    %v3579 = vpop.f32.mrf.mxu0
    %v3580 = vpop.f32.mrf.mxu0
    %v3581 = vadd.f32 0.0, %v3580
    %v3582 = vpop.f32.mrf.mxu0
    %3583 = vmatprep.mubr.bf16.mxu0 0
    %3584 = vmatmul.mubr.bf16.gmra.mxu0 %v3441
    %v3585 = vpop.f32.mrf.mxu0
    %v3586 = vadd.f32 0.0, %v3585
    %v3587 = vpop.f32.mrf.mxu0
    %v3588 = vpop.f32.mrf.mxu0
    %v3589 = vadd.f32 0.0, %v3588
    %v3590 = vpop.f32.mrf.mxu0
    %3591 = vmatprep.mubr.bf16.mxu0 0
    %3592 = vmatmul.mubr.bf16.gmra.mxu0 %v3444
    %v3593 = vpop.f32.mrf.mxu0
    %v3594 = vadd.f32 0.0, %v3593
    %v3595 = vpop.f32.mrf.mxu0
    %v3596 = vpop.f32.mrf.mxu0
    %v3597 = vadd.f32 0.0, %v3596
    %v3598 = vpop.f32.mrf.mxu0
    %3599 = vmatprep.mubr.bf16.mxu0 0
    %3600 = vmatmul.mubr.bf16.gmra.mxu0 %v3447
    %v3601 = vpop.f32.mrf.mxu0
    %v3602 = vadd.f32 0.0, %v3601
    %v3603 = vpop.f32.mrf.mxu0
    %v3604 = vpop.f32.mrf.mxu0
    %v3605 = vadd.f32 0.0, %v3604
    %v3606 = vpop.f32.mrf.mxu0
    %3607 = vmatprep.mubr.bf16.mxu0 0
    %3608 = vmatmul.mubr.bf16.gmra.mxu0 %v3450
    %v3609 = vpop.f32.mrf.mxu0
    %v3610 = vadd.f32 0.0, %v3609
    %v3611 = vpop.f32.mrf.mxu0
    %v3612 = vpop.f32.mrf.mxu0
    %v3613 = vadd.f32 0.0, %v3612
    %v3614 = vpop.f32.mrf.mxu0
    %3615 = vdwg.mxu0
    %v3616 = vadd.f32 %v3146, %v3490
    %v3617 = vadd.f32 %v3147, %v3493
    %v3618 = vadd.f32 %v3148, %v3498
    %v3619 = vadd.f32 %v3149, %v3501
    %v3620 = vadd.f32 %v3150, %v3506
    %v3621 = vadd.f32 %v3151, %v3509
    %v3622 = vadd.f32 %v3152, %v3514
    %v3623 = vadd.f32 %v3153, %v3517
    %v3624 = vadd.f32 %v3154, %v3522
    %v3625 = vadd.f32 %v3155, %v3525
    %v3626 = vadd.f32 %v3156, %v3530
    %v3627 = vadd.f32 %v3157, %v3533
    %v3628 = vadd.f32 %v3158, %v3538
    %v3629 = vadd.f32 %v3159, %v3541
    %v3630 = vadd.f32 %v3160, %v3546
    %v3631 = vadd.f32 %v3161, %v3549
    %v3632 = vadd.f32 %v3162, %v3554
    %v3633 = vadd.f32 %v3163, %v3557
    %v3634 = vadd.f32 %v3164, %v3562
    %v3635 = vadd.f32 %v3165, %v3565
    %v3636 = vadd.f32 %v3166, %v3570
    %v3637 = vadd.f32 %v3167, %v3573
    %v3638 = vadd.f32 %v3168, %v3578
    %v3639 = vadd.f32 %v3169, %v3581
    %v3640 = vadd.f32 %v3170, %v3586
    %v3641 = vadd.f32 %v3171, %v3589
    %v3642 = vadd.f32 %v3172, %v3594
    %v3643 = vadd.f32 %v3173, %v3597
    %v3644 = vadd.f32 %v3174, %v3602
    %v3645 = vadd.f32 %v3175, %v3605
    %v3646 = vadd.f32 %v3176, %v3610
    %v3647 = vadd.f32 %v3177, %v3613
    %s3648 = scalar_lea.vmem [#allocation2], 24
    %v3649 = vld [vmem:[%s3648] sm:$0xf]
    %v3650 = vld [vmem:[%s3648 + $0x4] sm:$0xf]
    %v3651 = vld [vmem:[%s3648 + $0xc] sm:$0xf]
    %v3652 = vld [vmem:[%s3648 + $0x10] sm:$0xf]
    %v3653 = vld [vmem:[%s3648 + $0x18] sm:$0xf]
    %v3654 = vld [vmem:[%s3648 + $0x1c] sm:$0xf]
    %v3655 = vld [vmem:[%s3648 + $0x24] sm:$0xf]
    %v3656 = vld [vmem:[%s3648 + $0x28] sm:$0xf]
    %v3657 = vld [vmem:[%s3648 + $0x30] sm:$0xf]
    %v3658 = vld [vmem:[%s3648 + $0x34] sm:$0xf]
    %v3659 = vld [vmem:[%s3648 + $0x3c] sm:$0xf]
    %v3660 = vld [vmem:[%s3648 + $0x40] sm:$0xf]
    %v3661 = vld [vmem:[%s3648 + $0x48] sm:$0xf]
    %v3662 = vld [vmem:[%s3648 + $0x4c] sm:$0xf]
    %v3663 = vld [vmem:[%s3648 + $0x54] sm:$0xf]
    %v3664 = vld [vmem:[%s3648 + $0x58] sm:$0xf]
    %v3665 = vld [vmem:[%s3648 + $0x60] sm:$0xf]
    %v3666 = vld [vmem:[%s3648 + $0x64] sm:$0xf]
    %v3667 = vld [vmem:[%s3648 + $0x6c] sm:$0xf]
    %v3668 = vld [vmem:[%s3648 + $0x70] sm:$0xf]
    %v3669 = vld [vmem:[%s3648 + $0x78] sm:$0xf]
    %v3670 = vld [vmem:[%s3648 + $0x7c] sm:$0xf]
    %v3671 = vld [vmem:[%s3648 + $0x84] sm:$0xf]
    %v3672 = vld [vmem:[%s3648 + $0x88] sm:$0xf]
    %v3673 = vld [vmem:[%s3648 + $0x90] sm:$0xf]
    %v3674 = vld [vmem:[%s3648 + $0x94] sm:$0xf]
    %v3675 = vld [vmem:[%s3648 + $0x9c] sm:$0xf]
    %v3676 = vld [vmem:[%s3648 + $0xa0] sm:$0xf]
    %v3677 = vld [vmem:[%s3648 + $0xa8] sm:$0xf]
    %v3678 = vld [vmem:[%s3648 + $0xac] sm:$0xf]
    %v3679 = vld [vmem:[%s3648 + $0xb4] sm:$0xf]
    %v3680 = vld [vmem:[%s3648 + $0xb8] sm:$0xf]
    %s3681 = scalar_lea.vmem %s1, 24
    %v3682 = vld [vmem:[%s3681] sm:$0xf]
    %v3715 = vunpack.c.l.b16 %v3649
    %v3716 = vunpack.c.l.b16 %v3650
    %v3717 = vunpack.c.l.b16 %v3651
    %v3718 = vunpack.c.l.b16 %v3652
    %v3719 = vunpack.c.l.b16 %v3653
    %v3720 = vunpack.c.l.b16 %v3654
    %v3721 = vunpack.c.l.b16 %v3655
    %v3722 = vunpack.c.l.b16 %v3656
    %v3723 = vunpack.c.l.b16 %v3657
    %v3724 = vunpack.c.l.b16 %v3658
    %v3725 = vunpack.c.l.b16 %v3659
    %v3726 = vunpack.c.l.b16 %v3660
    %v3727 = vunpack.c.l.b16 %v3661
    %v3728 = vunpack.c.l.b16 %v3662
    %v3729 = vunpack.c.l.b16 %v3663
    %v3730 = vunpack.c.l.b16 %v3664
    %v3731 = vunpack.c.l.b16 %v3665
    %v3732 = vunpack.c.l.b16 %v3666
    %v3733 = vunpack.c.l.b16 %v3667
    %v3734 = vunpack.c.l.b16 %v3668
    %v3735 = vunpack.c.l.b16 %v3669
    %v3736 = vunpack.c.l.b16 %v3670
    %v3737 = vunpack.c.l.b16 %v3671
    %v3738 = vunpack.c.l.b16 %v3672
    %v3739 = vunpack.c.l.b16 %v3673
    %v3740 = vunpack.c.l.b16 %v3674
    %v3741 = vunpack.c.l.b16 %v3675
    %v3742 = vunpack.c.l.b16 %v3676
    %v3743 = vunpack.c.l.b16 %v3677
    %v3744 = vunpack.c.l.b16 %v3678
    %v3745 = vunpack.c.l.b16 %v3679
    %v3746 = vunpack.c.l.b16 %v3680
    %v3747 = vpack.c.b16 %v3716, %v3715
    %v3748 = vpack.c.b16 %v3718, %v3717
    %v3749 = vpack.c.b16 %v3720, %v3719
    %v3750 = vpack.c.b16 %v3722, %v3721
    %v3751 = vpack.c.b16 %v3724, %v3723
    %v3752 = vpack.c.b16 %v3726, %v3725
    %v3753 = vpack.c.b16 %v3728, %v3727
    %v3754 = vpack.c.b16 %v3730, %v3729
    %v3755 = vpack.c.b16 %v3732, %v3731
    %v3756 = vpack.c.b16 %v3734, %v3733
    %v3757 = vpack.c.b16 %v3736, %v3735
    %v3758 = vpack.c.b16 %v3738, %v3737
    %v3759 = vpack.c.b16 %v3740, %v3739
    %v3760 = vpack.c.b16 %v3742, %v3741
    %v3761 = vpack.c.b16 %v3744, %v3743
    %v3762 = vpack.c.b16 %v3746, %v3745
    %v3764 = vsel %vm1131, %v3747, 0
    %v3767 = vsel %vm1131, %v3748, 0
    %v3770 = vsel %vm1131, %v3749, 0
    %v3773 = vsel %vm1131, %v3750, 0
    %v3776 = vsel %vm1131, %v3751, 0
    %v3779 = vsel %vm1131, %v3752, 0
    %v3782 = vsel %vm1131, %v3753, 0
    %v3785 = vsel %vm1131, %v3754, 0
    %v3788 = vsel %vm1131, %v3755, 0
    %v3791 = vsel %vm1131, %v3756, 0
    %v3794 = vsel %vm1131, %v3757, 0
    %v3797 = vsel %vm1131, %v3758, 0
    %v3800 = vsel %vm1131, %v3759, 0
    %v3803 = vsel %vm1131, %v3760, 0
    %v3806 = vsel %vm1131, %v3761, 0
    %v3809 = vsel %vm1131, %v3762, 0
    %v3812 = vsel %vm1180, %v3682, 0
    %3814 = vmatprep.subr.bf16.mxu0 0
    %3815 = vmatpush1.bf16.msra.mxu0 0
    %3816 = vmatprep.subr.bf16.mxu0 0
    %3817 = vmatpush1.bf16.msra.mxu0 0
    %3818 = vmatprep.subr.bf16.mxu0 0
    %3819 = vmatpush1.bf16.msra.mxu0 0
    %3820 = vmatprep.subr.bf16.mxu0 0
    %3821 = vmatpush1.bf16.msra.mxu0 0
    %3822 = vmatprep.subr.bf16.mxu0 0
    %3823 = vmatpush1.bf16.msra.mxu0 0
    %3824 = vmatprep.subr.bf16.mxu0 0
    %3825 = vmatpush1.bf16.msra.mxu0 0
    %3826 = vmatprep.subr.bf16.mxu0 0
    %3827 = vmatpush1.bf16.msra.mxu0 0
    %3828 = vmatprep.subr.bf16.mxu0 0
    %3829 = vmatpush1.bf16.msra.mxu0 %v3812
    %3830 = vmatprep.subr.bf16.mxu0 0
    %3831 = vmatpush2.bf16.msra.mxu0 0
    %3832 = vmatprep.subr.bf16.mxu0 0
    %3833 = vmatpush2.bf16.msra.mxu0 0
    %3834 = vmatprep.subr.bf16.mxu0 0
    %3835 = vmatpush2.bf16.msra.mxu0 0
    %3836 = vmatprep.subr.bf16.mxu0 0
    %3837 = vmatpush2.bf16.msra.mxu0 0
    %3838 = vmatprep.subr.bf16.mxu0 0
    %3839 = vmatpush2.bf16.msra.mxu0 0
    %3840 = vmatprep.subr.bf16.mxu0 0
    %3841 = vmatpush2.bf16.msra.mxu0 0
    %3842 = vmatprep.subr.bf16.mxu0 0
    %3843 = vmatpush2.bf16.msra.mxu0 0
    %3844 = vmatprep.subr.bf16.mxu0 0
    %3845 = vmatpush2.bf16.msra.mxu0 0
    %3846 = vmatprep.mubr.bf16.mxu0 0
    %3847 = vmatmul.mubr.bf16.gmra.mxu0 %v3764
    %v3848 = vpop.f32.mrf.mxu0
    %v3849 = vadd.f32 0.0, %v3848
    %v3850 = vpop.f32.mrf.mxu0
    %v3851 = vpop.f32.mrf.mxu0
    %v3852 = vadd.f32 0.0, %v3851
    %v3853 = vpop.f32.mrf.mxu0
    %3854 = vmatprep.mubr.bf16.mxu0 0
    %3855 = vmatmul.mubr.bf16.gmra.mxu0 %v3767
    %v3856 = vpop.f32.mrf.mxu0
    %v3857 = vadd.f32 0.0, %v3856
    %v3858 = vpop.f32.mrf.mxu0
    %v3859 = vpop.f32.mrf.mxu0
    %v3860 = vadd.f32 0.0, %v3859
    %v3861 = vpop.f32.mrf.mxu0
    %3862 = vmatprep.mubr.bf16.mxu0 0
    %3863 = vmatmul.mubr.bf16.gmra.mxu0 %v3770
    %v3864 = vpop.f32.mrf.mxu0
    %v3865 = vadd.f32 0.0, %v3864
    %v3866 = vpop.f32.mrf.mxu0
    %v3867 = vpop.f32.mrf.mxu0
    %v3868 = vadd.f32 0.0, %v3867
    %v3869 = vpop.f32.mrf.mxu0
    %3870 = vmatprep.mubr.bf16.mxu0 0
    %3871 = vmatmul.mubr.bf16.gmra.mxu0 %v3773
    %v3872 = vpop.f32.mrf.mxu0
    %v3873 = vadd.f32 0.0, %v3872
    %v3874 = vpop.f32.mrf.mxu0
    %v3875 = vpop.f32.mrf.mxu0
    %v3876 = vadd.f32 0.0, %v3875
    %v3877 = vpop.f32.mrf.mxu0
    %3878 = vmatprep.mubr.bf16.mxu0 0
    %3879 = vmatmul.mubr.bf16.gmra.mxu0 %v3776
    %v3880 = vpop.f32.mrf.mxu0
    %v3881 = vadd.f32 0.0, %v3880
    %v3882 = vpop.f32.mrf.mxu0
    %v3883 = vpop.f32.mrf.mxu0
    %v3884 = vadd.f32 0.0, %v3883
    %v3885 = vpop.f32.mrf.mxu0
    %3886 = vmatprep.mubr.bf16.mxu0 0
    %3887 = vmatmul.mubr.bf16.gmra.mxu0 %v3779
    %v3888 = vpop.f32.mrf.mxu0
    %v3889 = vadd.f32 0.0, %v3888
    %v3890 = vpop.f32.mrf.mxu0
    %v3891 = vpop.f32.mrf.mxu0
    %v3892 = vadd.f32 0.0, %v3891
    %v3893 = vpop.f32.mrf.mxu0
    %3894 = vmatprep.mubr.bf16.mxu0 0
    %3895 = vmatmul.mubr.bf16.gmra.mxu0 %v3782
    %v3896 = vpop.f32.mrf.mxu0
    %v3897 = vadd.f32 0.0, %v3896
    %v3898 = vpop.f32.mrf.mxu0
    %v3899 = vpop.f32.mrf.mxu0
    %v3900 = vadd.f32 0.0, %v3899
    %v3901 = vpop.f32.mrf.mxu0
    %3902 = vmatprep.mubr.bf16.mxu0 0
    %3903 = vmatmul.mubr.bf16.gmra.mxu0 %v3785
    %v3904 = vpop.f32.mrf.mxu0
    %v3905 = vadd.f32 0.0, %v3904
    %v3906 = vpop.f32.mrf.mxu0
    %v3907 = vpop.f32.mrf.mxu0
    %v3908 = vadd.f32 0.0, %v3907
    %v3909 = vpop.f32.mrf.mxu0
    %3910 = vmatprep.mubr.bf16.mxu0 0
    %3911 = vmatmul.mubr.bf16.gmra.mxu0 %v3788
    %v3912 = vpop.f32.mrf.mxu0
    %v3913 = vadd.f32 0.0, %v3912
    %v3914 = vpop.f32.mrf.mxu0
    %v3915 = vpop.f32.mrf.mxu0
    %v3916 = vadd.f32 0.0, %v3915
    %v3917 = vpop.f32.mrf.mxu0
    %3918 = vmatprep.mubr.bf16.mxu0 0
    %3919 = vmatmul.mubr.bf16.gmra.mxu0 %v3791
    %v3920 = vpop.f32.mrf.mxu0
    %v3921 = vadd.f32 0.0, %v3920
    %v3922 = vpop.f32.mrf.mxu0
    %v3923 = vpop.f32.mrf.mxu0
    %v3924 = vadd.f32 0.0, %v3923
    %v3925 = vpop.f32.mrf.mxu0
    %3926 = vmatprep.mubr.bf16.mxu0 0
    %3927 = vmatmul.mubr.bf16.gmra.mxu0 %v3794
    %v3928 = vpop.f32.mrf.mxu0
    %v3929 = vadd.f32 0.0, %v3928
    %v3930 = vpop.f32.mrf.mxu0
    %v3931 = vpop.f32.mrf.mxu0
    %v3932 = vadd.f32 0.0, %v3931
    %v3933 = vpop.f32.mrf.mxu0
    %3934 = vmatprep.mubr.bf16.mxu0 0
    %3935 = vmatmul.mubr.bf16.gmra.mxu0 %v3797
    %v3936 = vpop.f32.mrf.mxu0
    %v3937 = vadd.f32 0.0, %v3936
    %v3938 = vpop.f32.mrf.mxu0
    %v3939 = vpop.f32.mrf.mxu0
    %v3940 = vadd.f32 0.0, %v3939
    %v3941 = vpop.f32.mrf.mxu0
    %3942 = vmatprep.mubr.bf16.mxu0 0
    %3943 = vmatmul.mubr.bf16.gmra.mxu0 %v3800
    %v3944 = vpop.f32.mrf.mxu0
    %v3945 = vadd.f32 0.0, %v3944
    %v3946 = vpop.f32.mrf.mxu0
    %v3947 = vpop.f32.mrf.mxu0
    %v3948 = vadd.f32 0.0, %v3947
    %v3949 = vpop.f32.mrf.mxu0
    %3950 = vmatprep.mubr.bf16.mxu0 0
    %3951 = vmatmul.mubr.bf16.gmra.mxu0 %v3803
    %v3952 = vpop.f32.mrf.mxu0
    %v3953 = vadd.f32 0.0, %v3952
    %v3954 = vpop.f32.mrf.mxu0
    %v3955 = vpop.f32.mrf.mxu0
    %v3956 = vadd.f32 0.0, %v3955
    %v3957 = vpop.f32.mrf.mxu0
    %3958 = vmatprep.mubr.bf16.mxu0 0
    %3959 = vmatmul.mubr.bf16.gmra.mxu0 %v3806
    %v3960 = vpop.f32.mrf.mxu0
    %v3961 = vadd.f32 0.0, %v3960
    %v3962 = vpop.f32.mrf.mxu0
    %v3963 = vpop.f32.mrf.mxu0
    %v3964 = vadd.f32 0.0, %v3963
    %v3965 = vpop.f32.mrf.mxu0
    %3966 = vmatprep.mubr.bf16.mxu0 0
    %3967 = vmatmul.mubr.bf16.gmra.mxu0 %v3809
    %v3968 = vpop.f32.mrf.mxu0
    %v3969 = vadd.f32 0.0, %v3968
    %v3970 = vpop.f32.mrf.mxu0
    %v3971 = vpop.f32.mrf.mxu0
    %v3972 = vadd.f32 0.0, %v3971
    %v3973 = vpop.f32.mrf.mxu0
    %3974 = vdwg.mxu0
    %v3975 = vadd.f32 %v3616, %v3849
    %v3976 = vadd.f32 %v3617, %v3852
    %v3977 = vadd.f32 %v3618, %v3857
    %v3978 = vadd.f32 %v3619, %v3860
    %v3979 = vadd.f32 %v3620, %v3865
    %v3980 = vadd.f32 %v3621, %v3868
    %v3981 = vadd.f32 %v3622, %v3873
    %v3982 = vadd.f32 %v3623, %v3876
    %v3983 = vadd.f32 %v3624, %v3881
    %v3984 = vadd.f32 %v3625, %v3884
    %v3985 = vadd.f32 %v3626, %v3889
    %v3986 = vadd.f32 %v3627, %v3892
    %v3987 = vadd.f32 %v3628, %v3897
    %v3988 = vadd.f32 %v3629, %v3900
    %v3989 = vadd.f32 %v3630, %v3905
    %v3990 = vadd.f32 %v3631, %v3908
    %v3991 = vadd.f32 %v3632, %v3913
    %v3992 = vadd.f32 %v3633, %v3916
    %v3993 = vadd.f32 %v3634, %v3921
    %v3994 = vadd.f32 %v3635, %v3924
    %v3995 = vadd.f32 %v3636, %v3929
    %v3996 = vadd.f32 %v3637, %v3932
    %v3997 = vadd.f32 %v3638, %v3937
    %v3998 = vadd.f32 %v3639, %v3940
    %v3999 = vadd.f32 %v3640, %v3945
    %v4000 = vadd.f32 %v3641, %v3948
    %v4001 = vadd.f32 %v3642, %v3953
    %v4002 = vadd.f32 %v3643, %v3956
    %v4003 = vadd.f32 %v3644, %v3961
    %v4004 = vadd.f32 %v3645, %v3964
    %v4005 = vadd.f32 %v3646, %v3969
    %v4006 = vadd.f32 %v3647, %v3972
    %v4007 = vld [vmem:[%s3648] sm:$0xf]
    %v4008 = vld [vmem:[%s3648 + $0x4] sm:$0xf]
    %v4009 = vld [vmem:[%s3648 + $0x8] sm:$0x1]
    %v4010 = vld [vmem:[%s3648 + $0xc] sm:$0xf]
    %v4011 = vld [vmem:[%s3648 + $0x10] sm:$0xf]
    %v4012 = vld [vmem:[%s3648 + $0x14] sm:$0x1]
    %v4013 = vld [vmem:[%s3648 + $0x18] sm:$0xf]
    %v4014 = vld [vmem:[%s3648 + $0x1c] sm:$0xf]
    %v4015 = vld [vmem:[%s3648 + $0x20] sm:$0x1]
    %v4016 = vld [vmem:[%s3648 + $0x24] sm:$0xf]
    %v4017 = vld [vmem:[%s3648 + $0x28] sm:$0xf]
    %v4018 = vld [vmem:[%s3648 + $0x2c] sm:$0x1]
    %v4019 = vld [vmem:[%s3648 + $0x30] sm:$0xf]
    %v4020 = vld [vmem:[%s3648 + $0x34] sm:$0xf]
    %v4021 = vld [vmem:[%s3648 + $0x38] sm:$0x1]
    %v4022 = vld [vmem:[%s3648 + $0x3c] sm:$0xf]
    %v4023 = vld [vmem:[%s3648 + $0x40] sm:$0xf]
    %v4024 = vld [vmem:[%s3648 + $0x44] sm:$0x1]
    %v4025 = vld [vmem:[%s3648 + $0x48] sm:$0xf]
    %v4026 = vld [vmem:[%s3648 + $0x4c] sm:$0xf]
    %v4027 = vld [vmem:[%s3648 + $0x50] sm:$0x1]
    %v4028 = vld [vmem:[%s3648 + $0x54] sm:$0xf]
    %v4029 = vld [vmem:[%s3648 + $0x58] sm:$0xf]
    %v4030 = vld [vmem:[%s3648 + $0x5c] sm:$0x1]
    %v4031 = vld [vmem:[%s3648 + $0x60] sm:$0xf]
    %v4032 = vld [vmem:[%s3648 + $0x64] sm:$0xf]
    %v4033 = vld [vmem:[%s3648 + $0x68] sm:$0x1]
    %v4034 = vld [vmem:[%s3648 + $0x6c] sm:$0xf]
    %v4035 = vld [vmem:[%s3648 + $0x70] sm:$0xf]
    %v4036 = vld [vmem:[%s3648 + $0x74] sm:$0x1]
    %v4037 = vld [vmem:[%s3648 + $0x78] sm:$0xf]
    %v4038 = vld [vmem:[%s3648 + $0x7c] sm:$0xf]
    %v4039 = vld [vmem:[%s3648 + $0x80] sm:$0x1]
    %v4040 = vld [vmem:[%s3648 + $0x84] sm:$0xf]
    %v4041 = vld [vmem:[%s3648 + $0x88] sm:$0xf]
    %v4042 = vld [vmem:[%s3648 + $0x8c] sm:$0x1]
    %v4043 = vld [vmem:[%s3648 + $0x90] sm:$0xf]
    %v4044 = vld [vmem:[%s3648 + $0x94] sm:$0xf]
    %v4045 = vld [vmem:[%s3648 + $0x98] sm:$0x1]
    %v4046 = vld [vmem:[%s3648 + $0x9c] sm:$0xf]
    %v4047 = vld [vmem:[%s3648 + $0xa0] sm:$0xf]
    %v4048 = vld [vmem:[%s3648 + $0xa4] sm:$0x1]
    %v4049 = vld [vmem:[%s3648 + $0xa8] sm:$0xf]
    %v4050 = vld [vmem:[%s3648 + $0xac] sm:$0xf]
    %v4051 = vld [vmem:[%s3648 + $0xb0] sm:$0x1]
    %v4052 = vld [vmem:[%s3648 + $0xb4] sm:$0xf]
    %v4053 = vld [vmem:[%s3648 + $0xb8] sm:$0xf]
    %v4054 = vld [vmem:[%s3648 + $0xbc] sm:$0x1]
    %v4056 = vshrl.u32 %v4007, 16
    %v4058 = vrot.slane %v4056, 4
    %v4059 = vshll.u32 %v4007, 16
    %v4061 = vrot.slane %v4059, 5
    %v4062 = vor.u32 %v4058, %v4061
    %v4063 = vrot.slane %v4062, 4
    %v4065 = vshll.u32 %v4008, 16
    %v4067 = vrot.slane %v4065, 5
    %v4068 = vsel %vm696, %v4063, %v4067
    %v4069 = vshrl.u32 %v4008, 16
    %v4071 = vrot.slane %v4069, 4
    %v4072 = vor.u32 %v4071, %v4067
    %v4073 = vrot.slane %v4072, 4
    %v4075 = vshll.u32 %v4009, 16
    %v4077 = vrot.slane %v4075, 5
    %v4078 = vsel %vm696, %v4073, %v4077
    %v4080 = vshrl.u32 %v4010, 16
    %v4082 = vrot.slane %v4080, 4
    %v4083 = vshll.u32 %v4010, 16
    %v4085 = vrot.slane %v4083, 5
    %v4086 = vor.u32 %v4082, %v4085
    %v4087 = vrot.slane %v4086, 4
    %v4089 = vshll.u32 %v4011, 16
    %v4091 = vrot.slane %v4089, 5
    %v4092 = vsel %vm696, %v4087, %v4091
    %v4093 = vshrl.u32 %v4011, 16
    %v4095 = vrot.slane %v4093, 4
    %v4096 = vor.u32 %v4095, %v4091
    %v4097 = vrot.slane %v4096, 4
    %v4099 = vshll.u32 %v4012, 16
    %v4101 = vrot.slane %v4099, 5
    %v4102 = vsel %vm696, %v4097, %v4101
    %v4104 = vshrl.u32 %v4013, 16
    %v4106 = vrot.slane %v4104, 4
    %v4107 = vshll.u32 %v4013, 16
    %v4109 = vrot.slane %v4107, 5
    %v4110 = vor.u32 %v4106, %v4109
    %v4111 = vrot.slane %v4110, 4
    %v4113 = vshll.u32 %v4014, 16
    %v4115 = vrot.slane %v4113, 5
    %v4116 = vsel %vm696, %v4111, %v4115
    %v4117 = vshrl.u32 %v4014, 16
    %v4119 = vrot.slane %v4117, 4
    %v4120 = vor.u32 %v4119, %v4115
    %v4121 = vrot.slane %v4120, 4
    %v4123 = vshll.u32 %v4015, 16
    %v4125 = vrot.slane %v4123, 5
    %v4126 = vsel %vm696, %v4121, %v4125
    %v4128 = vshrl.u32 %v4016, 16
    %v4130 = vrot.slane %v4128, 4
    %v4131 = vshll.u32 %v4016, 16
    %v4133 = vrot.slane %v4131, 5
    %v4134 = vor.u32 %v4130, %v4133
    %v4135 = vrot.slane %v4134, 4
    %v4137 = vshll.u32 %v4017, 16
    %v4139 = vrot.slane %v4137, 5
    %v4140 = vsel %vm696, %v4135, %v4139
    %v4141 = vshrl.u32 %v4017, 16
    %v4143 = vrot.slane %v4141, 4
    %v4144 = vor.u32 %v4143, %v4139
    %v4145 = vrot.slane %v4144, 4
    %v4147 = vshll.u32 %v4018, 16
    %v4149 = vrot.slane %v4147, 5
    %v4150 = vsel %vm696, %v4145, %v4149
    %v4152 = vshrl.u32 %v4019, 16
    %v4154 = vrot.slane %v4152, 4
    %v4155 = vshll.u32 %v4019, 16
    %v4157 = vrot.slane %v4155, 5
    %v4158 = vor.u32 %v4154, %v4157
    %v4159 = vrot.slane %v4158, 4
    %v4161 = vshll.u32 %v4020, 16
    %v4163 = vrot.slane %v4161, 5
    %v4164 = vsel %vm696, %v4159, %v4163
    %v4165 = vshrl.u32 %v4020, 16
    %v4167 = vrot.slane %v4165, 4
    %v4168 = vor.u32 %v4167, %v4163
    %v4169 = vrot.slane %v4168, 4
    %v4171 = vshll.u32 %v4021, 16
    %v4173 = vrot.slane %v4171, 5
    %v4174 = vsel %vm696, %v4169, %v4173
    %v4176 = vshrl.u32 %v4022, 16
    %v4178 = vrot.slane %v4176, 4
    %v4179 = vshll.u32 %v4022, 16
    %v4181 = vrot.slane %v4179, 5
    %v4182 = vor.u32 %v4178, %v4181
    %v4183 = vrot.slane %v4182, 4
    %v4185 = vshll.u32 %v4023, 16
    %v4187 = vrot.slane %v4185, 5
    %v4188 = vsel %vm696, %v4183, %v4187
    %v4189 = vshrl.u32 %v4023, 16
    %v4191 = vrot.slane %v4189, 4
    %v4192 = vor.u32 %v4191, %v4187
    %v4193 = vrot.slane %v4192, 4
    %v4195 = vshll.u32 %v4024, 16
    %v4197 = vrot.slane %v4195, 5
    %v4198 = vsel %vm696, %v4193, %v4197
    %v4200 = vshrl.u32 %v4025, 16
    %v4202 = vrot.slane %v4200, 4
    %v4203 = vshll.u32 %v4025, 16
    %v4205 = vrot.slane %v4203, 5
    %v4206 = vor.u32 %v4202, %v4205
    %v4207 = vrot.slane %v4206, 4
    %v4209 = vshll.u32 %v4026, 16
    %v4211 = vrot.slane %v4209, 5
    %v4212 = vsel %vm696, %v4207, %v4211
    %v4213 = vshrl.u32 %v4026, 16
    %v4215 = vrot.slane %v4213, 4
    %v4216 = vor.u32 %v4215, %v4211
    %v4217 = vrot.slane %v4216, 4
    %v4219 = vshll.u32 %v4027, 16
    %v4221 = vrot.slane %v4219, 5
    %v4222 = vsel %vm696, %v4217, %v4221
    %v4224 = vshrl.u32 %v4028, 16
    %v4226 = vrot.slane %v4224, 4
    %v4227 = vshll.u32 %v4028, 16
    %v4229 = vrot.slane %v4227, 5
    %v4230 = vor.u32 %v4226, %v4229
    %v4231 = vrot.slane %v4230, 4
    %v4233 = vshll.u32 %v4029, 16
    %v4235 = vrot.slane %v4233, 5
    %v4236 = vsel %vm696, %v4231, %v4235
    %v4237 = vshrl.u32 %v4029, 16
    %v4239 = vrot.slane %v4237, 4
    %v4240 = vor.u32 %v4239, %v4235
    %v4241 = vrot.slane %v4240, 4
    %v4243 = vshll.u32 %v4030, 16
    %v4245 = vrot.slane %v4243, 5
    %v4246 = vsel %vm696, %v4241, %v4245
    %v4248 = vshrl.u32 %v4031, 16
    %v4250 = vrot.slane %v4248, 4
    %v4251 = vshll.u32 %v4031, 16
    %v4253 = vrot.slane %v4251, 5
    %v4254 = vor.u32 %v4250, %v4253
    %v4255 = vrot.slane %v4254, 4
    %v4257 = vshll.u32 %v4032, 16
    %v4259 = vrot.slane %v4257, 5
    %v4260 = vsel %vm696, %v4255, %v4259
    %v4261 = vshrl.u32 %v4032, 16
    %v4263 = vrot.slane %v4261, 4
    %v4264 = vor.u32 %v4263, %v4259
    %v4265 = vrot.slane %v4264, 4
    %v4267 = vshll.u32 %v4033, 16
    %v4269 = vrot.slane %v4267, 5
    %v4270 = vsel %vm696, %v4265, %v4269
    %v4272 = vshrl.u32 %v4034, 16
    %v4274 = vrot.slane %v4272, 4
    %v4275 = vshll.u32 %v4034, 16
    %v4277 = vrot.slane %v4275, 5
    %v4278 = vor.u32 %v4274, %v4277
    %v4279 = vrot.slane %v4278, 4
    %v4281 = vshll.u32 %v4035, 16
    %v4283 = vrot.slane %v4281, 5
    %v4284 = vsel %vm696, %v4279, %v4283
    %v4285 = vshrl.u32 %v4035, 16
    %v4287 = vrot.slane %v4285, 4
    %v4288 = vor.u32 %v4287, %v4283
    %v4289 = vrot.slane %v4288, 4
    %v4291 = vshll.u32 %v4036, 16
    %v4293 = vrot.slane %v4291, 5
    %v4294 = vsel %vm696, %v4289, %v4293
    %v4296 = vshrl.u32 %v4037, 16
    %v4298 = vrot.slane %v4296, 4
    %v4299 = vshll.u32 %v4037, 16
    %v4301 = vrot.slane %v4299, 5
    %v4302 = vor.u32 %v4298, %v4301
    %v4303 = vrot.slane %v4302, 4
    %v4305 = vshll.u32 %v4038, 16
    %v4307 = vrot.slane %v4305, 5
    %v4308 = vsel %vm696, %v4303, %v4307
    %v4309 = vshrl.u32 %v4038, 16
    %v4311 = vrot.slane %v4309, 4
    %v4312 = vor.u32 %v4311, %v4307
    %v4313 = vrot.slane %v4312, 4
    %v4315 = vshll.u32 %v4039, 16
    %v4317 = vrot.slane %v4315, 5
    %v4318 = vsel %vm696, %v4313, %v4317
    %v4320 = vshrl.u32 %v4040, 16
    %v4322 = vrot.slane %v4320, 4
    %v4323 = vshll.u32 %v4040, 16
    %v4325 = vrot.slane %v4323, 5
    %v4326 = vor.u32 %v4322, %v4325
    %v4327 = vrot.slane %v4326, 4
    %v4329 = vshll.u32 %v4041, 16
    %v4331 = vrot.slane %v4329, 5
    %v4332 = vsel %vm696, %v4327, %v4331
    %v4333 = vshrl.u32 %v4041, 16
    %v4335 = vrot.slane %v4333, 4
    %v4336 = vor.u32 %v4335, %v4331
    %v4337 = vrot.slane %v4336, 4
    %v4339 = vshll.u32 %v4042, 16
    %v4341 = vrot.slane %v4339, 5
    %v4342 = vsel %vm696, %v4337, %v4341
    %v4344 = vshrl.u32 %v4043, 16
    %v4346 = vrot.slane %v4344, 4
    %v4347 = vshll.u32 %v4043, 16
    %v4349 = vrot.slane %v4347, 5
    %v4350 = vor.u32 %v4346, %v4349
    %v4351 = vrot.slane %v4350, 4
    %v4353 = vshll.u32 %v4044, 16
    %v4355 = vrot.slane %v4353, 5
    %v4356 = vsel %vm696, %v4351, %v4355
    %v4357 = vshrl.u32 %v4044, 16
    %v4359 = vrot.slane %v4357, 4
    %v4360 = vor.u32 %v4359, %v4355
    %v4361 = vrot.slane %v4360, 4
    %v4363 = vshll.u32 %v4045, 16
    %v4365 = vrot.slane %v4363, 5
    %v4366 = vsel %vm696, %v4361, %v4365
    %v4368 = vshrl.u32 %v4046, 16
    %v4370 = vrot.slane %v4368, 4
    %v4371 = vshll.u32 %v4046, 16
    %v4373 = vrot.slane %v4371, 5
    %v4374 = vor.u32 %v4370, %v4373
    %v4375 = vrot.slane %v4374, 4
    %v4377 = vshll.u32 %v4047, 16
    %v4379 = vrot.slane %v4377, 5
    %v4380 = vsel %vm696, %v4375, %v4379
    %v4381 = vshrl.u32 %v4047, 16
    %v4383 = vrot.slane %v4381, 4
    %v4384 = vor.u32 %v4383, %v4379
    %v4385 = vrot.slane %v4384, 4
    %v4387 = vshll.u32 %v4048, 16
    %v4389 = vrot.slane %v4387, 5
    %v4390 = vsel %vm696, %v4385, %v4389
    %v4392 = vshrl.u32 %v4049, 16
    %v4394 = vrot.slane %v4392, 4
    %v4395 = vshll.u32 %v4049, 16
    %v4397 = vrot.slane %v4395, 5
    %v4398 = vor.u32 %v4394, %v4397
    %v4399 = vrot.slane %v4398, 4
    %v4401 = vshll.u32 %v4050, 16
    %v4403 = vrot.slane %v4401, 5
    %v4404 = vsel %vm696, %v4399, %v4403
    %v4405 = vshrl.u32 %v4050, 16
    %v4407 = vrot.slane %v4405, 4
    %v4408 = vor.u32 %v4407, %v4403
    %v4409 = vrot.slane %v4408, 4
    %v4411 = vshll.u32 %v4051, 16
    %v4413 = vrot.slane %v4411, 5
    %v4414 = vsel %vm696, %v4409, %v4413
    %v4416 = vshrl.u32 %v4052, 16
    %v4418 = vrot.slane %v4416, 4
    %v4419 = vshll.u32 %v4052, 16
    %v4421 = vrot.slane %v4419, 5
    %v4422 = vor.u32 %v4418, %v4421
    %v4423 = vrot.slane %v4422, 4
    %v4425 = vshll.u32 %v4053, 16
    %v4427 = vrot.slane %v4425, 5
    %v4428 = vsel %vm696, %v4423, %v4427
    %v4429 = vshrl.u32 %v4053, 16
    %v4431 = vrot.slane %v4429, 4
    %v4432 = vor.u32 %v4431, %v4427
    %v4433 = vrot.slane %v4432, 4
    %v4435 = vshll.u32 %v4054, 16
    %v4437 = vrot.slane %v4435, 5
    %v4438 = vsel %vm696, %v4433, %v4437
    %s4439 = scalar_lea.vmem %s1, 28
    %v4440 = vld [vmem:[%s4439] sm:$0xf]
    %v4441 = vunpack.c.l.b16 %v4068
    %v4442 = vunpack.c.l.b16 %v4078
    %v4443 = vunpack.c.l.b16 %v4092
    %v4444 = vunpack.c.l.b16 %v4102
    %v4445 = vunpack.c.l.b16 %v4116
    %v4446 = vunpack.c.l.b16 %v4126
    %v4447 = vunpack.c.l.b16 %v4140
    %v4448 = vunpack.c.l.b16 %v4150
    %v4449 = vunpack.c.l.b16 %v4164
    %v4450 = vunpack.c.l.b16 %v4174
    %v4451 = vunpack.c.l.b16 %v4188
    %v4452 = vunpack.c.l.b16 %v4198
    %v4453 = vunpack.c.l.b16 %v4212
    %v4454 = vunpack.c.l.b16 %v4222
    %v4455 = vunpack.c.l.b16 %v4236
    %v4456 = vunpack.c.l.b16 %v4246
    %v4457 = vunpack.c.l.b16 %v4260
    %v4458 = vunpack.c.l.b16 %v4270
    %v4459 = vunpack.c.l.b16 %v4284
    %v4460 = vunpack.c.l.b16 %v4294
    %v4461 = vunpack.c.l.b16 %v4308
    %v4462 = vunpack.c.l.b16 %v4318
    %v4463 = vunpack.c.l.b16 %v4332
    %v4464 = vunpack.c.l.b16 %v4342
    %v4465 = vunpack.c.l.b16 %v4356
    %v4466 = vunpack.c.l.b16 %v4366
    %v4467 = vunpack.c.l.b16 %v4380
    %v4468 = vunpack.c.l.b16 %v4390
    %v4469 = vunpack.c.l.b16 %v4404
    %v4470 = vunpack.c.l.b16 %v4414
    %v4471 = vunpack.c.l.b16 %v4428
    %v4472 = vunpack.c.l.b16 %v4438
    %v4473 = vpack.c.b16 %v4442, %v4441
    %v4474 = vpack.c.b16 %v4444, %v4443
    %v4475 = vpack.c.b16 %v4446, %v4445
    %v4476 = vpack.c.b16 %v4448, %v4447
    %v4477 = vpack.c.b16 %v4450, %v4449
    %v4478 = vpack.c.b16 %v4452, %v4451
    %v4479 = vpack.c.b16 %v4454, %v4453
    %v4480 = vpack.c.b16 %v4456, %v4455
    %v4481 = vpack.c.b16 %v4458, %v4457
    %v4482 = vpack.c.b16 %v4460, %v4459
    %v4483 = vpack.c.b16 %v4462, %v4461
    %v4484 = vpack.c.b16 %v4464, %v4463
    %v4485 = vpack.c.b16 %v4466, %v4465
    %v4486 = vpack.c.b16 %v4468, %v4467
    %v4487 = vpack.c.b16 %v4470, %v4469
    %v4488 = vpack.c.b16 %v4472, %v4471
    %v4490 = vsel %vm1131, %v4473, 0
    %v4493 = vsel %vm1131, %v4474, 0
    %v4496 = vsel %vm1131, %v4475, 0
    %v4499 = vsel %vm1131, %v4476, 0
    %v4502 = vsel %vm1131, %v4477, 0
    %v4505 = vsel %vm1131, %v4478, 0
    %v4508 = vsel %vm1131, %v4479, 0
    %v4511 = vsel %vm1131, %v4480, 0
    %v4514 = vsel %vm1131, %v4481, 0
    %v4517 = vsel %vm1131, %v4482, 0
    %v4520 = vsel %vm1131, %v4483, 0
    %v4523 = vsel %vm1131, %v4484, 0
    %v4526 = vsel %vm1131, %v4485, 0
    %v4529 = vsel %vm1131, %v4486, 0
    %v4532 = vsel %vm1131, %v4487, 0
    %v4535 = vsel %vm1131, %v4488, 0
    %v4538 = vsel %vm1180, %v4440, 0
    %4540 = vmatprep.subr.bf16.mxu0 0
    %4541 = vmatpush1.bf16.msra.mxu0 0
    %4542 = vmatprep.subr.bf16.mxu0 0
    %4543 = vmatpush1.bf16.msra.mxu0 0
    %4544 = vmatprep.subr.bf16.mxu0 0
    %4545 = vmatpush1.bf16.msra.mxu0 0
    %4546 = vmatprep.subr.bf16.mxu0 0
    %4547 = vmatpush1.bf16.msra.mxu0 0
    %4548 = vmatprep.subr.bf16.mxu0 0
    %4549 = vmatpush1.bf16.msra.mxu0 0
    %4550 = vmatprep.subr.bf16.mxu0 0
    %4551 = vmatpush1.bf16.msra.mxu0 0
    %4552 = vmatprep.subr.bf16.mxu0 0
    %4553 = vmatpush1.bf16.msra.mxu0 0
    %4554 = vmatprep.subr.bf16.mxu0 0
    %4555 = vmatpush1.bf16.msra.mxu0 %v4538
    %4556 = vmatprep.subr.bf16.mxu0 0
    %4557 = vmatpush2.bf16.msra.mxu0 0
    %4558 = vmatprep.subr.bf16.mxu0 0
    %4559 = vmatpush2.bf16.msra.mxu0 0
    %4560 = vmatprep.subr.bf16.mxu0 0
    %4561 = vmatpush2.bf16.msra.mxu0 0
    %4562 = vmatprep.subr.bf16.mxu0 0
    %4563 = vmatpush2.bf16.msra.mxu0 0
    %4564 = vmatprep.subr.bf16.mxu0 0
    %4565 = vmatpush2.bf16.msra.mxu0 0
    %4566 = vmatprep.subr.bf16.mxu0 0
    %4567 = vmatpush2.bf16.msra.mxu0 0
    %4568 = vmatprep.subr.bf16.mxu0 0
    %4569 = vmatpush2.bf16.msra.mxu0 0
    %4570 = vmatprep.subr.bf16.mxu0 0
    %4571 = vmatpush2.bf16.msra.mxu0 0
    %4572 = vmatprep.mubr.bf16.mxu0 0
    %4573 = vmatmul.mubr.bf16.gmra.mxu0 %v4490
    %v4574 = vpop.f32.mrf.mxu0
    %v4575 = vadd.f32 0.0, %v4574
    %v4576 = vpop.f32.mrf.mxu0
    %v4577 = vpop.f32.mrf.mxu0
    %v4578 = vadd.f32 0.0, %v4577
    %v4579 = vpop.f32.mrf.mxu0
    %4580 = vmatprep.mubr.bf16.mxu0 0
    %4581 = vmatmul.mubr.bf16.gmra.mxu0 %v4493
    %v4582 = vpop.f32.mrf.mxu0
    %v4583 = vadd.f32 0.0, %v4582
    %v4584 = vpop.f32.mrf.mxu0
    %v4585 = vpop.f32.mrf.mxu0
    %v4586 = vadd.f32 0.0, %v4585
    %v4587 = vpop.f32.mrf.mxu0
    %4588 = vmatprep.mubr.bf16.mxu0 0
    %4589 = vmatmul.mubr.bf16.gmra.mxu0 %v4496
    %v4590 = vpop.f32.mrf.mxu0
    %v4591 = vadd.f32 0.0, %v4590
    %v4592 = vpop.f32.mrf.mxu0
    %v4593 = vpop.f32.mrf.mxu0
    %v4594 = vadd.f32 0.0, %v4593
    %v4595 = vpop.f32.mrf.mxu0
    %4596 = vmatprep.mubr.bf16.mxu0 0
    %4597 = vmatmul.mubr.bf16.gmra.mxu0 %v4499
    %v4598 = vpop.f32.mrf.mxu0
    %v4599 = vadd.f32 0.0, %v4598
    %v4600 = vpop.f32.mrf.mxu0
    %v4601 = vpop.f32.mrf.mxu0
    %v4602 = vadd.f32 0.0, %v4601
    %v4603 = vpop.f32.mrf.mxu0
    %4604 = vmatprep.mubr.bf16.mxu0 0
    %4605 = vmatmul.mubr.bf16.gmra.mxu0 %v4502
    %v4606 = vpop.f32.mrf.mxu0
    %v4607 = vadd.f32 0.0, %v4606
    %v4608 = vpop.f32.mrf.mxu0
    %v4609 = vpop.f32.mrf.mxu0
    %v4610 = vadd.f32 0.0, %v4609
    %v4611 = vpop.f32.mrf.mxu0
    %4612 = vmatprep.mubr.bf16.mxu0 0
    %4613 = vmatmul.mubr.bf16.gmra.mxu0 %v4505
    %v4614 = vpop.f32.mrf.mxu0
    %v4615 = vadd.f32 0.0, %v4614
    %v4616 = vpop.f32.mrf.mxu0
    %v4617 = vpop.f32.mrf.mxu0
    %v4618 = vadd.f32 0.0, %v4617
    %v4619 = vpop.f32.mrf.mxu0
    %4620 = vmatprep.mubr.bf16.mxu0 0
    %4621 = vmatmul.mubr.bf16.gmra.mxu0 %v4508
    %v4622 = vpop.f32.mrf.mxu0
    %v4623 = vadd.f32 0.0, %v4622
    %v4624 = vpop.f32.mrf.mxu0
    %v4625 = vpop.f32.mrf.mxu0
    %v4626 = vadd.f32 0.0, %v4625
    %v4627 = vpop.f32.mrf.mxu0
    %4628 = vmatprep.mubr.bf16.mxu0 0
    %4629 = vmatmul.mubr.bf16.gmra.mxu0 %v4511
    %v4630 = vpop.f32.mrf.mxu0
    %v4631 = vadd.f32 0.0, %v4630
    %v4632 = vpop.f32.mrf.mxu0
    %v4633 = vpop.f32.mrf.mxu0
    %v4634 = vadd.f32 0.0, %v4633
    %v4635 = vpop.f32.mrf.mxu0
    %4636 = vmatprep.mubr.bf16.mxu0 0
    %4637 = vmatmul.mubr.bf16.gmra.mxu0 %v4514
    %v4638 = vpop.f32.mrf.mxu0
    %v4639 = vadd.f32 0.0, %v4638
    %v4640 = vpop.f32.mrf.mxu0
    %v4641 = vpop.f32.mrf.mxu0
    %v4642 = vadd.f32 0.0, %v4641
    %v4643 = vpop.f32.mrf.mxu0
    %4644 = vmatprep.mubr.bf16.mxu0 0
    %4645 = vmatmul.mubr.bf16.gmra.mxu0 %v4517
    %v4646 = vpop.f32.mrf.mxu0
    %v4647 = vadd.f32 0.0, %v4646
    %v4648 = vpop.f32.mrf.mxu0
    %v4649 = vpop.f32.mrf.mxu0
    %v4650 = vadd.f32 0.0, %v4649
    %v4651 = vpop.f32.mrf.mxu0
    %4652 = vmatprep.mubr.bf16.mxu0 0
    %4653 = vmatmul.mubr.bf16.gmra.mxu0 %v4520
    %v4654 = vpop.f32.mrf.mxu0
    %v4655 = vadd.f32 0.0, %v4654
    %v4656 = vpop.f32.mrf.mxu0
    %v4657 = vpop.f32.mrf.mxu0
    %v4658 = vadd.f32 0.0, %v4657
    %v4659 = vpop.f32.mrf.mxu0
    %4660 = vmatprep.mubr.bf16.mxu0 0
    %4661 = vmatmul.mubr.bf16.gmra.mxu0 %v4523
    %v4662 = vpop.f32.mrf.mxu0
    %v4663 = vadd.f32 0.0, %v4662
    %v4664 = vpop.f32.mrf.mxu0
    %v4665 = vpop.f32.mrf.mxu0
    %v4666 = vadd.f32 0.0, %v4665
    %v4667 = vpop.f32.mrf.mxu0
    %4668 = vmatprep.mubr.bf16.mxu0 0
    %4669 = vmatmul.mubr.bf16.gmra.mxu0 %v4526
    %v4670 = vpop.f32.mrf.mxu0
    %v4671 = vadd.f32 0.0, %v4670
    %v4672 = vpop.f32.mrf.mxu0
    %v4673 = vpop.f32.mrf.mxu0
    %v4674 = vadd.f32 0.0, %v4673
    %v4675 = vpop.f32.mrf.mxu0
    %4676 = vmatprep.mubr.bf16.mxu0 0
    %4677 = vmatmul.mubr.bf16.gmra.mxu0 %v4529
    %v4678 = vpop.f32.mrf.mxu0
    %v4679 = vadd.f32 0.0, %v4678
    %v4680 = vpop.f32.mrf.mxu0
    %v4681 = vpop.f32.mrf.mxu0
    %v4682 = vadd.f32 0.0, %v4681
    %v4683 = vpop.f32.mrf.mxu0
    %4684 = vmatprep.mubr.bf16.mxu0 0
    %4685 = vmatmul.mubr.bf16.gmra.mxu0 %v4532
    %v4686 = vpop.f32.mrf.mxu0
    %v4687 = vadd.f32 0.0, %v4686
    %v4688 = vpop.f32.mrf.mxu0
    %v4689 = vpop.f32.mrf.mxu0
    %v4690 = vadd.f32 0.0, %v4689
    %v4691 = vpop.f32.mrf.mxu0
    %4692 = vmatprep.mubr.bf16.mxu0 0
    %4693 = vmatmul.mubr.bf16.gmra.mxu0 %v4535
    %v4694 = vpop.f32.mrf.mxu0
    %v4695 = vadd.f32 0.0, %v4694
    %v4696 = vpop.f32.mrf.mxu0
    %v4697 = vpop.f32.mrf.mxu0
    %v4698 = vadd.f32 0.0, %v4697
    %v4699 = vpop.f32.mrf.mxu0
    %4700 = vdwg.mxu0
    %v4701 = vadd.f32 %v3975, %v4575
    %v4702 = vadd.f32 %v3976, %v4578
    %v4703 = vadd.f32 %v3977, %v4583
    %v4704 = vadd.f32 %v3978, %v4586
    %v4705 = vadd.f32 %v3979, %v4591
    %v4706 = vadd.f32 %v3980, %v4594
    %v4707 = vadd.f32 %v3981, %v4599
    %v4708 = vadd.f32 %v3982, %v4602
    %v4709 = vadd.f32 %v3983, %v4607
    %v4710 = vadd.f32 %v3984, %v4610
    %v4711 = vadd.f32 %v3985, %v4615
    %v4712 = vadd.f32 %v3986, %v4618
    %v4713 = vadd.f32 %v3987, %v4623
    %v4714 = vadd.f32 %v3988, %v4626
    %v4715 = vadd.f32 %v3989, %v4631
    %v4716 = vadd.f32 %v3990, %v4634
    %v4717 = vadd.f32 %v3991, %v4639
    %v4718 = vadd.f32 %v3992, %v4642
    %v4719 = vadd.f32 %v3993, %v4647
    %v4720 = vadd.f32 %v3994, %v4650
    %v4721 = vadd.f32 %v3995, %v4655
    %v4722 = vadd.f32 %v3996, %v4658
    %v4723 = vadd.f32 %v3997, %v4663
    %v4724 = vadd.f32 %v3998, %v4666
    %v4725 = vadd.f32 %v3999, %v4671
    %v4726 = vadd.f32 %v4000, %v4674
    %v4727 = vadd.f32 %v4001, %v4679
    %v4728 = vadd.f32 %v4002, %v4682
    %v4729 = vadd.f32 %v4003, %v4687
    %v4730 = vadd.f32 %v4004, %v4690
    %v4731 = vadd.f32 %v4005, %v4695
    %v4732 = vadd.f32 %v4006, %v4698
    %v4733 = vld [vmem:[%s3648] sm:$0xe]
    %v4734 = vld [vmem:[%s3648 + $0xc] sm:$0xe]
    %v4735 = vld [vmem:[%s3648 + $0x18] sm:$0xe]
    %v4736 = vld [vmem:[%s3648 + $0x24] sm:$0xe]
    %v4737 = vld [vmem:[%s3648 + $0x30] sm:$0xe]
    %v4738 = vld [vmem:[%s3648 + $0x3c] sm:$0xe]
    %v4739 = vld [vmem:[%s3648 + $0x48] sm:$0xe]
    %v4740 = vld [vmem:[%s3648 + $0x54] sm:$0xe]
    %v4741 = vld [vmem:[%s3648 + $0x60] sm:$0xe]
    %v4742 = vld [vmem:[%s3648 + $0x6c] sm:$0xe]
    %v4743 = vld [vmem:[%s3648 + $0x78] sm:$0xe]
    %v4744 = vld [vmem:[%s3648 + $0x84] sm:$0xe]
    %v4745 = vld [vmem:[%s3648 + $0x90] sm:$0xe]
    %v4746 = vld [vmem:[%s3648 + $0x9c] sm:$0xe]
    %v4747 = vld [vmem:[%s3648 + $0xa8] sm:$0xe]
    %v4748 = vld [vmem:[%s3648 + $0xb4] sm:$0xe]
    %v4797 = vrot.slane %v4733, 5
    %v4798 = vrot.slane %v4797, 4
    %v4799 = vrot.slane %v4008, 5
    %v4800 = vsel %vm1687, %v4798, %v4799
    %v4801 = vrot.slane %v4799, 4
    %v4802 = vrot.slane %v4009, 5
    %v4803 = vsel %vm1687, %v4801, %v4802
    %v4804 = vrot.slane %v4734, 5
    %v4805 = vrot.slane %v4804, 4
    %v4806 = vrot.slane %v4011, 5
    %v4807 = vsel %vm1687, %v4805, %v4806
    %v4808 = vrot.slane %v4806, 4
    %v4809 = vrot.slane %v4012, 5
    %v4810 = vsel %vm1687, %v4808, %v4809
    %v4811 = vrot.slane %v4735, 5
    %v4812 = vrot.slane %v4811, 4
    %v4813 = vrot.slane %v4014, 5
    %v4814 = vsel %vm1687, %v4812, %v4813
    %v4815 = vrot.slane %v4813, 4
    %v4816 = vrot.slane %v4015, 5
    %v4817 = vsel %vm1687, %v4815, %v4816
    %v4818 = vrot.slane %v4736, 5
    %v4819 = vrot.slane %v4818, 4
    %v4820 = vrot.slane %v4017, 5
    %v4821 = vsel %vm1687, %v4819, %v4820
    %v4822 = vrot.slane %v4820, 4
    %v4823 = vrot.slane %v4018, 5
    %v4824 = vsel %vm1687, %v4822, %v4823
    %v4825 = vrot.slane %v4737, 5
    %v4826 = vrot.slane %v4825, 4
    %v4827 = vrot.slane %v4020, 5
    %v4828 = vsel %vm1687, %v4826, %v4827
    %v4829 = vrot.slane %v4827, 4
    %v4830 = vrot.slane %v4021, 5
    %v4831 = vsel %vm1687, %v4829, %v4830
    %v4832 = vrot.slane %v4738, 5
    %v4833 = vrot.slane %v4832, 4
    %v4834 = vrot.slane %v4023, 5
    %v4835 = vsel %vm1687, %v4833, %v4834
    %v4836 = vrot.slane %v4834, 4
    %v4837 = vrot.slane %v4024, 5
    %v4838 = vsel %vm1687, %v4836, %v4837
    %v4839 = vrot.slane %v4739, 5
    %v4840 = vrot.slane %v4839, 4
    %v4841 = vrot.slane %v4026, 5
    %v4842 = vsel %vm1687, %v4840, %v4841
    %v4843 = vrot.slane %v4841, 4
    %v4844 = vrot.slane %v4027, 5
    %v4845 = vsel %vm1687, %v4843, %v4844
    %v4846 = vrot.slane %v4740, 5
    %v4847 = vrot.slane %v4846, 4
    %v4848 = vrot.slane %v4029, 5
    %v4849 = vsel %vm1687, %v4847, %v4848
    %v4850 = vrot.slane %v4848, 4
    %v4851 = vrot.slane %v4030, 5
    %v4852 = vsel %vm1687, %v4850, %v4851
    %v4853 = vrot.slane %v4741, 5
    %v4854 = vrot.slane %v4853, 4
    %v4855 = vrot.slane %v4032, 5
    %v4856 = vsel %vm1687, %v4854, %v4855
    %v4857 = vrot.slane %v4855, 4
    %v4858 = vrot.slane %v4033, 5
    %v4859 = vsel %vm1687, %v4857, %v4858
    %v4860 = vrot.slane %v4742, 5
    %v4861 = vrot.slane %v4860, 4
    %v4862 = vrot.slane %v4035, 5
    %v4863 = vsel %vm1687, %v4861, %v4862
    %v4864 = vrot.slane %v4862, 4
    %v4865 = vrot.slane %v4036, 5
    %v4866 = vsel %vm1687, %v4864, %v4865
    %v4867 = vrot.slane %v4743, 5
    %v4868 = vrot.slane %v4867, 4
    %v4869 = vrot.slane %v4038, 5
    %v4870 = vsel %vm1687, %v4868, %v4869
    %v4871 = vrot.slane %v4869, 4
    %v4872 = vrot.slane %v4039, 5
    %v4873 = vsel %vm1687, %v4871, %v4872
    %v4874 = vrot.slane %v4744, 5
    %v4875 = vrot.slane %v4874, 4
    %v4876 = vrot.slane %v4041, 5
    %v4877 = vsel %vm1687, %v4875, %v4876
    %v4878 = vrot.slane %v4876, 4
    %v4879 = vrot.slane %v4042, 5
    %v4880 = vsel %vm1687, %v4878, %v4879
    %v4881 = vrot.slane %v4745, 5
    %v4882 = vrot.slane %v4881, 4
    %v4883 = vrot.slane %v4044, 5
    %v4884 = vsel %vm1687, %v4882, %v4883
    %v4885 = vrot.slane %v4883, 4
    %v4886 = vrot.slane %v4045, 5
    %v4887 = vsel %vm1687, %v4885, %v4886
    %v4888 = vrot.slane %v4746, 5
    %v4889 = vrot.slane %v4888, 4
    %v4890 = vrot.slane %v4047, 5
    %v4891 = vsel %vm1687, %v4889, %v4890
    %v4892 = vrot.slane %v4890, 4
    %v4893 = vrot.slane %v4048, 5
    %v4894 = vsel %vm1687, %v4892, %v4893
    %v4895 = vrot.slane %v4747, 5
    %v4896 = vrot.slane %v4895, 4
    %v4897 = vrot.slane %v4050, 5
    %v4898 = vsel %vm1687, %v4896, %v4897
    %v4899 = vrot.slane %v4897, 4
    %v4900 = vrot.slane %v4051, 5
    %v4901 = vsel %vm1687, %v4899, %v4900
    %v4902 = vrot.slane %v4748, 5
    %v4903 = vrot.slane %v4902, 4
    %v4904 = vrot.slane %v4053, 5
    %v4905 = vsel %vm1687, %v4903, %v4904
    %v4906 = vrot.slane %v4904, 4
    %v4907 = vrot.slane %v4054, 5
    %v4908 = vsel %vm1687, %v4906, %v4907
    %s4909 = scalar_lea.vmem %s1, 32
    %v4910 = vld [vmem:[%s4909] sm:$0xf]
    %v4911 = vunpack.c.l.b16 %v4800
    %v4912 = vunpack.c.l.b16 %v4803
    %v4913 = vunpack.c.l.b16 %v4807
    %v4914 = vunpack.c.l.b16 %v4810
    %v4915 = vunpack.c.l.b16 %v4814
    %v4916 = vunpack.c.l.b16 %v4817
    %v4917 = vunpack.c.l.b16 %v4821
    %v4918 = vunpack.c.l.b16 %v4824
    %v4919 = vunpack.c.l.b16 %v4828
    %v4920 = vunpack.c.l.b16 %v4831
    %v4921 = vunpack.c.l.b16 %v4835
    %v4922 = vunpack.c.l.b16 %v4838
    %v4923 = vunpack.c.l.b16 %v4842
    %v4924 = vunpack.c.l.b16 %v4845
    %v4925 = vunpack.c.l.b16 %v4849
    %v4926 = vunpack.c.l.b16 %v4852
    %v4927 = vunpack.c.l.b16 %v4856
    %v4928 = vunpack.c.l.b16 %v4859
    %v4929 = vunpack.c.l.b16 %v4863
    %v4930 = vunpack.c.l.b16 %v4866
    %v4931 = vunpack.c.l.b16 %v4870
    %v4932 = vunpack.c.l.b16 %v4873
    %v4933 = vunpack.c.l.b16 %v4877
    %v4934 = vunpack.c.l.b16 %v4880
    %v4935 = vunpack.c.l.b16 %v4884
    %v4936 = vunpack.c.l.b16 %v4887
    %v4937 = vunpack.c.l.b16 %v4891
    %v4938 = vunpack.c.l.b16 %v4894
    %v4939 = vunpack.c.l.b16 %v4898
    %v4940 = vunpack.c.l.b16 %v4901
    %v4941 = vunpack.c.l.b16 %v4905
    %v4942 = vunpack.c.l.b16 %v4908
    %v4943 = vpack.c.b16 %v4912, %v4911
    %v4944 = vpack.c.b16 %v4914, %v4913
    %v4945 = vpack.c.b16 %v4916, %v4915
    %v4946 = vpack.c.b16 %v4918, %v4917
    %v4947 = vpack.c.b16 %v4920, %v4919
    %v4948 = vpack.c.b16 %v4922, %v4921
    %v4949 = vpack.c.b16 %v4924, %v4923
    %v4950 = vpack.c.b16 %v4926, %v4925
    %v4951 = vpack.c.b16 %v4928, %v4927
    %v4952 = vpack.c.b16 %v4930, %v4929
    %v4953 = vpack.c.b16 %v4932, %v4931
    %v4954 = vpack.c.b16 %v4934, %v4933
    %v4955 = vpack.c.b16 %v4936, %v4935
    %v4956 = vpack.c.b16 %v4938, %v4937
    %v4957 = vpack.c.b16 %v4940, %v4939
    %v4958 = vpack.c.b16 %v4942, %v4941
    %v4960 = vsel %vm1131, %v4943, 0
    %v4963 = vsel %vm1131, %v4944, 0
    %v4966 = vsel %vm1131, %v4945, 0
    %v4969 = vsel %vm1131, %v4946, 0
    %v4972 = vsel %vm1131, %v4947, 0
    %v4975 = vsel %vm1131, %v4948, 0
    %v4978 = vsel %vm1131, %v4949, 0
    %v4981 = vsel %vm1131, %v4950, 0
    %v4984 = vsel %vm1131, %v4951, 0
    %v4987 = vsel %vm1131, %v4952, 0
    %v4990 = vsel %vm1131, %v4953, 0
    %v4993 = vsel %vm1131, %v4954, 0
    %v4996 = vsel %vm1131, %v4955, 0
    %v4999 = vsel %vm1131, %v4956, 0
    %v5002 = vsel %vm1131, %v4957, 0
    %v5005 = vsel %vm1131, %v4958, 0
    %v5008 = vsel %vm1180, %v4910, 0
    %5010 = vmatprep.subr.bf16.mxu0 0
    %5011 = vmatpush1.bf16.msra.mxu0 0
    %5012 = vmatprep.subr.bf16.mxu0 0
    %5013 = vmatpush1.bf16.msra.mxu0 0
    %5014 = vmatprep.subr.bf16.mxu0 0
    %5015 = vmatpush1.bf16.msra.mxu0 0
    %5016 = vmatprep.subr.bf16.mxu0 0
    %5017 = vmatpush1.bf16.msra.mxu0 0
    %5018 = vmatprep.subr.bf16.mxu0 0
    %5019 = vmatpush1.bf16.msra.mxu0 0
    %5020 = vmatprep.subr.bf16.mxu0 0
    %5021 = vmatpush1.bf16.msra.mxu0 0
    %5022 = vmatprep.subr.bf16.mxu0 0
    %5023 = vmatpush1.bf16.msra.mxu0 0
    %5024 = vmatprep.subr.bf16.mxu0 0
    %5025 = vmatpush1.bf16.msra.mxu0 %v5008
    %5026 = vmatprep.subr.bf16.mxu0 0
    %5027 = vmatpush2.bf16.msra.mxu0 0
    %5028 = vmatprep.subr.bf16.mxu0 0
    %5029 = vmatpush2.bf16.msra.mxu0 0
    %5030 = vmatprep.subr.bf16.mxu0 0
    %5031 = vmatpush2.bf16.msra.mxu0 0
    %5032 = vmatprep.subr.bf16.mxu0 0
    %5033 = vmatpush2.bf16.msra.mxu0 0
    %5034 = vmatprep.subr.bf16.mxu0 0
    %5035 = vmatpush2.bf16.msra.mxu0 0
    %5036 = vmatprep.subr.bf16.mxu0 0
    %5037 = vmatpush2.bf16.msra.mxu0 0
    %5038 = vmatprep.subr.bf16.mxu0 0
    %5039 = vmatpush2.bf16.msra.mxu0 0
    %5040 = vmatprep.subr.bf16.mxu0 0
    %5041 = vmatpush2.bf16.msra.mxu0 0
    %5042 = vmatprep.mubr.bf16.mxu0 0
    %5043 = vmatmul.mubr.bf16.gmra.mxu0 %v4960
    %v5044 = vpop.f32.mrf.mxu0
    %v5045 = vadd.f32 0.0, %v5044
    %v5046 = vpop.f32.mrf.mxu0
    %v5047 = vpop.f32.mrf.mxu0
    %v5048 = vadd.f32 0.0, %v5047
    %v5049 = vpop.f32.mrf.mxu0
    %5050 = vmatprep.mubr.bf16.mxu0 0
    %5051 = vmatmul.mubr.bf16.gmra.mxu0 %v4963
    %v5052 = vpop.f32.mrf.mxu0
    %v5053 = vadd.f32 0.0, %v5052
    %v5054 = vpop.f32.mrf.mxu0
    %v5055 = vpop.f32.mrf.mxu0
    %v5056 = vadd.f32 0.0, %v5055
    %v5057 = vpop.f32.mrf.mxu0
    %5058 = vmatprep.mubr.bf16.mxu0 0
    %5059 = vmatmul.mubr.bf16.gmra.mxu0 %v4966
    %v5060 = vpop.f32.mrf.mxu0
    %v5061 = vadd.f32 0.0, %v5060
    %v5062 = vpop.f32.mrf.mxu0
    %v5063 = vpop.f32.mrf.mxu0
    %v5064 = vadd.f32 0.0, %v5063
    %v5065 = vpop.f32.mrf.mxu0
    %5066 = vmatprep.mubr.bf16.mxu0 0
    %5067 = vmatmul.mubr.bf16.gmra.mxu0 %v4969
    %v5068 = vpop.f32.mrf.mxu0
    %v5069 = vadd.f32 0.0, %v5068
    %v5070 = vpop.f32.mrf.mxu0
    %v5071 = vpop.f32.mrf.mxu0
    %v5072 = vadd.f32 0.0, %v5071
    %v5073 = vpop.f32.mrf.mxu0
    %5074 = vmatprep.mubr.bf16.mxu0 0
    %5075 = vmatmul.mubr.bf16.gmra.mxu0 %v4972
    %v5076 = vpop.f32.mrf.mxu0
    %v5077 = vadd.f32 0.0, %v5076
    %v5078 = vpop.f32.mrf.mxu0
    %v5079 = vpop.f32.mrf.mxu0
    %v5080 = vadd.f32 0.0, %v5079
    %v5081 = vpop.f32.mrf.mxu0
    %5082 = vmatprep.mubr.bf16.mxu0 0
    %5083 = vmatmul.mubr.bf16.gmra.mxu0 %v4975
    %v5084 = vpop.f32.mrf.mxu0
    %v5085 = vadd.f32 0.0, %v5084
    %v5086 = vpop.f32.mrf.mxu0
    %v5087 = vpop.f32.mrf.mxu0
    %v5088 = vadd.f32 0.0, %v5087
    %v5089 = vpop.f32.mrf.mxu0
    %5090 = vmatprep.mubr.bf16.mxu0 0
    %5091 = vmatmul.mubr.bf16.gmra.mxu0 %v4978
    %v5092 = vpop.f32.mrf.mxu0
    %v5093 = vadd.f32 0.0, %v5092
    %v5094 = vpop.f32.mrf.mxu0
    %v5095 = vpop.f32.mrf.mxu0
    %v5096 = vadd.f32 0.0, %v5095
    %v5097 = vpop.f32.mrf.mxu0
    %5098 = vmatprep.mubr.bf16.mxu0 0
    %5099 = vmatmul.mubr.bf16.gmra.mxu0 %v4981
    %v5100 = vpop.f32.mrf.mxu0
    %v5101 = vadd.f32 0.0, %v5100
    %v5102 = vpop.f32.mrf.mxu0
    %v5103 = vpop.f32.mrf.mxu0
    %v5104 = vadd.f32 0.0, %v5103
    %v5105 = vpop.f32.mrf.mxu0
    %5106 = vmatprep.mubr.bf16.mxu0 0
    %5107 = vmatmul.mubr.bf16.gmra.mxu0 %v4984
    %v5108 = vpop.f32.mrf.mxu0
    %v5109 = vadd.f32 0.0, %v5108
    %v5110 = vpop.f32.mrf.mxu0
    %v5111 = vpop.f32.mrf.mxu0
    %v5112 = vadd.f32 0.0, %v5111
    %v5113 = vpop.f32.mrf.mxu0
    %5114 = vmatprep.mubr.bf16.mxu0 0
    %5115 = vmatmul.mubr.bf16.gmra.mxu0 %v4987
    %v5116 = vpop.f32.mrf.mxu0
    %v5117 = vadd.f32 0.0, %v5116
    %v5118 = vpop.f32.mrf.mxu0
    %v5119 = vpop.f32.mrf.mxu0
    %v5120 = vadd.f32 0.0, %v5119
    %v5121 = vpop.f32.mrf.mxu0
    %5122 = vmatprep.mubr.bf16.mxu0 0
    %5123 = vmatmul.mubr.bf16.gmra.mxu0 %v4990
    %v5124 = vpop.f32.mrf.mxu0
    %v5125 = vadd.f32 0.0, %v5124
    %v5126 = vpop.f32.mrf.mxu0
    %v5127 = vpop.f32.mrf.mxu0
    %v5128 = vadd.f32 0.0, %v5127
    %v5129 = vpop.f32.mrf.mxu0
    %5130 = vmatprep.mubr.bf16.mxu0 0
    %5131 = vmatmul.mubr.bf16.gmra.mxu0 %v4993
    %v5132 = vpop.f32.mrf.mxu0
    %v5133 = vadd.f32 0.0, %v5132
    %v5134 = vpop.f32.mrf.mxu0
    %v5135 = vpop.f32.mrf.mxu0
    %v5136 = vadd.f32 0.0, %v5135
    %v5137 = vpop.f32.mrf.mxu0
    %5138 = vmatprep.mubr.bf16.mxu0 0
    %5139 = vmatmul.mubr.bf16.gmra.mxu0 %v4996
    %v5140 = vpop.f32.mrf.mxu0
    %v5141 = vadd.f32 0.0, %v5140
    %v5142 = vpop.f32.mrf.mxu0
    %v5143 = vpop.f32.mrf.mxu0
    %v5144 = vadd.f32 0.0, %v5143
    %v5145 = vpop.f32.mrf.mxu0
    %5146 = vmatprep.mubr.bf16.mxu0 0
    %5147 = vmatmul.mubr.bf16.gmra.mxu0 %v4999
    %v5148 = vpop.f32.mrf.mxu0
    %v5149 = vadd.f32 0.0, %v5148
    %v5150 = vpop.f32.mrf.mxu0
    %v5151 = vpop.f32.mrf.mxu0
    %v5152 = vadd.f32 0.0, %v5151
    %v5153 = vpop.f32.mrf.mxu0
    %5154 = vmatprep.mubr.bf16.mxu0 0
    %5155 = vmatmul.mubr.bf16.gmra.mxu0 %v5002
    %v5156 = vpop.f32.mrf.mxu0
    %v5157 = vadd.f32 0.0, %v5156
    %v5158 = vpop.f32.mrf.mxu0
    %v5159 = vpop.f32.mrf.mxu0
    %v5160 = vadd.f32 0.0, %v5159
    %v5161 = vpop.f32.mrf.mxu0
    %5162 = vmatprep.mubr.bf16.mxu0 0
    %5163 = vmatmul.mubr.bf16.gmra.mxu0 %v5005
    %v5164 = vpop.f32.mrf.mxu0
    %v5165 = vadd.f32 0.0, %v5164
    %v5166 = vpop.f32.mrf.mxu0
    %v5167 = vpop.f32.mrf.mxu0
    %v5168 = vadd.f32 0.0, %v5167
    %v5169 = vpop.f32.mrf.mxu0
    %5170 = vdwg.mxu0
    %v5171 = vadd.f32 %v4701, %v5045
    %v5172 = vadd.f32 %v4702, %v5048
    %v5173 = vadd.f32 %v4703, %v5053
    %v5174 = vadd.f32 %v4704, %v5056
    %v5175 = vadd.f32 %v4705, %v5061
    %v5176 = vadd.f32 %v4706, %v5064
    %v5177 = vadd.f32 %v4707, %v5069
    %v5178 = vadd.f32 %v4708, %v5072
    %v5179 = vadd.f32 %v4709, %v5077
    %v5180 = vadd.f32 %v4710, %v5080
    %v5181 = vadd.f32 %v4711, %v5085
    %v5182 = vadd.f32 %v4712, %v5088
    %v5183 = vadd.f32 %v4713, %v5093
    %v5184 = vadd.f32 %v4714, %v5096
    %v5185 = vadd.f32 %v4715, %v5101
    %v5186 = vadd.f32 %v4716, %v5104
    %v5187 = vadd.f32 %v4717, %v5109
    %v5188 = vadd.f32 %v4718, %v5112
    %v5189 = vadd.f32 %v4719, %v5117
    %v5190 = vadd.f32 %v4720, %v5120
    %v5191 = vadd.f32 %v4721, %v5125
    %v5192 = vadd.f32 %v4722, %v5128
    %v5193 = vadd.f32 %v4723, %v5133
    %v5194 = vadd.f32 %v4724, %v5136
    %v5195 = vadd.f32 %v4725, %v5141
    %v5196 = vadd.f32 %v4726, %v5144
    %v5197 = vadd.f32 %v4727, %v5149
    %v5198 = vadd.f32 %v4728, %v5152
    %v5199 = vadd.f32 %v4729, %v5157
    %v5200 = vadd.f32 %v4730, %v5160
    %v5201 = vadd.f32 %v4731, %v5165
    %v5202 = vadd.f32 %v4732, %v5168
    %v5203 = vld [vmem:[%s2] sm:$0x1]
    %v5205 = vlaneseq
    %v5206 = vshrl.u32 %v5205, 7
    %v5207 = vsub.s32 0, %v5206
    %v5208 = vrot.slane %v5203, %v5207
    %v5210 = vadd.f32 %v5171, %v5208
    %v5211 = vadd.f32 %v5172, %v5208
    %v5212 = vadd.f32 %v5173, %v5208
    %v5213 = vadd.f32 %v5174, %v5208
    %v5214 = vadd.f32 %v5175, %v5208
    %v5215 = vadd.f32 %v5176, %v5208
    %v5216 = vadd.f32 %v5177, %v5208
    %v5217 = vadd.f32 %v5178, %v5208
    %v5218 = vadd.f32 %v5179, %v5208
    %v5219 = vadd.f32 %v5180, %v5208
    %v5220 = vadd.f32 %v5181, %v5208
    %v5221 = vadd.f32 %v5182, %v5208
    %v5222 = vadd.f32 %v5183, %v5208
    %v5223 = vadd.f32 %v5184, %v5208
    %v5224 = vadd.f32 %v5185, %v5208
    %v5225 = vadd.f32 %v5186, %v5208
    %v5226 = vadd.f32 %v5187, %v5208
    %v5227 = vadd.f32 %v5188, %v5208
    %v5228 = vadd.f32 %v5189, %v5208
    %v5229 = vadd.f32 %v5190, %v5208
    %v5230 = vadd.f32 %v5191, %v5208
    %v5231 = vadd.f32 %v5192, %v5208
    %v5232 = vadd.f32 %v5193, %v5208
    %v5233 = vadd.f32 %v5194, %v5208
    %v5234 = vadd.f32 %v5195, %v5208
    %v5235 = vadd.f32 %v5196, %v5208
    %v5236 = vadd.f32 %v5197, %v5208
    %v5237 = vadd.f32 %v5198, %v5208
    %v5238 = vadd.f32 %v5199, %v5208
    %v5239 = vadd.f32 %v5200, %v5208
    %v5240 = vadd.f32 %v5201, %v5208
    %v5241 = vadd.f32 %v5202, %v5208
    %v5242 = vmax.f32 %v5210, 0.0
    %v5243 = vmax.f32 %v5211, 0.0
    %v5244 = vmax.f32 %v5212, 0.0
    %v5245 = vmax.f32 %v5213, 0.0
    %v5246 = vmax.f32 %v5214, 0.0
    %v5247 = vmax.f32 %v5215, 0.0
    %v5248 = vmax.f32 %v5216, 0.0
    %v5249 = vmax.f32 %v5217, 0.0
    %v5250 = vmax.f32 %v5218, 0.0
    %v5251 = vmax.f32 %v5219, 0.0
    %v5252 = vmax.f32 %v5220, 0.0
    %v5253 = vmax.f32 %v5221, 0.0
    %v5254 = vmax.f32 %v5222, 0.0
    %v5255 = vmax.f32 %v5223, 0.0
    %v5256 = vmax.f32 %v5224, 0.0
    %v5257 = vmax.f32 %v5225, 0.0
    %v5258 = vmax.f32 %v5226, 0.0
    %v5259 = vmax.f32 %v5227, 0.0
    %v5260 = vmax.f32 %v5228, 0.0
    %v5261 = vmax.f32 %v5229, 0.0
    %v5262 = vmax.f32 %v5230, 0.0
    %v5263 = vmax.f32 %v5231, 0.0
    %v5264 = vmax.f32 %v5232, 0.0
    %v5265 = vmax.f32 %v5233, 0.0
    %v5266 = vmax.f32 %v5234, 0.0
    %v5267 = vmax.f32 %v5235, 0.0
    %v5268 = vmax.f32 %v5236, 0.0
    %v5269 = vmax.f32 %v5237, 0.0
    %v5270 = vmax.f32 %v5238, 0.0
    %v5271 = vmax.f32 %v5239, 0.0
    %v5272 = vmax.f32 %v5240, 0.0
    %v5273 = vmax.f32 %v5241, 0.0
    %v5306 = vcombine.high %v5242, %v5242
    %v5308 = vunpack.c.l.s4 1983009808
    %v5309 = vunpack.c.0.s8 %v5308
    %v5310 = vlaneseq
    %v5311 = vshrl.u32 %v5310, 7
    %v5312 = vsub.s32 %v5309, %v5311
    %v5313 = vrot.slane %v5242, %v5312
    %v5315 = vunpack.c.l.s4 1983009808
    %v5316 = vunpack.c.0.s8 %v5315
    %v5317 = vlaneseq
    %v5318 = vshrl.u32 %v5317, 7
    %v5319 = vsub.s32 %v5316, %v5318
    %v5320 = vrot.slane %v5306, %v5319
    %v5321 = vcombine.high %v5313, %v5313
    %v5322 = vcombine.high %v5320, %v5320
    %v5323 = vcombine.high %v5243, %v5243
    %v5325 = vunpack.c.l.s4 1983009808
    %v5326 = vunpack.c.0.s8 %v5325
    %v5327 = vlaneseq
    %v5328 = vshrl.u32 %v5327, 7
    %v5329 = vsub.s32 %v5326, %v5328
    %v5330 = vrot.slane %v5243, %v5329
    %v5332 = vunpack.c.l.s4 1983009808
    %v5333 = vunpack.c.0.s8 %v5332
    %v5334 = vlaneseq
    %v5335 = vshrl.u32 %v5334, 7
    %v5336 = vsub.s32 %v5333, %v5335
    %v5337 = vrot.slane %v5323, %v5336
    %v5338 = vcombine.high %v5330, %v5330
    %v5339 = vcombine.high %v5337, %v5337
    %v5340 = vcombine.high %v5244, %v5244
    %v5342 = vunpack.c.l.s4 1983009808
    %v5343 = vunpack.c.0.s8 %v5342
    %v5344 = vlaneseq
    %v5345 = vshrl.u32 %v5344, 7
    %v5346 = vsub.s32 %v5343, %v5345
    %v5347 = vrot.slane %v5244, %v5346
    %v5349 = vunpack.c.l.s4 1983009808
    %v5350 = vunpack.c.0.s8 %v5349
    %v5351 = vlaneseq
    %v5352 = vshrl.u32 %v5351, 7
    %v5353 = vsub.s32 %v5350, %v5352
    %v5354 = vrot.slane %v5340, %v5353
    %v5355 = vcombine.high %v5347, %v5347
    %v5356 = vcombine.high %v5354, %v5354
    %v5357 = vcombine.high %v5245, %v5245
    %v5359 = vunpack.c.l.s4 1983009808
    %v5360 = vunpack.c.0.s8 %v5359
    %v5361 = vlaneseq
    %v5362 = vshrl.u32 %v5361, 7
    %v5363 = vsub.s32 %v5360, %v5362
    %v5364 = vrot.slane %v5245, %v5363
    %v5366 = vunpack.c.l.s4 1983009808
    %v5367 = vunpack.c.0.s8 %v5366
    %v5368 = vlaneseq
    %v5369 = vshrl.u32 %v5368, 7
    %v5370 = vsub.s32 %v5367, %v5369
    %v5371 = vrot.slane %v5357, %v5370
    %v5372 = vcombine.high %v5364, %v5364
    %v5373 = vcombine.high %v5371, %v5371
    %v5374 = vcombine.high %v5246, %v5246
    %v5376 = vunpack.c.l.s4 1983009808
    %v5377 = vunpack.c.0.s8 %v5376
    %v5378 = vlaneseq
    %v5379 = vshrl.u32 %v5378, 7
    %v5380 = vsub.s32 %v5377, %v5379
    %v5381 = vrot.slane %v5246, %v5380
    %v5383 = vunpack.c.l.s4 1983009808
    %v5384 = vunpack.c.0.s8 %v5383
    %v5385 = vlaneseq
    %v5386 = vshrl.u32 %v5385, 7
    %v5387 = vsub.s32 %v5384, %v5386
    %v5388 = vrot.slane %v5374, %v5387
    %v5389 = vcombine.high %v5381, %v5381
    %v5390 = vcombine.high %v5388, %v5388
    %v5391 = vcombine.high %v5247, %v5247
    %v5393 = vunpack.c.l.s4 1983009808
    %v5394 = vunpack.c.0.s8 %v5393
    %v5395 = vlaneseq
    %v5396 = vshrl.u32 %v5395, 7
    %v5397 = vsub.s32 %v5394, %v5396
    %v5398 = vrot.slane %v5247, %v5397
    %v5400 = vunpack.c.l.s4 1983009808
    %v5401 = vunpack.c.0.s8 %v5400
    %v5402 = vlaneseq
    %v5403 = vshrl.u32 %v5402, 7
    %v5404 = vsub.s32 %v5401, %v5403
    %v5405 = vrot.slane %v5391, %v5404
    %v5406 = vcombine.high %v5398, %v5398
    %v5407 = vcombine.high %v5405, %v5405
    %v5408 = vcombine.high %v5248, %v5248
    %v5410 = vunpack.c.l.s4 1983009808
    %v5411 = vunpack.c.0.s8 %v5410
    %v5412 = vlaneseq
    %v5413 = vshrl.u32 %v5412, 7
    %v5414 = vsub.s32 %v5411, %v5413
    %v5415 = vrot.slane %v5248, %v5414
    %v5417 = vunpack.c.l.s4 1983009808
    %v5418 = vunpack.c.0.s8 %v5417
    %v5419 = vlaneseq
    %v5420 = vshrl.u32 %v5419, 7
    %v5421 = vsub.s32 %v5418, %v5420
    %v5422 = vrot.slane %v5408, %v5421
    %v5423 = vcombine.high %v5415, %v5415
    %v5424 = vcombine.high %v5422, %v5422
    %v5425 = vcombine.high %v5249, %v5249
    %v5427 = vunpack.c.l.s4 1983009808
    %v5428 = vunpack.c.0.s8 %v5427
    %v5429 = vlaneseq
    %v5430 = vshrl.u32 %v5429, 7
    %v5431 = vsub.s32 %v5428, %v5430
    %v5432 = vrot.slane %v5249, %v5431
    %v5434 = vunpack.c.l.s4 1983009808
    %v5435 = vunpack.c.0.s8 %v5434
    %v5436 = vlaneseq
    %v5437 = vshrl.u32 %v5436, 7
    %v5438 = vsub.s32 %v5435, %v5437
    %v5439 = vrot.slane %v5425, %v5438
    %v5440 = vcombine.high %v5432, %v5432
    %v5441 = vcombine.high %v5439, %v5439
    %v5442 = vcombine.high %v5250, %v5250
    %v5444 = vunpack.c.l.s4 1983009808
    %v5445 = vunpack.c.0.s8 %v5444
    %v5446 = vlaneseq
    %v5447 = vshrl.u32 %v5446, 7
    %v5448 = vsub.s32 %v5445, %v5447
    %v5449 = vrot.slane %v5250, %v5448
    %v5451 = vunpack.c.l.s4 1983009808
    %v5452 = vunpack.c.0.s8 %v5451
    %v5453 = vlaneseq
    %v5454 = vshrl.u32 %v5453, 7
    %v5455 = vsub.s32 %v5452, %v5454
    %v5456 = vrot.slane %v5442, %v5455
    %v5457 = vcombine.high %v5449, %v5449
    %v5458 = vcombine.high %v5456, %v5456
    %v5459 = vcombine.high %v5251, %v5251
    %v5461 = vunpack.c.l.s4 1983009808
    %v5462 = vunpack.c.0.s8 %v5461
    %v5463 = vlaneseq
    %v5464 = vshrl.u32 %v5463, 7
    %v5465 = vsub.s32 %v5462, %v5464
    %v5466 = vrot.slane %v5251, %v5465
    %v5468 = vunpack.c.l.s4 1983009808
    %v5469 = vunpack.c.0.s8 %v5468
    %v5470 = vlaneseq
    %v5471 = vshrl.u32 %v5470, 7
    %v5472 = vsub.s32 %v5469, %v5471
    %v5473 = vrot.slane %v5459, %v5472
    %v5474 = vcombine.high %v5466, %v5466
    %v5475 = vcombine.high %v5473, %v5473
    %v5476 = vcombine.high %v5252, %v5252
    %v5478 = vunpack.c.l.s4 1983009808
    %v5479 = vunpack.c.0.s8 %v5478
    %v5480 = vlaneseq
    %v5481 = vshrl.u32 %v5480, 7
    %v5482 = vsub.s32 %v5479, %v5481
    %v5483 = vrot.slane %v5252, %v5482
    %v5485 = vunpack.c.l.s4 1983009808
    %v5486 = vunpack.c.0.s8 %v5485
    %v5487 = vlaneseq
    %v5488 = vshrl.u32 %v5487, 7
    %v5489 = vsub.s32 %v5486, %v5488
    %v5490 = vrot.slane %v5476, %v5489
    %v5491 = vcombine.high %v5483, %v5483
    %v5492 = vcombine.high %v5490, %v5490
    %v5493 = vcombine.high %v5253, %v5253
    %v5495 = vunpack.c.l.s4 1983009808
    %v5496 = vunpack.c.0.s8 %v5495
    %v5497 = vlaneseq
    %v5498 = vshrl.u32 %v5497, 7
    %v5499 = vsub.s32 %v5496, %v5498
    %v5500 = vrot.slane %v5253, %v5499
    %v5502 = vunpack.c.l.s4 1983009808
    %v5503 = vunpack.c.0.s8 %v5502
    %v5504 = vlaneseq
    %v5505 = vshrl.u32 %v5504, 7
    %v5506 = vsub.s32 %v5503, %v5505
    %v5507 = vrot.slane %v5493, %v5506
    %v5508 = vcombine.high %v5500, %v5500
    %v5509 = vcombine.high %v5507, %v5507
    %v5510 = vcombine.high %v5254, %v5254
    %v5512 = vunpack.c.l.s4 1983009808
    %v5513 = vunpack.c.0.s8 %v5512
    %v5514 = vlaneseq
    %v5515 = vshrl.u32 %v5514, 7
    %v5516 = vsub.s32 %v5513, %v5515
    %v5517 = vrot.slane %v5254, %v5516
    %v5519 = vunpack.c.l.s4 1983009808
    %v5520 = vunpack.c.0.s8 %v5519
    %v5521 = vlaneseq
    %v5522 = vshrl.u32 %v5521, 7
    %v5523 = vsub.s32 %v5520, %v5522
    %v5524 = vrot.slane %v5510, %v5523
    %v5525 = vcombine.high %v5517, %v5517
    %v5526 = vcombine.high %v5524, %v5524
    %v5527 = vcombine.high %v5255, %v5255
    %v5529 = vunpack.c.l.s4 1983009808
    %v5530 = vunpack.c.0.s8 %v5529
    %v5531 = vlaneseq
    %v5532 = vshrl.u32 %v5531, 7
    %v5533 = vsub.s32 %v5530, %v5532
    %v5534 = vrot.slane %v5255, %v5533
    %v5536 = vunpack.c.l.s4 1983009808
    %v5537 = vunpack.c.0.s8 %v5536
    %v5538 = vlaneseq
    %v5539 = vshrl.u32 %v5538, 7
    %v5540 = vsub.s32 %v5537, %v5539
    %v5541 = vrot.slane %v5527, %v5540
    %v5542 = vcombine.high %v5534, %v5534
    %v5543 = vcombine.high %v5541, %v5541
    %v5544 = vcombine.high %v5256, %v5256
    %v5546 = vunpack.c.l.s4 1983009808
    %v5547 = vunpack.c.0.s8 %v5546
    %v5548 = vlaneseq
    %v5549 = vshrl.u32 %v5548, 7
    %v5550 = vsub.s32 %v5547, %v5549
    %v5551 = vrot.slane %v5256, %v5550
    %v5553 = vunpack.c.l.s4 1983009808
    %v5554 = vunpack.c.0.s8 %v5553
    %v5555 = vlaneseq
    %v5556 = vshrl.u32 %v5555, 7
    %v5557 = vsub.s32 %v5554, %v5556
    %v5558 = vrot.slane %v5544, %v5557
    %v5559 = vcombine.high %v5551, %v5551
    %v5560 = vcombine.high %v5558, %v5558
    %v5561 = vcombine.high %v5257, %v5257
    %v5563 = vunpack.c.l.s4 1983009808
    %v5564 = vunpack.c.0.s8 %v5563
    %v5565 = vlaneseq
    %v5566 = vshrl.u32 %v5565, 7
    %v5567 = vsub.s32 %v5564, %v5566
    %v5568 = vrot.slane %v5257, %v5567
    %v5570 = vunpack.c.l.s4 1983009808
    %v5571 = vunpack.c.0.s8 %v5570
    %v5572 = vlaneseq
    %v5573 = vshrl.u32 %v5572, 7
    %v5574 = vsub.s32 %v5571, %v5573
    %v5575 = vrot.slane %v5561, %v5574
    %v5576 = vcombine.high %v5568, %v5568
    %v5577 = vcombine.high %v5575, %v5575
    %v5578 = vcombine.high %v5258, %v5258
    %v5580 = vunpack.c.l.s4 1983009808
    %v5581 = vunpack.c.0.s8 %v5580
    %v5582 = vlaneseq
    %v5583 = vshrl.u32 %v5582, 7
    %v5584 = vsub.s32 %v5581, %v5583
    %v5585 = vrot.slane %v5258, %v5584
    %v5587 = vunpack.c.l.s4 1983009808
    %v5588 = vunpack.c.0.s8 %v5587
    %v5589 = vlaneseq
    %v5590 = vshrl.u32 %v5589, 7
    %v5591 = vsub.s32 %v5588, %v5590
    %v5592 = vrot.slane %v5578, %v5591
    %v5593 = vcombine.high %v5585, %v5585
    %v5594 = vcombine.high %v5592, %v5592
    %v5595 = vcombine.high %v5259, %v5259
    %v5597 = vunpack.c.l.s4 1983009808
    %v5598 = vunpack.c.0.s8 %v5597
    %v5599 = vlaneseq
    %v5600 = vshrl.u32 %v5599, 7
    %v5601 = vsub.s32 %v5598, %v5600
    %v5602 = vrot.slane %v5259, %v5601
    %v5604 = vunpack.c.l.s4 1983009808
    %v5605 = vunpack.c.0.s8 %v5604
    %v5606 = vlaneseq
    %v5607 = vshrl.u32 %v5606, 7
    %v5608 = vsub.s32 %v5605, %v5607
    %v5609 = vrot.slane %v5595, %v5608
    %v5610 = vcombine.high %v5602, %v5602
    %v5611 = vcombine.high %v5609, %v5609
    %v5612 = vcombine.high %v5260, %v5260
    %v5614 = vunpack.c.l.s4 1983009808
    %v5615 = vunpack.c.0.s8 %v5614
    %v5616 = vlaneseq
    %v5617 = vshrl.u32 %v5616, 7
    %v5618 = vsub.s32 %v5615, %v5617
    %v5619 = vrot.slane %v5260, %v5618
    %v5621 = vunpack.c.l.s4 1983009808
    %v5622 = vunpack.c.0.s8 %v5621
    %v5623 = vlaneseq
    %v5624 = vshrl.u32 %v5623, 7
    %v5625 = vsub.s32 %v5622, %v5624
    %v5626 = vrot.slane %v5612, %v5625
    %v5627 = vcombine.high %v5619, %v5619
    %v5628 = vcombine.high %v5626, %v5626
    %v5629 = vcombine.high %v5261, %v5261
    %v5631 = vunpack.c.l.s4 1983009808
    %v5632 = vunpack.c.0.s8 %v5631
    %v5633 = vlaneseq
    %v5634 = vshrl.u32 %v5633, 7
    %v5635 = vsub.s32 %v5632, %v5634
    %v5636 = vrot.slane %v5261, %v5635
    %v5638 = vunpack.c.l.s4 1983009808
    %v5639 = vunpack.c.0.s8 %v5638
    %v5640 = vlaneseq
    %v5641 = vshrl.u32 %v5640, 7
    %v5642 = vsub.s32 %v5639, %v5641
    %v5643 = vrot.slane %v5629, %v5642
    %v5644 = vcombine.high %v5636, %v5636
    %v5645 = vcombine.high %v5643, %v5643
    %v5646 = vcombine.high %v5262, %v5262
    %v5648 = vunpack.c.l.s4 1983009808
    %v5649 = vunpack.c.0.s8 %v5648
    %v5650 = vlaneseq
    %v5651 = vshrl.u32 %v5650, 7
    %v5652 = vsub.s32 %v5649, %v5651
    %v5653 = vrot.slane %v5262, %v5652
    %v5655 = vunpack.c.l.s4 1983009808
    %v5656 = vunpack.c.0.s8 %v5655
    %v5657 = vlaneseq
    %v5658 = vshrl.u32 %v5657, 7
    %v5659 = vsub.s32 %v5656, %v5658
    %v5660 = vrot.slane %v5646, %v5659
    %v5661 = vcombine.high %v5653, %v5653
    %v5662 = vcombine.high %v5660, %v5660
    %v5663 = vcombine.high %v5263, %v5263
    %v5665 = vunpack.c.l.s4 1983009808
    %v5666 = vunpack.c.0.s8 %v5665
    %v5667 = vlaneseq
    %v5668 = vshrl.u32 %v5667, 7
    %v5669 = vsub.s32 %v5666, %v5668
    %v5670 = vrot.slane %v5263, %v5669
    %v5672 = vunpack.c.l.s4 1983009808
    %v5673 = vunpack.c.0.s8 %v5672
    %v5674 = vlaneseq
    %v5675 = vshrl.u32 %v5674, 7
    %v5676 = vsub.s32 %v5673, %v5675
    %v5677 = vrot.slane %v5663, %v5676
    %v5678 = vcombine.high %v5670, %v5670
    %v5679 = vcombine.high %v5677, %v5677
    %v5680 = vcombine.high %v5264, %v5264
    %v5682 = vunpack.c.l.s4 1983009808
    %v5683 = vunpack.c.0.s8 %v5682
    %v5684 = vlaneseq
    %v5685 = vshrl.u32 %v5684, 7
    %v5686 = vsub.s32 %v5683, %v5685
    %v5687 = vrot.slane %v5264, %v5686
    %v5689 = vunpack.c.l.s4 1983009808
    %v5690 = vunpack.c.0.s8 %v5689
    %v5691 = vlaneseq
    %v5692 = vshrl.u32 %v5691, 7
    %v5693 = vsub.s32 %v5690, %v5692
    %v5694 = vrot.slane %v5680, %v5693
    %v5695 = vcombine.high %v5687, %v5687
    %v5696 = vcombine.high %v5694, %v5694
    %v5697 = vcombine.high %v5265, %v5265
    %v5699 = vunpack.c.l.s4 1983009808
    %v5700 = vunpack.c.0.s8 %v5699
    %v5701 = vlaneseq
    %v5702 = vshrl.u32 %v5701, 7
    %v5703 = vsub.s32 %v5700, %v5702
    %v5704 = vrot.slane %v5265, %v5703
    %v5706 = vunpack.c.l.s4 1983009808
    %v5707 = vunpack.c.0.s8 %v5706
    %v5708 = vlaneseq
    %v5709 = vshrl.u32 %v5708, 7
    %v5710 = vsub.s32 %v5707, %v5709
    %v5711 = vrot.slane %v5697, %v5710
    %v5712 = vcombine.high %v5704, %v5704
    %v5713 = vcombine.high %v5711, %v5711
    %v5714 = vcombine.high %v5266, %v5266
    %v5716 = vunpack.c.l.s4 1983009808
    %v5717 = vunpack.c.0.s8 %v5716
    %v5718 = vlaneseq
    %v5719 = vshrl.u32 %v5718, 7
    %v5720 = vsub.s32 %v5717, %v5719
    %v5721 = vrot.slane %v5266, %v5720
    %v5723 = vunpack.c.l.s4 1983009808
    %v5724 = vunpack.c.0.s8 %v5723
    %v5725 = vlaneseq
    %v5726 = vshrl.u32 %v5725, 7
    %v5727 = vsub.s32 %v5724, %v5726
    %v5728 = vrot.slane %v5714, %v5727
    %v5729 = vcombine.high %v5721, %v5721
    %v5730 = vcombine.high %v5728, %v5728
    %v5731 = vcombine.high %v5267, %v5267
    %v5733 = vunpack.c.l.s4 1983009808
    %v5734 = vunpack.c.0.s8 %v5733
    %v5735 = vlaneseq
    %v5736 = vshrl.u32 %v5735, 7
    %v5737 = vsub.s32 %v5734, %v5736
    %v5738 = vrot.slane %v5267, %v5737
    %v5740 = vunpack.c.l.s4 1983009808
    %v5741 = vunpack.c.0.s8 %v5740
    %v5742 = vlaneseq
    %v5743 = vshrl.u32 %v5742, 7
    %v5744 = vsub.s32 %v5741, %v5743
    %v5745 = vrot.slane %v5731, %v5744
    %v5746 = vcombine.high %v5738, %v5738
    %v5747 = vcombine.high %v5745, %v5745
    %v5748 = vcombine.high %v5268, %v5268
    %v5750 = vunpack.c.l.s4 1983009808
    %v5751 = vunpack.c.0.s8 %v5750
    %v5752 = vlaneseq
    %v5753 = vshrl.u32 %v5752, 7
    %v5754 = vsub.s32 %v5751, %v5753
    %v5755 = vrot.slane %v5268, %v5754
    %v5757 = vunpack.c.l.s4 1983009808
    %v5758 = vunpack.c.0.s8 %v5757
    %v5759 = vlaneseq
    %v5760 = vshrl.u32 %v5759, 7
    %v5761 = vsub.s32 %v5758, %v5760
    %v5762 = vrot.slane %v5748, %v5761
    %v5763 = vcombine.high %v5755, %v5755
    %v5764 = vcombine.high %v5762, %v5762
    %v5765 = vcombine.high %v5269, %v5269
    %v5767 = vunpack.c.l.s4 1983009808
    %v5768 = vunpack.c.0.s8 %v5767
    %v5769 = vlaneseq
    %v5770 = vshrl.u32 %v5769, 7
    %v5771 = vsub.s32 %v5768, %v5770
    %v5772 = vrot.slane %v5269, %v5771
    %v5774 = vunpack.c.l.s4 1983009808
    %v5775 = vunpack.c.0.s8 %v5774
    %v5776 = vlaneseq
    %v5777 = vshrl.u32 %v5776, 7
    %v5778 = vsub.s32 %v5775, %v5777
    %v5779 = vrot.slane %v5765, %v5778
    %v5780 = vcombine.high %v5772, %v5772
    %v5781 = vcombine.high %v5779, %v5779
    %v5782 = vcombine.high %v5270, %v5270
    %v5784 = vunpack.c.l.s4 1983009808
    %v5785 = vunpack.c.0.s8 %v5784
    %v5786 = vlaneseq
    %v5787 = vshrl.u32 %v5786, 7
    %v5788 = vsub.s32 %v5785, %v5787
    %v5789 = vrot.slane %v5270, %v5788
    %v5791 = vunpack.c.l.s4 1983009808
    %v5792 = vunpack.c.0.s8 %v5791
    %v5793 = vlaneseq
    %v5794 = vshrl.u32 %v5793, 7
    %v5795 = vsub.s32 %v5792, %v5794
    %v5796 = vrot.slane %v5782, %v5795
    %v5797 = vcombine.high %v5789, %v5789
    %v5798 = vcombine.high %v5796, %v5796
    %v5799 = vcombine.high %v5271, %v5271
    %v5801 = vunpack.c.l.s4 1983009808
    %v5802 = vunpack.c.0.s8 %v5801
    %v5803 = vlaneseq
    %v5804 = vshrl.u32 %v5803, 7
    %v5805 = vsub.s32 %v5802, %v5804
    %v5806 = vrot.slane %v5271, %v5805
    %v5808 = vunpack.c.l.s4 1983009808
    %v5809 = vunpack.c.0.s8 %v5808
    %v5810 = vlaneseq
    %v5811 = vshrl.u32 %v5810, 7
    %v5812 = vsub.s32 %v5809, %v5811
    %v5813 = vrot.slane %v5799, %v5812
    %v5814 = vcombine.high %v5806, %v5806
    %v5815 = vcombine.high %v5813, %v5813
    %v5816 = vcombine.high %v5272, %v5272
    %v5818 = vunpack.c.l.s4 1983009808
    %v5819 = vunpack.c.0.s8 %v5818
    %v5820 = vlaneseq
    %v5821 = vshrl.u32 %v5820, 7
    %v5822 = vsub.s32 %v5819, %v5821
    %v5823 = vrot.slane %v5272, %v5822
    %v5825 = vunpack.c.l.s4 1983009808
    %v5826 = vunpack.c.0.s8 %v5825
    %v5827 = vlaneseq
    %v5828 = vshrl.u32 %v5827, 7
    %v5829 = vsub.s32 %v5826, %v5828
    %v5830 = vrot.slane %v5816, %v5829
    %v5831 = vcombine.high %v5823, %v5823
    %v5832 = vcombine.high %v5830, %v5830
    %v5833 = vcombine.high %v5273, %v5273
    %v5835 = vunpack.c.l.s4 1983009808
    %v5836 = vunpack.c.0.s8 %v5835
    %v5837 = vlaneseq
    %v5838 = vshrl.u32 %v5837, 7
    %v5839 = vsub.s32 %v5836, %v5838
    %v5840 = vrot.slane %v5273, %v5839
    %v5842 = vunpack.c.l.s4 1983009808
    %v5843 = vunpack.c.0.s8 %v5842
    %v5844 = vlaneseq
    %v5845 = vshrl.u32 %v5844, 7
    %v5846 = vsub.s32 %v5843, %v5845
    %v5847 = vrot.slane %v5833, %v5846
    %v5848 = vcombine.high %v5840, %v5840
    %v5849 = vcombine.high %v5847, %v5847
    %v5978 = vrot.slane %v5313, 7
    %v5979 = vrot.slane %v5978, 2
    %v5980 = vrot.slane %v5321, 7
    %v5981 = vrot.slane %v5980, 2
    %v5982 = vrot.slane %v5320, 7
    %v5983 = vrot.slane %v5982, 2
    %v5984 = vrot.slane %v5322, 7
    %v5985 = vrot.slane %v5984, 2
    %v5986 = vrot.slane %v5330, 7
    %v5987 = vrot.slane %v5986, 2
    %v5988 = vrot.slane %v5338, 7
    %v5989 = vrot.slane %v5988, 2
    %v5990 = vrot.slane %v5337, 7
    %v5991 = vrot.slane %v5990, 2
    %v5992 = vrot.slane %v5339, 7
    %v5993 = vrot.slane %v5992, 2
    %v5994 = vrot.slane %v5347, 7
    %v5995 = vrot.slane %v5994, 2
    %v5996 = vrot.slane %v5355, 7
    %v5997 = vrot.slane %v5996, 2
    %v5998 = vrot.slane %v5354, 7
    %v5999 = vrot.slane %v5998, 2
    %v6000 = vrot.slane %v5356, 7
    %v6001 = vrot.slane %v6000, 2
    %v6002 = vrot.slane %v5364, 7
    %v6003 = vrot.slane %v6002, 2
    %v6004 = vrot.slane %v5372, 7
    %v6005 = vrot.slane %v6004, 2
    %v6006 = vrot.slane %v5371, 7
    %v6007 = vrot.slane %v6006, 2
    %v6008 = vrot.slane %v5373, 7
    %v6009 = vrot.slane %v6008, 2
    %v6010 = vrot.slane %v5381, 7
    %v6011 = vrot.slane %v6010, 2
    %v6012 = vrot.slane %v5389, 7
    %v6013 = vrot.slane %v6012, 2
    %v6014 = vrot.slane %v5388, 7
    %v6015 = vrot.slane %v6014, 2
    %v6016 = vrot.slane %v5390, 7
    %v6017 = vrot.slane %v6016, 2
    %v6018 = vrot.slane %v5398, 7
    %v6019 = vrot.slane %v6018, 2
    %v6020 = vrot.slane %v5406, 7
    %v6021 = vrot.slane %v6020, 2
    %v6022 = vrot.slane %v5405, 7
    %v6023 = vrot.slane %v6022, 2
    %v6024 = vrot.slane %v5407, 7
    %v6025 = vrot.slane %v6024, 2
    %v6026 = vrot.slane %v5415, 7
    %v6027 = vrot.slane %v6026, 2
    %v6028 = vrot.slane %v5423, 7
    %v6029 = vrot.slane %v6028, 2
    %v6030 = vrot.slane %v5422, 7
    %v6031 = vrot.slane %v6030, 2
    %v6032 = vrot.slane %v5424, 7
    %v6033 = vrot.slane %v6032, 2
    %v6034 = vrot.slane %v5432, 7
    %v6035 = vrot.slane %v6034, 2
    %v6036 = vrot.slane %v5440, 7
    %v6037 = vrot.slane %v6036, 2
    %v6038 = vrot.slane %v5439, 7
    %v6039 = vrot.slane %v6038, 2
    %v6040 = vrot.slane %v5441, 7
    %v6041 = vrot.slane %v6040, 2
    %v6042 = vrot.slane %v5449, 7
    %v6043 = vrot.slane %v6042, 2
    %v6044 = vrot.slane %v5457, 7
    %v6045 = vrot.slane %v6044, 2
    %v6046 = vrot.slane %v5456, 7
    %v6047 = vrot.slane %v6046, 2
    %v6048 = vrot.slane %v5458, 7
    %v6049 = vrot.slane %v6048, 2
    %v6050 = vrot.slane %v5466, 7
    %v6051 = vrot.slane %v6050, 2
    %v6052 = vrot.slane %v5474, 7
    %v6053 = vrot.slane %v6052, 2
    %v6054 = vrot.slane %v5473, 7
    %v6055 = vrot.slane %v6054, 2
    %v6056 = vrot.slane %v5475, 7
    %v6057 = vrot.slane %v6056, 2
    %v6058 = vrot.slane %v5483, 7
    %v6059 = vrot.slane %v6058, 2
    %v6060 = vrot.slane %v5491, 7
    %v6061 = vrot.slane %v6060, 2
    %v6062 = vrot.slane %v5490, 7
    %v6063 = vrot.slane %v6062, 2
    %v6064 = vrot.slane %v5492, 7
    %v6065 = vrot.slane %v6064, 2
    %v6066 = vrot.slane %v5500, 7
    %v6067 = vrot.slane %v6066, 2
    %v6068 = vrot.slane %v5508, 7
    %v6069 = vrot.slane %v6068, 2
    %v6070 = vrot.slane %v5507, 7
    %v6071 = vrot.slane %v6070, 2
    %v6072 = vrot.slane %v5509, 7
    %v6073 = vrot.slane %v6072, 2
    %v6074 = vrot.slane %v5517, 7
    %v6075 = vrot.slane %v6074, 2
    %v6076 = vrot.slane %v5525, 7
    %v6077 = vrot.slane %v6076, 2
    %v6078 = vrot.slane %v5524, 7
    %v6079 = vrot.slane %v6078, 2
    %v6080 = vrot.slane %v5526, 7
    %v6081 = vrot.slane %v6080, 2
    %v6082 = vrot.slane %v5534, 7
    %v6083 = vrot.slane %v6082, 2
    %v6084 = vrot.slane %v5542, 7
    %v6085 = vrot.slane %v6084, 2
    %v6086 = vrot.slane %v5541, 7
    %v6087 = vrot.slane %v6086, 2
    %v6088 = vrot.slane %v5543, 7
    %v6089 = vrot.slane %v6088, 2
    %v6090 = vrot.slane %v5551, 7
    %v6091 = vrot.slane %v6090, 2
    %v6092 = vrot.slane %v5559, 7
    %v6093 = vrot.slane %v6092, 2
    %v6094 = vrot.slane %v5558, 7
    %v6095 = vrot.slane %v6094, 2
    %v6096 = vrot.slane %v5560, 7
    %v6097 = vrot.slane %v6096, 2
    %v6098 = vrot.slane %v5568, 7
    %v6099 = vrot.slane %v6098, 2
    %v6100 = vrot.slane %v5576, 7
    %v6101 = vrot.slane %v6100, 2
    %v6102 = vrot.slane %v5575, 7
    %v6103 = vrot.slane %v6102, 2
    %v6104 = vrot.slane %v5577, 7
    %v6105 = vrot.slane %v6104, 2
    %v6106 = vrot.slane %v5585, 7
    %v6107 = vrot.slane %v6106, 2
    %v6108 = vrot.slane %v5593, 7
    %v6109 = vrot.slane %v6108, 2
    %v6110 = vrot.slane %v5592, 7
    %v6111 = vrot.slane %v6110, 2
    %v6112 = vrot.slane %v5594, 7
    %v6113 = vrot.slane %v6112, 2
    %v6114 = vrot.slane %v5602, 7
    %v6115 = vrot.slane %v6114, 2
    %v6116 = vrot.slane %v5610, 7
    %v6117 = vrot.slane %v6116, 2
    %v6118 = vrot.slane %v5609, 7
    %v6119 = vrot.slane %v6118, 2
    %v6120 = vrot.slane %v5611, 7
    %v6121 = vrot.slane %v6120, 2
    %v6122 = vrot.slane %v5619, 7
    %v6123 = vrot.slane %v6122, 2
    %v6124 = vrot.slane %v5627, 7
    %v6125 = vrot.slane %v6124, 2
    %v6126 = vrot.slane %v5626, 7
    %v6127 = vrot.slane %v6126, 2
    %v6128 = vrot.slane %v5628, 7
    %v6129 = vrot.slane %v6128, 2
    %v6130 = vrot.slane %v5636, 7
    %v6131 = vrot.slane %v6130, 2
    %v6132 = vrot.slane %v5644, 7
    %v6133 = vrot.slane %v6132, 2
    %v6134 = vrot.slane %v5643, 7
    %v6135 = vrot.slane %v6134, 2
    %v6136 = vrot.slane %v5645, 7
    %v6137 = vrot.slane %v6136, 2
    %v6138 = vrot.slane %v5653, 7
    %v6139 = vrot.slane %v6138, 2
    %v6140 = vrot.slane %v5661, 7
    %v6141 = vrot.slane %v6140, 2
    %v6142 = vrot.slane %v5660, 7
    %v6143 = vrot.slane %v6142, 2
    %v6144 = vrot.slane %v5662, 7
    %v6145 = vrot.slane %v6144, 2
    %v6146 = vrot.slane %v5670, 7
    %v6147 = vrot.slane %v6146, 2
    %v6148 = vrot.slane %v5678, 7
    %v6149 = vrot.slane %v6148, 2
    %v6150 = vrot.slane %v5677, 7
    %v6151 = vrot.slane %v6150, 2
    %v6152 = vrot.slane %v5679, 7
    %v6153 = vrot.slane %v6152, 2
    %v6154 = vrot.slane %v5687, 7
    %v6155 = vrot.slane %v6154, 2
    %v6156 = vrot.slane %v5695, 7
    %v6157 = vrot.slane %v6156, 2
    %v6158 = vrot.slane %v5694, 7
    %v6159 = vrot.slane %v6158, 2
    %v6160 = vrot.slane %v5696, 7
    %v6161 = vrot.slane %v6160, 2
    %v6162 = vrot.slane %v5704, 7
    %v6163 = vrot.slane %v6162, 2
    %v6164 = vrot.slane %v5712, 7
    %v6165 = vrot.slane %v6164, 2
    %v6166 = vrot.slane %v5711, 7
    %v6167 = vrot.slane %v6166, 2
    %v6168 = vrot.slane %v5713, 7
    %v6169 = vrot.slane %v6168, 2
    %v6170 = vrot.slane %v5721, 7
    %v6171 = vrot.slane %v6170, 2
    %v6172 = vrot.slane %v5729, 7
    %v6173 = vrot.slane %v6172, 2
    %v6174 = vrot.slane %v5728, 7
    %v6175 = vrot.slane %v6174, 2
    %v6176 = vrot.slane %v5730, 7
    %v6177 = vrot.slane %v6176, 2
    %v6178 = vrot.slane %v5738, 7
    %v6179 = vrot.slane %v6178, 2
    %v6180 = vrot.slane %v5746, 7
    %v6181 = vrot.slane %v6180, 2
    %v6182 = vrot.slane %v5745, 7
    %v6183 = vrot.slane %v6182, 2
    %v6184 = vrot.slane %v5747, 7
    %v6185 = vrot.slane %v6184, 2
    %v6186 = vrot.slane %v5755, 7
    %v6187 = vrot.slane %v6186, 2
    %v6188 = vrot.slane %v5763, 7
    %v6189 = vrot.slane %v6188, 2
    %v6190 = vrot.slane %v5762, 7
    %v6191 = vrot.slane %v6190, 2
    %v6192 = vrot.slane %v5764, 7
    %v6193 = vrot.slane %v6192, 2
    %v6194 = vrot.slane %v5772, 7
    %v6195 = vrot.slane %v6194, 2
    %v6196 = vrot.slane %v5780, 7
    %v6197 = vrot.slane %v6196, 2
    %v6198 = vrot.slane %v5779, 7
    %v6199 = vrot.slane %v6198, 2
    %v6200 = vrot.slane %v5781, 7
    %v6201 = vrot.slane %v6200, 2
    %v6202 = vrot.slane %v5789, 7
    %v6203 = vrot.slane %v6202, 2
    %v6204 = vrot.slane %v5797, 7
    %v6205 = vrot.slane %v6204, 2
    %v6206 = vrot.slane %v5796, 7
    %v6207 = vrot.slane %v6206, 2
    %v6208 = vrot.slane %v5798, 7
    %v6209 = vrot.slane %v6208, 2
    %v6210 = vrot.slane %v5806, 7
    %v6211 = vrot.slane %v6210, 2
    %v6212 = vrot.slane %v5814, 7
    %v6213 = vrot.slane %v6212, 2
    %v6214 = vrot.slane %v5813, 7
    %v6215 = vrot.slane %v6214, 2
    %v6216 = vrot.slane %v5815, 7
    %v6217 = vrot.slane %v6216, 2
    %v6218 = vrot.slane %v5823, 7
    %v6219 = vrot.slane %v6218, 2
    %v6220 = vrot.slane %v5831, 7
    %v6221 = vrot.slane %v6220, 2
    %v6222 = vrot.slane %v5830, 7
    %v6223 = vrot.slane %v6222, 2
    %v6224 = vrot.slane %v5832, 7
    %v6225 = vrot.slane %v6224, 2
    %v6226 = vrot.slane %v5840, 7
    %v6227 = vrot.slane %v6226, 2
    %v6228 = vrot.slane %v5848, 7
    %v6229 = vrot.slane %v6228, 2
    %v6230 = vrot.slane %v5847, 7
    %v6231 = vrot.slane %v6230, 2
    %v6232 = vrot.slane %v5849, 7
    %v6233 = vrot.slane %v6232, 2
    %v6362 = vmax.f32 %v5313, %v5979
    %v6363 = vmax.f32 %v5321, %v5981
    %v6364 = vmax.f32 %v5320, %v5983
    %v6365 = vmax.f32 %v5322, %v5985
    %v6366 = vmax.f32 %v5330, %v5987
    %v6367 = vmax.f32 %v5338, %v5989
    %v6368 = vmax.f32 %v5337, %v5991
    %v6369 = vmax.f32 %v5339, %v5993
    %v6370 = vmax.f32 %v5347, %v5995
    %v6371 = vmax.f32 %v5355, %v5997
    %v6372 = vmax.f32 %v5354, %v5999
    %v6373 = vmax.f32 %v5356, %v6001
    %v6374 = vmax.f32 %v5364, %v6003
    %v6375 = vmax.f32 %v5372, %v6005
    %v6376 = vmax.f32 %v5371, %v6007
    %v6377 = vmax.f32 %v5373, %v6009
    %v6378 = vmax.f32 %v5381, %v6011
    %v6379 = vmax.f32 %v5389, %v6013
    %v6380 = vmax.f32 %v5388, %v6015
    %v6381 = vmax.f32 %v5390, %v6017
    %v6382 = vmax.f32 %v5398, %v6019
    %v6383 = vmax.f32 %v5406, %v6021
    %v6384 = vmax.f32 %v5405, %v6023
    %v6385 = vmax.f32 %v5407, %v6025
    %v6386 = vmax.f32 %v5415, %v6027
    %v6387 = vmax.f32 %v5423, %v6029
    %v6388 = vmax.f32 %v5422, %v6031
    %v6389 = vmax.f32 %v5424, %v6033
    %v6390 = vmax.f32 %v5432, %v6035
    %v6391 = vmax.f32 %v5440, %v6037
    %v6392 = vmax.f32 %v5439, %v6039
    %v6393 = vmax.f32 %v5441, %v6041
    %v6394 = vmax.f32 %v5449, %v6043
    %v6395 = vmax.f32 %v5457, %v6045
    %v6396 = vmax.f32 %v5456, %v6047
    %v6397 = vmax.f32 %v5458, %v6049
    %v6398 = vmax.f32 %v5466, %v6051
    %v6399 = vmax.f32 %v5474, %v6053
    %v6400 = vmax.f32 %v5473, %v6055
    %v6401 = vmax.f32 %v5475, %v6057
    %v6402 = vmax.f32 %v5483, %v6059
    %v6403 = vmax.f32 %v5491, %v6061
    %v6404 = vmax.f32 %v5490, %v6063
    %v6405 = vmax.f32 %v5492, %v6065
    %v6406 = vmax.f32 %v5500, %v6067
    %v6407 = vmax.f32 %v5508, %v6069
    %v6408 = vmax.f32 %v5507, %v6071
    %v6409 = vmax.f32 %v5509, %v6073
    %v6410 = vmax.f32 %v5517, %v6075
    %v6411 = vmax.f32 %v5525, %v6077
    %v6412 = vmax.f32 %v5524, %v6079
    %v6413 = vmax.f32 %v5526, %v6081
    %v6414 = vmax.f32 %v5534, %v6083
    %v6415 = vmax.f32 %v5542, %v6085
    %v6416 = vmax.f32 %v5541, %v6087
    %v6417 = vmax.f32 %v5543, %v6089
    %v6418 = vmax.f32 %v5551, %v6091
    %v6419 = vmax.f32 %v5559, %v6093
    %v6420 = vmax.f32 %v5558, %v6095
    %v6421 = vmax.f32 %v5560, %v6097
    %v6422 = vmax.f32 %v5568, %v6099
    %v6423 = vmax.f32 %v5576, %v6101
    %v6424 = vmax.f32 %v5575, %v6103
    %v6425 = vmax.f32 %v5577, %v6105
    %v6426 = vmax.f32 %v5585, %v6107
    %v6427 = vmax.f32 %v5593, %v6109
    %v6428 = vmax.f32 %v5592, %v6111
    %v6429 = vmax.f32 %v5594, %v6113
    %v6430 = vmax.f32 %v5602, %v6115
    %v6431 = vmax.f32 %v5610, %v6117
    %v6432 = vmax.f32 %v5609, %v6119
    %v6433 = vmax.f32 %v5611, %v6121
    %v6434 = vmax.f32 %v5619, %v6123
    %v6435 = vmax.f32 %v5627, %v6125
    %v6436 = vmax.f32 %v5626, %v6127
    %v6437 = vmax.f32 %v5628, %v6129
    %v6438 = vmax.f32 %v5636, %v6131
    %v6439 = vmax.f32 %v5644, %v6133
    %v6440 = vmax.f32 %v5643, %v6135
    %v6441 = vmax.f32 %v5645, %v6137
    %v6442 = vmax.f32 %v5653, %v6139
    %v6443 = vmax.f32 %v5661, %v6141
    %v6444 = vmax.f32 %v5660, %v6143
    %v6445 = vmax.f32 %v5662, %v6145
    %v6446 = vmax.f32 %v5670, %v6147
    %v6447 = vmax.f32 %v5678, %v6149
    %v6448 = vmax.f32 %v5677, %v6151
    %v6449 = vmax.f32 %v5679, %v6153
    %v6450 = vmax.f32 %v5687, %v6155
    %v6451 = vmax.f32 %v5695, %v6157
    %v6452 = vmax.f32 %v5694, %v6159
    %v6453 = vmax.f32 %v5696, %v6161
    %v6454 = vmax.f32 %v5704, %v6163
    %v6455 = vmax.f32 %v5712, %v6165
    %v6456 = vmax.f32 %v5711, %v6167
    %v6457 = vmax.f32 %v5713, %v6169
    %v6458 = vmax.f32 %v5721, %v6171
    %v6459 = vmax.f32 %v5729, %v6173
    %v6460 = vmax.f32 %v5728, %v6175
    %v6461 = vmax.f32 %v5730, %v6177
    %v6462 = vmax.f32 %v5738, %v6179
    %v6463 = vmax.f32 %v5746, %v6181
    %v6464 = vmax.f32 %v5745, %v6183
    %v6465 = vmax.f32 %v5747, %v6185
    %v6466 = vmax.f32 %v5755, %v6187
    %v6467 = vmax.f32 %v5763, %v6189
    %v6468 = vmax.f32 %v5762, %v6191
    %v6469 = vmax.f32 %v5764, %v6193
    %v6470 = vmax.f32 %v5772, %v6195
    %v6471 = vmax.f32 %v5780, %v6197
    %v6472 = vmax.f32 %v5779, %v6199
    %v6473 = vmax.f32 %v5781, %v6201
    %v6474 = vmax.f32 %v5789, %v6203
    %v6475 = vmax.f32 %v5797, %v6205
    %v6476 = vmax.f32 %v5796, %v6207
    %v6477 = vmax.f32 %v5798, %v6209
    %v6478 = vmax.f32 %v5806, %v6211
    %v6479 = vmax.f32 %v5814, %v6213
    %v6480 = vmax.f32 %v5813, %v6215
    %v6481 = vmax.f32 %v5815, %v6217
    %v6482 = vmax.f32 %v5823, %v6219
    %v6483 = vmax.f32 %v5831, %v6221
    %v6484 = vmax.f32 %v5830, %v6223
    %v6485 = vmax.f32 %v5832, %v6225
    %v6486 = vmax.f32 %v5840, %v6227
    %v6487 = vmax.f32 %v5848, %v6229
    %v6488 = vmax.f32 %v5847, %v6231
    %v6489 = vmax.f32 %v5849, %v6233
    %v6490 = vmax.f32 %v6362, %v6370
    %v6491 = vmax.f32 %v6363, %v6371
    %v6492 = vmax.f32 %v6364, %v6372
    %v6493 = vmax.f32 %v6365, %v6373
    %v6494 = vmax.f32 %v6366, %v6374
    %v6495 = vmax.f32 %v6367, %v6375
    %v6496 = vmax.f32 %v6368, %v6376
    %v6497 = vmax.f32 %v6369, %v6377
    %v6498 = vmax.f32 %v6378, %v6386
    %v6499 = vmax.f32 %v6379, %v6387
    %v6500 = vmax.f32 %v6380, %v6388
    %v6501 = vmax.f32 %v6381, %v6389
    %v6502 = vmax.f32 %v6382, %v6390
    %v6503 = vmax.f32 %v6383, %v6391
    %v6504 = vmax.f32 %v6384, %v6392
    %v6505 = vmax.f32 %v6385, %v6393
    %v6506 = vmax.f32 %v6394, %v6402
    %v6507 = vmax.f32 %v6395, %v6403
    %v6508 = vmax.f32 %v6396, %v6404
    %v6509 = vmax.f32 %v6397, %v6405
    %v6510 = vmax.f32 %v6398, %v6406
    %v6511 = vmax.f32 %v6399, %v6407
    %v6512 = vmax.f32 %v6400, %v6408
    %v6513 = vmax.f32 %v6401, %v6409
    %v6514 = vmax.f32 %v6410, %v6418
    %v6515 = vmax.f32 %v6411, %v6419
    %v6516 = vmax.f32 %v6412, %v6420
    %v6517 = vmax.f32 %v6413, %v6421
    %v6518 = vmax.f32 %v6414, %v6422
    %v6519 = vmax.f32 %v6415, %v6423
    %v6520 = vmax.f32 %v6416, %v6424
    %v6521 = vmax.f32 %v6417, %v6425
    %v6522 = vmax.f32 %v6426, %v6434
    %v6523 = vmax.f32 %v6427, %v6435
    %v6524 = vmax.f32 %v6428, %v6436
    %v6525 = vmax.f32 %v6429, %v6437
    %v6526 = vmax.f32 %v6430, %v6438
    %v6527 = vmax.f32 %v6431, %v6439
    %v6528 = vmax.f32 %v6432, %v6440
    %v6529 = vmax.f32 %v6433, %v6441
    %v6530 = vmax.f32 %v6442, %v6450
    %v6531 = vmax.f32 %v6443, %v6451
    %v6532 = vmax.f32 %v6444, %v6452
    %v6533 = vmax.f32 %v6445, %v6453
    %v6534 = vmax.f32 %v6446, %v6454
    %v6535 = vmax.f32 %v6447, %v6455
    %v6536 = vmax.f32 %v6448, %v6456
    %v6537 = vmax.f32 %v6449, %v6457
    %v6538 = vmax.f32 %v6458, %v6466
    %v6539 = vmax.f32 %v6459, %v6467
    %v6540 = vmax.f32 %v6460, %v6468
    %v6541 = vmax.f32 %v6461, %v6469
    %v6542 = vmax.f32 %v6462, %v6470
    %v6543 = vmax.f32 %v6463, %v6471
    %v6544 = vmax.f32 %v6464, %v6472
    %v6545 = vmax.f32 %v6465, %v6473
    %v6546 = vmax.f32 %v6474, %v6482
    %v6547 = vmax.f32 %v6475, %v6483
    %v6548 = vmax.f32 %v6476, %v6484
    %v6549 = vmax.f32 %v6477, %v6485
    %v6550 = vmax.f32 %v6478, %v6486
    %v6551 = vmax.f32 %v6479, %v6487
    %v6552 = vmax.f32 %v6480, %v6488
    %v6553 = vmax.f32 %v6481, %v6489
    %vm6554 = vcmask 519168
    %6555 = vst.msk [vmem:[#allocation3] sm:$0xf] %vm6554, 0
    %vm6556 = vcmask 516096
    %6557 = vst.msk [vmem:[#allocation3 + $0x4] sm:$0x1] %vm6556, 0
    %s6558 = scalar_lea.vmem [#allocation3], 72
    %6559 = vst.msk [vmem:[%s6558] sm:$0xf] %vm6554, 0
    %6560 = vst.msk [vmem:[%s6558 + $0x4] sm:$0x1] %vm6556, 0
    %vm6561 = vcmask 516096
    %vm6562 = vmand %vm6561, %vm64
    %v6563 = vld [vmem:[#allocation3] sm:$0x1]
    %v6564 = vsel %vm6562, 0, %v6563
    %6565 = vst [vmem:[#allocation3] sm:$0x1] %v6564
    %v6566 = vld [vmem:[#allocation3 + $0x8] sm:$0x1]
    %v6567 = vsel %vm6562, 0, %v6566
    %6568 = vst [vmem:[#allocation3 + $0x8] sm:$0x1] %v6567
    %v6569 = vld [vmem:[#allocation3 + $0x10] sm:$0x1]
    %v6570 = vsel %vm6562, 0, %v6569
    %6571 = vst [vmem:[#allocation3 + $0x10] sm:$0x1] %v6570
    %v6572 = vld [vmem:[#allocation3 + $0x18] sm:$0x1]
    %v6573 = vsel %vm6562, 0, %v6572
    %6574 = vst [vmem:[#allocation3 + $0x18] sm:$0x1] %v6573
    %v6575 = vld [vmem:[#allocation3 + $0x20] sm:$0x1]
    %v6576 = vsel %vm6562, 0, %v6575
    %6577 = vst [vmem:[#allocation3 + $0x20] sm:$0x1] %v6576
    %v6578 = vld [vmem:[#allocation3 + $0x28] sm:$0x1]
    %v6579 = vsel %vm6562, 0, %v6578
    %6580 = vst [vmem:[#allocation3 + $0x28] sm:$0x1] %v6579
    %v6581 = vld [vmem:[#allocation3 + $0x30] sm:$0x1]
    %v6582 = vsel %vm6562, 0, %v6581
    %6583 = vst [vmem:[#allocation3 + $0x30] sm:$0x1] %v6582
    %v6584 = vld [vmem:[#allocation3 + $0x38] sm:$0x1]
    %v6585 = vsel %vm6562, 0, %v6584
    %6586 = vst [vmem:[#allocation3 + $0x38] sm:$0x1] %v6585
    %v6587 = vld [vmem:[#allocation3 + $0x40] sm:$0x1]
    %v6588 = vsel %vm6562, 0, %v6587
    %6589 = vst [vmem:[#allocation3 + $0x40] sm:$0x1] %v6588
    %v6590 = vld [vmem:[#allocation3 + $0x48] sm:$0x1]
    %v6591 = vsel %vm6562, 0, %v6590
    %6592 = vst [vmem:[#allocation3 + $0x48] sm:$0x1] %v6591
    %vm6593 = vmand %vm6561, %vm120
    %v6594 = vld [vmem:[#allocation3 + $0x4] sm:$0x1]
    %v6595 = vsel %vm6593, 0, %v6594
    %6596 = vst [vmem:[#allocation3 + $0x4] sm:$0x1] %v6595
    %v6597 = vld [vmem:[#allocation3 + $0xc] sm:$0x1]
    %v6598 = vsel %vm6593, 0, %v6597
    %6599 = vst [vmem:[#allocation3 + $0xc] sm:$0x1] %v6598
    %v6600 = vld [vmem:[#allocation3 + $0x14] sm:$0x1]
    %v6601 = vsel %vm6593, 0, %v6600
    %6602 = vst [vmem:[#allocation3 + $0x14] sm:$0x1] %v6601
    %v6603 = vld [vmem:[#allocation3 + $0x1c] sm:$0x1]
    %v6604 = vsel %vm6593, 0, %v6603
    %6605 = vst [vmem:[#allocation3 + $0x1c] sm:$0x1] %v6604
    %v6606 = vld [vmem:[#allocation3 + $0x24] sm:$0x1]
    %v6607 = vsel %vm6593, 0, %v6606
    %6608 = vst [vmem:[#allocation3 + $0x24] sm:$0x1] %v6607
    %v6609 = vld [vmem:[#allocation3 + $0x2c] sm:$0x1]
    %v6610 = vsel %vm6593, 0, %v6609
    %6611 = vst [vmem:[#allocation3 + $0x2c] sm:$0x1] %v6610
    %v6612 = vld [vmem:[#allocation3 + $0x34] sm:$0x1]
    %v6613 = vsel %vm6593, 0, %v6612
    %6614 = vst [vmem:[#allocation3 + $0x34] sm:$0x1] %v6613
    %v6615 = vld [vmem:[#allocation3 + $0x3c] sm:$0x1]
    %v6616 = vsel %vm6593, 0, %v6615
    %6617 = vst [vmem:[#allocation3 + $0x3c] sm:$0x1] %v6616
    %v6618 = vld [vmem:[#allocation3 + $0x44] sm:$0x1]
    %v6619 = vsel %vm6593, 0, %v6618
    %6620 = vst [vmem:[#allocation3 + $0x44] sm:$0x1] %v6619
    %v6621 = vld [vmem:[#allocation3 + $0x4c] sm:$0x1]
    %v6622 = vsel %vm6593, 0, %v6621
    %6623 = vst [vmem:[#allocation3 + $0x4c] sm:$0x1] %v6622
    %v6624 = vpack.c.bf16 %v6490, %v6490
    %v6625 = vpack.c.bf16 %v6491, %v6491
    %v6626 = vpack.c.bf16 %v6492, %v6492
    %v6627 = vpack.c.bf16 %v6493, %v6493
    %v6628 = vpack.c.bf16 %v6494, %v6494
    %v6629 = vpack.c.bf16 %v6495, %v6495
    %v6630 = vpack.c.bf16 %v6496, %v6496
    %v6631 = vpack.c.bf16 %v6497, %v6497
    %v6632 = vpack.c.bf16 %v6498, %v6498
    %v6633 = vpack.c.bf16 %v6499, %v6499
    %v6634 = vpack.c.bf16 %v6500, %v6500
    %v6635 = vpack.c.bf16 %v6501, %v6501
    %v6636 = vpack.c.bf16 %v6502, %v6502
    %v6637 = vpack.c.bf16 %v6503, %v6503
    %v6638 = vpack.c.bf16 %v6504, %v6504
    %v6639 = vpack.c.bf16 %v6505, %v6505
    %v6640 = vpack.c.bf16 %v6506, %v6506
    %v6641 = vpack.c.bf16 %v6507, %v6507
    %v6642 = vpack.c.bf16 %v6508, %v6508
    %v6643 = vpack.c.bf16 %v6509, %v6509
    %v6644 = vpack.c.bf16 %v6510, %v6510
    %v6645 = vpack.c.bf16 %v6511, %v6511
    %v6646 = vpack.c.bf16 %v6512, %v6512
    %v6647 = vpack.c.bf16 %v6513, %v6513
    %v6648 = vpack.c.bf16 %v6514, %v6514
    %v6649 = vpack.c.bf16 %v6515, %v6515
    %v6650 = vpack.c.bf16 %v6516, %v6516
    %v6651 = vpack.c.bf16 %v6517, %v6517
    %v6652 = vpack.c.bf16 %v6518, %v6518
    %v6653 = vpack.c.bf16 %v6519, %v6519
    %v6654 = vpack.c.bf16 %v6520, %v6520
    %v6655 = vpack.c.bf16 %v6521, %v6521
    %v6656 = vpack.c.bf16 %v6522, %v6522
    %v6657 = vpack.c.bf16 %v6523, %v6523
    %v6658 = vpack.c.bf16 %v6524, %v6524
    %v6659 = vpack.c.bf16 %v6525, %v6525
    %v6660 = vpack.c.bf16 %v6526, %v6526
    %v6661 = vpack.c.bf16 %v6527, %v6527
    %v6662 = vpack.c.bf16 %v6528, %v6528
    %v6663 = vpack.c.bf16 %v6529, %v6529
    %v6664 = vpack.c.bf16 %v6530, %v6530
    %v6665 = vpack.c.bf16 %v6531, %v6531
    %v6666 = vpack.c.bf16 %v6532, %v6532
    %v6667 = vpack.c.bf16 %v6533, %v6533
    %v6668 = vpack.c.bf16 %v6534, %v6534
    %v6669 = vpack.c.bf16 %v6535, %v6535
    %v6670 = vpack.c.bf16 %v6536, %v6536
    %v6671 = vpack.c.bf16 %v6537, %v6537
    %v6672 = vpack.c.bf16 %v6538, %v6538
    %v6673 = vpack.c.bf16 %v6539, %v6539
    %v6674 = vpack.c.bf16 %v6540, %v6540
    %v6675 = vpack.c.bf16 %v6541, %v6541
    %v6676 = vpack.c.bf16 %v6542, %v6542
    %v6677 = vpack.c.bf16 %v6543, %v6543
    %v6678 = vpack.c.bf16 %v6544, %v6544
    %v6679 = vpack.c.bf16 %v6545, %v6545
    %v6680 = vpack.c.bf16 %v6546, %v6546
    %v6681 = vpack.c.bf16 %v6547, %v6547
    %v6682 = vpack.c.bf16 %v6548, %v6548
    %v6683 = vpack.c.bf16 %v6549, %v6549
    %v6684 = vpack.c.bf16 %v6550, %v6550
    %v6685 = vpack.c.bf16 %v6551, %v6551
    %v6686 = vpack.c.bf16 %v6552, %v6552
    %v6687 = vpack.c.bf16 %v6553, %v6553
    %v6752 = vunpack.c.l.b16 %v6624
    %v6753 = vunpack.c.l.b16 %v6625
    %v6754 = vunpack.c.l.b16 %v6626
    %v6755 = vunpack.c.l.b16 %v6627
    %v6756 = vunpack.c.l.b16 %v6628
    %v6757 = vunpack.c.l.b16 %v6629
    %v6758 = vunpack.c.l.b16 %v6630
    %v6759 = vunpack.c.l.b16 %v6631
    %v6760 = vunpack.c.l.b16 %v6632
    %v6761 = vunpack.c.l.b16 %v6633
    %v6762 = vunpack.c.l.b16 %v6634
    %v6763 = vunpack.c.l.b16 %v6635
    %v6764 = vunpack.c.l.b16 %v6636
    %v6765 = vunpack.c.l.b16 %v6637
    %v6766 = vunpack.c.l.b16 %v6638
    %v6767 = vunpack.c.l.b16 %v6639
    %v6768 = vunpack.c.l.b16 %v6640
    %v6769 = vunpack.c.l.b16 %v6641
    %v6770 = vunpack.c.l.b16 %v6642
    %v6771 = vunpack.c.l.b16 %v6643
    %v6772 = vunpack.c.l.b16 %v6644
    %v6773 = vunpack.c.l.b16 %v6645
    %v6774 = vunpack.c.l.b16 %v6646
    %v6775 = vunpack.c.l.b16 %v6647
    %v6776 = vunpack.c.l.b16 %v6648
    %v6777 = vunpack.c.l.b16 %v6649
    %v6778 = vunpack.c.l.b16 %v6650
    %v6779 = vunpack.c.l.b16 %v6651
    %v6780 = vunpack.c.l.b16 %v6652
    %v6781 = vunpack.c.l.b16 %v6653
    %v6782 = vunpack.c.l.b16 %v6654
    %v6783 = vunpack.c.l.b16 %v6655
    %v6784 = vunpack.c.l.b16 %v6656
    %v6785 = vunpack.c.l.b16 %v6657
    %v6786 = vunpack.c.l.b16 %v6658
    %v6787 = vunpack.c.l.b16 %v6659
    %v6788 = vunpack.c.l.b16 %v6660
    %v6789 = vunpack.c.l.b16 %v6661
    %v6790 = vunpack.c.l.b16 %v6662
    %v6791 = vunpack.c.l.b16 %v6663
    %v6792 = vunpack.c.l.b16 %v6664
    %v6793 = vunpack.c.l.b16 %v6665
    %v6794 = vunpack.c.l.b16 %v6666
    %v6795 = vunpack.c.l.b16 %v6667
    %v6796 = vunpack.c.l.b16 %v6668
    %v6797 = vunpack.c.l.b16 %v6669
    %v6798 = vunpack.c.l.b16 %v6670
    %v6799 = vunpack.c.l.b16 %v6671
    %v6800 = vunpack.c.l.b16 %v6672
    %v6801 = vunpack.c.l.b16 %v6673
    %v6802 = vunpack.c.l.b16 %v6674
    %v6803 = vunpack.c.l.b16 %v6675
    %v6804 = vunpack.c.l.b16 %v6676
    %v6805 = vunpack.c.l.b16 %v6677
    %v6806 = vunpack.c.l.b16 %v6678
    %v6807 = vunpack.c.l.b16 %v6679
    %v6808 = vunpack.c.l.b16 %v6680
    %v6809 = vunpack.c.l.b16 %v6681
    %v6810 = vunpack.c.l.b16 %v6682
    %v6811 = vunpack.c.l.b16 %v6683
    %v6812 = vunpack.c.l.b16 %v6684
    %v6813 = vunpack.c.l.b16 %v6685
    %v6814 = vunpack.c.l.b16 %v6686
    %v6815 = vunpack.c.l.b16 %v6687
    %v6816 = vpack.c.b16 %v6752, %v6752
    %v6817 = vpack.c.b16 %v6753, %v6753
    %v6818 = vpack.c.b16 %v6754, %v6754
    %v6819 = vpack.c.b16 %v6755, %v6755
    %v6820 = vpack.c.b16 %v6756, %v6756
    %v6821 = vpack.c.b16 %v6757, %v6757
    %v6822 = vpack.c.b16 %v6758, %v6758
    %v6823 = vpack.c.b16 %v6759, %v6759
    %v6824 = vpack.c.b16 %v6760, %v6760
    %v6825 = vpack.c.b16 %v6761, %v6761
    %v6826 = vpack.c.b16 %v6762, %v6762
    %v6827 = vpack.c.b16 %v6763, %v6763
    %v6828 = vpack.c.b16 %v6764, %v6764
    %v6829 = vpack.c.b16 %v6765, %v6765
    %v6830 = vpack.c.b16 %v6766, %v6766
    %v6831 = vpack.c.b16 %v6767, %v6767
    %v6832 = vpack.c.b16 %v6768, %v6768
    %v6833 = vpack.c.b16 %v6769, %v6769
    %v6834 = vpack.c.b16 %v6770, %v6770
    %v6835 = vpack.c.b16 %v6771, %v6771
    %v6836 = vpack.c.b16 %v6772, %v6772
    %v6837 = vpack.c.b16 %v6773, %v6773
    %v6838 = vpack.c.b16 %v6774, %v6774
    %v6839 = vpack.c.b16 %v6775, %v6775
    %v6840 = vpack.c.b16 %v6776, %v6776
    %v6841 = vpack.c.b16 %v6777, %v6777
    %v6842 = vpack.c.b16 %v6778, %v6778
    %v6843 = vpack.c.b16 %v6779, %v6779
    %v6844 = vpack.c.b16 %v6780, %v6780
    %v6845 = vpack.c.b16 %v6781, %v6781
    %v6846 = vpack.c.b16 %v6782, %v6782
    %v6847 = vpack.c.b16 %v6783, %v6783
    %v6848 = vpack.c.b16 %v6784, %v6784
    %v6849 = vpack.c.b16 %v6785, %v6785
    %v6850 = vpack.c.b16 %v6786, %v6786
    %v6851 = vpack.c.b16 %v6787, %v6787
    %v6852 = vpack.c.b16 %v6788, %v6788
    %v6853 = vpack.c.b16 %v6789, %v6789
    %v6854 = vpack.c.b16 %v6790, %v6790
    %v6855 = vpack.c.b16 %v6791, %v6791
    %v6856 = vpack.c.b16 %v6792, %v6792
    %v6857 = vpack.c.b16 %v6793, %v6793
    %v6858 = vpack.c.b16 %v6794, %v6794
    %v6859 = vpack.c.b16 %v6795, %v6795
    %v6860 = vpack.c.b16 %v6796, %v6796
    %v6861 = vpack.c.b16 %v6797, %v6797
    %v6862 = vpack.c.b16 %v6798, %v6798
    %v6863 = vpack.c.b16 %v6799, %v6799
    %v6864 = vpack.c.b16 %v6800, %v6800
    %v6865 = vpack.c.b16 %v6801, %v6801
    %v6866 = vpack.c.b16 %v6802, %v6802
    %v6867 = vpack.c.b16 %v6803, %v6803
    %v6868 = vpack.c.b16 %v6804, %v6804
    %v6869 = vpack.c.b16 %v6805, %v6805
    %v6870 = vpack.c.b16 %v6806, %v6806
    %v6871 = vpack.c.b16 %v6807, %v6807
    %v6872 = vpack.c.b16 %v6808, %v6808
    %v6873 = vpack.c.b16 %v6809, %v6809
    %v6874 = vpack.c.b16 %v6810, %v6810
    %v6875 = vpack.c.b16 %v6811, %v6811
    %v6876 = vpack.c.b16 %v6812, %v6812
    %v6877 = vpack.c.b16 %v6813, %v6813
    %v6878 = vpack.c.b16 %v6814, %v6814
    %v6879 = vpack.c.b16 %v6815, %v6815
    %v6880 = vunpack.c.l.b16 %v6816
    %v6881 = vunpack.c.l.b16 %v6817
    %v6882 = vunpack.c.l.b16 %v6818
    %v6883 = vunpack.c.l.b16 %v6819
    %v6884 = vunpack.c.l.b16 %v6820
    %v6885 = vunpack.c.l.b16 %v6821
    %v6886 = vunpack.c.l.b16 %v6822
    %v6887 = vunpack.c.l.b16 %v6823
    %v6888 = vunpack.c.l.b16 %v6824
    %v6889 = vunpack.c.l.b16 %v6825
    %v6890 = vunpack.c.l.b16 %v6826
    %v6891 = vunpack.c.l.b16 %v6827
    %v6892 = vunpack.c.l.b16 %v6828
    %v6893 = vunpack.c.l.b16 %v6829
    %v6894 = vunpack.c.l.b16 %v6830
    %v6895 = vunpack.c.l.b16 %v6831
    %v6896 = vunpack.c.l.b16 %v6832
    %v6897 = vunpack.c.l.b16 %v6833
    %v6898 = vunpack.c.l.b16 %v6834
    %v6899 = vunpack.c.l.b16 %v6835
    %v6900 = vunpack.c.l.b16 %v6836
    %v6901 = vunpack.c.l.b16 %v6837
    %v6902 = vunpack.c.l.b16 %v6838
    %v6903 = vunpack.c.l.b16 %v6839
    %v6904 = vunpack.c.l.b16 %v6840
    %v6905 = vunpack.c.l.b16 %v6841
    %v6906 = vunpack.c.l.b16 %v6842
    %v6907 = vunpack.c.l.b16 %v6843
    %v6908 = vunpack.c.l.b16 %v6844
    %v6909 = vunpack.c.l.b16 %v6845
    %v6910 = vunpack.c.l.b16 %v6846
    %v6911 = vunpack.c.l.b16 %v6847
    %v6912 = vunpack.c.l.b16 %v6848
    %v6913 = vunpack.c.l.b16 %v6849
    %v6914 = vunpack.c.l.b16 %v6850
    %v6915 = vunpack.c.l.b16 %v6851
    %v6916 = vunpack.c.l.b16 %v6852
    %v6917 = vunpack.c.l.b16 %v6853
    %v6918 = vunpack.c.l.b16 %v6854
    %v6919 = vunpack.c.l.b16 %v6855
    %v6920 = vunpack.c.l.b16 %v6856
    %v6921 = vunpack.c.l.b16 %v6857
    %v6922 = vunpack.c.l.b16 %v6858
    %v6923 = vunpack.c.l.b16 %v6859
    %v6924 = vunpack.c.l.b16 %v6860
    %v6925 = vunpack.c.l.b16 %v6861
    %v6926 = vunpack.c.l.b16 %v6862
    %v6927 = vunpack.c.l.b16 %v6863
    %v6928 = vunpack.c.l.b16 %v6864
    %v6929 = vunpack.c.l.b16 %v6865
    %v6930 = vunpack.c.l.b16 %v6866
    %v6931 = vunpack.c.l.b16 %v6867
    %v6932 = vunpack.c.l.b16 %v6868
    %v6933 = vunpack.c.l.b16 %v6869
    %v6934 = vunpack.c.l.b16 %v6870
    %v6935 = vunpack.c.l.b16 %v6871
    %v6936 = vunpack.c.l.b16 %v6872
    %v6937 = vunpack.c.l.b16 %v6873
    %v6938 = vunpack.c.l.b16 %v6874
    %v6939 = vunpack.c.l.b16 %v6875
    %v6940 = vunpack.c.l.b16 %v6876
    %v6941 = vunpack.c.l.b16 %v6877
    %v6942 = vunpack.c.l.b16 %v6878
    %v6943 = vunpack.c.l.b16 %v6879
    %v6944 = vrot.slane %v6880, 7
    %v6945 = vrot.slane %v6881, 6
    %vm6946 = vcmask 1042434
    %v6947 = vsel %vm6946, %v6945, %v6944
    %v6948 = vrot.slane %v6882, 5
    %vm6949 = vcmask 1043459
    %v6950 = vsel %vm6949, %v6948, %v6947
    %v6951 = vrot.slane %v6883, 4
    %vm6952 = vcmask 1044484
    %v6953 = vsel %vm6952, %v6951, %v6950
    %v6954 = vrot.slane %v6884, 3
    %vm6955 = vcmask 1045509
    %v6956 = vsel %vm6955, %v6954, %v6953
    %v6957 = vrot.slane %v6885, 2
    %vm6958 = vcmask 1046534
    %v6959 = vsel %vm6958, %v6957, %v6956
    %v6960 = vrot.slane %v6886, 1
    %vm6961 = vcmask 1047559
    %v6962 = vsel %vm6961, %v6960, %v6959
    %v6963 = vrot.slane %v6888, 7
    %v6964 = vrot.slane %v6889, 6
    %v6965 = vsel %vm6946, %v6964, %v6963
    %v6966 = vrot.slane %v6890, 5
    %v6967 = vsel %vm6949, %v6966, %v6965
    %v6968 = vrot.slane %v6891, 4
    %v6969 = vsel %vm6952, %v6968, %v6967
    %v6970 = vrot.slane %v6892, 3
    %v6971 = vsel %vm6955, %v6970, %v6969
    %v6972 = vrot.slane %v6893, 2
    %v6973 = vsel %vm6958, %v6972, %v6971
    %v6974 = vrot.slane %v6894, 1
    %v6975 = vsel %vm6961, %v6974, %v6973
    %v6976 = vrot.slane %v6896, 7
    %v6977 = vrot.slane %v6897, 6
    %v6978 = vsel %vm6946, %v6977, %v6976
    %v6979 = vrot.slane %v6898, 5
    %v6980 = vsel %vm6949, %v6979, %v6978
    %v6981 = vrot.slane %v6899, 4
    %v6982 = vsel %vm6952, %v6981, %v6980
    %v6983 = vrot.slane %v6900, 3
    %v6984 = vsel %vm6955, %v6983, %v6982
    %v6985 = vrot.slane %v6901, 2
    %v6986 = vsel %vm6958, %v6985, %v6984
    %v6987 = vrot.slane %v6902, 1
    %v6988 = vsel %vm6961, %v6987, %v6986
    %v6989 = vrot.slane %v6904, 7
    %v6990 = vrot.slane %v6905, 6
    %v6991 = vsel %vm6946, %v6990, %v6989
    %v6992 = vrot.slane %v6906, 5
    %v6993 = vsel %vm6949, %v6992, %v6991
    %v6994 = vrot.slane %v6907, 4
    %v6995 = vsel %vm6952, %v6994, %v6993
    %v6996 = vrot.slane %v6908, 3
    %v6997 = vsel %vm6955, %v6996, %v6995
    %v6998 = vrot.slane %v6909, 2
    %v6999 = vsel %vm6958, %v6998, %v6997
    %v7000 = vrot.slane %v6910, 1
    %v7001 = vsel %vm6961, %v7000, %v6999
    %v7002 = vrot.slane %v6912, 7
    %v7003 = vrot.slane %v6913, 6
    %v7004 = vsel %vm6946, %v7003, %v7002
    %v7005 = vrot.slane %v6914, 5
    %v7006 = vsel %vm6949, %v7005, %v7004
    %v7007 = vrot.slane %v6915, 4
    %v7008 = vsel %vm6952, %v7007, %v7006
    %v7009 = vrot.slane %v6916, 3
    %v7010 = vsel %vm6955, %v7009, %v7008
    %v7011 = vrot.slane %v6917, 2
    %v7012 = vsel %vm6958, %v7011, %v7010
    %v7013 = vrot.slane %v6918, 1
    %v7014 = vsel %vm6961, %v7013, %v7012
    %v7015 = vrot.slane %v6920, 7
    %v7016 = vrot.slane %v6921, 6
    %v7017 = vsel %vm6946, %v7016, %v7015
    %v7018 = vrot.slane %v6922, 5
    %v7019 = vsel %vm6949, %v7018, %v7017
    %v7020 = vrot.slane %v6923, 4
    %v7021 = vsel %vm6952, %v7020, %v7019
    %v7022 = vrot.slane %v6924, 3
    %v7023 = vsel %vm6955, %v7022, %v7021
    %v7024 = vrot.slane %v6925, 2
    %v7025 = vsel %vm6958, %v7024, %v7023
    %v7026 = vrot.slane %v6926, 1
    %v7027 = vsel %vm6961, %v7026, %v7025
    %v7028 = vrot.slane %v6928, 7
    %v7029 = vrot.slane %v6929, 6
    %v7030 = vsel %vm6946, %v7029, %v7028
    %v7031 = vrot.slane %v6930, 5
    %v7032 = vsel %vm6949, %v7031, %v7030
    %v7033 = vrot.slane %v6931, 4
    %v7034 = vsel %vm6952, %v7033, %v7032
    %v7035 = vrot.slane %v6932, 3
    %v7036 = vsel %vm6955, %v7035, %v7034
    %v7037 = vrot.slane %v6933, 2
    %v7038 = vsel %vm6958, %v7037, %v7036
    %v7039 = vrot.slane %v6934, 1
    %v7040 = vsel %vm6961, %v7039, %v7038
    %v7041 = vrot.slane %v6936, 7
    %v7042 = vrot.slane %v6937, 6
    %v7043 = vsel %vm6946, %v7042, %v7041
    %v7044 = vrot.slane %v6938, 5
    %v7045 = vsel %vm6949, %v7044, %v7043
    %v7046 = vrot.slane %v6939, 4
    %v7047 = vsel %vm6952, %v7046, %v7045
    %v7048 = vrot.slane %v6940, 3
    %v7049 = vsel %vm6955, %v7048, %v7047
    %v7050 = vrot.slane %v6941, 2
    %v7051 = vsel %vm6958, %v7050, %v7049
    %v7052 = vrot.slane %v6942, 1
    %v7053 = vsel %vm6961, %v7052, %v7051
    %v7054 = vpack.c.b16 %v6962, %v6962
    %v7055 = vpack.c.b16 %v6887, %v6887
    %v7056 = vpack.c.b16 %v6975, %v6975
    %v7057 = vpack.c.b16 %v6895, %v6895
    %v7058 = vpack.c.b16 %v6988, %v6988
    %v7059 = vpack.c.b16 %v6903, %v6903
    %v7060 = vpack.c.b16 %v7001, %v7001
    %v7061 = vpack.c.b16 %v6911, %v6911
    %v7062 = vpack.c.b16 %v7014, %v7014
    %v7063 = vpack.c.b16 %v6919, %v6919
    %v7064 = vpack.c.b16 %v7027, %v7027
    %v7065 = vpack.c.b16 %v6927, %v6927
    %v7066 = vpack.c.b16 %v7040, %v7040
    %v7067 = vpack.c.b16 %v6935, %v6935
    %v7068 = vpack.c.b16 %v7053, %v7053
    %v7069 = vpack.c.b16 %v6943, %v6943
    %s7086 = scalar_lea.vmem [#allocation3], 8
    %vm7087 = vcmask 519168
    %vm7088 = vmand %vm7087, %vm120
    %v7089 = vld [vmem:[%s7086] sm:$0xf]
    %v7090 = vsel %vm7088, %v7054, %v7089
    %7091 = vst [vmem:[%s7086] sm:$0xf] %v7090
    %v7092 = vld [vmem:[%s7086 + $0x4] sm:$0x1]
    %v7093 = vsel %vm6562, %v7055, %v7092
    %7094 = vst [vmem:[%s7086 + $0x4] sm:$0x1] %v7093
    %v7095 = vld [vmem:[%s7086 + $0x8] sm:$0xf]
    %v7096 = vsel %vm7088, %v7056, %v7095
    %7097 = vst [vmem:[%s7086 + $0x8] sm:$0xf] %v7096
    %v7098 = vld [vmem:[%s7086 + $0xc] sm:$0x1]
    %v7099 = vsel %vm6562, %v7057, %v7098
    %7100 = vst [vmem:[%s7086 + $0xc] sm:$0x1] %v7099
    %v7101 = vld [vmem:[%s7086 + $0x10] sm:$0xf]
    %v7102 = vsel %vm7088, %v7058, %v7101
    %7103 = vst [vmem:[%s7086 + $0x10] sm:$0xf] %v7102
    %v7104 = vld [vmem:[%s7086 + $0x14] sm:$0x1]
    %v7105 = vsel %vm6562, %v7059, %v7104
    %7106 = vst [vmem:[%s7086 + $0x14] sm:$0x1] %v7105
    %v7107 = vld [vmem:[%s7086 + $0x18] sm:$0xf]
    %v7108 = vsel %vm7088, %v7060, %v7107
    %7109 = vst [vmem:[%s7086 + $0x18] sm:$0xf] %v7108
    %v7110 = vld [vmem:[%s7086 + $0x1c] sm:$0x1]
    %v7111 = vsel %vm6562, %v7061, %v7110
    %7112 = vst [vmem:[%s7086 + $0x1c] sm:$0x1] %v7111
    %v7113 = vld [vmem:[%s7086 + $0x20] sm:$0xf]
    %v7114 = vsel %vm7088, %v7062, %v7113
    %7115 = vst [vmem:[%s7086 + $0x20] sm:$0xf] %v7114
    %v7116 = vld [vmem:[%s7086 + $0x24] sm:$0x1]
    %v7117 = vsel %vm6562, %v7063, %v7116
    %7118 = vst [vmem:[%s7086 + $0x24] sm:$0x1] %v7117
    %v7119 = vld [vmem:[%s7086 + $0x28] sm:$0xf]
    %v7120 = vsel %vm7088, %v7064, %v7119
    %7121 = vst [vmem:[%s7086 + $0x28] sm:$0xf] %v7120
    %v7122 = vld [vmem:[%s7086 + $0x2c] sm:$0x1]
    %v7123 = vsel %vm6562, %v7065, %v7122
    %7124 = vst [vmem:[%s7086 + $0x2c] sm:$0x1] %v7123
    %v7125 = vld [vmem:[%s7086 + $0x30] sm:$0xf]
    %v7126 = vsel %vm7088, %v7066, %v7125
    %7127 = vst [vmem:[%s7086 + $0x30] sm:$0xf] %v7126
    %v7128 = vld [vmem:[%s7086 + $0x34] sm:$0x1]
    %v7129 = vsel %vm6562, %v7067, %v7128
    %7130 = vst [vmem:[%s7086 + $0x34] sm:$0x1] %v7129
    %v7131 = vld [vmem:[%s7086 + $0x38] sm:$0xf]
    %v7132 = vsel %vm7088, %v7068, %v7131
    %7133 = vst [vmem:[%s7086 + $0x38] sm:$0xf] %v7132
    %v7134 = vld [vmem:[%s7086 + $0x3c] sm:$0x1]
    %v7135 = vsel %vm6562, %v7069, %v7134
    %7136 = vst [vmem:[%s7086 + $0x3c] sm:$0x1] %v7135
    %v7137 = vld [vmem:[#allocation3] sm:$0xf]
    %v7138 = vld [vmem:[#allocation3 + $0x8] sm:$0xf]
    %v7139 = vld [vmem:[#allocation3 + $0x10] sm:$0xf]
    %v7140 = vld [vmem:[#allocation3 + $0x18] sm:$0xf]
    %v7141 = vld [vmem:[#allocation3 + $0x20] sm:$0xf]
    %v7142 = vld [vmem:[#allocation3 + $0x28] sm:$0xf]
    %v7143 = vld [vmem:[#allocation3 + $0x30] sm:$0xf]
    %v7144 = vld [vmem:[#allocation3 + $0x38] sm:$0xf]
    %v7145 = vld [vmem:[#allocation5] sm:$0xf]
    %v7146 = vld [vmem:[#allocation5 + $0x4] sm:$0xf]
    %v7147 = vld [vmem:[#allocation5 + $0x8] sm:$0xf]
    %v7148 = vld [vmem:[#allocation5 + $0xc] sm:$0xf]
    %v7149 = vld [vmem:[#allocation5 + $0x10] sm:$0xf]
    %v7150 = vld [vmem:[#allocation5 + $0x14] sm:$0xf]
    %v7151 = vld [vmem:[#allocation5 + $0x18] sm:$0xf]
    %v7152 = vld [vmem:[#allocation5 + $0x1c] sm:$0xf]
    %v7153 = vld [vmem:[#allocation3 + $0x4] sm:$0x1]
    %v7154 = vld [vmem:[#allocation3 + $0xc] sm:$0x1]
    %v7155 = vld [vmem:[#allocation3 + $0x14] sm:$0x1]
    %v7156 = vld [vmem:[#allocation3 + $0x1c] sm:$0x1]
    %v7157 = vld [vmem:[#allocation3 + $0x24] sm:$0x1]
    %v7158 = vld [vmem:[#allocation3 + $0x2c] sm:$0x1]
    %v7159 = vld [vmem:[#allocation3 + $0x34] sm:$0x1]
    %v7160 = vld [vmem:[#allocation3 + $0x3c] sm:$0x1]
    %v7162 = vshrl.u32 %v7137, 16
    %v7164 = vrot.slane %v7162, 4
    %v7165 = vshll.u32 %v7137, 16
    %v7167 = vrot.slane %v7165, 5
    %v7168 = vor.u32 %v7164, %v7167
    %v7169 = vrot.slane %v7168, 4
    %v7171 = vshll.u32 %v7153, 16
    %v7173 = vrot.slane %v7171, 5
    %v7174 = vsel %vm696, %v7169, %v7173
    %v7176 = vshrl.u32 %v7138, 16
    %v7178 = vrot.slane %v7176, 4
    %v7179 = vshll.u32 %v7138, 16
    %v7181 = vrot.slane %v7179, 5
    %v7182 = vor.u32 %v7178, %v7181
    %v7183 = vrot.slane %v7182, 4
    %v7185 = vshll.u32 %v7154, 16
    %v7187 = vrot.slane %v7185, 5
    %v7188 = vsel %vm696, %v7183, %v7187
    %v7190 = vshrl.u32 %v7139, 16
    %v7192 = vrot.slane %v7190, 4
    %v7193 = vshll.u32 %v7139, 16
    %v7195 = vrot.slane %v7193, 5
    %v7196 = vor.u32 %v7192, %v7195
    %v7197 = vrot.slane %v7196, 4
    %v7199 = vshll.u32 %v7155, 16
    %v7201 = vrot.slane %v7199, 5
    %v7202 = vsel %vm696, %v7197, %v7201
    %v7204 = vshrl.u32 %v7140, 16
    %v7206 = vrot.slane %v7204, 4
    %v7207 = vshll.u32 %v7140, 16
    %v7209 = vrot.slane %v7207, 5
    %v7210 = vor.u32 %v7206, %v7209
    %v7211 = vrot.slane %v7210, 4
    %v7213 = vshll.u32 %v7156, 16
    %v7215 = vrot.slane %v7213, 5
    %v7216 = vsel %vm696, %v7211, %v7215
    %v7218 = vshrl.u32 %v7141, 16
    %v7220 = vrot.slane %v7218, 4
    %v7221 = vshll.u32 %v7141, 16
    %v7223 = vrot.slane %v7221, 5
    %v7224 = vor.u32 %v7220, %v7223
    %v7225 = vrot.slane %v7224, 4
    %v7227 = vshll.u32 %v7157, 16
    %v7229 = vrot.slane %v7227, 5
    %v7230 = vsel %vm696, %v7225, %v7229
    %v7232 = vshrl.u32 %v7142, 16
    %v7234 = vrot.slane %v7232, 4
    %v7235 = vshll.u32 %v7142, 16
    %v7237 = vrot.slane %v7235, 5
    %v7238 = vor.u32 %v7234, %v7237
    %v7239 = vrot.slane %v7238, 4
    %v7241 = vshll.u32 %v7158, 16
    %v7243 = vrot.slane %v7241, 5
    %v7244 = vsel %vm696, %v7239, %v7243
    %v7246 = vshrl.u32 %v7143, 16
    %v7248 = vrot.slane %v7246, 4
    %v7249 = vshll.u32 %v7143, 16
    %v7251 = vrot.slane %v7249, 5
    %v7252 = vor.u32 %v7248, %v7251
    %v7253 = vrot.slane %v7252, 4
    %v7255 = vshll.u32 %v7159, 16
    %v7257 = vrot.slane %v7255, 5
    %v7258 = vsel %vm696, %v7253, %v7257
    %v7260 = vshrl.u32 %v7144, 16
    %v7262 = vrot.slane %v7260, 4
    %v7263 = vshll.u32 %v7144, 16
    %v7265 = vrot.slane %v7263, 5
    %v7266 = vor.u32 %v7262, %v7265
    %v7267 = vrot.slane %v7266, 4
    %v7269 = vshll.u32 %v7160, 16
    %v7271 = vrot.slane %v7269, 5
    %v7272 = vsel %vm696, %v7267, %v7271
    %s7273 = scalar_lea.vmem [#allocation5], 32
    %v7274 = vld [vmem:[%s7273] sm:$0xf]
    %v7275 = vld [vmem:[%s7273 + $0x4] sm:$0xf]
    %v7276 = vld [vmem:[%s7273 + $0x8] sm:$0xf]
    %v7277 = vld [vmem:[%s7273 + $0xc] sm:$0xf]
    %v7278 = vld [vmem:[%s7273 + $0x10] sm:$0xf]
    %v7279 = vld [vmem:[%s7273 + $0x14] sm:$0xf]
    %v7280 = vld [vmem:[%s7273 + $0x18] sm:$0xf]
    %v7281 = vld [vmem:[%s7273 + $0x1c] sm:$0xf]
    %v7282 = vunpack.c.l.b16 %v7174
    %v7283 = vunpack.c.l.b16 %v7188
    %v7284 = vunpack.c.l.b16 %v7202
    %v7285 = vunpack.c.l.b16 %v7216
    %v7286 = vunpack.c.l.b16 %v7230
    %v7287 = vunpack.c.l.b16 %v7244
    %v7288 = vunpack.c.l.b16 %v7258
    %v7289 = vunpack.c.l.b16 %v7272
    %v7290 = vpack.c.b16 %v7283, %v7282
    %v7291 = vpack.c.b16 %v7285, %v7284
    %v7292 = vpack.c.b16 %v7287, %v7286
    %v7293 = vpack.c.b16 %v7289, %v7288
    %v7302 = vunpack.c.l.b16 %v7274
    %v7303 = vunpack.c.l.b16 %v7275
    %v7304 = vunpack.c.l.b16 %v7276
    %v7305 = vunpack.c.l.b16 %v7277
    %v7306 = vunpack.c.l.b16 %v7278
    %v7307 = vunpack.c.l.b16 %v7279
    %v7308 = vunpack.c.l.b16 %v7280
    %v7309 = vunpack.c.l.b16 %v7281
    %v7310 = vpack.c.b16 %v7303, %v7302
    %v7311 = vpack.c.b16 %v7305, %v7304
    %v7312 = vpack.c.b16 %v7307, %v7306
    %v7313 = vpack.c.b16 %v7309, %v7308
    %vm7318 = vcmask 523264
    %v7320 = vsel %vm7318, %v7290, 0
    %v7323 = vsel %vm7318, %v7291, 0
    %v7326 = vsel %vm7318, %v7292, 0
    %v7329 = vsel %vm7318, %v7293, 0
    %7331 = vmatprep.subr.bf16.mxu0 0
    %7332 = vmatpush1.bf16.msra.mxu0 0
    %7333 = vmatprep.subr.bf16.mxu0 0
    %7334 = vmatpush1.bf16.msra.mxu0 0
    %7335 = vmatprep.subr.bf16.mxu0 0
    %7336 = vmatpush1.bf16.msra.mxu0 0
    %7337 = vmatprep.subr.bf16.mxu0 0
    %7338 = vmatpush1.bf16.msra.mxu0 0
    %7339 = vmatprep.subr.bf16.mxu0 0
    %7340 = vmatpush1.bf16.msra.mxu0 %v7313
    %7341 = vmatprep.subr.bf16.mxu0 0
    %7342 = vmatpush1.bf16.msra.mxu0 %v7312
    %7343 = vmatprep.subr.bf16.mxu0 0
    %7344 = vmatpush1.bf16.msra.mxu0 %v7311
    %7345 = vmatprep.subr.bf16.mxu0 0
    %7346 = vmatpush1.bf16.msra.mxu0 %v7310
    %7347 = vmatprep.subr.bf16.mxu0 0
    %7348 = vmatpush2.bf16.msra.mxu0 0
    %7349 = vmatprep.subr.bf16.mxu0 0
    %7350 = vmatpush2.bf16.msra.mxu0 0
    %7351 = vmatprep.subr.bf16.mxu0 0
    %7352 = vmatpush2.bf16.msra.mxu0 0
    %7353 = vmatprep.subr.bf16.mxu0 0
    %7354 = vmatpush2.bf16.msra.mxu0 0
    %7355 = vmatprep.subr.bf16.mxu0 0
    %7356 = vmatpush2.bf16.msra.mxu0 0
    %7357 = vmatprep.subr.bf16.mxu0 0
    %7358 = vmatpush2.bf16.msra.mxu0 0
    %7359 = vmatprep.subr.bf16.mxu0 0
    %7360 = vmatpush2.bf16.msra.mxu0 0
    %7361 = vmatprep.subr.bf16.mxu0 0
    %7362 = vmatpush2.bf16.msra.mxu0 0
    %7363 = vmatprep.mubr.bf16.mxu0 0
    %7364 = vmatmul.mubr.bf16.gmra.mxu0 %v7320
    %v7365 = vpop.f32.mrf.mxu0
    %v7366 = vadd.f32 0.0, %v7365
    %v7367 = vpop.f32.mrf.mxu0
    %v7368 = vpop.f32.mrf.mxu0
    %v7369 = vadd.f32 0.0, %v7368
    %v7370 = vpop.f32.mrf.mxu0
    %7371 = vmatprep.mubr.bf16.mxu0 0
    %7372 = vmatmul.mubr.bf16.gmra.mxu0 %v7323
    %v7373 = vpop.f32.mrf.mxu0
    %v7374 = vadd.f32 0.0, %v7373
    %v7375 = vpop.f32.mrf.mxu0
    %v7376 = vpop.f32.mrf.mxu0
    %v7377 = vadd.f32 0.0, %v7376
    %v7378 = vpop.f32.mrf.mxu0
    %7379 = vmatprep.mubr.bf16.mxu0 0
    %7380 = vmatmul.mubr.bf16.gmra.mxu0 %v7326
    %v7381 = vpop.f32.mrf.mxu0
    %v7382 = vadd.f32 0.0, %v7381
    %v7383 = vpop.f32.mrf.mxu0
    %v7384 = vpop.f32.mrf.mxu0
    %v7385 = vadd.f32 0.0, %v7384
    %v7386 = vpop.f32.mrf.mxu0
    %7387 = vmatprep.mubr.bf16.mxu0 0
    %7388 = vmatmul.mubr.bf16.gmra.mxu0 %v7329
    %v7389 = vpop.f32.mrf.mxu0
    %v7390 = vadd.f32 0.0, %v7389
    %v7391 = vpop.f32.mrf.mxu0
    %v7392 = vpop.f32.mrf.mxu0
    %v7393 = vadd.f32 0.0, %v7392
    %v7394 = vpop.f32.mrf.mxu0
    %7395 = vdwg.mxu0
    %v7404 = vunpack.c.l.b16 %v7137
    %v7405 = vunpack.c.l.b16 %v7138
    %v7406 = vunpack.c.l.b16 %v7139
    %v7407 = vunpack.c.l.b16 %v7140
    %v7408 = vunpack.c.l.b16 %v7141
    %v7409 = vunpack.c.l.b16 %v7142
    %v7410 = vunpack.c.l.b16 %v7143
    %v7411 = vunpack.c.l.b16 %v7144
    %v7412 = vpack.c.b16 %v7405, %v7404
    %v7413 = vpack.c.b16 %v7407, %v7406
    %v7414 = vpack.c.b16 %v7409, %v7408
    %v7415 = vpack.c.b16 %v7411, %v7410
    %v7424 = vunpack.c.l.b16 %v7145
    %v7425 = vunpack.c.l.b16 %v7146
    %v7426 = vunpack.c.l.b16 %v7147
    %v7427 = vunpack.c.l.b16 %v7148
    %v7428 = vunpack.c.l.b16 %v7149
    %v7429 = vunpack.c.l.b16 %v7150
    %v7430 = vunpack.c.l.b16 %v7151
    %v7431 = vunpack.c.l.b16 %v7152
    %v7432 = vpack.c.b16 %v7425, %v7424
    %v7433 = vpack.c.b16 %v7427, %v7426
    %v7434 = vpack.c.b16 %v7429, %v7428
    %v7435 = vpack.c.b16 %v7431, %v7430
    %v7441 = vsel %vm7318, %v7412, 0
    %v7444 = vsel %vm7318, %v7413, 0
    %v7447 = vsel %vm7318, %v7414, 0
    %v7450 = vsel %vm7318, %v7415, 0
    %7452 = vmatprep.subr.bf16.mxu0 0
    %7453 = vmatpush1.bf16.msra.mxu0 0
    %7454 = vmatprep.subr.bf16.mxu0 0
    %7455 = vmatpush1.bf16.msra.mxu0 0
    %7456 = vmatprep.subr.bf16.mxu0 0
    %7457 = vmatpush1.bf16.msra.mxu0 0
    %7458 = vmatprep.subr.bf16.mxu0 0
    %7459 = vmatpush1.bf16.msra.mxu0 0
    %7460 = vmatprep.subr.bf16.mxu0 0
    %7461 = vmatpush1.bf16.msra.mxu0 %v7435
    %7462 = vmatprep.subr.bf16.mxu0 0
    %7463 = vmatpush1.bf16.msra.mxu0 %v7434
    %7464 = vmatprep.subr.bf16.mxu0 0
    %7465 = vmatpush1.bf16.msra.mxu0 %v7433
    %7466 = vmatprep.subr.bf16.mxu0 0
    %7467 = vmatpush1.bf16.msra.mxu0 %v7432
    %7468 = vmatprep.subr.bf16.mxu0 0
    %7469 = vmatpush2.bf16.msra.mxu0 0
    %7470 = vmatprep.subr.bf16.mxu0 0
    %7471 = vmatpush2.bf16.msra.mxu0 0
    %7472 = vmatprep.subr.bf16.mxu0 0
    %7473 = vmatpush2.bf16.msra.mxu0 0
    %7474 = vmatprep.subr.bf16.mxu0 0
    %7475 = vmatpush2.bf16.msra.mxu0 0
    %7476 = vmatprep.subr.bf16.mxu0 0
    %7477 = vmatpush2.bf16.msra.mxu0 0
    %7478 = vmatprep.subr.bf16.mxu0 0
    %7479 = vmatpush2.bf16.msra.mxu0 0
    %7480 = vmatprep.subr.bf16.mxu0 0
    %7481 = vmatpush2.bf16.msra.mxu0 0
    %7482 = vmatprep.subr.bf16.mxu0 0
    %7483 = vmatpush2.bf16.msra.mxu0 0
    %7484 = vmatprep.mubr.bf16.mxu0 0
    %7485 = vmatmul.mubr.bf16.gmra.mxu0 %v7441
    %v7486 = vpop.f32.mrf.mxu0
    %v7487 = vadd.f32 %v7366, %v7486
    %v7488 = vpop.f32.mrf.mxu0
    %v7489 = vpop.f32.mrf.mxu0
    %v7490 = vadd.f32 %v7369, %v7489
    %v7491 = vpop.f32.mrf.mxu0
    %7492 = vmatprep.mubr.bf16.mxu0 0
    %7493 = vmatmul.mubr.bf16.gmra.mxu0 %v7444
    %v7494 = vpop.f32.mrf.mxu0
    %v7495 = vadd.f32 %v7374, %v7494
    %v7496 = vpop.f32.mrf.mxu0
    %v7497 = vpop.f32.mrf.mxu0
    %v7498 = vadd.f32 %v7377, %v7497
    %v7499 = vpop.f32.mrf.mxu0
    %7500 = vmatprep.mubr.bf16.mxu0 0
    %7501 = vmatmul.mubr.bf16.gmra.mxu0 %v7447
    %v7502 = vpop.f32.mrf.mxu0
    %v7503 = vadd.f32 %v7382, %v7502
    %v7504 = vpop.f32.mrf.mxu0
    %v7505 = vpop.f32.mrf.mxu0
    %v7506 = vadd.f32 %v7385, %v7505
    %v7507 = vpop.f32.mrf.mxu0
    %7508 = vmatprep.mubr.bf16.mxu0 0
    %7509 = vmatmul.mubr.bf16.gmra.mxu0 %v7450
    %v7510 = vpop.f32.mrf.mxu0
    %v7511 = vadd.f32 %v7390, %v7510
    %v7512 = vpop.f32.mrf.mxu0
    %v7513 = vpop.f32.mrf.mxu0
    %v7514 = vadd.f32 %v7393, %v7513
    %v7515 = vpop.f32.mrf.mxu0
    %7516 = vdwg.mxu0
    %v7517 = vld [vmem:[#allocation3] sm:$0xe]
    %v7518 = vld [vmem:[#allocation3 + $0x8] sm:$0xe]
    %v7519 = vld [vmem:[#allocation3 + $0x10] sm:$0xe]
    %v7520 = vld [vmem:[#allocation3 + $0x18] sm:$0xe]
    %v7521 = vld [vmem:[#allocation3 + $0x20] sm:$0xe]
    %v7522 = vld [vmem:[#allocation3 + $0x28] sm:$0xe]
    %v7523 = vld [vmem:[#allocation3 + $0x30] sm:$0xe]
    %v7524 = vld [vmem:[#allocation3 + $0x38] sm:$0xe]
    %v7541 = vrot.slane %v7517, 5
    %v7542 = vrot.slane %v7541, 4
    %v7543 = vrot.slane %v7153, 5
    %v7544 = vsel %vm1687, %v7542, %v7543
    %v7545 = vrot.slane %v7518, 5
    %v7546 = vrot.slane %v7545, 4
    %v7547 = vrot.slane %v7154, 5
    %v7548 = vsel %vm1687, %v7546, %v7547
    %v7549 = vrot.slane %v7519, 5
    %v7550 = vrot.slane %v7549, 4
    %v7551 = vrot.slane %v7155, 5
    %v7552 = vsel %vm1687, %v7550, %v7551
    %v7553 = vrot.slane %v7520, 5
    %v7554 = vrot.slane %v7553, 4
    %v7555 = vrot.slane %v7156, 5
    %v7556 = vsel %vm1687, %v7554, %v7555
    %v7557 = vrot.slane %v7521, 5
    %v7558 = vrot.slane %v7557, 4
    %v7559 = vrot.slane %v7157, 5
    %v7560 = vsel %vm1687, %v7558, %v7559
    %v7561 = vrot.slane %v7522, 5
    %v7562 = vrot.slane %v7561, 4
    %v7563 = vrot.slane %v7158, 5
    %v7564 = vsel %vm1687, %v7562, %v7563
    %v7565 = vrot.slane %v7523, 5
    %v7566 = vrot.slane %v7565, 4
    %v7567 = vrot.slane %v7159, 5
    %v7568 = vsel %vm1687, %v7566, %v7567
    %v7569 = vrot.slane %v7524, 5
    %v7570 = vrot.slane %v7569, 4
    %v7571 = vrot.slane %v7160, 5
    %v7572 = vsel %vm1687, %v7570, %v7571
    %s7573 = scalar_lea.vmem [#allocation5], 64
    %v7574 = vld [vmem:[%s7573] sm:$0xf]
    %v7575 = vld [vmem:[%s7573 + $0x4] sm:$0xf]
    %v7576 = vld [vmem:[%s7573 + $0x8] sm:$0xf]
    %v7577 = vld [vmem:[%s7573 + $0xc] sm:$0xf]
    %v7578 = vld [vmem:[%s7573 + $0x10] sm:$0xf]
    %v7579 = vld [vmem:[%s7573 + $0x14] sm:$0xf]
    %v7580 = vld [vmem:[%s7573 + $0x18] sm:$0xf]
    %v7581 = vld [vmem:[%s7573 + $0x1c] sm:$0xf]
    %v7582 = vunpack.c.l.b16 %v7544
    %v7583 = vunpack.c.l.b16 %v7548
    %v7584 = vunpack.c.l.b16 %v7552
    %v7585 = vunpack.c.l.b16 %v7556
    %v7586 = vunpack.c.l.b16 %v7560
    %v7587 = vunpack.c.l.b16 %v7564
    %v7588 = vunpack.c.l.b16 %v7568
    %v7589 = vunpack.c.l.b16 %v7572
    %v7590 = vpack.c.b16 %v7583, %v7582
    %v7591 = vpack.c.b16 %v7585, %v7584
    %v7592 = vpack.c.b16 %v7587, %v7586
    %v7593 = vpack.c.b16 %v7589, %v7588
    %v7602 = vunpack.c.l.b16 %v7574
    %v7603 = vunpack.c.l.b16 %v7575
    %v7604 = vunpack.c.l.b16 %v7576
    %v7605 = vunpack.c.l.b16 %v7577
    %v7606 = vunpack.c.l.b16 %v7578
    %v7607 = vunpack.c.l.b16 %v7579
    %v7608 = vunpack.c.l.b16 %v7580
    %v7609 = vunpack.c.l.b16 %v7581
    %v7610 = vpack.c.b16 %v7603, %v7602
    %v7611 = vpack.c.b16 %v7605, %v7604
    %v7612 = vpack.c.b16 %v7607, %v7606
    %v7613 = vpack.c.b16 %v7609, %v7608
    %v7619 = vsel %vm7318, %v7590, 0
    %v7622 = vsel %vm7318, %v7591, 0
    %v7625 = vsel %vm7318, %v7592, 0
    %v7628 = vsel %vm7318, %v7593, 0
    %7630 = vmatprep.subr.bf16.mxu0 0
    %7631 = vmatpush1.bf16.msra.mxu0 0
    %7632 = vmatprep.subr.bf16.mxu0 0
    %7633 = vmatpush1.bf16.msra.mxu0 0
    %7634 = vmatprep.subr.bf16.mxu0 0
    %7635 = vmatpush1.bf16.msra.mxu0 0
    %7636 = vmatprep.subr.bf16.mxu0 0
    %7637 = vmatpush1.bf16.msra.mxu0 0
    %7638 = vmatprep.subr.bf16.mxu0 0
    %7639 = vmatpush1.bf16.msra.mxu0 %v7613
    %7640 = vmatprep.subr.bf16.mxu0 0
    %7641 = vmatpush1.bf16.msra.mxu0 %v7612
    %7642 = vmatprep.subr.bf16.mxu0 0
    %7643 = vmatpush1.bf16.msra.mxu0 %v7611
    %7644 = vmatprep.subr.bf16.mxu0 0
    %7645 = vmatpush1.bf16.msra.mxu0 %v7610
    %7646 = vmatprep.subr.bf16.mxu0 0
    %7647 = vmatpush2.bf16.msra.mxu0 0
    %7648 = vmatprep.subr.bf16.mxu0 0
    %7649 = vmatpush2.bf16.msra.mxu0 0
    %7650 = vmatprep.subr.bf16.mxu0 0
    %7651 = vmatpush2.bf16.msra.mxu0 0
    %7652 = vmatprep.subr.bf16.mxu0 0
    %7653 = vmatpush2.bf16.msra.mxu0 0
    %7654 = vmatprep.subr.bf16.mxu0 0
    %7655 = vmatpush2.bf16.msra.mxu0 0
    %7656 = vmatprep.subr.bf16.mxu0 0
    %7657 = vmatpush2.bf16.msra.mxu0 0
    %7658 = vmatprep.subr.bf16.mxu0 0
    %7659 = vmatpush2.bf16.msra.mxu0 0
    %7660 = vmatprep.subr.bf16.mxu0 0
    %7661 = vmatpush2.bf16.msra.mxu0 0
    %7662 = vmatprep.mubr.bf16.mxu0 0
    %7663 = vmatmul.mubr.bf16.gmra.mxu0 %v7619
    %v7664 = vpop.f32.mrf.mxu0
    %v7665 = vadd.f32 0.0, %v7664
    %v7666 = vpop.f32.mrf.mxu0
    %v7667 = vpop.f32.mrf.mxu0
    %v7668 = vadd.f32 0.0, %v7667
    %v7669 = vpop.f32.mrf.mxu0
    %7670 = vmatprep.mubr.bf16.mxu0 0
    %7671 = vmatmul.mubr.bf16.gmra.mxu0 %v7622
    %v7672 = vpop.f32.mrf.mxu0
    %v7673 = vadd.f32 0.0, %v7672
    %v7674 = vpop.f32.mrf.mxu0
    %v7675 = vpop.f32.mrf.mxu0
    %v7676 = vadd.f32 0.0, %v7675
    %v7677 = vpop.f32.mrf.mxu0
    %7678 = vmatprep.mubr.bf16.mxu0 0
    %7679 = vmatmul.mubr.bf16.gmra.mxu0 %v7625
    %v7680 = vpop.f32.mrf.mxu0
    %v7681 = vadd.f32 0.0, %v7680
    %v7682 = vpop.f32.mrf.mxu0
    %v7683 = vpop.f32.mrf.mxu0
    %v7684 = vadd.f32 0.0, %v7683
    %v7685 = vpop.f32.mrf.mxu0
    %7686 = vmatprep.mubr.bf16.mxu0 0
    %7687 = vmatmul.mubr.bf16.gmra.mxu0 %v7628
    %v7688 = vpop.f32.mrf.mxu0
    %v7689 = vadd.f32 0.0, %v7688
    %v7690 = vpop.f32.mrf.mxu0
    %v7691 = vpop.f32.mrf.mxu0
    %v7692 = vadd.f32 0.0, %v7691
    %v7693 = vpop.f32.mrf.mxu0
    %7694 = vdwg.mxu0
    %v7695 = vadd.f32 %v7487, %v7665
    %v7696 = vadd.f32 %v7490, %v7668
    %v7697 = vadd.f32 %v7495, %v7673
    %v7698 = vadd.f32 %v7498, %v7676
    %v7699 = vadd.f32 %v7503, %v7681
    %v7700 = vadd.f32 %v7506, %v7684
    %v7701 = vadd.f32 %v7511, %v7689
    %v7702 = vadd.f32 %v7514, %v7692
    %v7703 = vld [vmem:[%s7086] sm:$0xf]
    %v7704 = vld [vmem:[%s7086 + $0x8] sm:$0xf]
    %v7705 = vld [vmem:[%s7086 + $0x10] sm:$0xf]
    %v7706 = vld [vmem:[%s7086 + $0x18] sm:$0xf]
    %v7707 = vld [vmem:[%s7086 + $0x20] sm:$0xf]
    %v7708 = vld [vmem:[%s7086 + $0x28] sm:$0xf]
    %v7709 = vld [vmem:[%s7086 + $0x30] sm:$0xf]
    %v7710 = vld [vmem:[%s7086 + $0x38] sm:$0xf]
    %s7711 = scalar_lea.vmem [#allocation5], 96
    %v7712 = vld [vmem:[%s7711] sm:$0xf]
    %v7713 = vld [vmem:[%s7711 + $0x4] sm:$0xf]
    %v7714 = vld [vmem:[%s7711 + $0x8] sm:$0xf]
    %v7715 = vld [vmem:[%s7711 + $0xc] sm:$0xf]
    %v7716 = vld [vmem:[%s7711 + $0x10] sm:$0xf]
    %v7717 = vld [vmem:[%s7711 + $0x14] sm:$0xf]
    %v7718 = vld [vmem:[%s7711 + $0x18] sm:$0xf]
    %v7719 = vld [vmem:[%s7711 + $0x1c] sm:$0xf]
    %v7728 = vunpack.c.l.b16 %v7703
    %v7729 = vunpack.c.l.b16 %v7704
    %v7730 = vunpack.c.l.b16 %v7705
    %v7731 = vunpack.c.l.b16 %v7706
    %v7732 = vunpack.c.l.b16 %v7707
    %v7733 = vunpack.c.l.b16 %v7708
    %v7734 = vunpack.c.l.b16 %v7709
    %v7735 = vunpack.c.l.b16 %v7710
    %v7736 = vpack.c.b16 %v7729, %v7728
    %v7737 = vpack.c.b16 %v7731, %v7730
    %v7738 = vpack.c.b16 %v7733, %v7732
    %v7739 = vpack.c.b16 %v7735, %v7734
    %v7748 = vunpack.c.l.b16 %v7712
    %v7749 = vunpack.c.l.b16 %v7713
    %v7750 = vunpack.c.l.b16 %v7714
    %v7751 = vunpack.c.l.b16 %v7715
    %v7752 = vunpack.c.l.b16 %v7716
    %v7753 = vunpack.c.l.b16 %v7717
    %v7754 = vunpack.c.l.b16 %v7718
    %v7755 = vunpack.c.l.b16 %v7719
    %v7756 = vpack.c.b16 %v7749, %v7748
    %v7757 = vpack.c.b16 %v7751, %v7750
    %v7758 = vpack.c.b16 %v7753, %v7752
    %v7759 = vpack.c.b16 %v7755, %v7754
    %v7765 = vsel %vm7318, %v7736, 0
    %v7768 = vsel %vm7318, %v7737, 0
    %v7771 = vsel %vm7318, %v7738, 0
    %v7774 = vsel %vm7318, %v7739, 0
    %7776 = vmatprep.subr.bf16.mxu0 0
    %7777 = vmatpush1.bf16.msra.mxu0 0
    %7778 = vmatprep.subr.bf16.mxu0 0
    %7779 = vmatpush1.bf16.msra.mxu0 0
    %7780 = vmatprep.subr.bf16.mxu0 0
    %7781 = vmatpush1.bf16.msra.mxu0 0
    %7782 = vmatprep.subr.bf16.mxu0 0
    %7783 = vmatpush1.bf16.msra.mxu0 0
    %7784 = vmatprep.subr.bf16.mxu0 0
    %7785 = vmatpush1.bf16.msra.mxu0 %v7759
    %7786 = vmatprep.subr.bf16.mxu0 0
    %7787 = vmatpush1.bf16.msra.mxu0 %v7758
    %7788 = vmatprep.subr.bf16.mxu0 0
    %7789 = vmatpush1.bf16.msra.mxu0 %v7757
    %7790 = vmatprep.subr.bf16.mxu0 0
    %7791 = vmatpush1.bf16.msra.mxu0 %v7756
    %7792 = vmatprep.subr.bf16.mxu0 0
    %7793 = vmatpush2.bf16.msra.mxu0 0
    %7794 = vmatprep.subr.bf16.mxu0 0
    %7795 = vmatpush2.bf16.msra.mxu0 0
    %7796 = vmatprep.subr.bf16.mxu0 0
    %7797 = vmatpush2.bf16.msra.mxu0 0
    %7798 = vmatprep.subr.bf16.mxu0 0
    %7799 = vmatpush2.bf16.msra.mxu0 0
    %7800 = vmatprep.subr.bf16.mxu0 0
    %7801 = vmatpush2.bf16.msra.mxu0 0
    %7802 = vmatprep.subr.bf16.mxu0 0
    %7803 = vmatpush2.bf16.msra.mxu0 0
    %7804 = vmatprep.subr.bf16.mxu0 0
    %7805 = vmatpush2.bf16.msra.mxu0 0
    %7806 = vmatprep.subr.bf16.mxu0 0
    %7807 = vmatpush2.bf16.msra.mxu0 0
    %7808 = vmatprep.mubr.bf16.mxu0 0
    %7809 = vmatmul.mubr.bf16.gmra.mxu0 %v7765
    %v7810 = vpop.f32.mrf.mxu0
    %v7811 = vadd.f32 0.0, %v7810
    %v7812 = vpop.f32.mrf.mxu0
    %v7813 = vpop.f32.mrf.mxu0
    %v7814 = vadd.f32 0.0, %v7813
    %v7815 = vpop.f32.mrf.mxu0
    %7816 = vmatprep.mubr.bf16.mxu0 0
    %7817 = vmatmul.mubr.bf16.gmra.mxu0 %v7768
    %v7818 = vpop.f32.mrf.mxu0
    %v7819 = vadd.f32 0.0, %v7818
    %v7820 = vpop.f32.mrf.mxu0
    %v7821 = vpop.f32.mrf.mxu0
    %v7822 = vadd.f32 0.0, %v7821
    %v7823 = vpop.f32.mrf.mxu0
    %7824 = vmatprep.mubr.bf16.mxu0 0
    %7825 = vmatmul.mubr.bf16.gmra.mxu0 %v7771
    %v7826 = vpop.f32.mrf.mxu0
    %v7827 = vadd.f32 0.0, %v7826
    %v7828 = vpop.f32.mrf.mxu0
    %v7829 = vpop.f32.mrf.mxu0
    %v7830 = vadd.f32 0.0, %v7829
    %v7831 = vpop.f32.mrf.mxu0
    %7832 = vmatprep.mubr.bf16.mxu0 0
    %7833 = vmatmul.mubr.bf16.gmra.mxu0 %v7774
    %v7834 = vpop.f32.mrf.mxu0
    %v7835 = vadd.f32 0.0, %v7834
    %v7836 = vpop.f32.mrf.mxu0
    %v7837 = vpop.f32.mrf.mxu0
    %v7838 = vadd.f32 0.0, %v7837
    %v7839 = vpop.f32.mrf.mxu0
    %7840 = vdwg.mxu0
    %v7841 = vadd.f32 %v7695, %v7811
    %v7842 = vadd.f32 %v7696, %v7814
    %v7843 = vadd.f32 %v7697, %v7819
    %v7844 = vadd.f32 %v7698, %v7822
    %v7845 = vadd.f32 %v7699, %v7827
    %v7846 = vadd.f32 %v7700, %v7830
    %v7847 = vadd.f32 %v7701, %v7835
    %v7848 = vadd.f32 %v7702, %v7838
    %v7849 = vld [vmem:[%s7086] sm:$0xf]
    %v7850 = vld [vmem:[%s7086 + $0x4] sm:$0x1]
    %v7851 = vld [vmem:[%s7086 + $0x8] sm:$0xf]
    %v7852 = vld [vmem:[%s7086 + $0xc] sm:$0x1]
    %v7853 = vld [vmem:[%s7086 + $0x10] sm:$0xf]
    %v7854 = vld [vmem:[%s7086 + $0x14] sm:$0x1]
    %v7855 = vld [vmem:[%s7086 + $0x18] sm:$0xf]
    %v7856 = vld [vmem:[%s7086 + $0x1c] sm:$0x1]
    %v7857 = vld [vmem:[%s7086 + $0x20] sm:$0xf]
    %v7858 = vld [vmem:[%s7086 + $0x24] sm:$0x1]
    %v7859 = vld [vmem:[%s7086 + $0x28] sm:$0xf]
    %v7860 = vld [vmem:[%s7086 + $0x2c] sm:$0x1]
    %v7861 = vld [vmem:[%s7086 + $0x30] sm:$0xf]
    %v7862 = vld [vmem:[%s7086 + $0x34] sm:$0x1]
    %v7863 = vld [vmem:[%s7086 + $0x38] sm:$0xf]
    %v7864 = vld [vmem:[%s7086 + $0x3c] sm:$0x1]
    %v7866 = vshrl.u32 %v7849, 16
    %v7868 = vrot.slane %v7866, 4
    %v7869 = vshll.u32 %v7849, 16
    %v7871 = vrot.slane %v7869, 5
    %v7872 = vor.u32 %v7868, %v7871
    %v7873 = vrot.slane %v7872, 4
    %v7875 = vshll.u32 %v7850, 16
    %v7877 = vrot.slane %v7875, 5
    %v7878 = vsel %vm696, %v7873, %v7877
    %v7880 = vshrl.u32 %v7851, 16
    %v7882 = vrot.slane %v7880, 4
    %v7883 = vshll.u32 %v7851, 16
    %v7885 = vrot.slane %v7883, 5
    %v7886 = vor.u32 %v7882, %v7885
    %v7887 = vrot.slane %v7886, 4
    %v7889 = vshll.u32 %v7852, 16
    %v7891 = vrot.slane %v7889, 5
    %v7892 = vsel %vm696, %v7887, %v7891
    %v7894 = vshrl.u32 %v7853, 16
    %v7896 = vrot.slane %v7894, 4
    %v7897 = vshll.u32 %v7853, 16
    %v7899 = vrot.slane %v7897, 5
    %v7900 = vor.u32 %v7896, %v7899
    %v7901 = vrot.slane %v7900, 4
    %v7903 = vshll.u32 %v7854, 16
    %v7905 = vrot.slane %v7903, 5
    %v7906 = vsel %vm696, %v7901, %v7905
    %v7908 = vshrl.u32 %v7855, 16
    %v7910 = vrot.slane %v7908, 4
    %v7911 = vshll.u32 %v7855, 16
    %v7913 = vrot.slane %v7911, 5
    %v7914 = vor.u32 %v7910, %v7913
    %v7915 = vrot.slane %v7914, 4
    %v7917 = vshll.u32 %v7856, 16
    %v7919 = vrot.slane %v7917, 5
    %v7920 = vsel %vm696, %v7915, %v7919
    %v7922 = vshrl.u32 %v7857, 16
    %v7924 = vrot.slane %v7922, 4
    %v7925 = vshll.u32 %v7857, 16
    %v7927 = vrot.slane %v7925, 5
    %v7928 = vor.u32 %v7924, %v7927
    %v7929 = vrot.slane %v7928, 4
    %v7931 = vshll.u32 %v7858, 16
    %v7933 = vrot.slane %v7931, 5
    %v7934 = vsel %vm696, %v7929, %v7933
    %v7936 = vshrl.u32 %v7859, 16
    %v7938 = vrot.slane %v7936, 4
    %v7939 = vshll.u32 %v7859, 16
    %v7941 = vrot.slane %v7939, 5
    %v7942 = vor.u32 %v7938, %v7941
    %v7943 = vrot.slane %v7942, 4
    %v7945 = vshll.u32 %v7860, 16
    %v7947 = vrot.slane %v7945, 5
    %v7948 = vsel %vm696, %v7943, %v7947
    %v7950 = vshrl.u32 %v7861, 16
    %v7952 = vrot.slane %v7950, 4
    %v7953 = vshll.u32 %v7861, 16
    %v7955 = vrot.slane %v7953, 5
    %v7956 = vor.u32 %v7952, %v7955
    %v7957 = vrot.slane %v7956, 4
    %v7959 = vshll.u32 %v7862, 16
    %v7961 = vrot.slane %v7959, 5
    %v7962 = vsel %vm696, %v7957, %v7961
    %v7964 = vshrl.u32 %v7863, 16
    %v7966 = vrot.slane %v7964, 4
    %v7967 = vshll.u32 %v7863, 16
    %v7969 = vrot.slane %v7967, 5
    %v7970 = vor.u32 %v7966, %v7969
    %v7971 = vrot.slane %v7970, 4
    %v7973 = vshll.u32 %v7864, 16
    %v7975 = vrot.slane %v7973, 5
    %v7976 = vsel %vm696, %v7971, %v7975
    %s7977 = scalar_lea.vmem [#allocation5], 128
    %v7978 = vld [vmem:[%s7977] sm:$0xf]
    %v7979 = vld [vmem:[%s7977 + $0x4] sm:$0xf]
    %v7980 = vld [vmem:[%s7977 + $0x8] sm:$0xf]
    %v7981 = vld [vmem:[%s7977 + $0xc] sm:$0xf]
    %v7982 = vld [vmem:[%s7977 + $0x10] sm:$0xf]
    %v7983 = vld [vmem:[%s7977 + $0x14] sm:$0xf]
    %v7984 = vld [vmem:[%s7977 + $0x18] sm:$0xf]
    %v7985 = vld [vmem:[%s7977 + $0x1c] sm:$0xf]
    %v7986 = vunpack.c.l.b16 %v7878
    %v7987 = vunpack.c.l.b16 %v7892
    %v7988 = vunpack.c.l.b16 %v7906
    %v7989 = vunpack.c.l.b16 %v7920
    %v7990 = vunpack.c.l.b16 %v7934
    %v7991 = vunpack.c.l.b16 %v7948
    %v7992 = vunpack.c.l.b16 %v7962
    %v7993 = vunpack.c.l.b16 %v7976
    %v7994 = vpack.c.b16 %v7987, %v7986
    %v7995 = vpack.c.b16 %v7989, %v7988
    %v7996 = vpack.c.b16 %v7991, %v7990
    %v7997 = vpack.c.b16 %v7993, %v7992
    %v8006 = vunpack.c.l.b16 %v7978
    %v8007 = vunpack.c.l.b16 %v7979
    %v8008 = vunpack.c.l.b16 %v7980
    %v8009 = vunpack.c.l.b16 %v7981
    %v8010 = vunpack.c.l.b16 %v7982
    %v8011 = vunpack.c.l.b16 %v7983
    %v8012 = vunpack.c.l.b16 %v7984
    %v8013 = vunpack.c.l.b16 %v7985
    %v8014 = vpack.c.b16 %v8007, %v8006
    %v8015 = vpack.c.b16 %v8009, %v8008
    %v8016 = vpack.c.b16 %v8011, %v8010
    %v8017 = vpack.c.b16 %v8013, %v8012
    %v8023 = vsel %vm7318, %v7994, 0
    %v8026 = vsel %vm7318, %v7995, 0
    %v8029 = vsel %vm7318, %v7996, 0
    %v8032 = vsel %vm7318, %v7997, 0
    %8034 = vmatprep.subr.bf16.mxu0 0
    %8035 = vmatpush1.bf16.msra.mxu0 0
    %8036 = vmatprep.subr.bf16.mxu0 0
    %8037 = vmatpush1.bf16.msra.mxu0 0
    %8038 = vmatprep.subr.bf16.mxu0 0
    %8039 = vmatpush1.bf16.msra.mxu0 0
    %8040 = vmatprep.subr.bf16.mxu0 0
    %8041 = vmatpush1.bf16.msra.mxu0 0
    %8042 = vmatprep.subr.bf16.mxu0 0
    %8043 = vmatpush1.bf16.msra.mxu0 %v8017
    %8044 = vmatprep.subr.bf16.mxu0 0
    %8045 = vmatpush1.bf16.msra.mxu0 %v8016
    %8046 = vmatprep.subr.bf16.mxu0 0
    %8047 = vmatpush1.bf16.msra.mxu0 %v8015
    %8048 = vmatprep.subr.bf16.mxu0 0
    %8049 = vmatpush1.bf16.msra.mxu0 %v8014
    %8050 = vmatprep.subr.bf16.mxu0 0
    %8051 = vmatpush2.bf16.msra.mxu0 0
    %8052 = vmatprep.subr.bf16.mxu0 0
    %8053 = vmatpush2.bf16.msra.mxu0 0
    %8054 = vmatprep.subr.bf16.mxu0 0
    %8055 = vmatpush2.bf16.msra.mxu0 0
    %8056 = vmatprep.subr.bf16.mxu0 0
    %8057 = vmatpush2.bf16.msra.mxu0 0
    %8058 = vmatprep.subr.bf16.mxu0 0
    %8059 = vmatpush2.bf16.msra.mxu0 0
    %8060 = vmatprep.subr.bf16.mxu0 0
    %8061 = vmatpush2.bf16.msra.mxu0 0
    %8062 = vmatprep.subr.bf16.mxu0 0
    %8063 = vmatpush2.bf16.msra.mxu0 0
    %8064 = vmatprep.subr.bf16.mxu0 0
    %8065 = vmatpush2.bf16.msra.mxu0 0
    %8066 = vmatprep.mubr.bf16.mxu0 0
    %8067 = vmatmul.mubr.bf16.gmra.mxu0 %v8023
    %v8068 = vpop.f32.mrf.mxu0
    %v8069 = vadd.f32 0.0, %v8068
    %v8070 = vpop.f32.mrf.mxu0
    %v8071 = vpop.f32.mrf.mxu0
    %v8072 = vadd.f32 0.0, %v8071
    %v8073 = vpop.f32.mrf.mxu0
    %8074 = vmatprep.mubr.bf16.mxu0 0
    %8075 = vmatmul.mubr.bf16.gmra.mxu0 %v8026
    %v8076 = vpop.f32.mrf.mxu0
    %v8077 = vadd.f32 0.0, %v8076
    %v8078 = vpop.f32.mrf.mxu0
    %v8079 = vpop.f32.mrf.mxu0
    %v8080 = vadd.f32 0.0, %v8079
    %v8081 = vpop.f32.mrf.mxu0
    %8082 = vmatprep.mubr.bf16.mxu0 0
    %8083 = vmatmul.mubr.bf16.gmra.mxu0 %v8029
    %v8084 = vpop.f32.mrf.mxu0
    %v8085 = vadd.f32 0.0, %v8084
    %v8086 = vpop.f32.mrf.mxu0
    %v8087 = vpop.f32.mrf.mxu0
    %v8088 = vadd.f32 0.0, %v8087
    %v8089 = vpop.f32.mrf.mxu0
    %8090 = vmatprep.mubr.bf16.mxu0 0
    %8091 = vmatmul.mubr.bf16.gmra.mxu0 %v8032
    %v8092 = vpop.f32.mrf.mxu0
    %v8093 = vadd.f32 0.0, %v8092
    %v8094 = vpop.f32.mrf.mxu0
    %v8095 = vpop.f32.mrf.mxu0
    %v8096 = vadd.f32 0.0, %v8095
    %v8097 = vpop.f32.mrf.mxu0
    %8098 = vdwg.mxu0
    %v8099 = vadd.f32 %v7841, %v8069
    %v8100 = vadd.f32 %v7842, %v8072
    %v8101 = vadd.f32 %v7843, %v8077
    %v8102 = vadd.f32 %v7844, %v8080
    %v8103 = vadd.f32 %v7845, %v8085
    %v8104 = vadd.f32 %v7846, %v8088
    %v8105 = vadd.f32 %v7847, %v8093
    %v8106 = vadd.f32 %v7848, %v8096
    %v8107 = vld [vmem:[%s7086] sm:$0xe]
    %v8108 = vld [vmem:[%s7086 + $0x8] sm:$0xe]
    %v8109 = vld [vmem:[%s7086 + $0x10] sm:$0xe]
    %v8110 = vld [vmem:[%s7086 + $0x18] sm:$0xe]
    %v8111 = vld [vmem:[%s7086 + $0x20] sm:$0xe]
    %v8112 = vld [vmem:[%s7086 + $0x28] sm:$0xe]
    %v8113 = vld [vmem:[%s7086 + $0x30] sm:$0xe]
    %v8114 = vld [vmem:[%s7086 + $0x38] sm:$0xe]
    %v8131 = vrot.slane %v8107, 5
    %v8132 = vrot.slane %v8131, 4
    %v8133 = vrot.slane %v7850, 5
    %v8134 = vsel %vm1687, %v8132, %v8133
    %v8135 = vrot.slane %v8108, 5
    %v8136 = vrot.slane %v8135, 4
    %v8137 = vrot.slane %v7852, 5
    %v8138 = vsel %vm1687, %v8136, %v8137
    %v8139 = vrot.slane %v8109, 5
    %v8140 = vrot.slane %v8139, 4
    %v8141 = vrot.slane %v7854, 5
    %v8142 = vsel %vm1687, %v8140, %v8141
    %v8143 = vrot.slane %v8110, 5
    %v8144 = vrot.slane %v8143, 4
    %v8145 = vrot.slane %v7856, 5
    %v8146 = vsel %vm1687, %v8144, %v8145
    %v8147 = vrot.slane %v8111, 5
    %v8148 = vrot.slane %v8147, 4
    %v8149 = vrot.slane %v7858, 5
    %v8150 = vsel %vm1687, %v8148, %v8149
    %v8151 = vrot.slane %v8112, 5
    %v8152 = vrot.slane %v8151, 4
    %v8153 = vrot.slane %v7860, 5
    %v8154 = vsel %vm1687, %v8152, %v8153
    %v8155 = vrot.slane %v8113, 5
    %v8156 = vrot.slane %v8155, 4
    %v8157 = vrot.slane %v7862, 5
    %v8158 = vsel %vm1687, %v8156, %v8157
    %v8159 = vrot.slane %v8114, 5
    %v8160 = vrot.slane %v8159, 4
    %v8161 = vrot.slane %v7864, 5
    %v8162 = vsel %vm1687, %v8160, %v8161
    %s8163 = scalar_lea.vmem [#allocation5], 160
    %v8164 = vld [vmem:[%s8163] sm:$0xf]
    %v8165 = vld [vmem:[%s8163 + $0x4] sm:$0xf]
    %v8166 = vld [vmem:[%s8163 + $0x8] sm:$0xf]
    %v8167 = vld [vmem:[%s8163 + $0xc] sm:$0xf]
    %v8168 = vld [vmem:[%s8163 + $0x10] sm:$0xf]
    %v8169 = vld [vmem:[%s8163 + $0x14] sm:$0xf]
    %v8170 = vld [vmem:[%s8163 + $0x18] sm:$0xf]
    %v8171 = vld [vmem:[%s8163 + $0x1c] sm:$0xf]
    %v8172 = vunpack.c.l.b16 %v8134
    %v8173 = vunpack.c.l.b16 %v8138
    %v8174 = vunpack.c.l.b16 %v8142
    %v8175 = vunpack.c.l.b16 %v8146
    %v8176 = vunpack.c.l.b16 %v8150
    %v8177 = vunpack.c.l.b16 %v8154
    %v8178 = vunpack.c.l.b16 %v8158
    %v8179 = vunpack.c.l.b16 %v8162
    %v8180 = vpack.c.b16 %v8173, %v8172
    %v8181 = vpack.c.b16 %v8175, %v8174
    %v8182 = vpack.c.b16 %v8177, %v8176
    %v8183 = vpack.c.b16 %v8179, %v8178
    %v8192 = vunpack.c.l.b16 %v8164
    %v8193 = vunpack.c.l.b16 %v8165
    %v8194 = vunpack.c.l.b16 %v8166
    %v8195 = vunpack.c.l.b16 %v8167
    %v8196 = vunpack.c.l.b16 %v8168
    %v8197 = vunpack.c.l.b16 %v8169
    %v8198 = vunpack.c.l.b16 %v8170
    %v8199 = vunpack.c.l.b16 %v8171
    %v8200 = vpack.c.b16 %v8193, %v8192
    %v8201 = vpack.c.b16 %v8195, %v8194
    %v8202 = vpack.c.b16 %v8197, %v8196
    %v8203 = vpack.c.b16 %v8199, %v8198
    %v8209 = vsel %vm7318, %v8180, 0
    %v8212 = vsel %vm7318, %v8181, 0
    %v8215 = vsel %vm7318, %v8182, 0
    %v8218 = vsel %vm7318, %v8183, 0
    %8220 = vmatprep.subr.bf16.mxu0 0
    %8221 = vmatpush1.bf16.msra.mxu0 0
    %8222 = vmatprep.subr.bf16.mxu0 0
    %8223 = vmatpush1.bf16.msra.mxu0 0
    %8224 = vmatprep.subr.bf16.mxu0 0
    %8225 = vmatpush1.bf16.msra.mxu0 0
    %8226 = vmatprep.subr.bf16.mxu0 0
    %8227 = vmatpush1.bf16.msra.mxu0 0
    %8228 = vmatprep.subr.bf16.mxu0 0
    %8229 = vmatpush1.bf16.msra.mxu0 %v8203
    %8230 = vmatprep.subr.bf16.mxu0 0
    %8231 = vmatpush1.bf16.msra.mxu0 %v8202
    %8232 = vmatprep.subr.bf16.mxu0 0
    %8233 = vmatpush1.bf16.msra.mxu0 %v8201
    %8234 = vmatprep.subr.bf16.mxu0 0
    %8235 = vmatpush1.bf16.msra.mxu0 %v8200
    %8236 = vmatprep.subr.bf16.mxu0 0
    %8237 = vmatpush2.bf16.msra.mxu0 0
    %8238 = vmatprep.subr.bf16.mxu0 0
    %8239 = vmatpush2.bf16.msra.mxu0 0
    %8240 = vmatprep.subr.bf16.mxu0 0
    %8241 = vmatpush2.bf16.msra.mxu0 0
    %8242 = vmatprep.subr.bf16.mxu0 0
    %8243 = vmatpush2.bf16.msra.mxu0 0
    %8244 = vmatprep.subr.bf16.mxu0 0
    %8245 = vmatpush2.bf16.msra.mxu0 0
    %8246 = vmatprep.subr.bf16.mxu0 0
    %8247 = vmatpush2.bf16.msra.mxu0 0
    %8248 = vmatprep.subr.bf16.mxu0 0
    %8249 = vmatpush2.bf16.msra.mxu0 0
    %8250 = vmatprep.subr.bf16.mxu0 0
    %8251 = vmatpush2.bf16.msra.mxu0 0
    %8252 = vmatprep.mubr.bf16.mxu0 0
    %8253 = vmatmul.mubr.bf16.gmra.mxu0 %v8209
    %v8254 = vpop.f32.mrf.mxu0
    %v8255 = vadd.f32 0.0, %v8254
    %v8256 = vpop.f32.mrf.mxu0
    %v8257 = vpop.f32.mrf.mxu0
    %v8258 = vadd.f32 0.0, %v8257
    %v8259 = vpop.f32.mrf.mxu0
    %8260 = vmatprep.mubr.bf16.mxu0 0
    %8261 = vmatmul.mubr.bf16.gmra.mxu0 %v8212
    %v8262 = vpop.f32.mrf.mxu0
    %v8263 = vadd.f32 0.0, %v8262
    %v8264 = vpop.f32.mrf.mxu0
    %v8265 = vpop.f32.mrf.mxu0
    %v8266 = vadd.f32 0.0, %v8265
    %v8267 = vpop.f32.mrf.mxu0
    %8268 = vmatprep.mubr.bf16.mxu0 0
    %8269 = vmatmul.mubr.bf16.gmra.mxu0 %v8215
    %v8270 = vpop.f32.mrf.mxu0
    %v8271 = vadd.f32 0.0, %v8270
    %v8272 = vpop.f32.mrf.mxu0
    %v8273 = vpop.f32.mrf.mxu0
    %v8274 = vadd.f32 0.0, %v8273
    %v8275 = vpop.f32.mrf.mxu0
    %8276 = vmatprep.mubr.bf16.mxu0 0
    %8277 = vmatmul.mubr.bf16.gmra.mxu0 %v8218
    %v8278 = vpop.f32.mrf.mxu0
    %v8279 = vadd.f32 0.0, %v8278
    %v8280 = vpop.f32.mrf.mxu0
    %v8281 = vpop.f32.mrf.mxu0
    %v8282 = vadd.f32 0.0, %v8281
    %v8283 = vpop.f32.mrf.mxu0
    %8284 = vdwg.mxu0
    %v8285 = vadd.f32 %v8099, %v8255
    %v8286 = vadd.f32 %v8100, %v8258
    %v8287 = vadd.f32 %v8101, %v8263
    %v8288 = vadd.f32 %v8102, %v8266
    %v8289 = vadd.f32 %v8103, %v8271
    %v8290 = vadd.f32 %v8104, %v8274
    %v8291 = vadd.f32 %v8105, %v8279
    %v8292 = vadd.f32 %v8106, %v8282
    %s8293 = scalar_lea.vmem [#allocation3], 16
    %v8294 = vld [vmem:[%s8293] sm:$0xf]
    %v8295 = vld [vmem:[%s8293 + $0x8] sm:$0xf]
    %v8296 = vld [vmem:[%s8293 + $0x10] sm:$0xf]
    %v8297 = vld [vmem:[%s8293 + $0x18] sm:$0xf]
    %v8298 = vld [vmem:[%s8293 + $0x20] sm:$0xf]
    %v8299 = vld [vmem:[%s8293 + $0x28] sm:$0xf]
    %v8300 = vld [vmem:[%s8293 + $0x30] sm:$0xf]
    %v8301 = vld [vmem:[%s8293 + $0x38] sm:$0xf]
    %s8302 = scalar_lea.vmem [#allocation5], 192
    %v8303 = vld [vmem:[%s8302] sm:$0xf]
    %v8304 = vld [vmem:[%s8302 + $0x4] sm:$0xf]
    %v8305 = vld [vmem:[%s8302 + $0x8] sm:$0xf]
    %v8306 = vld [vmem:[%s8302 + $0xc] sm:$0xf]
    %v8307 = vld [vmem:[%s8302 + $0x10] sm:$0xf]
    %v8308 = vld [vmem:[%s8302 + $0x14] sm:$0xf]
    %v8309 = vld [vmem:[%s8302 + $0x18] sm:$0xf]
    %v8310 = vld [vmem:[%s8302 + $0x1c] sm:$0xf]
    %v8319 = vunpack.c.l.b16 %v8294
    %v8320 = vunpack.c.l.b16 %v8295
    %v8321 = vunpack.c.l.b16 %v8296
    %v8322 = vunpack.c.l.b16 %v8297
    %v8323 = vunpack.c.l.b16 %v8298
    %v8324 = vunpack.c.l.b16 %v8299
    %v8325 = vunpack.c.l.b16 %v8300
    %v8326 = vunpack.c.l.b16 %v8301
    %v8327 = vpack.c.b16 %v8320, %v8319
    %v8328 = vpack.c.b16 %v8322, %v8321
    %v8329 = vpack.c.b16 %v8324, %v8323
    %v8330 = vpack.c.b16 %v8326, %v8325
    %v8339 = vunpack.c.l.b16 %v8303
    %v8340 = vunpack.c.l.b16 %v8304
    %v8341 = vunpack.c.l.b16 %v8305
    %v8342 = vunpack.c.l.b16 %v8306
    %v8343 = vunpack.c.l.b16 %v8307
    %v8344 = vunpack.c.l.b16 %v8308
    %v8345 = vunpack.c.l.b16 %v8309
    %v8346 = vunpack.c.l.b16 %v8310
    %v8347 = vpack.c.b16 %v8340, %v8339
    %v8348 = vpack.c.b16 %v8342, %v8341
    %v8349 = vpack.c.b16 %v8344, %v8343
    %v8350 = vpack.c.b16 %v8346, %v8345
    %v8356 = vsel %vm7318, %v8327, 0
    %v8359 = vsel %vm7318, %v8328, 0
    %v8362 = vsel %vm7318, %v8329, 0
    %v8365 = vsel %vm7318, %v8330, 0
    %8367 = vmatprep.subr.bf16.mxu0 0
    %8368 = vmatpush1.bf16.msra.mxu0 0
    %8369 = vmatprep.subr.bf16.mxu0 0
    %8370 = vmatpush1.bf16.msra.mxu0 0
    %8371 = vmatprep.subr.bf16.mxu0 0
    %8372 = vmatpush1.bf16.msra.mxu0 0
    %8373 = vmatprep.subr.bf16.mxu0 0
    %8374 = vmatpush1.bf16.msra.mxu0 0
    %8375 = vmatprep.subr.bf16.mxu0 0
    %8376 = vmatpush1.bf16.msra.mxu0 %v8350
    %8377 = vmatprep.subr.bf16.mxu0 0
    %8378 = vmatpush1.bf16.msra.mxu0 %v8349
    %8379 = vmatprep.subr.bf16.mxu0 0
    %8380 = vmatpush1.bf16.msra.mxu0 %v8348
    %8381 = vmatprep.subr.bf16.mxu0 0
    %8382 = vmatpush1.bf16.msra.mxu0 %v8347
    %8383 = vmatprep.subr.bf16.mxu0 0
    %8384 = vmatpush2.bf16.msra.mxu0 0
    %8385 = vmatprep.subr.bf16.mxu0 0
    %8386 = vmatpush2.bf16.msra.mxu0 0
    %8387 = vmatprep.subr.bf16.mxu0 0
    %8388 = vmatpush2.bf16.msra.mxu0 0
    %8389 = vmatprep.subr.bf16.mxu0 0
    %8390 = vmatpush2.bf16.msra.mxu0 0
    %8391 = vmatprep.subr.bf16.mxu0 0
    %8392 = vmatpush2.bf16.msra.mxu0 0
    %8393 = vmatprep.subr.bf16.mxu0 0
    %8394 = vmatpush2.bf16.msra.mxu0 0
    %8395 = vmatprep.subr.bf16.mxu0 0
    %8396 = vmatpush2.bf16.msra.mxu0 0
    %8397 = vmatprep.subr.bf16.mxu0 0
    %8398 = vmatpush2.bf16.msra.mxu0 0
    %8399 = vmatprep.mubr.bf16.mxu0 0
    %8400 = vmatmul.mubr.bf16.gmra.mxu0 %v8356
    %v8401 = vpop.f32.mrf.mxu0
    %v8402 = vadd.f32 0.0, %v8401
    %v8403 = vpop.f32.mrf.mxu0
    %v8404 = vpop.f32.mrf.mxu0
    %v8405 = vadd.f32 0.0, %v8404
    %v8406 = vpop.f32.mrf.mxu0
    %8407 = vmatprep.mubr.bf16.mxu0 0
    %8408 = vmatmul.mubr.bf16.gmra.mxu0 %v8359
    %v8409 = vpop.f32.mrf.mxu0
    %v8410 = vadd.f32 0.0, %v8409
    %v8411 = vpop.f32.mrf.mxu0
    %v8412 = vpop.f32.mrf.mxu0
    %v8413 = vadd.f32 0.0, %v8412
    %v8414 = vpop.f32.mrf.mxu0
    %8415 = vmatprep.mubr.bf16.mxu0 0
    %8416 = vmatmul.mubr.bf16.gmra.mxu0 %v8362
    %v8417 = vpop.f32.mrf.mxu0
    %v8418 = vadd.f32 0.0, %v8417
    %v8419 = vpop.f32.mrf.mxu0
    %v8420 = vpop.f32.mrf.mxu0
    %v8421 = vadd.f32 0.0, %v8420
    %v8422 = vpop.f32.mrf.mxu0
    %8423 = vmatprep.mubr.bf16.mxu0 0
    %8424 = vmatmul.mubr.bf16.gmra.mxu0 %v8365
    %v8425 = vpop.f32.mrf.mxu0
    %v8426 = vadd.f32 0.0, %v8425
    %v8427 = vpop.f32.mrf.mxu0
    %v8428 = vpop.f32.mrf.mxu0
    %v8429 = vadd.f32 0.0, %v8428
    %v8430 = vpop.f32.mrf.mxu0
    %8431 = vdwg.mxu0
    %v8432 = vadd.f32 %v8285, %v8402
    %v8433 = vadd.f32 %v8286, %v8405
    %v8434 = vadd.f32 %v8287, %v8410
    %v8435 = vadd.f32 %v8288, %v8413
    %v8436 = vadd.f32 %v8289, %v8418
    %v8437 = vadd.f32 %v8290, %v8421
    %v8438 = vadd.f32 %v8291, %v8426
    %v8439 = vadd.f32 %v8292, %v8429
    %v8440 = vld [vmem:[%s8293] sm:$0xf]
    %v8441 = vld [vmem:[%s8293 + $0x4] sm:$0x1]
    %v8442 = vld [vmem:[%s8293 + $0x8] sm:$0xf]
    %v8443 = vld [vmem:[%s8293 + $0xc] sm:$0x1]
    %v8444 = vld [vmem:[%s8293 + $0x10] sm:$0xf]
    %v8445 = vld [vmem:[%s8293 + $0x14] sm:$0x1]
    %v8446 = vld [vmem:[%s8293 + $0x18] sm:$0xf]
    %v8447 = vld [vmem:[%s8293 + $0x1c] sm:$0x1]
    %v8448 = vld [vmem:[%s8293 + $0x20] sm:$0xf]
    %v8449 = vld [vmem:[%s8293 + $0x24] sm:$0x1]
    %v8450 = vld [vmem:[%s8293 + $0x28] sm:$0xf]
    %v8451 = vld [vmem:[%s8293 + $0x2c] sm:$0x1]
    %v8452 = vld [vmem:[%s8293 + $0x30] sm:$0xf]
    %v8453 = vld [vmem:[%s8293 + $0x34] sm:$0x1]
    %v8454 = vld [vmem:[%s8293 + $0x38] sm:$0xf]
    %v8455 = vld [vmem:[%s8293 + $0x3c] sm:$0x1]
    %v8457 = vshrl.u32 %v8440, 16
    %v8459 = vrot.slane %v8457, 4
    %v8460 = vshll.u32 %v8440, 16
    %v8462 = vrot.slane %v8460, 5
    %v8463 = vor.u32 %v8459, %v8462
    %v8464 = vrot.slane %v8463, 4
    %v8466 = vshll.u32 %v8441, 16
    %v8468 = vrot.slane %v8466, 5
    %v8469 = vsel %vm696, %v8464, %v8468
    %v8471 = vshrl.u32 %v8442, 16
    %v8473 = vrot.slane %v8471, 4
    %v8474 = vshll.u32 %v8442, 16
    %v8476 = vrot.slane %v8474, 5
    %v8477 = vor.u32 %v8473, %v8476
    %v8478 = vrot.slane %v8477, 4
    %v8480 = vshll.u32 %v8443, 16
    %v8482 = vrot.slane %v8480, 5
    %v8483 = vsel %vm696, %v8478, %v8482
    %v8485 = vshrl.u32 %v8444, 16
    %v8487 = vrot.slane %v8485, 4
    %v8488 = vshll.u32 %v8444, 16
    %v8490 = vrot.slane %v8488, 5
    %v8491 = vor.u32 %v8487, %v8490
    %v8492 = vrot.slane %v8491, 4
    %v8494 = vshll.u32 %v8445, 16
    %v8496 = vrot.slane %v8494, 5
    %v8497 = vsel %vm696, %v8492, %v8496
    %v8499 = vshrl.u32 %v8446, 16
    %v8501 = vrot.slane %v8499, 4
    %v8502 = vshll.u32 %v8446, 16
    %v8504 = vrot.slane %v8502, 5
    %v8505 = vor.u32 %v8501, %v8504
    %v8506 = vrot.slane %v8505, 4
    %v8508 = vshll.u32 %v8447, 16
    %v8510 = vrot.slane %v8508, 5
    %v8511 = vsel %vm696, %v8506, %v8510
    %v8513 = vshrl.u32 %v8448, 16
    %v8515 = vrot.slane %v8513, 4
    %v8516 = vshll.u32 %v8448, 16
    %v8518 = vrot.slane %v8516, 5
    %v8519 = vor.u32 %v8515, %v8518
    %v8520 = vrot.slane %v8519, 4
    %v8522 = vshll.u32 %v8449, 16
    %v8524 = vrot.slane %v8522, 5
    %v8525 = vsel %vm696, %v8520, %v8524
    %v8527 = vshrl.u32 %v8450, 16
    %v8529 = vrot.slane %v8527, 4
    %v8530 = vshll.u32 %v8450, 16
    %v8532 = vrot.slane %v8530, 5
    %v8533 = vor.u32 %v8529, %v8532
    %v8534 = vrot.slane %v8533, 4
    %v8536 = vshll.u32 %v8451, 16
    %v8538 = vrot.slane %v8536, 5
    %v8539 = vsel %vm696, %v8534, %v8538
    %v8541 = vshrl.u32 %v8452, 16
    %v8543 = vrot.slane %v8541, 4
    %v8544 = vshll.u32 %v8452, 16
    %v8546 = vrot.slane %v8544, 5
    %v8547 = vor.u32 %v8543, %v8546
    %v8548 = vrot.slane %v8547, 4
    %v8550 = vshll.u32 %v8453, 16
    %v8552 = vrot.slane %v8550, 5
    %v8553 = vsel %vm696, %v8548, %v8552
    %v8555 = vshrl.u32 %v8454, 16
    %v8557 = vrot.slane %v8555, 4
    %v8558 = vshll.u32 %v8454, 16
    %v8560 = vrot.slane %v8558, 5
    %v8561 = vor.u32 %v8557, %v8560
    %v8562 = vrot.slane %v8561, 4
    %v8564 = vshll.u32 %v8455, 16
    %v8566 = vrot.slane %v8564, 5
    %v8567 = vsel %vm696, %v8562, %v8566
    %s8568 = scalar_lea.vmem [#allocation5], 224
    %v8569 = vld [vmem:[%s8568] sm:$0xf]
    %v8570 = vld [vmem:[%s8568 + $0x4] sm:$0xf]
    %v8571 = vld [vmem:[%s8568 + $0x8] sm:$0xf]
    %v8572 = vld [vmem:[%s8568 + $0xc] sm:$0xf]
    %v8573 = vld [vmem:[%s8568 + $0x10] sm:$0xf]
    %v8574 = vld [vmem:[%s8568 + $0x14] sm:$0xf]
    %v8575 = vld [vmem:[%s8568 + $0x18] sm:$0xf]
    %v8576 = vld [vmem:[%s8568 + $0x1c] sm:$0xf]
    %v8577 = vunpack.c.l.b16 %v8469
    %v8578 = vunpack.c.l.b16 %v8483
    %v8579 = vunpack.c.l.b16 %v8497
    %v8580 = vunpack.c.l.b16 %v8511
    %v8581 = vunpack.c.l.b16 %v8525
    %v8582 = vunpack.c.l.b16 %v8539
    %v8583 = vunpack.c.l.b16 %v8553
    %v8584 = vunpack.c.l.b16 %v8567
    %v8585 = vpack.c.b16 %v8578, %v8577
    %v8586 = vpack.c.b16 %v8580, %v8579
    %v8587 = vpack.c.b16 %v8582, %v8581
    %v8588 = vpack.c.b16 %v8584, %v8583
    %v8597 = vunpack.c.l.b16 %v8569
    %v8598 = vunpack.c.l.b16 %v8570
    %v8599 = vunpack.c.l.b16 %v8571
    %v8600 = vunpack.c.l.b16 %v8572
    %v8601 = vunpack.c.l.b16 %v8573
    %v8602 = vunpack.c.l.b16 %v8574
    %v8603 = vunpack.c.l.b16 %v8575
    %v8604 = vunpack.c.l.b16 %v8576
    %v8605 = vpack.c.b16 %v8598, %v8597
    %v8606 = vpack.c.b16 %v8600, %v8599
    %v8607 = vpack.c.b16 %v8602, %v8601
    %v8608 = vpack.c.b16 %v8604, %v8603
    %v8614 = vsel %vm7318, %v8585, 0
    %v8617 = vsel %vm7318, %v8586, 0
    %v8620 = vsel %vm7318, %v8587, 0
    %v8623 = vsel %vm7318, %v8588, 0
    %8625 = vmatprep.subr.bf16.mxu0 0
    %8626 = vmatpush1.bf16.msra.mxu0 0
    %8627 = vmatprep.subr.bf16.mxu0 0
    %8628 = vmatpush1.bf16.msra.mxu0 0
    %8629 = vmatprep.subr.bf16.mxu0 0
    %8630 = vmatpush1.bf16.msra.mxu0 0
    %8631 = vmatprep.subr.bf16.mxu0 0
    %8632 = vmatpush1.bf16.msra.mxu0 0
    %8633 = vmatprep.subr.bf16.mxu0 0
    %8634 = vmatpush1.bf16.msra.mxu0 %v8608
    %8635 = vmatprep.subr.bf16.mxu0 0
    %8636 = vmatpush1.bf16.msra.mxu0 %v8607
    %8637 = vmatprep.subr.bf16.mxu0 0
    %8638 = vmatpush1.bf16.msra.mxu0 %v8606
    %8639 = vmatprep.subr.bf16.mxu0 0
    %8640 = vmatpush1.bf16.msra.mxu0 %v8605
    %8641 = vmatprep.subr.bf16.mxu0 0
    %8642 = vmatpush2.bf16.msra.mxu0 0
    %8643 = vmatprep.subr.bf16.mxu0 0
    %8644 = vmatpush2.bf16.msra.mxu0 0
    %8645 = vmatprep.subr.bf16.mxu0 0
    %8646 = vmatpush2.bf16.msra.mxu0 0
    %8647 = vmatprep.subr.bf16.mxu0 0
    %8648 = vmatpush2.bf16.msra.mxu0 0
    %8649 = vmatprep.subr.bf16.mxu0 0
    %8650 = vmatpush2.bf16.msra.mxu0 0
    %8651 = vmatprep.subr.bf16.mxu0 0
    %8652 = vmatpush2.bf16.msra.mxu0 0
    %8653 = vmatprep.subr.bf16.mxu0 0
    %8654 = vmatpush2.bf16.msra.mxu0 0
    %8655 = vmatprep.subr.bf16.mxu0 0
    %8656 = vmatpush2.bf16.msra.mxu0 0
    %8657 = vmatprep.mubr.bf16.mxu0 0
    %8658 = vmatmul.mubr.bf16.gmra.mxu0 %v8614
    %v8659 = vpop.f32.mrf.mxu0
    %v8660 = vadd.f32 0.0, %v8659
    %v8661 = vpop.f32.mrf.mxu0
    %v8662 = vpop.f32.mrf.mxu0
    %v8663 = vadd.f32 0.0, %v8662
    %v8664 = vpop.f32.mrf.mxu0
    %8665 = vmatprep.mubr.bf16.mxu0 0
    %8666 = vmatmul.mubr.bf16.gmra.mxu0 %v8617
    %v8667 = vpop.f32.mrf.mxu0
    %v8668 = vadd.f32 0.0, %v8667
    %v8669 = vpop.f32.mrf.mxu0
    %v8670 = vpop.f32.mrf.mxu0
    %v8671 = vadd.f32 0.0, %v8670
    %v8672 = vpop.f32.mrf.mxu0
    %8673 = vmatprep.mubr.bf16.mxu0 0
    %8674 = vmatmul.mubr.bf16.gmra.mxu0 %v8620
    %v8675 = vpop.f32.mrf.mxu0
    %v8676 = vadd.f32 0.0, %v8675
    %v8677 = vpop.f32.mrf.mxu0
    %v8678 = vpop.f32.mrf.mxu0
    %v8679 = vadd.f32 0.0, %v8678
    %v8680 = vpop.f32.mrf.mxu0
    %8681 = vmatprep.mubr.bf16.mxu0 0
    %8682 = vmatmul.mubr.bf16.gmra.mxu0 %v8623
    %v8683 = vpop.f32.mrf.mxu0
    %v8684 = vadd.f32 0.0, %v8683
    %v8685 = vpop.f32.mrf.mxu0
    %v8686 = vpop.f32.mrf.mxu0
    %v8687 = vadd.f32 0.0, %v8686
    %v8688 = vpop.f32.mrf.mxu0
    %8689 = vdwg.mxu0
    %v8690 = vadd.f32 %v8432, %v8660
    %v8691 = vadd.f32 %v8433, %v8663
    %v8692 = vadd.f32 %v8434, %v8668
    %v8693 = vadd.f32 %v8435, %v8671
    %v8694 = vadd.f32 %v8436, %v8676
    %v8695 = vadd.f32 %v8437, %v8679
    %v8696 = vadd.f32 %v8438, %v8684
    %v8697 = vadd.f32 %v8439, %v8687
    %v8698 = vld [vmem:[%s8293] sm:$0xe]
    %v8699 = vld [vmem:[%s8293 + $0x8] sm:$0xe]
    %v8700 = vld [vmem:[%s8293 + $0x10] sm:$0xe]
    %v8701 = vld [vmem:[%s8293 + $0x18] sm:$0xe]
    %v8702 = vld [vmem:[%s8293 + $0x20] sm:$0xe]
    %v8703 = vld [vmem:[%s8293 + $0x28] sm:$0xe]
    %v8704 = vld [vmem:[%s8293 + $0x30] sm:$0xe]
    %v8705 = vld [vmem:[%s8293 + $0x38] sm:$0xe]
    %v8722 = vrot.slane %v8698, 5
    %v8723 = vrot.slane %v8722, 4
    %v8724 = vrot.slane %v8441, 5
    %v8725 = vsel %vm1687, %v8723, %v8724
    %v8726 = vrot.slane %v8699, 5
    %v8727 = vrot.slane %v8726, 4
    %v8728 = vrot.slane %v8443, 5
    %v8729 = vsel %vm1687, %v8727, %v8728
    %v8730 = vrot.slane %v8700, 5
    %v8731 = vrot.slane %v8730, 4
    %v8732 = vrot.slane %v8445, 5
    %v8733 = vsel %vm1687, %v8731, %v8732
    %v8734 = vrot.slane %v8701, 5
    %v8735 = vrot.slane %v8734, 4
    %v8736 = vrot.slane %v8447, 5
    %v8737 = vsel %vm1687, %v8735, %v8736
    %v8738 = vrot.slane %v8702, 5
    %v8739 = vrot.slane %v8738, 4
    %v8740 = vrot.slane %v8449, 5
    %v8741 = vsel %vm1687, %v8739, %v8740
    %v8742 = vrot.slane %v8703, 5
    %v8743 = vrot.slane %v8742, 4
    %v8744 = vrot.slane %v8451, 5
    %v8745 = vsel %vm1687, %v8743, %v8744
    %v8746 = vrot.slane %v8704, 5
    %v8747 = vrot.slane %v8746, 4
    %v8748 = vrot.slane %v8453, 5
    %v8749 = vsel %vm1687, %v8747, %v8748
    %v8750 = vrot.slane %v8705, 5
    %v8751 = vrot.slane %v8750, 4
    %v8752 = vrot.slane %v8455, 5
    %v8753 = vsel %vm1687, %v8751, %v8752
    %s8754 = scalar_lea.vmem [#allocation5], 256
    %v8755 = vld [vmem:[%s8754] sm:$0xf]
    %v8756 = vld [vmem:[%s8754 + $0x4] sm:$0xf]
    %v8757 = vld [vmem:[%s8754 + $0x8] sm:$0xf]
    %v8758 = vld [vmem:[%s8754 + $0xc] sm:$0xf]
    %v8759 = vld [vmem:[%s8754 + $0x10] sm:$0xf]
    %v8760 = vld [vmem:[%s8754 + $0x14] sm:$0xf]
    %v8761 = vld [vmem:[%s8754 + $0x18] sm:$0xf]
    %v8762 = vld [vmem:[%s8754 + $0x1c] sm:$0xf]
    %v8763 = vunpack.c.l.b16 %v8725
    %v8764 = vunpack.c.l.b16 %v8729
    %v8765 = vunpack.c.l.b16 %v8733
    %v8766 = vunpack.c.l.b16 %v8737
    %v8767 = vunpack.c.l.b16 %v8741
    %v8768 = vunpack.c.l.b16 %v8745
    %v8769 = vunpack.c.l.b16 %v8749
    %v8770 = vunpack.c.l.b16 %v8753
    %v8771 = vpack.c.b16 %v8764, %v8763
    %v8772 = vpack.c.b16 %v8766, %v8765
    %v8773 = vpack.c.b16 %v8768, %v8767
    %v8774 = vpack.c.b16 %v8770, %v8769
    %v8783 = vunpack.c.l.b16 %v8755
    %v8784 = vunpack.c.l.b16 %v8756
    %v8785 = vunpack.c.l.b16 %v8757
    %v8786 = vunpack.c.l.b16 %v8758
    %v8787 = vunpack.c.l.b16 %v8759
    %v8788 = vunpack.c.l.b16 %v8760
    %v8789 = vunpack.c.l.b16 %v8761
    %v8790 = vunpack.c.l.b16 %v8762
    %v8791 = vpack.c.b16 %v8784, %v8783
    %v8792 = vpack.c.b16 %v8786, %v8785
    %v8793 = vpack.c.b16 %v8788, %v8787
    %v8794 = vpack.c.b16 %v8790, %v8789
    %v8800 = vsel %vm7318, %v8771, 0
    %v8803 = vsel %vm7318, %v8772, 0
    %v8806 = vsel %vm7318, %v8773, 0
    %v8809 = vsel %vm7318, %v8774, 0
    %8811 = vmatprep.subr.bf16.mxu0 0
    %8812 = vmatpush1.bf16.msra.mxu0 0
    %8813 = vmatprep.subr.bf16.mxu0 0
    %8814 = vmatpush1.bf16.msra.mxu0 0
    %8815 = vmatprep.subr.bf16.mxu0 0
    %8816 = vmatpush1.bf16.msra.mxu0 0
    %8817 = vmatprep.subr.bf16.mxu0 0
    %8818 = vmatpush1.bf16.msra.mxu0 0
    %8819 = vmatprep.subr.bf16.mxu0 0
    %8820 = vmatpush1.bf16.msra.mxu0 %v8794
    %8821 = vmatprep.subr.bf16.mxu0 0
    %8822 = vmatpush1.bf16.msra.mxu0 %v8793
    %8823 = vmatprep.subr.bf16.mxu0 0
    %8824 = vmatpush1.bf16.msra.mxu0 %v8792
    %8825 = vmatprep.subr.bf16.mxu0 0
    %8826 = vmatpush1.bf16.msra.mxu0 %v8791
    %8827 = vmatprep.subr.bf16.mxu0 0
    %8828 = vmatpush2.bf16.msra.mxu0 0
    %8829 = vmatprep.subr.bf16.mxu0 0
    %8830 = vmatpush2.bf16.msra.mxu0 0
    %8831 = vmatprep.subr.bf16.mxu0 0
    %8832 = vmatpush2.bf16.msra.mxu0 0
    %8833 = vmatprep.subr.bf16.mxu0 0
    %8834 = vmatpush2.bf16.msra.mxu0 0
    %8835 = vmatprep.subr.bf16.mxu0 0
    %8836 = vmatpush2.bf16.msra.mxu0 0
    %8837 = vmatprep.subr.bf16.mxu0 0
    %8838 = vmatpush2.bf16.msra.mxu0 0
    %8839 = vmatprep.subr.bf16.mxu0 0
    %8840 = vmatpush2.bf16.msra.mxu0 0
    %8841 = vmatprep.subr.bf16.mxu0 0
    %8842 = vmatpush2.bf16.msra.mxu0 0
    %8843 = vmatprep.mubr.bf16.mxu0 0
    %8844 = vmatmul.mubr.bf16.gmra.mxu0 %v8800
    %v8845 = vpop.f32.mrf.mxu0
    %v8846 = vadd.f32 0.0, %v8845
    %v8847 = vpop.f32.mrf.mxu0
    %v8848 = vpop.f32.mrf.mxu0
    %v8849 = vadd.f32 0.0, %v8848
    %v8850 = vpop.f32.mrf.mxu0
    %8851 = vmatprep.mubr.bf16.mxu0 0
    %8852 = vmatmul.mubr.bf16.gmra.mxu0 %v8803
    %v8853 = vpop.f32.mrf.mxu0
    %v8854 = vadd.f32 0.0, %v8853
    %v8855 = vpop.f32.mrf.mxu0
    %v8856 = vpop.f32.mrf.mxu0
    %v8857 = vadd.f32 0.0, %v8856
    %v8858 = vpop.f32.mrf.mxu0
    %8859 = vmatprep.mubr.bf16.mxu0 0
    %8860 = vmatmul.mubr.bf16.gmra.mxu0 %v8806
    %v8861 = vpop.f32.mrf.mxu0
    %v8862 = vadd.f32 0.0, %v8861
    %v8863 = vpop.f32.mrf.mxu0
    %v8864 = vpop.f32.mrf.mxu0
    %v8865 = vadd.f32 0.0, %v8864
    %v8866 = vpop.f32.mrf.mxu0
    %8867 = vmatprep.mubr.bf16.mxu0 0
    %8868 = vmatmul.mubr.bf16.gmra.mxu0 %v8809
    %v8869 = vpop.f32.mrf.mxu0
    %v8870 = vadd.f32 0.0, %v8869
    %v8871 = vpop.f32.mrf.mxu0
    %v8872 = vpop.f32.mrf.mxu0
    %v8873 = vadd.f32 0.0, %v8872
    %v8874 = vpop.f32.mrf.mxu0
    %8875 = vdwg.mxu0
    %v8876 = vadd.f32 %v8690, %v8846
    %v8877 = vadd.f32 %v8691, %v8849
    %v8878 = vadd.f32 %v8692, %v8854
    %v8879 = vadd.f32 %v8693, %v8857
    %v8880 = vadd.f32 %v8694, %v8862
    %v8881 = vadd.f32 %v8695, %v8865
    %v8882 = vadd.f32 %v8696, %v8870
    %v8883 = vadd.f32 %v8697, %v8873
    %v8884 = vld [vmem:[%s4] sm:$0x1]
    %v8886 = vlaneseq
    %v8887 = vshrl.u32 %v8886, 7
    %v8888 = vsub.s32 0, %v8887
    %v8889 = vrot.slane %v8884, %v8888
    %v8891 = vadd.f32 %v8876, %v8889
    %v8892 = vadd.f32 %v8877, %v8889
    %v8893 = vadd.f32 %v8878, %v8889
    %v8894 = vadd.f32 %v8879, %v8889
    %v8895 = vadd.f32 %v8880, %v8889
    %v8896 = vadd.f32 %v8881, %v8889
    %v8897 = vadd.f32 %v8882, %v8889
    %v8898 = vadd.f32 %v8883, %v8889
    %v8899 = vmax.f32 %v8891, 0.0
    %v8900 = vmax.f32 %v8892, 0.0
    %v8901 = vmax.f32 %v8893, 0.0
    %v8902 = vmax.f32 %v8894, 0.0
    %v8903 = vmax.f32 %v8895, 0.0
    %v8904 = vmax.f32 %v8896, 0.0
    %v8905 = vmax.f32 %v8897, 0.0
    %v8906 = vmax.f32 %v8898, 0.0
    %v8915 = vcombine.high %v8899, %v8899
    %v8917 = vunpack.c.l.s4 1983009808
    %v8918 = vunpack.c.0.s8 %v8917
    %v8919 = vlaneseq
    %v8920 = vshrl.u32 %v8919, 7
    %v8921 = vsub.s32 %v8918, %v8920
    %v8922 = vrot.slane %v8899, %v8921
    %v8924 = vunpack.c.l.s4 1983009808
    %v8925 = vunpack.c.0.s8 %v8924
    %v8926 = vlaneseq
    %v8927 = vshrl.u32 %v8926, 7
    %v8928 = vsub.s32 %v8925, %v8927
    %v8929 = vrot.slane %v8915, %v8928
    %v8930 = vcombine.high %v8922, %v8922
    %v8931 = vcombine.high %v8929, %v8929
    %v8932 = vcombine.high %v8900, %v8900
    %v8934 = vunpack.c.l.s4 1983009808
    %v8935 = vunpack.c.0.s8 %v8934
    %v8936 = vlaneseq
    %v8937 = vshrl.u32 %v8936, 7
    %v8938 = vsub.s32 %v8935, %v8937
    %v8939 = vrot.slane %v8900, %v8938
    %v8941 = vunpack.c.l.s4 1983009808
    %v8942 = vunpack.c.0.s8 %v8941
    %v8943 = vlaneseq
    %v8944 = vshrl.u32 %v8943, 7
    %v8945 = vsub.s32 %v8942, %v8944
    %v8946 = vrot.slane %v8932, %v8945
    %v8947 = vcombine.high %v8939, %v8939
    %v8948 = vcombine.high %v8946, %v8946
    %v8949 = vcombine.high %v8901, %v8901
    %v8951 = vunpack.c.l.s4 1983009808
    %v8952 = vunpack.c.0.s8 %v8951
    %v8953 = vlaneseq
    %v8954 = vshrl.u32 %v8953, 7
    %v8955 = vsub.s32 %v8952, %v8954
    %v8956 = vrot.slane %v8901, %v8955
    %v8958 = vunpack.c.l.s4 1983009808
    %v8959 = vunpack.c.0.s8 %v8958
    %v8960 = vlaneseq
    %v8961 = vshrl.u32 %v8960, 7
    %v8962 = vsub.s32 %v8959, %v8961
    %v8963 = vrot.slane %v8949, %v8962
    %v8964 = vcombine.high %v8956, %v8956
    %v8965 = vcombine.high %v8963, %v8963
    %v8966 = vcombine.high %v8902, %v8902
    %v8968 = vunpack.c.l.s4 1983009808
    %v8969 = vunpack.c.0.s8 %v8968
    %v8970 = vlaneseq
    %v8971 = vshrl.u32 %v8970, 7
    %v8972 = vsub.s32 %v8969, %v8971
    %v8973 = vrot.slane %v8902, %v8972
    %v8975 = vunpack.c.l.s4 1983009808
    %v8976 = vunpack.c.0.s8 %v8975
    %v8977 = vlaneseq
    %v8978 = vshrl.u32 %v8977, 7
    %v8979 = vsub.s32 %v8976, %v8978
    %v8980 = vrot.slane %v8966, %v8979
    %v8981 = vcombine.high %v8973, %v8973
    %v8982 = vcombine.high %v8980, %v8980
    %v8983 = vcombine.high %v8903, %v8903
    %v8985 = vunpack.c.l.s4 1983009808
    %v8986 = vunpack.c.0.s8 %v8985
    %v8987 = vlaneseq
    %v8988 = vshrl.u32 %v8987, 7
    %v8989 = vsub.s32 %v8986, %v8988
    %v8990 = vrot.slane %v8903, %v8989
    %v8992 = vunpack.c.l.s4 1983009808
    %v8993 = vunpack.c.0.s8 %v8992
    %v8994 = vlaneseq
    %v8995 = vshrl.u32 %v8994, 7
    %v8996 = vsub.s32 %v8993, %v8995
    %v8997 = vrot.slane %v8983, %v8996
    %v8998 = vcombine.high %v8990, %v8990
    %v8999 = vcombine.high %v8997, %v8997
    %v9000 = vcombine.high %v8904, %v8904
    %v9002 = vunpack.c.l.s4 1983009808
    %v9003 = vunpack.c.0.s8 %v9002
    %v9004 = vlaneseq
    %v9005 = vshrl.u32 %v9004, 7
    %v9006 = vsub.s32 %v9003, %v9005
    %v9007 = vrot.slane %v8904, %v9006
    %v9009 = vunpack.c.l.s4 1983009808
    %v9010 = vunpack.c.0.s8 %v9009
    %v9011 = vlaneseq
    %v9012 = vshrl.u32 %v9011, 7
    %v9013 = vsub.s32 %v9010, %v9012
    %v9014 = vrot.slane %v9000, %v9013
    %v9015 = vcombine.high %v9007, %v9007
    %v9016 = vcombine.high %v9014, %v9014
    %v9017 = vcombine.high %v8905, %v8905
    %v9019 = vunpack.c.l.s4 1983009808
    %v9020 = vunpack.c.0.s8 %v9019
    %v9021 = vlaneseq
    %v9022 = vshrl.u32 %v9021, 7
    %v9023 = vsub.s32 %v9020, %v9022
    %v9024 = vrot.slane %v8905, %v9023
    %v9026 = vunpack.c.l.s4 1983009808
    %v9027 = vunpack.c.0.s8 %v9026
    %v9028 = vlaneseq
    %v9029 = vshrl.u32 %v9028, 7
    %v9030 = vsub.s32 %v9027, %v9029
    %v9031 = vrot.slane %v9017, %v9030
    %v9032 = vcombine.high %v9024, %v9024
    %v9033 = vcombine.high %v9031, %v9031
    %v9034 = vcombine.high %v8906, %v8906
    %v9036 = vunpack.c.l.s4 1983009808
    %v9037 = vunpack.c.0.s8 %v9036
    %v9038 = vlaneseq
    %v9039 = vshrl.u32 %v9038, 7
    %v9040 = vsub.s32 %v9037, %v9039
    %v9041 = vrot.slane %v8906, %v9040
    %v9043 = vunpack.c.l.s4 1983009808
    %v9044 = vunpack.c.0.s8 %v9043
    %v9045 = vlaneseq
    %v9046 = vshrl.u32 %v9045, 7
    %v9047 = vsub.s32 %v9044, %v9046
    %v9048 = vrot.slane %v9034, %v9047
    %v9049 = vcombine.high %v9041, %v9041
    %v9050 = vcombine.high %v9048, %v9048
    %v9083 = vrot.slane %v8922, 7
    %v9084 = vrot.slane %v9083, 2
    %v9085 = vrot.slane %v8930, 7
    %v9086 = vrot.slane %v9085, 2
    %v9087 = vrot.slane %v8929, 7
    %v9088 = vrot.slane %v9087, 2
    %v9089 = vrot.slane %v8931, 7
    %v9090 = vrot.slane %v9089, 2
    %v9091 = vrot.slane %v8939, 7
    %v9092 = vrot.slane %v9091, 2
    %v9093 = vrot.slane %v8947, 7
    %v9094 = vrot.slane %v9093, 2
    %v9095 = vrot.slane %v8946, 7
    %v9096 = vrot.slane %v9095, 2
    %v9097 = vrot.slane %v8948, 7
    %v9098 = vrot.slane %v9097, 2
    %v9099 = vrot.slane %v8956, 7
    %v9100 = vrot.slane %v9099, 2
    %v9101 = vrot.slane %v8964, 7
    %v9102 = vrot.slane %v9101, 2
    %v9103 = vrot.slane %v8963, 7
    %v9104 = vrot.slane %v9103, 2
    %v9105 = vrot.slane %v8965, 7
    %v9106 = vrot.slane %v9105, 2
    %v9107 = vrot.slane %v8973, 7
    %v9108 = vrot.slane %v9107, 2
    %v9109 = vrot.slane %v8981, 7
    %v9110 = vrot.slane %v9109, 2
    %v9111 = vrot.slane %v8980, 7
    %v9112 = vrot.slane %v9111, 2
    %v9113 = vrot.slane %v8982, 7
    %v9114 = vrot.slane %v9113, 2
    %v9115 = vrot.slane %v8990, 7
    %v9116 = vrot.slane %v9115, 2
    %v9117 = vrot.slane %v8998, 7
    %v9118 = vrot.slane %v9117, 2
    %v9119 = vrot.slane %v8997, 7
    %v9120 = vrot.slane %v9119, 2
    %v9121 = vrot.slane %v8999, 7
    %v9122 = vrot.slane %v9121, 2
    %v9123 = vrot.slane %v9007, 7
    %v9124 = vrot.slane %v9123, 2
    %v9125 = vrot.slane %v9015, 7
    %v9126 = vrot.slane %v9125, 2
    %v9127 = vrot.slane %v9014, 7
    %v9128 = vrot.slane %v9127, 2
    %v9129 = vrot.slane %v9016, 7
    %v9130 = vrot.slane %v9129, 2
    %v9131 = vrot.slane %v9024, 7
    %v9132 = vrot.slane %v9131, 2
    %v9133 = vrot.slane %v9032, 7
    %v9134 = vrot.slane %v9133, 2
    %v9135 = vrot.slane %v9031, 7
    %v9136 = vrot.slane %v9135, 2
    %v9137 = vrot.slane %v9033, 7
    %v9138 = vrot.slane %v9137, 2
    %v9139 = vrot.slane %v9041, 7
    %v9140 = vrot.slane %v9139, 2
    %v9141 = vrot.slane %v9049, 7
    %v9142 = vrot.slane %v9141, 2
    %v9143 = vrot.slane %v9048, 7
    %v9144 = vrot.slane %v9143, 2
    %v9145 = vrot.slane %v9050, 7
    %v9146 = vrot.slane %v9145, 2
    %v9179 = vmax.f32 %v8922, %v9084
    %v9180 = vmax.f32 %v8930, %v9086
    %v9181 = vmax.f32 %v8929, %v9088
    %v9182 = vmax.f32 %v8931, %v9090
    %v9183 = vmax.f32 %v8939, %v9092
    %v9184 = vmax.f32 %v8947, %v9094
    %v9185 = vmax.f32 %v8946, %v9096
    %v9186 = vmax.f32 %v8948, %v9098
    %v9187 = vmax.f32 %v8956, %v9100
    %v9188 = vmax.f32 %v8964, %v9102
    %v9189 = vmax.f32 %v8963, %v9104
    %v9190 = vmax.f32 %v8965, %v9106
    %v9191 = vmax.f32 %v8973, %v9108
    %v9192 = vmax.f32 %v8981, %v9110
    %v9193 = vmax.f32 %v8980, %v9112
    %v9194 = vmax.f32 %v8982, %v9114
    %v9195 = vmax.f32 %v8990, %v9116
    %v9196 = vmax.f32 %v8998, %v9118
    %v9197 = vmax.f32 %v8997, %v9120
    %v9198 = vmax.f32 %v8999, %v9122
    %v9199 = vmax.f32 %v9007, %v9124
    %v9200 = vmax.f32 %v9015, %v9126
    %v9201 = vmax.f32 %v9014, %v9128
    %v9202 = vmax.f32 %v9016, %v9130
    %v9203 = vmax.f32 %v9024, %v9132
    %v9204 = vmax.f32 %v9032, %v9134
    %v9205 = vmax.f32 %v9031, %v9136
    %v9206 = vmax.f32 %v9033, %v9138
    %v9207 = vmax.f32 %v9041, %v9140
    %v9208 = vmax.f32 %v9049, %v9142
    %v9209 = vmax.f32 %v9048, %v9144
    %v9210 = vmax.f32 %v9050, %v9146
    %v9211 = vmax.f32 %v9179, %v9183
    %v9212 = vmax.f32 %v9180, %v9184
    %v9213 = vmax.f32 %v9181, %v9185
    %v9214 = vmax.f32 %v9182, %v9186
    %v9215 = vmax.f32 %v9187, %v9191
    %v9216 = vmax.f32 %v9188, %v9192
    %v9217 = vmax.f32 %v9189, %v9193
    %v9218 = vmax.f32 %v9190, %v9194
    %v9219 = vmax.f32 %v9195, %v9199
    %v9220 = vmax.f32 %v9196, %v9200
    %v9221 = vmax.f32 %v9197, %v9201
    %v9222 = vmax.f32 %v9198, %v9202
    %v9223 = vmax.f32 %v9203, %v9207
    %v9224 = vmax.f32 %v9204, %v9208
    %v9225 = vmax.f32 %v9205, %v9209
    %v9226 = vmax.f32 %v9206, %v9210
    %9227 = vst [vmem:[#allocation4] sm:$0x7] 0
    %s9228 = scalar_lea.vmem [#allocation4], 20
    %9229 = vst [vmem:[%s9228] sm:$0x7] 0
    %vm9230 = vcmask 1040384
    %vm9231 = vmand %vm9230, %vm64
    %v9232 = vld [vmem:[#allocation4] sm:$0x1]
    %v9233 = vsel %vm9231, 0, %v9232
    %9234 = vst [vmem:[#allocation4] sm:$0x1] %v9233
    %v9235 = vld [vmem:[#allocation4 + $0x4] sm:$0x1]
    %v9236 = vsel %vm9231, 0, %v9235
    %9237 = vst [vmem:[#allocation4 + $0x4] sm:$0x1] %v9236
    %v9238 = vld [vmem:[#allocation4 + $0x8] sm:$0x1]
    %v9239 = vsel %vm9231, 0, %v9238
    %9240 = vst [vmem:[#allocation4 + $0x8] sm:$0x1] %v9239
    %v9241 = vld [vmem:[#allocation4 + $0xc] sm:$0x1]
    %v9242 = vsel %vm9231, 0, %v9241
    %9243 = vst [vmem:[#allocation4 + $0xc] sm:$0x1] %v9242
    %v9244 = vld [vmem:[#allocation4 + $0x10] sm:$0x1]
    %v9245 = vsel %vm9231, 0, %v9244
    %9246 = vst [vmem:[#allocation4 + $0x10] sm:$0x1] %v9245
    %v9247 = vld [vmem:[#allocation4 + $0x14] sm:$0x1]
    %v9248 = vsel %vm9231, 0, %v9247
    %9249 = vst [vmem:[#allocation4 + $0x14] sm:$0x1] %v9248
    %vm9250 = vcmask 1042434
    %vm9251 = vsmask.f32 7946
    %vm9252 = vmand %vm9250, %vm9251
    %v9253 = vld [vmem:[#allocation4] sm:$0x4]
    %v9254 = vsel %vm9252, 0, %v9253
    %9255 = vst [vmem:[#allocation4] sm:$0x4] %v9254
    %v9256 = vld [vmem:[#allocation4 + $0x4] sm:$0x4]
    %v9257 = vsel %vm9252, 0, %v9256
    %9258 = vst [vmem:[#allocation4 + $0x4] sm:$0x4] %v9257
    %v9259 = vld [vmem:[#allocation4 + $0x8] sm:$0x4]
    %v9260 = vsel %vm9252, 0, %v9259
    %9261 = vst [vmem:[#allocation4 + $0x8] sm:$0x4] %v9260
    %v9262 = vld [vmem:[#allocation4 + $0xc] sm:$0x4]
    %v9263 = vsel %vm9252, 0, %v9262
    %9264 = vst [vmem:[#allocation4 + $0xc] sm:$0x4] %v9263
    %v9265 = vld [vmem:[#allocation4 + $0x10] sm:$0x4]
    %v9266 = vsel %vm9252, 0, %v9265
    %9267 = vst [vmem:[#allocation4 + $0x10] sm:$0x4] %v9266
    %v9268 = vld [vmem:[#allocation4 + $0x14] sm:$0x4]
    %v9269 = vsel %vm9252, 0, %v9268
    %9270 = vst [vmem:[#allocation4 + $0x14] sm:$0x4] %v9269
    %v9271 = vpack.c.bf16 %v9211, %v9211
    %v9272 = vpack.c.bf16 %v9212, %v9212
    %v9273 = vpack.c.bf16 %v9213, %v9213
    %v9274 = vpack.c.bf16 %v9214, %v9214
    %v9275 = vpack.c.bf16 %v9215, %v9215
    %v9276 = vpack.c.bf16 %v9216, %v9216
    %v9277 = vpack.c.bf16 %v9217, %v9217
    %v9278 = vpack.c.bf16 %v9218, %v9218
    %v9279 = vpack.c.bf16 %v9219, %v9219
    %v9280 = vpack.c.bf16 %v9220, %v9220
    %v9281 = vpack.c.bf16 %v9221, %v9221
    %v9282 = vpack.c.bf16 %v9222, %v9222
    %v9283 = vpack.c.bf16 %v9223, %v9223
    %v9284 = vpack.c.bf16 %v9224, %v9224
    %v9285 = vpack.c.bf16 %v9225, %v9225
    %v9286 = vpack.c.bf16 %v9226, %v9226
    %v9303 = vunpack.c.l.b16 %v9271
    %v9304 = vunpack.c.l.b16 %v9272
    %v9305 = vunpack.c.l.b16 %v9273
    %v9306 = vunpack.c.l.b16 %v9274
    %v9307 = vunpack.c.l.b16 %v9275
    %v9308 = vunpack.c.l.b16 %v9276
    %v9309 = vunpack.c.l.b16 %v9277
    %v9310 = vunpack.c.l.b16 %v9278
    %v9311 = vunpack.c.l.b16 %v9279
    %v9312 = vunpack.c.l.b16 %v9280
    %v9313 = vunpack.c.l.b16 %v9281
    %v9314 = vunpack.c.l.b16 %v9282
    %v9315 = vunpack.c.l.b16 %v9283
    %v9316 = vunpack.c.l.b16 %v9284
    %v9317 = vunpack.c.l.b16 %v9285
    %v9318 = vunpack.c.l.b16 %v9286
    %v9319 = vpack.c.b16 %v9303, %v9303
    %v9320 = vpack.c.b16 %v9304, %v9304
    %v9321 = vpack.c.b16 %v9305, %v9305
    %v9322 = vpack.c.b16 %v9306, %v9306
    %v9323 = vpack.c.b16 %v9307, %v9307
    %v9324 = vpack.c.b16 %v9308, %v9308
    %v9325 = vpack.c.b16 %v9309, %v9309
    %v9326 = vpack.c.b16 %v9310, %v9310
    %v9327 = vpack.c.b16 %v9311, %v9311
    %v9328 = vpack.c.b16 %v9312, %v9312
    %v9329 = vpack.c.b16 %v9313, %v9313
    %v9330 = vpack.c.b16 %v9314, %v9314
    %v9331 = vpack.c.b16 %v9315, %v9315
    %v9332 = vpack.c.b16 %v9316, %v9316
    %v9333 = vpack.c.b16 %v9317, %v9317
    %v9334 = vpack.c.b16 %v9318, %v9318
    %v9335 = vunpack.c.l.b16 %v9319
    %v9336 = vunpack.c.l.b16 %v9320
    %v9337 = vunpack.c.l.b16 %v9321
    %v9338 = vunpack.c.l.b16 %v9322
    %v9339 = vunpack.c.l.b16 %v9323
    %v9340 = vunpack.c.l.b16 %v9324
    %v9341 = vunpack.c.l.b16 %v9325
    %v9342 = vunpack.c.l.b16 %v9326
    %v9343 = vunpack.c.l.b16 %v9327
    %v9344 = vunpack.c.l.b16 %v9328
    %v9345 = vunpack.c.l.b16 %v9329
    %v9346 = vunpack.c.l.b16 %v9330
    %v9347 = vunpack.c.l.b16 %v9331
    %v9348 = vunpack.c.l.b16 %v9332
    %v9349 = vunpack.c.l.b16 %v9333
    %v9350 = vunpack.c.l.b16 %v9334
    %v9351 = vrot.slane %v9335, 7
    %v9352 = vrot.slane %v9336, 6
    %v9353 = vsel %vm6946, %v9352, %v9351
    %v9354 = vrot.slane %v9337, 5
    %v9355 = vsel %vm6949, %v9354, %v9353
    %v9356 = vrot.slane %v9338, 4
    %v9357 = vsel %vm6952, %v9356, %v9355
    %v9358 = vrot.slane %v9339, 7
    %v9359 = vrot.slane %v9340, 6
    %v9360 = vsel %vm6946, %v9359, %v9358
    %v9361 = vrot.slane %v9341, 5
    %v9362 = vsel %vm6949, %v9361, %v9360
    %v9363 = vrot.slane %v9342, 4
    %v9364 = vsel %vm6952, %v9363, %v9362
    %v9365 = vrot.slane %v9343, 7
    %v9366 = vrot.slane %v9344, 6
    %v9367 = vsel %vm6946, %v9366, %v9365
    %v9368 = vrot.slane %v9345, 5
    %v9369 = vsel %vm6949, %v9368, %v9367
    %v9370 = vrot.slane %v9346, 4
    %v9371 = vsel %vm6952, %v9370, %v9369
    %v9372 = vrot.slane %v9347, 7
    %v9373 = vrot.slane %v9348, 6
    %v9374 = vsel %vm6946, %v9373, %v9372
    %v9375 = vrot.slane %v9349, 5
    %v9376 = vsel %vm6949, %v9375, %v9374
    %v9377 = vrot.slane %v9350, 4
    %v9378 = vsel %vm6952, %v9377, %v9376
    %v9379 = vpack.c.b16 %v9357, %v9357
    %v9380 = vpack.c.b16 %v9364, %v9364
    %v9381 = vpack.c.b16 %v9371, %v9371
    %v9382 = vpack.c.b16 %v9378, %v9378
    %s9387 = scalar_lea.vmem [#allocation4], 4
    %vm9388 = vsmask.f32 2306
    %vm9389 = vmand %vm1685, %vm9388
    %v9390 = vld [vmem:[%s9387] sm:$0x7]
    %v9391 = vsel %vm9389, %v9379, %v9390
    %9392 = vst [vmem:[%s9387] sm:$0x7] %v9391
    %v9393 = vld [vmem:[%s9387 + $0x4] sm:$0x7]
    %v9394 = vsel %vm9389, %v9380, %v9393
    %9395 = vst [vmem:[%s9387 + $0x4] sm:$0x7] %v9394
    %v9396 = vld [vmem:[%s9387 + $0x8] sm:$0x7]
    %v9397 = vsel %vm9389, %v9381, %v9396
    %9398 = vst [vmem:[%s9387 + $0x8] sm:$0x7] %v9397
    %v9399 = vld [vmem:[%s9387 + $0xc] sm:$0x7]
    %v9400 = vsel %vm9389, %v9382, %v9399
    %9401 = vst [vmem:[%s9387 + $0xc] sm:$0x7] %v9400
    %v9402 = vld [vmem:[#allocation4] sm:$0x3]
    %v9403 = vld [vmem:[#allocation4 + $0x4] sm:$0x3]
    %v9404 = vld [vmem:[#allocation4 + $0x8] sm:$0x3]
    %v9405 = vld [vmem:[#allocation4 + $0xc] sm:$0x3]
    %v9406 = vld [vmem:[%s5] sm:$0xf]
    %v9407 = vld [vmem:[%s5 + $0x4] sm:$0xf]
    %v9408 = vld [vmem:[%s5 + $0x8] sm:$0xf]
    %v9409 = vld [vmem:[%s5 + $0xc] sm:$0xf]
    %v9410 = vld [vmem:[%s5 + $0x10] sm:$0xf]
    %v9411 = vld [vmem:[%s5 + $0x14] sm:$0xf]
    %v9412 = vld [vmem:[%s5 + $0x18] sm:$0xf]
    %v9413 = vld [vmem:[%s5 + $0x1c] sm:$0xf]
    %v9414 = vld [vmem:[%s5 + $0x20] sm:$0xf]
    %v9415 = vld [vmem:[%s5 + $0x24] sm:$0xf]
    %v9416 = vld [vmem:[%s5 + $0x28] sm:$0xf]
    %v9417 = vld [vmem:[%s5 + $0x2c] sm:$0xf]
    %v9418 = vld [vmem:[%s5 + $0x30] sm:$0xf]
    %v9419 = vld [vmem:[%s5 + $0x34] sm:$0xf]
    %v9420 = vld [vmem:[%s5 + $0x38] sm:$0xf]
    %v9421 = vld [vmem:[%s5 + $0x3c] sm:$0xf]
    %v9422 = vld [vmem:[#allocation4] sm:$0x7]
    %v9423 = vld [vmem:[#allocation4 + $0x4] sm:$0x7]
    %v9424 = vld [vmem:[#allocation4 + $0x8] sm:$0x7]
    %v9425 = vld [vmem:[#allocation4 + $0xc] sm:$0x7]
    %v9431 = vunpack.c.l.s4 1983009808
    %v9432 = vunpack.c.0.s8 %v9431
    %v9433 = vlaneseq
    %v9434 = vshrl.u32 %v9433, 7
    %v9435 = vsub.s32 %v9432, %v9434
    %v9436 = vrot.slane %v9422, %v9435
    %v9437 = vcombine.high %v9436, %v9436
    %v9439 = vunpack.c.l.s4 1983009808
    %v9440 = vunpack.c.0.s8 %v9439
    %v9441 = vlaneseq
    %v9442 = vshrl.u32 %v9441, 7
    %v9443 = vsub.s32 %v9440, %v9442
    %v9444 = vrot.slane %v9423, %v9443
    %v9445 = vcombine.high %v9444, %v9444
    %v9447 = vunpack.c.l.s4 1983009808
    %v9448 = vunpack.c.0.s8 %v9447
    %v9449 = vlaneseq
    %v9450 = vshrl.u32 %v9449, 7
    %v9451 = vsub.s32 %v9448, %v9450
    %v9452 = vrot.slane %v9424, %v9451
    %v9453 = vcombine.high %v9452, %v9452
    %v9455 = vunpack.c.l.s4 1983009808
    %v9456 = vunpack.c.0.s8 %v9455
    %v9457 = vlaneseq
    %v9458 = vshrl.u32 %v9457, 7
    %v9459 = vsub.s32 %v9456, %v9458
    %v9460 = vrot.slane %v9425, %v9459
    %v9461 = vcombine.high %v9460, %v9460
    %vm9462 = vsmask.f32 1280
    %vm9463 = vsmask.f32 3336
    %vm9464 = vmor %vm9462, %vm9463
    %vm9465 = vsmask.f32 5392
    %vm9466 = vmor %vm9464, %vm9465
    %vm9467 = vsmask.f32 7448
    %vm9468 = vmor %vm9466, %vm9467
    %v9470 = vshrl.u32 %v9436, 16
    %v9472 = vrot.slane %v9470, 6
    %v9473 = vshll.u32 %v9436, 16
    %v9475 = vrot.slane %v9473, 7
    %v9476 = vor.u32 %v9472, %v9475
    %v9477 = vrot.slane %v9476, 2
    %v9479 = vshll.u32 %v9437, 16
    %v9481 = vrot.slane %v9479, 7
    %v9482 = vsel %vm9468, %v9477, %v9481
    %v9484 = vshrl.u32 %v9444, 16
    %v9486 = vrot.slane %v9484, 6
    %v9487 = vshll.u32 %v9444, 16
    %v9489 = vrot.slane %v9487, 7
    %v9490 = vor.u32 %v9486, %v9489
    %v9491 = vrot.slane %v9490, 2
    %v9493 = vshll.u32 %v9445, 16
    %v9495 = vrot.slane %v9493, 7
    %v9496 = vsel %vm9468, %v9491, %v9495
    %v9498 = vshrl.u32 %v9452, 16
    %v9500 = vrot.slane %v9498, 6
    %v9501 = vshll.u32 %v9452, 16
    %v9503 = vrot.slane %v9501, 7
    %v9504 = vor.u32 %v9500, %v9503
    %v9505 = vrot.slane %v9504, 2
    %v9507 = vshll.u32 %v9453, 16
    %v9509 = vrot.slane %v9507, 7
    %v9510 = vsel %vm9468, %v9505, %v9509
    %v9512 = vshrl.u32 %v9460, 16
    %v9514 = vrot.slane %v9512, 6
    %v9515 = vshll.u32 %v9460, 16
    %v9517 = vrot.slane %v9515, 7
    %v9518 = vor.u32 %v9514, %v9517
    %v9519 = vrot.slane %v9518, 2
    %v9521 = vshll.u32 %v9461, 16
    %v9523 = vrot.slane %v9521, 7
    %v9524 = vsel %vm9468, %v9519, %v9523
    %s9525 = scalar_lea.vmem %s5, 64
    %v9526 = vld [vmem:[%s9525] sm:$0xf]
    %v9527 = vld [vmem:[%s9525 + $0x4] sm:$0xf]
    %v9528 = vld [vmem:[%s9525 + $0x8] sm:$0xf]
    %v9529 = vld [vmem:[%s9525 + $0xc] sm:$0xf]
    %v9530 = vld [vmem:[%s9525 + $0x10] sm:$0xf]
    %v9531 = vld [vmem:[%s9525 + $0x14] sm:$0xf]
    %v9532 = vld [vmem:[%s9525 + $0x18] sm:$0xf]
    %v9533 = vld [vmem:[%s9525 + $0x1c] sm:$0xf]
    %v9534 = vld [vmem:[%s9525 + $0x20] sm:$0xf]
    %v9535 = vld [vmem:[%s9525 + $0x24] sm:$0xf]
    %v9536 = vld [vmem:[%s9525 + $0x28] sm:$0xf]
    %v9537 = vld [vmem:[%s9525 + $0x2c] sm:$0xf]
    %v9538 = vld [vmem:[%s9525 + $0x30] sm:$0xf]
    %v9539 = vld [vmem:[%s9525 + $0x34] sm:$0xf]
    %v9540 = vld [vmem:[%s9525 + $0x38] sm:$0xf]
    %v9541 = vld [vmem:[%s9525 + $0x3c] sm:$0xf]
    %v9542 = vcombine.low %v9482, %v9496
    %v9543 = vcombine.low %v9510, %v9524
    %v9545 = vunpack.c.l.s4 1983009808
    %v9546 = vunpack.c.0.s8 %v9545
    %v9547 = vlaneseq
    %v9548 = vshrl.u32 %v9547, 7
    %v9549 = vsub.s32 %v9546, %v9548
    %v9550 = vrot.slane %v9542, %v9549
    %v9552 = vunpack.c.l.s4 1983009808
    %v9553 = vunpack.c.0.s8 %v9552
    %v9554 = vlaneseq
    %v9555 = vshrl.u32 %v9554, 7
    %v9556 = vsub.s32 %v9553, %v9555
    %v9557 = vrot.slane %v9543, %v9556
    %v9558 = vcombine.low %v9550, %v9557
    %v9576 = vunpack.c.l.b16 %v9526
    %v9577 = vunpack.c.l.b16 %v9527
    %v9578 = vunpack.c.l.b16 %v9528
    %v9579 = vunpack.c.l.b16 %v9529
    %v9580 = vunpack.c.l.b16 %v9530
    %v9581 = vunpack.c.l.b16 %v9531
    %v9582 = vunpack.c.l.b16 %v9532
    %v9583 = vunpack.c.l.b16 %v9533
    %v9584 = vunpack.c.l.b16 %v9534
    %v9585 = vunpack.c.l.b16 %v9535
    %v9586 = vunpack.c.l.b16 %v9536
    %v9587 = vunpack.c.l.b16 %v9537
    %v9588 = vunpack.c.l.b16 %v9538
    %v9589 = vunpack.c.l.b16 %v9539
    %v9590 = vunpack.c.l.b16 %v9540
    %v9591 = vunpack.c.l.b16 %v9541
    %v9592 = vpack.c.b16 %v9577, %v9576
    %v9593 = vpack.c.b16 %v9579, %v9578
    %v9594 = vpack.c.b16 %v9581, %v9580
    %v9595 = vpack.c.b16 %v9583, %v9582
    %v9596 = vpack.c.b16 %v9585, %v9584
    %v9597 = vpack.c.b16 %v9587, %v9586
    %v9598 = vpack.c.b16 %v9589, %v9588
    %v9599 = vpack.c.b16 %v9591, %v9590
    %9608 = vmatprep.subr.bf16.mxu0 0
    %9609 = vmatpush1.bf16.msra.mxu0 %v9599
    %9610 = vmatprep.subr.bf16.mxu0 0
    %9611 = vmatpush1.bf16.msra.mxu0 %v9598
    %9612 = vmatprep.subr.bf16.mxu0 0
    %9613 = vmatpush1.bf16.msra.mxu0 %v9597
    %9614 = vmatprep.subr.bf16.mxu0 0
    %9615 = vmatpush1.bf16.msra.mxu0 %v9596
    %9616 = vmatprep.subr.bf16.mxu0 0
    %9617 = vmatpush1.bf16.msra.mxu0 %v9595
    %9618 = vmatprep.subr.bf16.mxu0 0
    %9619 = vmatpush1.bf16.msra.mxu0 %v9594
    %9620 = vmatprep.subr.bf16.mxu0 0
    %9621 = vmatpush1.bf16.msra.mxu0 %v9593
    %9622 = vmatprep.subr.bf16.mxu0 0
    %9623 = vmatpush1.bf16.msra.mxu0 %v9592
    %9624 = vmatprep.subr.bf16.mxu0 0
    %9625 = vmatpush2.bf16.msra.mxu0 0
    %9626 = vmatprep.subr.bf16.mxu0 0
    %9627 = vmatpush2.bf16.msra.mxu0 0
    %9628 = vmatprep.subr.bf16.mxu0 0
    %9629 = vmatpush2.bf16.msra.mxu0 0
    %9630 = vmatprep.subr.bf16.mxu0 0
    %9631 = vmatpush2.bf16.msra.mxu0 0
    %9632 = vmatprep.subr.bf16.mxu0 0
    %9633 = vmatpush2.bf16.msra.mxu0 0
    %9634 = vmatprep.subr.bf16.mxu0 0
    %9635 = vmatpush2.bf16.msra.mxu0 0
    %9636 = vmatprep.subr.bf16.mxu0 0
    %9637 = vmatpush2.bf16.msra.mxu0 0
    %9638 = vmatprep.subr.bf16.mxu0 0
    %9639 = vmatpush2.bf16.msra.mxu0 0
    %9640 = vmatprep.mubr.bf16.mxu0 0
    %9641 = vmatmul.mubr.bf16.gmra.mxu0 %v9558
    %v9642 = vpop.f32.mrf.mxu0
    %v9643 = vadd.f32 0.0, %v9642
    %v9644 = vpop.f32.mrf.mxu0
    %v9645 = vpop.f32.mrf.mxu0
    %v9646 = vadd.f32 0.0, %v9645
    %v9647 = vpop.f32.mrf.mxu0
    %9648 = vdwg.mxu0
    %v9653 = vcombine.low %v9402, %v9403
    %v9654 = vcombine.low %v9404, %v9405
    %v9656 = vunpack.c.l.s4 1983009808
    %v9657 = vunpack.c.0.s8 %v9656
    %v9658 = vlaneseq
    %v9659 = vshrl.u32 %v9658, 7
    %v9660 = vsub.s32 %v9657, %v9659
    %v9661 = vrot.slane %v9653, %v9660
    %v9663 = vunpack.c.l.s4 1983009808
    %v9664 = vunpack.c.0.s8 %v9663
    %v9665 = vlaneseq
    %v9666 = vshrl.u32 %v9665, 7
    %v9667 = vsub.s32 %v9664, %v9666
    %v9668 = vrot.slane %v9654, %v9667
    %v9669 = vcombine.low %v9661, %v9668
    %v9687 = vunpack.c.l.b16 %v9406
    %v9688 = vunpack.c.l.b16 %v9407
    %v9689 = vunpack.c.l.b16 %v9408
    %v9690 = vunpack.c.l.b16 %v9409
    %v9691 = vunpack.c.l.b16 %v9410
    %v9692 = vunpack.c.l.b16 %v9411
    %v9693 = vunpack.c.l.b16 %v9412
    %v9694 = vunpack.c.l.b16 %v9413
    %v9695 = vunpack.c.l.b16 %v9414
    %v9696 = vunpack.c.l.b16 %v9415
    %v9697 = vunpack.c.l.b16 %v9416
    %v9698 = vunpack.c.l.b16 %v9417
    %v9699 = vunpack.c.l.b16 %v9418
    %v9700 = vunpack.c.l.b16 %v9419
    %v9701 = vunpack.c.l.b16 %v9420
    %v9702 = vunpack.c.l.b16 %v9421
    %v9703 = vpack.c.b16 %v9688, %v9687
    %v9704 = vpack.c.b16 %v9690, %v9689
    %v9705 = vpack.c.b16 %v9692, %v9691
    %v9706 = vpack.c.b16 %v9694, %v9693
    %v9707 = vpack.c.b16 %v9696, %v9695
    %v9708 = vpack.c.b16 %v9698, %v9697
    %v9709 = vpack.c.b16 %v9700, %v9699
    %v9710 = vpack.c.b16 %v9702, %v9701
    %9719 = vmatprep.subr.bf16.mxu0 0
    %9720 = vmatpush1.bf16.msra.mxu0 %v9710
    %9721 = vmatprep.subr.bf16.mxu0 0
    %9722 = vmatpush1.bf16.msra.mxu0 %v9709
    %9723 = vmatprep.subr.bf16.mxu0 0
    %9724 = vmatpush1.bf16.msra.mxu0 %v9708
    %9725 = vmatprep.subr.bf16.mxu0 0
    %9726 = vmatpush1.bf16.msra.mxu0 %v9707
    %9727 = vmatprep.subr.bf16.mxu0 0
    %9728 = vmatpush1.bf16.msra.mxu0 %v9706
    %9729 = vmatprep.subr.bf16.mxu0 0
    %9730 = vmatpush1.bf16.msra.mxu0 %v9705
    %9731 = vmatprep.subr.bf16.mxu0 0
    %9732 = vmatpush1.bf16.msra.mxu0 %v9704
    %9733 = vmatprep.subr.bf16.mxu0 0
    %9734 = vmatpush1.bf16.msra.mxu0 %v9703
    %9735 = vmatprep.subr.bf16.mxu0 0
    %9736 = vmatpush2.bf16.msra.mxu0 0
    %9737 = vmatprep.subr.bf16.mxu0 0
    %9738 = vmatpush2.bf16.msra.mxu0 0
    %9739 = vmatprep.subr.bf16.mxu0 0
    %9740 = vmatpush2.bf16.msra.mxu0 0
    %9741 = vmatprep.subr.bf16.mxu0 0
    %9742 = vmatpush2.bf16.msra.mxu0 0
    %9743 = vmatprep.subr.bf16.mxu0 0
    %9744 = vmatpush2.bf16.msra.mxu0 0
    %9745 = vmatprep.subr.bf16.mxu0 0
    %9746 = vmatpush2.bf16.msra.mxu0 0
    %9747 = vmatprep.subr.bf16.mxu0 0
    %9748 = vmatpush2.bf16.msra.mxu0 0
    %9749 = vmatprep.subr.bf16.mxu0 0
    %9750 = vmatpush2.bf16.msra.mxu0 0
    %9751 = vmatprep.mubr.bf16.mxu0 0
    %9752 = vmatmul.mubr.bf16.gmra.mxu0 %v9669
    %v9753 = vpop.f32.mrf.mxu0
    %v9754 = vadd.f32 %v9643, %v9753
    %v9755 = vpop.f32.mrf.mxu0
    %v9756 = vpop.f32.mrf.mxu0
    %v9757 = vadd.f32 %v9646, %v9756
    %v9758 = vpop.f32.mrf.mxu0
    %9759 = vdwg.mxu0
    %v9760 = vld [vmem:[#allocation4] sm:$0x6]
    %v9761 = vld [vmem:[#allocation4 + $0x4] sm:$0x6]
    %v9762 = vld [vmem:[#allocation4 + $0x8] sm:$0x6]
    %v9763 = vld [vmem:[#allocation4 + $0xc] sm:$0x6]
    %v9769 = vunpack.c.l.s4 1983009808
    %v9770 = vunpack.c.0.s8 %v9769
    %v9771 = vlaneseq
    %v9772 = vshrl.u32 %v9771, 7
    %v9773 = vsub.s32 %v9770, %v9772
    %v9774 = vrot.slane %v9760, %v9773
    %v9775 = vcombine.high %v9774, %v9774
    %v9777 = vunpack.c.l.s4 1983009808
    %v9778 = vunpack.c.0.s8 %v9777
    %v9779 = vlaneseq
    %v9780 = vshrl.u32 %v9779, 7
    %v9781 = vsub.s32 %v9778, %v9780
    %v9782 = vrot.slane %v9761, %v9781
    %v9783 = vcombine.high %v9782, %v9782
    %v9785 = vunpack.c.l.s4 1983009808
    %v9786 = vunpack.c.0.s8 %v9785
    %v9787 = vlaneseq
    %v9788 = vshrl.u32 %v9787, 7
    %v9789 = vsub.s32 %v9786, %v9788
    %v9790 = vrot.slane %v9762, %v9789
    %v9791 = vcombine.high %v9790, %v9790
    %v9793 = vunpack.c.l.s4 1983009808
    %v9794 = vunpack.c.0.s8 %v9793
    %v9795 = vlaneseq
    %v9796 = vshrl.u32 %v9795, 7
    %v9797 = vsub.s32 %v9794, %v9796
    %v9798 = vrot.slane %v9763, %v9797
    %v9799 = vcombine.high %v9798, %v9798
    %vm9800 = vmor %vm9230, %vm9250
    %vm9801 = vcmask 1044484
    %vm9802 = vmor %vm9800, %vm9801
    %vm9803 = vcmask 1046534
    %vm9804 = vmor %vm9802, %vm9803
    %v9805 = vrot.slane %v9774, 7
    %v9806 = vrot.slane %v9805, 2
    %v9807 = vrot.slane %v9775, 7
    %v9808 = vsel %vm9804, %v9806, %v9807
    %v9809 = vrot.slane %v9782, 7
    %v9810 = vrot.slane %v9809, 2
    %v9811 = vrot.slane %v9783, 7
    %v9812 = vsel %vm9804, %v9810, %v9811
    %v9813 = vrot.slane %v9790, 7
    %v9814 = vrot.slane %v9813, 2
    %v9815 = vrot.slane %v9791, 7
    %v9816 = vsel %vm9804, %v9814, %v9815
    %v9817 = vrot.slane %v9798, 7
    %v9818 = vrot.slane %v9817, 2
    %v9819 = vrot.slane %v9799, 7
    %v9820 = vsel %vm9804, %v9818, %v9819
    %s9821 = scalar_lea.vmem %s5, 128
    %v9822 = vld [vmem:[%s9821] sm:$0xf]
    %v9823 = vld [vmem:[%s9821 + $0x4] sm:$0xf]
    %v9824 = vld [vmem:[%s9821 + $0x8] sm:$0xf]
    %v9825 = vld [vmem:[%s9821 + $0xc] sm:$0xf]
    %v9826 = vld [vmem:[%s9821 + $0x10] sm:$0xf]
    %v9827 = vld [vmem:[%s9821 + $0x14] sm:$0xf]
    %v9828 = vld [vmem:[%s9821 + $0x18] sm:$0xf]
    %v9829 = vld [vmem:[%s9821 + $0x1c] sm:$0xf]
    %v9830 = vld [vmem:[%s9821 + $0x20] sm:$0xf]
    %v9831 = vld [vmem:[%s9821 + $0x24] sm:$0xf]
    %v9832 = vld [vmem:[%s9821 + $0x28] sm:$0xf]
    %v9833 = vld [vmem:[%s9821 + $0x2c] sm:$0xf]
    %v9834 = vld [vmem:[%s9821 + $0x30] sm:$0xf]
    %v9835 = vld [vmem:[%s9821 + $0x34] sm:$0xf]
    %v9836 = vld [vmem:[%s9821 + $0x38] sm:$0xf]
    %v9837 = vld [vmem:[%s9821 + $0x3c] sm:$0xf]
    %v9838 = vcombine.low %v9808, %v9812
    %v9839 = vcombine.low %v9816, %v9820
    %v9841 = vunpack.c.l.s4 1983009808
    %v9842 = vunpack.c.0.s8 %v9841
    %v9843 = vlaneseq
    %v9844 = vshrl.u32 %v9843, 7
    %v9845 = vsub.s32 %v9842, %v9844
    %v9846 = vrot.slane %v9838, %v9845
    %v9848 = vunpack.c.l.s4 1983009808
    %v9849 = vunpack.c.0.s8 %v9848
    %v9850 = vlaneseq
    %v9851 = vshrl.u32 %v9850, 7
    %v9852 = vsub.s32 %v9849, %v9851
    %v9853 = vrot.slane %v9839, %v9852
    %v9854 = vcombine.low %v9846, %v9853
    %v9872 = vunpack.c.l.b16 %v9822
    %v9873 = vunpack.c.l.b16 %v9823
    %v9874 = vunpack.c.l.b16 %v9824
    %v9875 = vunpack.c.l.b16 %v9825
    %v9876 = vunpack.c.l.b16 %v9826
    %v9877 = vunpack.c.l.b16 %v9827
    %v9878 = vunpack.c.l.b16 %v9828
    %v9879 = vunpack.c.l.b16 %v9829
    %v9880 = vunpack.c.l.b16 %v9830
    %v9881 = vunpack.c.l.b16 %v9831
    %v9882 = vunpack.c.l.b16 %v9832
    %v9883 = vunpack.c.l.b16 %v9833
    %v9884 = vunpack.c.l.b16 %v9834
    %v9885 = vunpack.c.l.b16 %v9835
    %v9886 = vunpack.c.l.b16 %v9836
    %v9887 = vunpack.c.l.b16 %v9837
    %v9888 = vpack.c.b16 %v9873, %v9872
    %v9889 = vpack.c.b16 %v9875, %v9874
    %v9890 = vpack.c.b16 %v9877, %v9876
    %v9891 = vpack.c.b16 %v9879, %v9878
    %v9892 = vpack.c.b16 %v9881, %v9880
    %v9893 = vpack.c.b16 %v9883, %v9882
    %v9894 = vpack.c.b16 %v9885, %v9884
    %v9895 = vpack.c.b16 %v9887, %v9886
    %9904 = vmatprep.subr.bf16.mxu0 0
    %9905 = vmatpush1.bf16.msra.mxu0 %v9895
    %9906 = vmatprep.subr.bf16.mxu0 0
    %9907 = vmatpush1.bf16.msra.mxu0 %v9894
    %9908 = vmatprep.subr.bf16.mxu0 0
    %9909 = vmatpush1.bf16.msra.mxu0 %v9893
    %9910 = vmatprep.subr.bf16.mxu0 0
    %9911 = vmatpush1.bf16.msra.mxu0 %v9892
    %9912 = vmatprep.subr.bf16.mxu0 0
    %9913 = vmatpush1.bf16.msra.mxu0 %v9891
    %9914 = vmatprep.subr.bf16.mxu0 0
    %9915 = vmatpush1.bf16.msra.mxu0 %v9890
    %9916 = vmatprep.subr.bf16.mxu0 0
    %9917 = vmatpush1.bf16.msra.mxu0 %v9889
    %9918 = vmatprep.subr.bf16.mxu0 0
    %9919 = vmatpush1.bf16.msra.mxu0 %v9888
    %9920 = vmatprep.subr.bf16.mxu0 0
    %9921 = vmatpush2.bf16.msra.mxu0 0
    %9922 = vmatprep.subr.bf16.mxu0 0
    %9923 = vmatpush2.bf16.msra.mxu0 0
    %9924 = vmatprep.subr.bf16.mxu0 0
    %9925 = vmatpush2.bf16.msra.mxu0 0
    %9926 = vmatprep.subr.bf16.mxu0 0
    %9927 = vmatpush2.bf16.msra.mxu0 0
    %9928 = vmatprep.subr.bf16.mxu0 0
    %9929 = vmatpush2.bf16.msra.mxu0 0
    %9930 = vmatprep.subr.bf16.mxu0 0
    %9931 = vmatpush2.bf16.msra.mxu0 0
    %9932 = vmatprep.subr.bf16.mxu0 0
    %9933 = vmatpush2.bf16.msra.mxu0 0
    %9934 = vmatprep.subr.bf16.mxu0 0
    %9935 = vmatpush2.bf16.msra.mxu0 0
    %9936 = vmatprep.mubr.bf16.mxu0 0
    %9937 = vmatmul.mubr.bf16.gmra.mxu0 %v9854
    %v9938 = vpop.f32.mrf.mxu0
    %v9939 = vadd.f32 0.0, %v9938
    %v9940 = vpop.f32.mrf.mxu0
    %v9941 = vpop.f32.mrf.mxu0
    %v9942 = vadd.f32 0.0, %v9941
    %v9943 = vpop.f32.mrf.mxu0
    %9944 = vdwg.mxu0
    %v9945 = vadd.f32 %v9754, %v9939
    %v9946 = vadd.f32 %v9757, %v9942
    %v9947 = vld [vmem:[%s9387] sm:$0x3]
    %v9948 = vld [vmem:[%s9387 + $0x4] sm:$0x3]
    %v9949 = vld [vmem:[%s9387 + $0x8] sm:$0x3]
    %v9950 = vld [vmem:[%s9387 + $0xc] sm:$0x3]
    %s9951 = scalar_lea.vmem %s5, 192
    %v9952 = vld [vmem:[%s9951] sm:$0xf]
    %v9953 = vld [vmem:[%s9951 + $0x4] sm:$0xf]
    %v9954 = vld [vmem:[%s9951 + $0x8] sm:$0xf]
    %v9955 = vld [vmem:[%s9951 + $0xc] sm:$0xf]
    %v9956 = vld [vmem:[%s9951 + $0x10] sm:$0xf]
    %v9957 = vld [vmem:[%s9951 + $0x14] sm:$0xf]
    %v9958 = vld [vmem:[%s9951 + $0x18] sm:$0xf]
    %v9959 = vld [vmem:[%s9951 + $0x1c] sm:$0xf]
    %v9960 = vld [vmem:[%s9951 + $0x20] sm:$0xf]
    %v9961 = vld [vmem:[%s9951 + $0x24] sm:$0xf]
    %v9962 = vld [vmem:[%s9951 + $0x28] sm:$0xf]
    %v9963 = vld [vmem:[%s9951 + $0x2c] sm:$0xf]
    %v9964 = vld [vmem:[%s9951 + $0x30] sm:$0xf]
    %v9965 = vld [vmem:[%s9951 + $0x34] sm:$0xf]
    %v9966 = vld [vmem:[%s9951 + $0x38] sm:$0xf]
    %v9967 = vld [vmem:[%s9951 + $0x3c] sm:$0xf]
    %v9972 = vcombine.low %v9947, %v9948
    %v9973 = vcombine.low %v9949, %v9950
    %v9975 = vunpack.c.l.s4 1983009808
    %v9976 = vunpack.c.0.s8 %v9975
    %v9977 = vlaneseq
    %v9978 = vshrl.u32 %v9977, 7
    %v9979 = vsub.s32 %v9976, %v9978
    %v9980 = vrot.slane %v9972, %v9979
    %v9982 = vunpack.c.l.s4 1983009808
    %v9983 = vunpack.c.0.s8 %v9982
    %v9984 = vlaneseq
    %v9985 = vshrl.u32 %v9984, 7
    %v9986 = vsub.s32 %v9983, %v9985
    %v9987 = vrot.slane %v9973, %v9986
    %v9988 = vcombine.low %v9980, %v9987
    %v10006 = vunpack.c.l.b16 %v9952
    %v10007 = vunpack.c.l.b16 %v9953
    %v10008 = vunpack.c.l.b16 %v9954
    %v10009 = vunpack.c.l.b16 %v9955
    %v10010 = vunpack.c.l.b16 %v9956
    %v10011 = vunpack.c.l.b16 %v9957
    %v10012 = vunpack.c.l.b16 %v9958
    %v10013 = vunpack.c.l.b16 %v9959
    %v10014 = vunpack.c.l.b16 %v9960
    %v10015 = vunpack.c.l.b16 %v9961
    %v10016 = vunpack.c.l.b16 %v9962
    %v10017 = vunpack.c.l.b16 %v9963
    %v10018 = vunpack.c.l.b16 %v9964
    %v10019 = vunpack.c.l.b16 %v9965
    %v10020 = vunpack.c.l.b16 %v9966
    %v10021 = vunpack.c.l.b16 %v9967
    %v10022 = vpack.c.b16 %v10007, %v10006
    %v10023 = vpack.c.b16 %v10009, %v10008
    %v10024 = vpack.c.b16 %v10011, %v10010
    %v10025 = vpack.c.b16 %v10013, %v10012
    %v10026 = vpack.c.b16 %v10015, %v10014
    %v10027 = vpack.c.b16 %v10017, %v10016
    %v10028 = vpack.c.b16 %v10019, %v10018
    %v10029 = vpack.c.b16 %v10021, %v10020
    %10038 = vmatprep.subr.bf16.mxu0 0
    %10039 = vmatpush1.bf16.msra.mxu0 %v10029
    %10040 = vmatprep.subr.bf16.mxu0 0
    %10041 = vmatpush1.bf16.msra.mxu0 %v10028
    %10042 = vmatprep.subr.bf16.mxu0 0
    %10043 = vmatpush1.bf16.msra.mxu0 %v10027
    %10044 = vmatprep.subr.bf16.mxu0 0
    %10045 = vmatpush1.bf16.msra.mxu0 %v10026
    %10046 = vmatprep.subr.bf16.mxu0 0
    %10047 = vmatpush1.bf16.msra.mxu0 %v10025
    %10048 = vmatprep.subr.bf16.mxu0 0
    %10049 = vmatpush1.bf16.msra.mxu0 %v10024
    %10050 = vmatprep.subr.bf16.mxu0 0
    %10051 = vmatpush1.bf16.msra.mxu0 %v10023
    %10052 = vmatprep.subr.bf16.mxu0 0
    %10053 = vmatpush1.bf16.msra.mxu0 %v10022
    %10054 = vmatprep.subr.bf16.mxu0 0
    %10055 = vmatpush2.bf16.msra.mxu0 0
    %10056 = vmatprep.subr.bf16.mxu0 0
    %10057 = vmatpush2.bf16.msra.mxu0 0
    %10058 = vmatprep.subr.bf16.mxu0 0
    %10059 = vmatpush2.bf16.msra.mxu0 0
    %10060 = vmatprep.subr.bf16.mxu0 0
    %10061 = vmatpush2.bf16.msra.mxu0 0
    %10062 = vmatprep.subr.bf16.mxu0 0
    %10063 = vmatpush2.bf16.msra.mxu0 0
    %10064 = vmatprep.subr.bf16.mxu0 0
    %10065 = vmatpush2.bf16.msra.mxu0 0
    %10066 = vmatprep.subr.bf16.mxu0 0
    %10067 = vmatpush2.bf16.msra.mxu0 0
    %10068 = vmatprep.subr.bf16.mxu0 0
    %10069 = vmatpush2.bf16.msra.mxu0 0
    %10070 = vmatprep.mubr.bf16.mxu0 0
    %10071 = vmatmul.mubr.bf16.gmra.mxu0 %v9988
    %v10072 = vpop.f32.mrf.mxu0
    %v10073 = vadd.f32 0.0, %v10072
    %v10074 = vpop.f32.mrf.mxu0
    %v10075 = vpop.f32.mrf.mxu0
    %v10076 = vadd.f32 0.0, %v10075
    %v10077 = vpop.f32.mrf.mxu0
    %10078 = vdwg.mxu0
    %v10079 = vadd.f32 %v9945, %v10073
    %v10080 = vadd.f32 %v9946, %v10076
    %v10081 = vld [vmem:[%s9387] sm:$0x7]
    %v10082 = vld [vmem:[%s9387 + $0x4] sm:$0x7]
    %v10083 = vld [vmem:[%s9387 + $0x8] sm:$0x7]
    %v10084 = vld [vmem:[%s9387 + $0xc] sm:$0x7]
    %v10090 = vunpack.c.l.s4 1983009808
    %v10091 = vunpack.c.0.s8 %v10090
    %v10092 = vlaneseq
    %v10093 = vshrl.u32 %v10092, 7
    %v10094 = vsub.s32 %v10091, %v10093
    %v10095 = vrot.slane %v10081, %v10094
    %v10096 = vcombine.high %v10095, %v10095
    %v10098 = vunpack.c.l.s4 1983009808
    %v10099 = vunpack.c.0.s8 %v10098
    %v10100 = vlaneseq
    %v10101 = vshrl.u32 %v10100, 7
    %v10102 = vsub.s32 %v10099, %v10101
    %v10103 = vrot.slane %v10082, %v10102
    %v10104 = vcombine.high %v10103, %v10103
    %v10106 = vunpack.c.l.s4 1983009808
    %v10107 = vunpack.c.0.s8 %v10106
    %v10108 = vlaneseq
    %v10109 = vshrl.u32 %v10108, 7
    %v10110 = vsub.s32 %v10107, %v10109
    %v10111 = vrot.slane %v10083, %v10110
    %v10112 = vcombine.high %v10111, %v10111
    %v10114 = vunpack.c.l.s4 1983009808
    %v10115 = vunpack.c.0.s8 %v10114
    %v10116 = vlaneseq
    %v10117 = vshrl.u32 %v10116, 7
    %v10118 = vsub.s32 %v10115, %v10117
    %v10119 = vrot.slane %v10084, %v10118
    %v10120 = vcombine.high %v10119, %v10119
    %v10122 = vshrl.u32 %v10095, 16
    %v10124 = vrot.slane %v10122, 6
    %v10125 = vshll.u32 %v10095, 16
    %v10127 = vrot.slane %v10125, 7
    %v10128 = vor.u32 %v10124, %v10127
    %v10129 = vrot.slane %v10128, 2
    %v10131 = vshll.u32 %v10096, 16
    %v10133 = vrot.slane %v10131, 7
    %v10134 = vsel %vm9468, %v10129, %v10133
    %v10136 = vshrl.u32 %v10103, 16
    %v10138 = vrot.slane %v10136, 6
    %v10139 = vshll.u32 %v10103, 16
    %v10141 = vrot.slane %v10139, 7
    %v10142 = vor.u32 %v10138, %v10141
    %v10143 = vrot.slane %v10142, 2
    %v10145 = vshll.u32 %v10104, 16
    %v10147 = vrot.slane %v10145, 7
    %v10148 = vsel %vm9468, %v10143, %v10147
    %v10150 = vshrl.u32 %v10111, 16
    %v10152 = vrot.slane %v10150, 6
    %v10153 = vshll.u32 %v10111, 16
    %v10155 = vrot.slane %v10153, 7
    %v10156 = vor.u32 %v10152, %v10155
    %v10157 = vrot.slane %v10156, 2
    %v10159 = vshll.u32 %v10112, 16
    %v10161 = vrot.slane %v10159, 7
    %v10162 = vsel %vm9468, %v10157, %v10161
    %v10164 = vshrl.u32 %v10119, 16
    %v10166 = vrot.slane %v10164, 6
    %v10167 = vshll.u32 %v10119, 16
    %v10169 = vrot.slane %v10167, 7
    %v10170 = vor.u32 %v10166, %v10169
    %v10171 = vrot.slane %v10170, 2
    %v10173 = vshll.u32 %v10120, 16
    %v10175 = vrot.slane %v10173, 7
    %v10176 = vsel %vm9468, %v10171, %v10175
    %s10177 = scalar_lea.vmem %s5, 256
    %v10178 = vld [vmem:[%s10177] sm:$0xf]
    %v10179 = vld [vmem:[%s10177 + $0x4] sm:$0xf]
    %v10180 = vld [vmem:[%s10177 + $0x8] sm:$0xf]
    %v10181 = vld [vmem:[%s10177 + $0xc] sm:$0xf]
    %v10182 = vld [vmem:[%s10177 + $0x10] sm:$0xf]
    %v10183 = vld [vmem:[%s10177 + $0x14] sm:$0xf]
    %v10184 = vld [vmem:[%s10177 + $0x18] sm:$0xf]
    %v10185 = vld [vmem:[%s10177 + $0x1c] sm:$0xf]
    %v10186 = vld [vmem:[%s10177 + $0x20] sm:$0xf]
    %v10187 = vld [vmem:[%s10177 + $0x24] sm:$0xf]
    %v10188 = vld [vmem:[%s10177 + $0x28] sm:$0xf]
    %v10189 = vld [vmem:[%s10177 + $0x2c] sm:$0xf]
    %v10190 = vld [vmem:[%s10177 + $0x30] sm:$0xf]
    %v10191 = vld [vmem:[%s10177 + $0x34] sm:$0xf]
    %v10192 = vld [vmem:[%s10177 + $0x38] sm:$0xf]
    %v10193 = vld [vmem:[%s10177 + $0x3c] sm:$0xf]
    %v10194 = vcombine.low %v10134, %v10148
    %v10195 = vcombine.low %v10162, %v10176
    %v10197 = vunpack.c.l.s4 1983009808
    %v10198 = vunpack.c.0.s8 %v10197
    %v10199 = vlaneseq
    %v10200 = vshrl.u32 %v10199, 7
    %v10201 = vsub.s32 %v10198, %v10200
    %v10202 = vrot.slane %v10194, %v10201
    %v10204 = vunpack.c.l.s4 1983009808
    %v10205 = vunpack.c.0.s8 %v10204
    %v10206 = vlaneseq
    %v10207 = vshrl.u32 %v10206, 7
    %v10208 = vsub.s32 %v10205, %v10207
    %v10209 = vrot.slane %v10195, %v10208
    %v10210 = vcombine.low %v10202, %v10209
    %v10228 = vunpack.c.l.b16 %v10178
    %v10229 = vunpack.c.l.b16 %v10179
    %v10230 = vunpack.c.l.b16 %v10180
    %v10231 = vunpack.c.l.b16 %v10181
    %v10232 = vunpack.c.l.b16 %v10182
    %v10233 = vunpack.c.l.b16 %v10183
    %v10234 = vunpack.c.l.b16 %v10184
    %v10235 = vunpack.c.l.b16 %v10185
    %v10236 = vunpack.c.l.b16 %v10186
    %v10237 = vunpack.c.l.b16 %v10187
    %v10238 = vunpack.c.l.b16 %v10188
    %v10239 = vunpack.c.l.b16 %v10189
    %v10240 = vunpack.c.l.b16 %v10190
    %v10241 = vunpack.c.l.b16 %v10191
    %v10242 = vunpack.c.l.b16 %v10192
    %v10243 = vunpack.c.l.b16 %v10193
    %v10244 = vpack.c.b16 %v10229, %v10228
    %v10245 = vpack.c.b16 %v10231, %v10230
    %v10246 = vpack.c.b16 %v10233, %v10232
    %v10247 = vpack.c.b16 %v10235, %v10234
    %v10248 = vpack.c.b16 %v10237, %v10236
    %v10249 = vpack.c.b16 %v10239, %v10238
    %v10250 = vpack.c.b16 %v10241, %v10240
    %v10251 = vpack.c.b16 %v10243, %v10242
    %10260 = vmatprep.subr.bf16.mxu0 0
    %10261 = vmatpush1.bf16.msra.mxu0 %v10251
    %10262 = vmatprep.subr.bf16.mxu0 0
    %10263 = vmatpush1.bf16.msra.mxu0 %v10250
    %10264 = vmatprep.subr.bf16.mxu0 0
    %10265 = vmatpush1.bf16.msra.mxu0 %v10249
    %10266 = vmatprep.subr.bf16.mxu0 0
    %10267 = vmatpush1.bf16.msra.mxu0 %v10248
    %10268 = vmatprep.subr.bf16.mxu0 0
    %10269 = vmatpush1.bf16.msra.mxu0 %v10247
    %10270 = vmatprep.subr.bf16.mxu0 0
    %10271 = vmatpush1.bf16.msra.mxu0 %v10246
    %10272 = vmatprep.subr.bf16.mxu0 0
    %10273 = vmatpush1.bf16.msra.mxu0 %v10245
    %10274 = vmatprep.subr.bf16.mxu0 0
    %10275 = vmatpush1.bf16.msra.mxu0 %v10244
    %10276 = vmatprep.subr.bf16.mxu0 0
    %10277 = vmatpush2.bf16.msra.mxu0 0
    %10278 = vmatprep.subr.bf16.mxu0 0
    %10279 = vmatpush2.bf16.msra.mxu0 0
    %10280 = vmatprep.subr.bf16.mxu0 0
    %10281 = vmatpush2.bf16.msra.mxu0 0
    %10282 = vmatprep.subr.bf16.mxu0 0
    %10283 = vmatpush2.bf16.msra.mxu0 0
    %10284 = vmatprep.subr.bf16.mxu0 0
    %10285 = vmatpush2.bf16.msra.mxu0 0
    %10286 = vmatprep.subr.bf16.mxu0 0
    %10287 = vmatpush2.bf16.msra.mxu0 0
    %10288 = vmatprep.subr.bf16.mxu0 0
    %10289 = vmatpush2.bf16.msra.mxu0 0
    %10290 = vmatprep.subr.bf16.mxu0 0
    %10291 = vmatpush2.bf16.msra.mxu0 0
    %10292 = vmatprep.mubr.bf16.mxu0 0
    %10293 = vmatmul.mubr.bf16.gmra.mxu0 %v10210
    %v10294 = vpop.f32.mrf.mxu0
    %v10295 = vadd.f32 0.0, %v10294
    %v10296 = vpop.f32.mrf.mxu0
    %v10297 = vpop.f32.mrf.mxu0
    %v10298 = vadd.f32 0.0, %v10297
    %v10299 = vpop.f32.mrf.mxu0
    %10300 = vdwg.mxu0
    %v10301 = vadd.f32 %v10079, %v10295
    %v10302 = vadd.f32 %v10080, %v10298
    %v10303 = vld [vmem:[%s9387] sm:$0x6]
    %v10304 = vld [vmem:[%s9387 + $0x4] sm:$0x6]
    %v10305 = vld [vmem:[%s9387 + $0x8] sm:$0x6]
    %v10306 = vld [vmem:[%s9387 + $0xc] sm:$0x6]
    %v10312 = vunpack.c.l.s4 1983009808
    %v10313 = vunpack.c.0.s8 %v10312
    %v10314 = vlaneseq
    %v10315 = vshrl.u32 %v10314, 7
    %v10316 = vsub.s32 %v10313, %v10315
    %v10317 = vrot.slane %v10303, %v10316
    %v10318 = vcombine.high %v10317, %v10317
    %v10320 = vunpack.c.l.s4 1983009808
    %v10321 = vunpack.c.0.s8 %v10320
    %v10322 = vlaneseq
    %v10323 = vshrl.u32 %v10322, 7
    %v10324 = vsub.s32 %v10321, %v10323
    %v10325 = vrot.slane %v10304, %v10324
    %v10326 = vcombine.high %v10325, %v10325
    %v10328 = vunpack.c.l.s4 1983009808
    %v10329 = vunpack.c.0.s8 %v10328
    %v10330 = vlaneseq
    %v10331 = vshrl.u32 %v10330, 7
    %v10332 = vsub.s32 %v10329, %v10331
    %v10333 = vrot.slane %v10305, %v10332
    %v10334 = vcombine.high %v10333, %v10333
    %v10336 = vunpack.c.l.s4 1983009808
    %v10337 = vunpack.c.0.s8 %v10336
    %v10338 = vlaneseq
    %v10339 = vshrl.u32 %v10338, 7
    %v10340 = vsub.s32 %v10337, %v10339
    %v10341 = vrot.slane %v10306, %v10340
    %v10342 = vcombine.high %v10341, %v10341
    %v10343 = vrot.slane %v10317, 7
    %v10344 = vrot.slane %v10343, 2
    %v10345 = vrot.slane %v10318, 7
    %v10346 = vsel %vm9804, %v10344, %v10345
    %v10347 = vrot.slane %v10325, 7
    %v10348 = vrot.slane %v10347, 2
    %v10349 = vrot.slane %v10326, 7
    %v10350 = vsel %vm9804, %v10348, %v10349
    %v10351 = vrot.slane %v10333, 7
    %v10352 = vrot.slane %v10351, 2
    %v10353 = vrot.slane %v10334, 7
    %v10354 = vsel %vm9804, %v10352, %v10353
    %v10355 = vrot.slane %v10341, 7
    %v10356 = vrot.slane %v10355, 2
    %v10357 = vrot.slane %v10342, 7
    %v10358 = vsel %vm9804, %v10356, %v10357
    %s10359 = scalar_lea.vmem %s5, 320
    %v10360 = vld [vmem:[%s10359] sm:$0xf]
    %v10361 = vld [vmem:[%s10359 + $0x4] sm:$0xf]
    %v10362 = vld [vmem:[%s10359 + $0x8] sm:$0xf]
    %v10363 = vld [vmem:[%s10359 + $0xc] sm:$0xf]
    %v10364 = vld [vmem:[%s10359 + $0x10] sm:$0xf]
    %v10365 = vld [vmem:[%s10359 + $0x14] sm:$0xf]
    %v10366 = vld [vmem:[%s10359 + $0x18] sm:$0xf]
    %v10367 = vld [vmem:[%s10359 + $0x1c] sm:$0xf]
    %v10368 = vld [vmem:[%s10359 + $0x20] sm:$0xf]
    %v10369 = vld [vmem:[%s10359 + $0x24] sm:$0xf]
    %v10370 = vld [vmem:[%s10359 + $0x28] sm:$0xf]
    %v10371 = vld [vmem:[%s10359 + $0x2c] sm:$0xf]
    %v10372 = vld [vmem:[%s10359 + $0x30] sm:$0xf]
    %v10373 = vld [vmem:[%s10359 + $0x34] sm:$0xf]
    %v10374 = vld [vmem:[%s10359 + $0x38] sm:$0xf]
    %v10375 = vld [vmem:[%s10359 + $0x3c] sm:$0xf]
    %v10376 = vcombine.low %v10346, %v10350
    %v10377 = vcombine.low %v10354, %v10358
    %v10379 = vunpack.c.l.s4 1983009808
    %v10380 = vunpack.c.0.s8 %v10379
    %v10381 = vlaneseq
    %v10382 = vshrl.u32 %v10381, 7
    %v10383 = vsub.s32 %v10380, %v10382
    %v10384 = vrot.slane %v10376, %v10383
    %v10386 = vunpack.c.l.s4 1983009808
    %v10387 = vunpack.c.0.s8 %v10386
    %v10388 = vlaneseq
    %v10389 = vshrl.u32 %v10388, 7
    %v10390 = vsub.s32 %v10387, %v10389
    %v10391 = vrot.slane %v10377, %v10390
    %v10392 = vcombine.low %v10384, %v10391
    %v10410 = vunpack.c.l.b16 %v10360
    %v10411 = vunpack.c.l.b16 %v10361
    %v10412 = vunpack.c.l.b16 %v10362
    %v10413 = vunpack.c.l.b16 %v10363
    %v10414 = vunpack.c.l.b16 %v10364
    %v10415 = vunpack.c.l.b16 %v10365
    %v10416 = vunpack.c.l.b16 %v10366
    %v10417 = vunpack.c.l.b16 %v10367
    %v10418 = vunpack.c.l.b16 %v10368
    %v10419 = vunpack.c.l.b16 %v10369
    %v10420 = vunpack.c.l.b16 %v10370
    %v10421 = vunpack.c.l.b16 %v10371
    %v10422 = vunpack.c.l.b16 %v10372
    %v10423 = vunpack.c.l.b16 %v10373
    %v10424 = vunpack.c.l.b16 %v10374
    %v10425 = vunpack.c.l.b16 %v10375
    %v10426 = vpack.c.b16 %v10411, %v10410
    %v10427 = vpack.c.b16 %v10413, %v10412
    %v10428 = vpack.c.b16 %v10415, %v10414
    %v10429 = vpack.c.b16 %v10417, %v10416
    %v10430 = vpack.c.b16 %v10419, %v10418
    %v10431 = vpack.c.b16 %v10421, %v10420
    %v10432 = vpack.c.b16 %v10423, %v10422
    %v10433 = vpack.c.b16 %v10425, %v10424
    %10442 = vmatprep.subr.bf16.mxu0 0
    %10443 = vmatpush1.bf16.msra.mxu0 %v10433
    %10444 = vmatprep.subr.bf16.mxu0 0
    %10445 = vmatpush1.bf16.msra.mxu0 %v10432
    %10446 = vmatprep.subr.bf16.mxu0 0
    %10447 = vmatpush1.bf16.msra.mxu0 %v10431
    %10448 = vmatprep.subr.bf16.mxu0 0
    %10449 = vmatpush1.bf16.msra.mxu0 %v10430
    %10450 = vmatprep.subr.bf16.mxu0 0
    %10451 = vmatpush1.bf16.msra.mxu0 %v10429
    %10452 = vmatprep.subr.bf16.mxu0 0
    %10453 = vmatpush1.bf16.msra.mxu0 %v10428
    %10454 = vmatprep.subr.bf16.mxu0 0
    %10455 = vmatpush1.bf16.msra.mxu0 %v10427
    %10456 = vmatprep.subr.bf16.mxu0 0
    %10457 = vmatpush1.bf16.msra.mxu0 %v10426
    %10458 = vmatprep.subr.bf16.mxu0 0
    %10459 = vmatpush2.bf16.msra.mxu0 0
    %10460 = vmatprep.subr.bf16.mxu0 0
    %10461 = vmatpush2.bf16.msra.mxu0 0
    %10462 = vmatprep.subr.bf16.mxu0 0
    %10463 = vmatpush2.bf16.msra.mxu0 0
    %10464 = vmatprep.subr.bf16.mxu0 0
    %10465 = vmatpush2.bf16.msra.mxu0 0
    %10466 = vmatprep.subr.bf16.mxu0 0
    %10467 = vmatpush2.bf16.msra.mxu0 0
    %10468 = vmatprep.subr.bf16.mxu0 0
    %10469 = vmatpush2.bf16.msra.mxu0 0
    %10470 = vmatprep.subr.bf16.mxu0 0
    %10471 = vmatpush2.bf16.msra.mxu0 0
    %10472 = vmatprep.subr.bf16.mxu0 0
    %10473 = vmatpush2.bf16.msra.mxu0 0
    %10474 = vmatprep.mubr.bf16.mxu0 0
    %10475 = vmatmul.mubr.bf16.gmra.mxu0 %v10392
    %v10476 = vpop.f32.mrf.mxu0
    %v10477 = vadd.f32 0.0, %v10476
    %v10478 = vpop.f32.mrf.mxu0
    %v10479 = vpop.f32.mrf.mxu0
    %v10480 = vadd.f32 0.0, %v10479
    %v10481 = vpop.f32.mrf.mxu0
    %10482 = vdwg.mxu0
    %v10483 = vadd.f32 %v10301, %v10477
    %v10484 = vadd.f32 %v10302, %v10480
    %s10485 = scalar_lea.vmem [#allocation4], 8
    %v10486 = vld [vmem:[%s10485] sm:$0x3]
    %v10487 = vld [vmem:[%s10485 + $0x4] sm:$0x3]
    %v10488 = vld [vmem:[%s10485 + $0x8] sm:$0x3]
    %v10489 = vld [vmem:[%s10485 + $0xc] sm:$0x3]
    %s10490 = scalar_lea.vmem %s5, 384
    %v10491 = vld [vmem:[%s10490] sm:$0xf]
    %v10492 = vld [vmem:[%s10490 + $0x4] sm:$0xf]
    %v10493 = vld [vmem:[%s10490 + $0x8] sm:$0xf]
    %v10494 = vld [vmem:[%s10490 + $0xc] sm:$0xf]
    %v10495 = vld [vmem:[%s10490 + $0x10] sm:$0xf]
    %v10496 = vld [vmem:[%s10490 + $0x14] sm:$0xf]
    %v10497 = vld [vmem:[%s10490 + $0x18] sm:$0xf]
    %v10498 = vld [vmem:[%s10490 + $0x1c] sm:$0xf]
    %v10499 = vld [vmem:[%s10490 + $0x20] sm:$0xf]
    %v10500 = vld [vmem:[%s10490 + $0x24] sm:$0xf]
    %v10501 = vld [vmem:[%s10490 + $0x28] sm:$0xf]
    %v10502 = vld [vmem:[%s10490 + $0x2c] sm:$0xf]
    %v10503 = vld [vmem:[%s10490 + $0x30] sm:$0xf]
    %v10504 = vld [vmem:[%s10490 + $0x34] sm:$0xf]
    %v10505 = vld [vmem:[%s10490 + $0x38] sm:$0xf]
    %v10506 = vld [vmem:[%s10490 + $0x3c] sm:$0xf]
    %v10511 = vcombine.low %v10486, %v10487
    %v10512 = vcombine.low %v10488, %v10489
    %v10514 = vunpack.c.l.s4 1983009808
    %v10515 = vunpack.c.0.s8 %v10514
    %v10516 = vlaneseq
    %v10517 = vshrl.u32 %v10516, 7
    %v10518 = vsub.s32 %v10515, %v10517
    %v10519 = vrot.slane %v10511, %v10518
    %v10521 = vunpack.c.l.s4 1983009808
    %v10522 = vunpack.c.0.s8 %v10521
    %v10523 = vlaneseq
    %v10524 = vshrl.u32 %v10523, 7
    %v10525 = vsub.s32 %v10522, %v10524
    %v10526 = vrot.slane %v10512, %v10525
    %v10527 = vcombine.low %v10519, %v10526
    %v10545 = vunpack.c.l.b16 %v10491
    %v10546 = vunpack.c.l.b16 %v10492
    %v10547 = vunpack.c.l.b16 %v10493
    %v10548 = vunpack.c.l.b16 %v10494
    %v10549 = vunpack.c.l.b16 %v10495
    %v10550 = vunpack.c.l.b16 %v10496
    %v10551 = vunpack.c.l.b16 %v10497
    %v10552 = vunpack.c.l.b16 %v10498
    %v10553 = vunpack.c.l.b16 %v10499
    %v10554 = vunpack.c.l.b16 %v10500
    %v10555 = vunpack.c.l.b16 %v10501
    %v10556 = vunpack.c.l.b16 %v10502
    %v10557 = vunpack.c.l.b16 %v10503
    %v10558 = vunpack.c.l.b16 %v10504
    %v10559 = vunpack.c.l.b16 %v10505
    %v10560 = vunpack.c.l.b16 %v10506
    %v10561 = vpack.c.b16 %v10546, %v10545
    %v10562 = vpack.c.b16 %v10548, %v10547
    %v10563 = vpack.c.b16 %v10550, %v10549
    %v10564 = vpack.c.b16 %v10552, %v10551
    %v10565 = vpack.c.b16 %v10554, %v10553
    %v10566 = vpack.c.b16 %v10556, %v10555
    %v10567 = vpack.c.b16 %v10558, %v10557
    %v10568 = vpack.c.b16 %v10560, %v10559
    %10577 = vmatprep.subr.bf16.mxu0 0
    %10578 = vmatpush1.bf16.msra.mxu0 %v10568
    %10579 = vmatprep.subr.bf16.mxu0 0
    %10580 = vmatpush1.bf16.msra.mxu0 %v10567
    %10581 = vmatprep.subr.bf16.mxu0 0
    %10582 = vmatpush1.bf16.msra.mxu0 %v10566
    %10583 = vmatprep.subr.bf16.mxu0 0
    %10584 = vmatpush1.bf16.msra.mxu0 %v10565
    %10585 = vmatprep.subr.bf16.mxu0 0
    %10586 = vmatpush1.bf16.msra.mxu0 %v10564
    %10587 = vmatprep.subr.bf16.mxu0 0
    %10588 = vmatpush1.bf16.msra.mxu0 %v10563
    %10589 = vmatprep.subr.bf16.mxu0 0
    %10590 = vmatpush1.bf16.msra.mxu0 %v10562
    %10591 = vmatprep.subr.bf16.mxu0 0
    %10592 = vmatpush1.bf16.msra.mxu0 %v10561
    %10593 = vmatprep.subr.bf16.mxu0 0
    %10594 = vmatpush2.bf16.msra.mxu0 0
    %10595 = vmatprep.subr.bf16.mxu0 0
    %10596 = vmatpush2.bf16.msra.mxu0 0
    %10597 = vmatprep.subr.bf16.mxu0 0
    %10598 = vmatpush2.bf16.msra.mxu0 0
    %10599 = vmatprep.subr.bf16.mxu0 0
    %10600 = vmatpush2.bf16.msra.mxu0 0
    %10601 = vmatprep.subr.bf16.mxu0 0
    %10602 = vmatpush2.bf16.msra.mxu0 0
    %10603 = vmatprep.subr.bf16.mxu0 0
    %10604 = vmatpush2.bf16.msra.mxu0 0
    %10605 = vmatprep.subr.bf16.mxu0 0
    %10606 = vmatpush2.bf16.msra.mxu0 0
    %10607 = vmatprep.subr.bf16.mxu0 0
    %10608 = vmatpush2.bf16.msra.mxu0 0
    %10609 = vmatprep.mubr.bf16.mxu0 0
    %10610 = vmatmul.mubr.bf16.gmra.mxu0 %v10527
    %v10611 = vpop.f32.mrf.mxu0
    %v10612 = vadd.f32 0.0, %v10611
    %v10613 = vpop.f32.mrf.mxu0
    %v10614 = vpop.f32.mrf.mxu0
    %v10615 = vadd.f32 0.0, %v10614
    %v10616 = vpop.f32.mrf.mxu0
    %10617 = vdwg.mxu0
    %v10618 = vadd.f32 %v10483, %v10612
    %v10619 = vadd.f32 %v10484, %v10615
    %v10620 = vld [vmem:[%s10485] sm:$0x7]
    %v10621 = vld [vmem:[%s10485 + $0x4] sm:$0x7]
    %v10622 = vld [vmem:[%s10485 + $0x8] sm:$0x7]
    %v10623 = vld [vmem:[%s10485 + $0xc] sm:$0x7]
    %v10629 = vunpack.c.l.s4 1983009808
    %v10630 = vunpack.c.0.s8 %v10629
    %v10631 = vlaneseq
    %v10632 = vshrl.u32 %v10631, 7
    %v10633 = vsub.s32 %v10630, %v10632
    %v10634 = vrot.slane %v10620, %v10633
    %v10635 = vcombine.high %v10634, %v10634
    %v10637 = vunpack.c.l.s4 1983009808
    %v10638 = vunpack.c.0.s8 %v10637
    %v10639 = vlaneseq
    %v10640 = vshrl.u32 %v10639, 7
    %v10641 = vsub.s32 %v10638, %v10640
    %v10642 = vrot.slane %v10621, %v10641
    %v10643 = vcombine.high %v10642, %v10642
    %v10645 = vunpack.c.l.s4 1983009808
    %v10646 = vunpack.c.0.s8 %v10645
    %v10647 = vlaneseq
    %v10648 = vshrl.u32 %v10647, 7
    %v10649 = vsub.s32 %v10646, %v10648
    %v10650 = vrot.slane %v10622, %v10649
    %v10651 = vcombine.high %v10650, %v10650
    %v10653 = vunpack.c.l.s4 1983009808
    %v10654 = vunpack.c.0.s8 %v10653
    %v10655 = vlaneseq
    %v10656 = vshrl.u32 %v10655, 7
    %v10657 = vsub.s32 %v10654, %v10656
    %v10658 = vrot.slane %v10623, %v10657
    %v10659 = vcombine.high %v10658, %v10658
    %v10661 = vshrl.u32 %v10634, 16
    %v10663 = vrot.slane %v10661, 6
    %v10664 = vshll.u32 %v10634, 16
    %v10666 = vrot.slane %v10664, 7
    %v10667 = vor.u32 %v10663, %v10666
    %v10668 = vrot.slane %v10667, 2
    %v10670 = vshll.u32 %v10635, 16
    %v10672 = vrot.slane %v10670, 7
    %v10673 = vsel %vm9468, %v10668, %v10672
    %v10675 = vshrl.u32 %v10642, 16
    %v10677 = vrot.slane %v10675, 6
    %v10678 = vshll.u32 %v10642, 16
    %v10680 = vrot.slane %v10678, 7
    %v10681 = vor.u32 %v10677, %v10680
    %v10682 = vrot.slane %v10681, 2
    %v10684 = vshll.u32 %v10643, 16
    %v10686 = vrot.slane %v10684, 7
    %v10687 = vsel %vm9468, %v10682, %v10686
    %v10689 = vshrl.u32 %v10650, 16
    %v10691 = vrot.slane %v10689, 6
    %v10692 = vshll.u32 %v10650, 16
    %v10694 = vrot.slane %v10692, 7
    %v10695 = vor.u32 %v10691, %v10694
    %v10696 = vrot.slane %v10695, 2
    %v10698 = vshll.u32 %v10651, 16
    %v10700 = vrot.slane %v10698, 7
    %v10701 = vsel %vm9468, %v10696, %v10700
    %v10703 = vshrl.u32 %v10658, 16
    %v10705 = vrot.slane %v10703, 6
    %v10706 = vshll.u32 %v10658, 16
    %v10708 = vrot.slane %v10706, 7
    %v10709 = vor.u32 %v10705, %v10708
    %v10710 = vrot.slane %v10709, 2
    %v10712 = vshll.u32 %v10659, 16
    %v10714 = vrot.slane %v10712, 7
    %v10715 = vsel %vm9468, %v10710, %v10714
    %s10716 = scalar_lea.vmem %s5, 448
    %v10717 = vld [vmem:[%s10716] sm:$0xf]
    %v10718 = vld [vmem:[%s10716 + $0x4] sm:$0xf]
    %v10719 = vld [vmem:[%s10716 + $0x8] sm:$0xf]
    %v10720 = vld [vmem:[%s10716 + $0xc] sm:$0xf]
    %v10721 = vld [vmem:[%s10716 + $0x10] sm:$0xf]
    %v10722 = vld [vmem:[%s10716 + $0x14] sm:$0xf]
    %v10723 = vld [vmem:[%s10716 + $0x18] sm:$0xf]
    %v10724 = vld [vmem:[%s10716 + $0x1c] sm:$0xf]
    %v10725 = vld [vmem:[%s10716 + $0x20] sm:$0xf]
    %v10726 = vld [vmem:[%s10716 + $0x24] sm:$0xf]
    %v10727 = vld [vmem:[%s10716 + $0x28] sm:$0xf]
    %v10728 = vld [vmem:[%s10716 + $0x2c] sm:$0xf]
    %v10729 = vld [vmem:[%s10716 + $0x30] sm:$0xf]
    %v10730 = vld [vmem:[%s10716 + $0x34] sm:$0xf]
    %v10731 = vld [vmem:[%s10716 + $0x38] sm:$0xf]
    %v10732 = vld [vmem:[%s10716 + $0x3c] sm:$0xf]
    %v10733 = vcombine.low %v10673, %v10687
    %v10734 = vcombine.low %v10701, %v10715
    %v10736 = vunpack.c.l.s4 1983009808
    %v10737 = vunpack.c.0.s8 %v10736
    %v10738 = vlaneseq
    %v10739 = vshrl.u32 %v10738, 7
    %v10740 = vsub.s32 %v10737, %v10739
    %v10741 = vrot.slane %v10733, %v10740
    %v10743 = vunpack.c.l.s4 1983009808
    %v10744 = vunpack.c.0.s8 %v10743
    %v10745 = vlaneseq
    %v10746 = vshrl.u32 %v10745, 7
    %v10747 = vsub.s32 %v10744, %v10746
    %v10748 = vrot.slane %v10734, %v10747
    %v10749 = vcombine.low %v10741, %v10748
    %v10767 = vunpack.c.l.b16 %v10717
    %v10768 = vunpack.c.l.b16 %v10718
    %v10769 = vunpack.c.l.b16 %v10719
    %v10770 = vunpack.c.l.b16 %v10720
    %v10771 = vunpack.c.l.b16 %v10721
    %v10772 = vunpack.c.l.b16 %v10722
    %v10773 = vunpack.c.l.b16 %v10723
    %v10774 = vunpack.c.l.b16 %v10724
    %v10775 = vunpack.c.l.b16 %v10725
    %v10776 = vunpack.c.l.b16 %v10726
    %v10777 = vunpack.c.l.b16 %v10727
    %v10778 = vunpack.c.l.b16 %v10728
    %v10779 = vunpack.c.l.b16 %v10729
    %v10780 = vunpack.c.l.b16 %v10730
    %v10781 = vunpack.c.l.b16 %v10731
    %v10782 = vunpack.c.l.b16 %v10732
    %v10783 = vpack.c.b16 %v10768, %v10767
    %v10784 = vpack.c.b16 %v10770, %v10769
    %v10785 = vpack.c.b16 %v10772, %v10771
    %v10786 = vpack.c.b16 %v10774, %v10773
    %v10787 = vpack.c.b16 %v10776, %v10775
    %v10788 = vpack.c.b16 %v10778, %v10777
    %v10789 = vpack.c.b16 %v10780, %v10779
    %v10790 = vpack.c.b16 %v10782, %v10781
    %10799 = vmatprep.subr.bf16.mxu0 0
    %10800 = vmatpush1.bf16.msra.mxu0 %v10790
    %10801 = vmatprep.subr.bf16.mxu0 0
    %10802 = vmatpush1.bf16.msra.mxu0 %v10789
    %10803 = vmatprep.subr.bf16.mxu0 0
    %10804 = vmatpush1.bf16.msra.mxu0 %v10788
    %10805 = vmatprep.subr.bf16.mxu0 0
    %10806 = vmatpush1.bf16.msra.mxu0 %v10787
    %10807 = vmatprep.subr.bf16.mxu0 0
    %10808 = vmatpush1.bf16.msra.mxu0 %v10786
    %10809 = vmatprep.subr.bf16.mxu0 0
    %10810 = vmatpush1.bf16.msra.mxu0 %v10785
    %10811 = vmatprep.subr.bf16.mxu0 0
    %10812 = vmatpush1.bf16.msra.mxu0 %v10784
    %10813 = vmatprep.subr.bf16.mxu0 0
    %10814 = vmatpush1.bf16.msra.mxu0 %v10783
    %10815 = vmatprep.subr.bf16.mxu0 0
    %10816 = vmatpush2.bf16.msra.mxu0 0
    %10817 = vmatprep.subr.bf16.mxu0 0
    %10818 = vmatpush2.bf16.msra.mxu0 0
    %10819 = vmatprep.subr.bf16.mxu0 0
    %10820 = vmatpush2.bf16.msra.mxu0 0
    %10821 = vmatprep.subr.bf16.mxu0 0
    %10822 = vmatpush2.bf16.msra.mxu0 0
    %10823 = vmatprep.subr.bf16.mxu0 0
    %10824 = vmatpush2.bf16.msra.mxu0 0
    %10825 = vmatprep.subr.bf16.mxu0 0
    %10826 = vmatpush2.bf16.msra.mxu0 0
    %10827 = vmatprep.subr.bf16.mxu0 0
    %10828 = vmatpush2.bf16.msra.mxu0 0
    %10829 = vmatprep.subr.bf16.mxu0 0
    %10830 = vmatpush2.bf16.msra.mxu0 0
    %10831 = vmatprep.mubr.bf16.mxu0 0
    %10832 = vmatmul.mubr.bf16.gmra.mxu0 %v10749
    %v10833 = vpop.f32.mrf.mxu0
    %v10834 = vadd.f32 0.0, %v10833
    %v10835 = vpop.f32.mrf.mxu0
    %v10836 = vpop.f32.mrf.mxu0
    %v10837 = vadd.f32 0.0, %v10836
    %v10838 = vpop.f32.mrf.mxu0
    %10839 = vdwg.mxu0
    %v10840 = vadd.f32 %v10618, %v10834
    %v10841 = vadd.f32 %v10619, %v10837
    %v10842 = vld [vmem:[%s10485] sm:$0x6]
    %v10843 = vld [vmem:[%s10485 + $0x4] sm:$0x6]
    %v10844 = vld [vmem:[%s10485 + $0x8] sm:$0x6]
    %v10845 = vld [vmem:[%s10485 + $0xc] sm:$0x6]
    %v10851 = vunpack.c.l.s4 1983009808
    %v10852 = vunpack.c.0.s8 %v10851
    %v10853 = vlaneseq
    %v10854 = vshrl.u32 %v10853, 7
    %v10855 = vsub.s32 %v10852, %v10854
    %v10856 = vrot.slane %v10842, %v10855
    %v10857 = vcombine.high %v10856, %v10856
    %v10859 = vunpack.c.l.s4 1983009808
    %v10860 = vunpack.c.0.s8 %v10859
    %v10861 = vlaneseq
    %v10862 = vshrl.u32 %v10861, 7
    %v10863 = vsub.s32 %v10860, %v10862
    %v10864 = vrot.slane %v10843, %v10863
    %v10865 = vcombine.high %v10864, %v10864
    %v10867 = vunpack.c.l.s4 1983009808
    %v10868 = vunpack.c.0.s8 %v10867
    %v10869 = vlaneseq
    %v10870 = vshrl.u32 %v10869, 7
    %v10871 = vsub.s32 %v10868, %v10870
    %v10872 = vrot.slane %v10844, %v10871
    %v10873 = vcombine.high %v10872, %v10872
    %v10875 = vunpack.c.l.s4 1983009808
    %v10876 = vunpack.c.0.s8 %v10875
    %v10877 = vlaneseq
    %v10878 = vshrl.u32 %v10877, 7
    %v10879 = vsub.s32 %v10876, %v10878
    %v10880 = vrot.slane %v10845, %v10879
    %v10881 = vcombine.high %v10880, %v10880
    %v10882 = vrot.slane %v10856, 7
    %v10883 = vrot.slane %v10882, 2
    %v10884 = vrot.slane %v10857, 7
    %v10885 = vsel %vm9804, %v10883, %v10884
    %v10886 = vrot.slane %v10864, 7
    %v10887 = vrot.slane %v10886, 2
    %v10888 = vrot.slane %v10865, 7
    %v10889 = vsel %vm9804, %v10887, %v10888
    %v10890 = vrot.slane %v10872, 7
    %v10891 = vrot.slane %v10890, 2
    %v10892 = vrot.slane %v10873, 7
    %v10893 = vsel %vm9804, %v10891, %v10892
    %v10894 = vrot.slane %v10880, 7
    %v10895 = vrot.slane %v10894, 2
    %v10896 = vrot.slane %v10881, 7
    %v10897 = vsel %vm9804, %v10895, %v10896
    %s10898 = scalar_lea.vmem %s5, 512
    %v10899 = vld [vmem:[%s10898] sm:$0xf]
    %v10900 = vld [vmem:[%s10898 + $0x4] sm:$0xf]
    %v10901 = vld [vmem:[%s10898 + $0x8] sm:$0xf]
    %v10902 = vld [vmem:[%s10898 + $0xc] sm:$0xf]
    %v10903 = vld [vmem:[%s10898 + $0x10] sm:$0xf]
    %v10904 = vld [vmem:[%s10898 + $0x14] sm:$0xf]
    %v10905 = vld [vmem:[%s10898 + $0x18] sm:$0xf]
    %v10906 = vld [vmem:[%s10898 + $0x1c] sm:$0xf]
    %v10907 = vld [vmem:[%s10898 + $0x20] sm:$0xf]
    %v10908 = vld [vmem:[%s10898 + $0x24] sm:$0xf]
    %v10909 = vld [vmem:[%s10898 + $0x28] sm:$0xf]
    %v10910 = vld [vmem:[%s10898 + $0x2c] sm:$0xf]
    %v10911 = vld [vmem:[%s10898 + $0x30] sm:$0xf]
    %v10912 = vld [vmem:[%s10898 + $0x34] sm:$0xf]
    %v10913 = vld [vmem:[%s10898 + $0x38] sm:$0xf]
    %v10914 = vld [vmem:[%s10898 + $0x3c] sm:$0xf]
    %v10915 = vcombine.low %v10885, %v10889
    %v10916 = vcombine.low %v10893, %v10897
    %v10918 = vunpack.c.l.s4 1983009808
    %v10919 = vunpack.c.0.s8 %v10918
    %v10920 = vlaneseq
    %v10921 = vshrl.u32 %v10920, 7
    %v10922 = vsub.s32 %v10919, %v10921
    %v10923 = vrot.slane %v10915, %v10922
    %v10925 = vunpack.c.l.s4 1983009808
    %v10926 = vunpack.c.0.s8 %v10925
    %v10927 = vlaneseq
    %v10928 = vshrl.u32 %v10927, 7
    %v10929 = vsub.s32 %v10926, %v10928
    %v10930 = vrot.slane %v10916, %v10929
    %v10931 = vcombine.low %v10923, %v10930
    %v10949 = vunpack.c.l.b16 %v10899
    %v10950 = vunpack.c.l.b16 %v10900
    %v10951 = vunpack.c.l.b16 %v10901
    %v10952 = vunpack.c.l.b16 %v10902
    %v10953 = vunpack.c.l.b16 %v10903
    %v10954 = vunpack.c.l.b16 %v10904
    %v10955 = vunpack.c.l.b16 %v10905
    %v10956 = vunpack.c.l.b16 %v10906
    %v10957 = vunpack.c.l.b16 %v10907
    %v10958 = vunpack.c.l.b16 %v10908
    %v10959 = vunpack.c.l.b16 %v10909
    %v10960 = vunpack.c.l.b16 %v10910
    %v10961 = vunpack.c.l.b16 %v10911
    %v10962 = vunpack.c.l.b16 %v10912
    %v10963 = vunpack.c.l.b16 %v10913
    %v10964 = vunpack.c.l.b16 %v10914
    %v10965 = vpack.c.b16 %v10950, %v10949
    %v10966 = vpack.c.b16 %v10952, %v10951
    %v10967 = vpack.c.b16 %v10954, %v10953
    %v10968 = vpack.c.b16 %v10956, %v10955
    %v10969 = vpack.c.b16 %v10958, %v10957
    %v10970 = vpack.c.b16 %v10960, %v10959
    %v10971 = vpack.c.b16 %v10962, %v10961
    %v10972 = vpack.c.b16 %v10964, %v10963
    %10981 = vmatprep.subr.bf16.mxu0 0
    %10982 = vmatpush1.bf16.msra.mxu0 %v10972
    %10983 = vmatprep.subr.bf16.mxu0 0
    %10984 = vmatpush1.bf16.msra.mxu0 %v10971
    %10985 = vmatprep.subr.bf16.mxu0 0
    %10986 = vmatpush1.bf16.msra.mxu0 %v10970
    %10987 = vmatprep.subr.bf16.mxu0 0
    %10988 = vmatpush1.bf16.msra.mxu0 %v10969
    %10989 = vmatprep.subr.bf16.mxu0 0
    %10990 = vmatpush1.bf16.msra.mxu0 %v10968
    %10991 = vmatprep.subr.bf16.mxu0 0
    %10992 = vmatpush1.bf16.msra.mxu0 %v10967
    %10993 = vmatprep.subr.bf16.mxu0 0
    %10994 = vmatpush1.bf16.msra.mxu0 %v10966
    %10995 = vmatprep.subr.bf16.mxu0 0
    %10996 = vmatpush1.bf16.msra.mxu0 %v10965
    %10997 = vmatprep.subr.bf16.mxu0 0
    %10998 = vmatpush2.bf16.msra.mxu0 0
    %10999 = vmatprep.subr.bf16.mxu0 0
    %11000 = vmatpush2.bf16.msra.mxu0 0
    %11001 = vmatprep.subr.bf16.mxu0 0
    %11002 = vmatpush2.bf16.msra.mxu0 0
    %11003 = vmatprep.subr.bf16.mxu0 0
    %11004 = vmatpush2.bf16.msra.mxu0 0
    %11005 = vmatprep.subr.bf16.mxu0 0
    %11006 = vmatpush2.bf16.msra.mxu0 0
    %11007 = vmatprep.subr.bf16.mxu0 0
    %11008 = vmatpush2.bf16.msra.mxu0 0
    %11009 = vmatprep.subr.bf16.mxu0 0
    %11010 = vmatpush2.bf16.msra.mxu0 0
    %11011 = vmatprep.subr.bf16.mxu0 0
    %11012 = vmatpush2.bf16.msra.mxu0 0
    %11013 = vmatprep.mubr.bf16.mxu0 0
    %11014 = vmatmul.mubr.bf16.gmra.mxu0 %v10931
    %v11015 = vpop.f32.mrf.mxu0
    %v11016 = vadd.f32 0.0, %v11015
    %v11017 = vpop.f32.mrf.mxu0
    %v11018 = vpop.f32.mrf.mxu0
    %v11019 = vadd.f32 0.0, %v11018
    %v11020 = vpop.f32.mrf.mxu0
    %11021 = vdwg.mxu0
    %v11022 = vadd.f32 %v10840, %v11016
    %v11023 = vadd.f32 %v10841, %v11019
    %v11024 = vld [vmem:[%s6] sm:$0x1]
    %v11026 = vlaneseq
    %v11027 = vshrl.u32 %v11026, 7
    %v11028 = vsub.s32 0, %v11027
    %v11029 = vrot.slane %v11024, %v11028
    %v11031 = vadd.f32 %v11022, %v11029
    %v11032 = vadd.f32 %v11023, %v11029
    %v11033 = vmax.f32 %v11031, 0.0
    %v11034 = vmax.f32 %v11032, 0.0
    %v11037 = vcombine.high %v11033, %v11033
    %v11039 = vunpack.c.l.s4 1983009808
    %v11040 = vunpack.c.0.s8 %v11039
    %v11041 = vlaneseq
    %v11042 = vshrl.u32 %v11041, 7
    %v11043 = vsub.s32 %v11040, %v11042
    %v11044 = vrot.slane %v11033, %v11043
    %v11046 = vunpack.c.l.s4 1983009808
    %v11047 = vunpack.c.0.s8 %v11046
    %v11048 = vlaneseq
    %v11049 = vshrl.u32 %v11048, 7
    %v11050 = vsub.s32 %v11047, %v11049
    %v11051 = vrot.slane %v11037, %v11050
    %v11052 = vcombine.high %v11044, %v11044
    %v11053 = vcombine.high %v11051, %v11051
    %v11054 = vcombine.high %v11034, %v11034
    %v11056 = vunpack.c.l.s4 1983009808
    %v11057 = vunpack.c.0.s8 %v11056
    %v11058 = vlaneseq
    %v11059 = vshrl.u32 %v11058, 7
    %v11060 = vsub.s32 %v11057, %v11059
    %v11061 = vrot.slane %v11034, %v11060
    %v11063 = vunpack.c.l.s4 1983009808
    %v11064 = vunpack.c.0.s8 %v11063
    %v11065 = vlaneseq
    %v11066 = vshrl.u32 %v11065, 7
    %v11067 = vsub.s32 %v11064, %v11066
    %v11068 = vrot.slane %v11054, %v11067
    %v11069 = vcombine.high %v11061, %v11061
    %v11070 = vcombine.high %v11068, %v11068
    %v11079 = vrot.slane %v11044, 7
    %v11080 = vrot.slane %v11079, 2
    %v11081 = vrot.slane %v11052, 7
    %v11082 = vrot.slane %v11081, 2
    %v11083 = vrot.slane %v11051, 7
    %v11084 = vrot.slane %v11083, 2
    %v11085 = vrot.slane %v11053, 7
    %v11086 = vrot.slane %v11085, 2
    %v11087 = vrot.slane %v11061, 7
    %v11088 = vrot.slane %v11087, 2
    %v11089 = vrot.slane %v11069, 7
    %v11090 = vrot.slane %v11089, 2
    %v11091 = vrot.slane %v11068, 7
    %v11092 = vrot.slane %v11091, 2
    %v11093 = vrot.slane %v11070, 7
    %v11094 = vrot.slane %v11093, 2
    %v11103 = vmax.f32 %v11044, %v11080
    %v11104 = vmax.f32 %v11052, %v11082
    %v11105 = vmax.f32 %v11051, %v11084
    %v11106 = vmax.f32 %v11053, %v11086
    %v11107 = vmax.f32 %v11061, %v11088
    %v11108 = vmax.f32 %v11069, %v11090
    %v11109 = vmax.f32 %v11068, %v11092
    %v11110 = vmax.f32 %v11070, %v11094
    %v11111 = vmax.f32 %v11103, %v11105
    %v11112 = vmax.f32 %v11104, %v11106
    %v11113 = vmax.f32 %v11107, %v11109
    %v11114 = vmax.f32 %v11108, %v11110
    %v11115 = vmul.f32 %v11111, %v11111
    %v11116 = vmul.f32 %v11112, %v11112
    %v11117 = vmul.f32 %v11113, %v11113
    %v11118 = vmul.f32 %v11114, %v11114
    %v11123 = vlaneseq
    %v11124 = vshrl.u32 %v11123, 7
    %v11125 = vsub.s32 0, %v11124
    %v11126 = vrot.slane %v11115, %v11125
    %v11127 = vlaneseq
    %v11128 = vshrl.u32 %v11127, 7
    %v11129 = vsub.s32 0, %v11128
    %v11130 = vrot.slane %v11116, %v11129
    %v11131 = vlaneseq
    %v11132 = vshrl.u32 %v11131, 7
    %v11133 = vsub.s32 0, %v11132
    %v11134 = vrot.slane %v11117, %v11133
    %v11135 = vlaneseq
    %v11136 = vshrl.u32 %v11135, 7
    %v11137 = vsub.s32 0, %v11136
    %v11138 = vrot.slane %v11118, %v11137
    %vm11139 = vcmask 1041409
    %v11140 = vsel %vm11139, %v11130, %v11126
    %v11141 = vsel %vm6946, %v11134, %v11140
    %v11142 = vsel %vm6949, %v11138, %v11141
    %vm11144 = vcmask 19456
    %v11145 = vsel %vm11144, %v11142, 0.0
    %v11146 = vrot.slane %v11145, 4
    %v11147 = vadd.f32 %v11145, %v11146
    %v11148 = vrot.slane %v11147, 2
    %v11149 = vadd.f32 %v11147, %v11148
    %v11150 = vrot.slane %v11149, 1
    %v11151 = vadd.f32 %v11149, %v11150
    %v11152 = vmax.f32 %v11151, 1e-24
    %v11153 = vrsqrt.pop %v11152
    %v11154 = vlaneseq
    %v11155 = vshrl.u32 %v11154, 7
    %v11156 = vsub.s32 0, %v11155
    %v11157 = vrot.slane %v11153, %v11156
    %v11160 = vunpack.c.l.s4 1983009808
    %v11161 = vunpack.c.0.s8 %v11160
    %v11162 = vlaneseq
    %v11163 = vshrl.u32 %v11162, 7
    %v11164 = vsub.s32 %v11161, %v11163
    %v11165 = vrot.slane %v11157, %v11164
    %v11166 = vcombine.high %v11165, %v11165
    %v11167 = vrot.slane %v11165, 1
    %v11168 = vrot.slane %v11166, 1
    %v11173 = vmul.f32 %v11111, %v11165
    %v11174 = vmul.f32 %v11112, %v11167
    %v11175 = vmul.f32 %v11113, %v11166
    %v11176 = vmul.f32 %v11114, %v11168
    %v11181 = vlaneseq
    %v11182 = vshrl.u32 %v11181, 7
    %v11183 = vsub.s32 0, %v11182
    %v11184 = vrot.slane %v11173, %v11183
    %v11185 = vlaneseq
    %v11186 = vshrl.u32 %v11185, 7
    %v11187 = vsub.s32 0, %v11186
    %v11188 = vrot.slane %v11174, %v11187
    %v11189 = vlaneseq
    %v11190 = vshrl.u32 %v11189, 7
    %v11191 = vsub.s32 0, %v11190
    %v11192 = vrot.slane %v11175, %v11191
    %v11193 = vlaneseq
    %v11194 = vshrl.u32 %v11193, 7
    %v11195 = vsub.s32 0, %v11194
    %v11196 = vrot.slane %v11176, %v11195
    %v11197 = vsel %vm11139, %v11188, %v11184
    %v11198 = vsel %vm6946, %v11192, %v11197
    %v11199 = vsel %vm6949, %v11196, %v11198
    %v11201 = vsel %vm11144, %v11199, 0.0
    %11202 = vadd.xlane.f32.xlu0 %v11201
    %v11203 = vpop.xlane.xlu0 %11202
    %v11204 = vrot.slane %v11203, 4
    %v11205 = vadd.f32 %v11203, %v11204
    %v11206 = vrot.slane %v11205, 2
    %v11207 = vadd.f32 %v11205, %v11206
    %v11208 = vrot.slane %v11207, 1
    %v11209 = vadd.f32 %v11207, %v11208
    %s11210 = vtos %v11209
    %v11211 = vrcp.pop 12.0
    %s11212 = vtos %v11211
    %s11213 = smul.f32 %s11210, %s11212
    %v11214 = vld [vmem:[%s7] sm:$0x3]
    %v11215 = vstv %s11213
    %v11216 = vmul.f32 %v11215, %v11214
    %v11217 = vld [vmem:[%s8] sm:$0x3]
    %v11218 = vadd.f32 %v11216, %v11217
    %v11219 = vmax.f32 %v11218, 0.0
    %v11220 = vld [vmem:[%s9] sm:$0xff]
    %v11221 = vld [vmem:[%s9 + $0x8] sm:$0xff]
    %v11222 = vld [vmem:[%s9 + $0x10] sm:$0xff]
    %v11223 = vld [vmem:[%s9 + $0x18] sm:$0xff]
    %v11224 = vld [vmem:[%s9 + $0x20] sm:$0xff]
    %v11225 = vld [vmem:[%s9 + $0x28] sm:$0xff]
    %v11226 = vld [vmem:[%s9 + $0x30] sm:$0xff]
    %v11227 = vld [vmem:[%s9 + $0x38] sm:$0xff]
    %v11228 = vld [vmem:[%s9 + $0x40] sm:$0xff]
    %v11229 = vld [vmem:[%s9 + $0x48] sm:$0xff]
    %v11230 = vld [vmem:[%s9 + $0x50] sm:$0xff]
    %v11231 = vld [vmem:[%s9 + $0x58] sm:$0xff]
    %v11232 = vld [vmem:[%s9 + $0x60] sm:$0xff]
    %v11233 = vld [vmem:[%s9 + $0x68] sm:$0xff]
    %v11234 = vld [vmem:[%s9 + $0x70] sm:$0xff]
    %v11235 = vld [vmem:[%s9 + $0x78] sm:$0xff]
    %v11236 = vld [vmem:[%s9 + $0x80] sm:$0xff]
    %v11237 = vld [vmem:[%s9 + $0x88] sm:$0xff]
    %v11238 = vld [vmem:[%s9 + $0x90] sm:$0xff]
    %v11239 = vld [vmem:[%s9 + $0x98] sm:$0xff]
    %v11240 = vld [vmem:[%s9 + $0xa0] sm:$0xff]
    %v11241 = vld [vmem:[%s9 + $0xa8] sm:$0xff]
    %v11242 = vld [vmem:[%s9 + $0xb0] sm:$0xff]
    %v11243 = vld [vmem:[%s9 + $0xb8] sm:$0xff]
    %v11244 = vld [vmem:[%s9 + $0xc0] sm:$0xff]
    %v11245 = vld [vmem:[%s9 + $0xc8] sm:$0xff]
    %v11246 = vld [vmem:[%s9 + $0xd0] sm:$0xff]
    %v11247 = vld [vmem:[%s9 + $0xd8] sm:$0xff]
    %v11248 = vld [vmem:[%s9 + $0xe0] sm:$0xff]
    %v11249 = vld [vmem:[%s9 + $0xe8] sm:$0xff]
    %v11250 = vld [vmem:[%s9 + $0xf0] sm:$0xff]
    %v11251 = vld [vmem:[%s9 + $0xf8] sm:$0xff]
    %v11252 = vld [vmem:[%s10] sm:$0x1]
    %v11254 = vlaneseq
    %v11255 = vshrl.u32 %v11254, 7
    %v11256 = vsub.s32 0, %v11255
    %v11257 = vrot.slane %v11219, %v11256
    %v11258 = vlaneseq
    %v11259 = vshrl.u32 %v11258, 7
    %v11260 = vsub.s32 1, %v11259
    %v11261 = vrot.slane %v11219, %v11260
    %11264 = vmatprep.subr.mxu0 0.0
    %11265 = vmatpush1.msra.mxu0 %v11235
    %11266 = vmatprep.subr.mxu0 0.0
    %11267 = vmatpush1.msra.mxu0 %v11234
    %11268 = vmatprep.subr.mxu0 0.0
    %11269 = vmatpush1.msra.mxu0 %v11233
    %11270 = vmatprep.subr.mxu0 0.0
    %11271 = vmatpush1.msra.mxu0 %v11232
    %11272 = vmatprep.subr.mxu0 0.0
    %11273 = vmatpush1.msra.mxu0 %v11231
    %11274 = vmatprep.subr.mxu0 0.0
    %11275 = vmatpush1.msra.mxu0 %v11230
    %11276 = vmatprep.subr.mxu0 0.0
    %11277 = vmatpush1.msra.mxu0 %v11229
    %11278 = vmatprep.subr.mxu0 0.0
    %11279 = vmatpush1.msra.mxu0 %v11228
    %11280 = vmatprep.subr.mxu0 0.0
    %11281 = vmatpush1.msra.mxu0 %v11227
    %11282 = vmatprep.subr.mxu0 0.0
    %11283 = vmatpush1.msra.mxu0 %v11226
    %11284 = vmatprep.subr.mxu0 0.0
    %11285 = vmatpush1.msra.mxu0 %v11225
    %11286 = vmatprep.subr.mxu0 0.0
    %11287 = vmatpush1.msra.mxu0 %v11224
    %11288 = vmatprep.subr.mxu0 0.0
    %11289 = vmatpush1.msra.mxu0 %v11223
    %11290 = vmatprep.subr.mxu0 0.0
    %11291 = vmatpush1.msra.mxu0 %v11222
    %11292 = vmatprep.subr.mxu0 0.0
    %11293 = vmatpush1.msra.mxu0 %v11221
    %11294 = vmatprep.subr.mxu0 0.0
    %11295 = vmatpush1.msra.mxu0 %v11220
    %11296 = vmatprep.subr.mxu0 0.0
    %11297 = vmatpush2.msra.mxu0 %v11251
    %11298 = vmatprep.subr.mxu0 0.0
    %11299 = vmatpush2.msra.mxu0 %v11250
    %11300 = vmatprep.subr.mxu0 0.0
    %11301 = vmatpush2.msra.mxu0 %v11249
    %11302 = vmatprep.subr.mxu0 0.0
    %11303 = vmatpush2.msra.mxu0 %v11248
    %11304 = vmatprep.subr.mxu0 0.0
    %11305 = vmatpush2.msra.mxu0 %v11247
    %11306 = vmatprep.subr.mxu0 0.0
    %11307 = vmatpush2.msra.mxu0 %v11246
    %11308 = vmatprep.subr.mxu0 0.0
    %11309 = vmatpush2.msra.mxu0 %v11245
    %11310 = vmatprep.subr.mxu0 0.0
    %11311 = vmatpush2.msra.mxu0 %v11244
    %11312 = vmatprep.subr.mxu0 0.0
    %11313 = vmatpush2.msra.mxu0 %v11243
    %11314 = vmatprep.subr.mxu0 0.0
    %11315 = vmatpush2.msra.mxu0 %v11242
    %11316 = vmatprep.subr.mxu0 0.0
    %11317 = vmatpush2.msra.mxu0 %v11241
    %11318 = vmatprep.subr.mxu0 0.0
    %11319 = vmatpush2.msra.mxu0 %v11240
    %11320 = vmatprep.subr.mxu0 0.0
    %11321 = vmatpush2.msra.mxu0 %v11239
    %11322 = vmatprep.subr.mxu0 0.0
    %11323 = vmatpush2.msra.mxu0 %v11238
    %11324 = vmatprep.subr.mxu0 0.0
    %11325 = vmatpush2.msra.mxu0 %v11237
    %11326 = vmatprep.subr.mxu0 0.0
    %11327 = vmatpush2.msra.mxu0 %v11236
    %11328 = vmatprep.mubr.f32.mxu0 %v11261
    %11329 = vmatmul.mubr.f32.gmra.mxu0 %v11257
    %v11330 = vpop.f32.mrf.mxu0
    %v11331 = vadd.f32 %v11252, %v11330
    %v11332 = vpop.f32.mrf.mxu0
    %11333 = vdwg.mxu0
    %vm11334 = vcmask 24576
    %11335 = vst.msk [vmem:[#allocation8] sm:$0x1] %vm11334, %v11331
    // Predicated region
    $region50: #{custom_model_forward.1} parent=1 // pred_check
      _
    $region51: #{custom_model_forward.1} parent=1 // pred_check_branch
      %11337 = sbr.rel (0) target = $region53
    $region52: #{custom_model_forward.1} parent=1 // pred_region
      %s11339 = ssub.s32 16, 16
      %11340 = vsyncadd [#allocation7], %s11339
      %s11342 = sshll.u32 [#allocation8], 4
      %s11343 = int_to_ptr.vmem [resolvable:$true] %s11342
      %11345 = dma.vmem_to_hbm [thread:$0]  %s11343, 16, %s11, [#allocation7]
    $region53: #{custom_model_forward.1} parent=1 // pred_fallthru
      _
    // Predicated region
    $region54: #{custom_model_forward.1} parent=1 // pred_check
      _
    $region55: #{custom_model_forward.1} parent=1 // pred_check_branch
      %11347 = sbr.rel (0) target = $region57
    $region56: #{custom_model_forward.1} parent=1 // pred_region
      %11348 = dma.done [#allocation7], 16
    $region57: #{custom_model_forward.1} parent=1 // pred_fallthru
      _
    %11349 = vsyncpa [#allocation6], 1
    %11350 = vsyncpa [#allocation7], 1

</llo_original>
